<compile_context>
chip_gen: v7x
topology: tpu7x:2x2x1
jax: 0.10.0
libtpu: 0.0.40
codegen_flags: <defaults>
</compile_context>

<pallas_src>
import functools

import jax
import jax.numpy as jnp
from jax.experimental import pallas as pl
from jax.experimental.pallas import tpu as pltpu

_MXU_DTYPE = jnp.bfloat16     # MXU inputs; accumulation & gate math stay f32


# ----------------------------------------------------------------------------
# Fused bidirectional GRU layer + summary head.
#   x_ref    : (T, B, D)        f32
#   wih_ref  : (6, D, H)        bf16   index = dir*3 + gate, gates (r, z, n), pre-T
#   whh_ref  : (6, H, H)        bf16
#   bih_ref  : (6, 1, H)        f32
#   bhh_ref  : (6, 1, H)        f32
#   wlin_ref : (2, H, O)        bf16   Linear(2H->O) split into [fw; bw] halves
#   blin_ref : (1, O)           f32
#   out_ref  : (T, B, 2H)       f32    fwd in [:H], bwd in [H:]
#   summ_ref : (B, O)           f32    tanh(Linear(cat(h_fw_fin, h_bw_fin)))
# ----------------------------------------------------------------------------
def _bigru_layer_kernel(x_ref, wih_ref, whh_ref, bih_ref, bhh_ref,
                        wlin_ref, blin_ref,
                        out_ref, summ_ref,
                        gi_scr, fw_scr, bw_scr):
    T, B, D = x_ref.shape
    H = whh_ref.shape[-1]
    f32 = jnp.float32

    # --- Prologue: hoist the input projection out of the serial recurrence.
    #     One (T*B, D) @ (D, H) matmul per (direction, gate); b_ih folded in.
    x2 = x_ref[...].reshape(T * B, D).astype(_MXU_DTYPE)
    for i in range(6):                                   # i = dir*3 + gate
        gi = jnp.dot(x2, wih_ref[i], preferred_element_type=f32) + bih_ref[i]
        gi_scr[i] = gi.reshape(T, B, H)

    # --- Hoist recurrent weights/biases out of the loop (loaded once).
    whh = [whh_ref[i] for i in range(6)]                 # (H, H) bf16 each
    bhh = [bhh_ref[i] for i in range(6)]                 # (1, H) f32  each

    def gru_cell(h, gi_r, gi_z, gi_n, w_r, w_z, w_n, b_r, b_z, b_n):
        h16 = h.astype(_MXU_DTYPE)
        gh_r = jnp.dot(h16, w_r, preferred_element_type=f32) + b_r
        gh_z = jnp.dot(h16, w_z, preferred_element_type=f32) + b_z
        gh_n = jnp.dot(h16, w_n, preferred_element_type=f32) + b_n
        r = jax.nn.sigmoid(gi_r + gh_r)
        z = jax.nn.sigmoid(gi_z + gh_z)
        n = jnp.tanh(gi_n + r * gh_n)                    # b_hh_n inside gh_n (PyTorch)
        return (1.0 - z) * n + z * h

    def step(t, carry):
        h_fw, h_bw = carry
        tb = T - 1 - t
        # Two independent chains per step: each direction's MXU/EUP latency
        # hides under the other's.
        h_fw = gru_cell(h_fw, gi_scr[0, t], gi_scr[1, t], gi_scr[2, t],
                        whh[0], whh[1], whh[2], bhh[0], bhh[1], bhh[2])
        h_bw = gru_cell(h_bw, gi_scr[3, tb], gi_scr[4, tb], gi_scr[5, tb],
                        whh[3], whh[4], whh[5], bhh[3], bhh[4], bhh[5])
        fw_scr[t] = h_fw
        bw_scr[tb] = h_bw
        return h_fw, h_bw

    h0 = jnp.zeros((B, H), f32)                          # PyTorch default h0 = 0
    h_fw_fin, h_bw_fin = jax.lax.fori_loop(0, T, step, (h0, h0),
                                           unroll=(T <= 16))

    # --- Epilogue: one lane-dense writeback + fused summary Linear + tanh.
    out_ref[...] = jnp.concatenate([fw_scr[...], bw_scr[...]], axis=-1)
    s = (jnp.dot(h_fw_fin.astype(_MXU_DTYPE), wlin_ref[0], preferred_element_type=f32)
         + jnp.dot(h_bw_fin.astype(_MXU_DTYPE), wlin_ref[1], preferred_element_type=f32)
         + blin_ref[...])
    summ_ref[...] = jnp.tanh(s)


def bigru_layer(x, w_ih, w_hh, b_ih, b_hh, w_lin, b_lin):
    """One bidirectional GRU layer + summary head as a single pallas_call."""
    T, B, D = x.shape
    H = w_hh.shape[-1]
    O = w_lin.shape[-1]
    return pl.pallas_call(
        _bigru_layer_kernel,
        out_shape=(jax.ShapeDtypeStruct((T, B, 2 * H), jnp.float32),
                   jax.ShapeDtypeStruct((B, O), jnp.float32)),
        grid_spec=pltpu.PrefetchScalarGridSpec(
            num_scalar_prefetch=0,
            grid=(1,),
            in_specs=[
                pl.BlockSpec((T, B, D), lambda i: (0, 0, 0)),
                pl.BlockSpec((6, D, H), lambda i: (0, 0, 0)),
                pl.BlockSpec((6, H, H), lambda i: (0, 0, 0)),
                pl.BlockSpec((6, 1, H), lambda i: (0, 0, 0)),
                pl.BlockSpec((6, 1, H), lambda i: (0, 0, 0)),
                pl.BlockSpec((2, H, O), lambda i: (0, 0, 0)),
                pl.BlockSpec((1, O), lambda i: (0, 0)),
            ],
            out_specs=[
                pl.BlockSpec((T, B, 2 * H), lambda i: (0, 0, 0)),
                pl.BlockSpec((B, O), lambda i: (0, 0)),
            ],
            scratch_shapes=[
                pltpu.VMEM((6, T, B, H), jnp.float32),   # hoisted gi, per (dir, gate)
                pltpu.VMEM((T, B, H), jnp.float32),      # forward outputs
                pltpu.VMEM((T, B, H), jnp.float32),      # backward outputs
            ],
        ),
        compiler_params=pltpu.CompilerParams(
            dimension_semantics=("arbitrary",)),
    )(x, w_ih, w_hh, b_ih, b_hh, w_lin, b_lin)


# ----------------------------------------------------------------------------
# Parameter construction (PyTorch-equivalent init ranges) and full forward.
# Layout mapping from nn.GRU:
#   w_ih[dir*3+g] = weight_ih_l{L}{_reverse if dir}[g*H:(g+1)*H, :].T   (d_in, H)
#   w_hh[dir*3+g] = weight_hh_...[g*H:(g+1)*H, :].T                     (H, H)
#   w_lin[0] = Linear.weight[:, :H].T ; w_lin[1] = Linear.weight[:, H:].T
# ----------------------------------------------------------------------------
def init_encoder_params(key, input_dim, enc_hid_dim, dec_hid_dim, n_layers):
    H = enc_hid_dim
    k = H ** -0.5
    params = {"gru": []}
    for layer in range(n_layers):
        d_in = input_dim if layer == 0 else 2 * H
        key, k1, k2, k3, k4 = jax.random.split(key, 5)
        params["gru"].append({
            "w_ih": jax.random.uniform(k1, (6, d_in, H), jnp.float32, -k, k
                                       ).astype(_MXU_DTYPE),
            "w_hh": jax.random.uniform(k2, (6, H, H), jnp.float32, -k, k
                                       ).astype(_MXU_DTYPE),
            "b_ih": jax.random.uniform(k3, (6, 1, H), jnp.float32, -k, k),
            "b_hh": jax.random.uniform(k4, (6, 1, H), jnp.float32, -k, k),
        })
    key, k1, k2 = jax.random.split(key, 3)
    kl = (2 * H) ** -0.5
    params["linear"] = {
        "w": jax.random.uniform(k1, (2, H, dec_hid_dim), jnp.float32, -kl, kl
                                ).astype(_MXU_DTYPE),
        "b": jax.random.uniform(k2, (1, dec_hid_dim), jnp.float32, -kl, kl),
    }
    return params


@functools.partial(jax.jit, static_argnames=("n_layers",))
def encoder_forward(params, src, *, n_layers):
    """src: (T, B, input_dim) -> (outputs (T, B, 2H), summary (B, dec_hid_dim))."""
    x = src
    summary = None
    for layer in range(n_layers):
        p = params["gru"][layer]
        # Only the last layer's summary matters (hidden[-2]/hidden[-1] are the
        # last layer's final fwd/bwd states); the per-layer summary dot is tiny.
        x, summary = bigru_layer(x, p["w_ih"], p["w_hh"], p["b_ih"], p["b_hh"],
                                 params["linear"]["w"], params["linear"]["b"])
    return x, summary


if __name__ == "__main__":
    # Small, module-consistent shapes.
    T, B = 8, 4
    input_dim, emb_dim, enc_hid_dim, dec_hid_dim, n_layers, dropout = 8, 16, 32, 32, 2, 0.1
    # emb_dim / dropout are unused by Encoder.forward (matching the PyTorch module).

    key = jax.random.PRNGKey(0)
    k_param, k_src = jax.random.split(key)
    params = init_encoder_params(k_param, input_dim, enc_hid_dim, dec_hid_dim, n_layers)
    src = jax.random.normal(k_src, (T, B, input_dim), jnp.float32)

    outputs, summary = encoder_forward(params, src, n_layers=n_layers)
    jax.block_until_ready((outputs, summary))

    assert outputs.shape == (T, B, 2 * enc_hid_dim)
    assert summary.shape == (B, dec_hid_dim)
    assert bool(jnp.all(jnp.isfinite(outputs))) and bool(jnp.all(jnp.isfinite(summary)))
    print("KERNEL_OK")
</pallas_src>

<mosaic_0001>
module attributes {stable_mosaic.version = 11 : i64} {
  func.func @_bigru_layer_kernel(%arg0: i32, %arg1: memref<8x4x64xf32, #tpu.memory_space<vmem>>, %arg2: memref<6x64x32xbf16, #tpu.memory_space<vmem>>, %arg3: memref<6x32x32xbf16, #tpu.memory_space<vmem>>, %arg4: memref<6x1x32xf32, #tpu.memory_space<vmem>>, %arg5: memref<6x1x32xf32, #tpu.memory_space<vmem>>, %arg6: memref<2x32x32xbf16, #tpu.memory_space<vmem>>, %arg7: memref<1x32xf32, #tpu.memory_space<vmem>>, %arg8: memref<8x4x64xf32, #tpu.memory_space<vmem>>, %arg9: memref<4x32xf32, #tpu.memory_space<vmem>>, %arg10: memref<6x8x4x32xf32, #tpu.memory_space<vmem>>, %arg11: memref<8x4x32xf32, #tpu.memory_space<vmem>>, %arg12: memref<8x4x32xf32, #tpu.memory_space<vmem>>) attributes {dimension_semantics = [#tpu.dimension_semantics<arbitrary>], iteration_bounds = array<i64: 1>, scalar_prefetch = 0 : i64, scratch_operands = 3 : i64, tpu.core_type = #tpu.core_type<tc>, window_params = [{pipeline_mode = #tpu.pipeline_mode<synchronous>, transform_indices = @transform_0, window_bounds = array<i64: 8, 4, 64>}, {pipeline_mode = #tpu.pipeline_mode<synchronous>, transform_indices = @transform_1, window_bounds = array<i64: 6, 64, 32>}, {pipeline_mode = #tpu.pipeline_mode<synchronous>, transform_indices = @transform_2, window_bounds = array<i64: 6, 32, 32>}, {pipeline_mode = #tpu.pipeline_mode<synchronous>, transform_indices = @transform_3, window_bounds = array<i64: 6, 1, 32>}, {pipeline_mode = #tpu.pipeline_mode<synchronous>, transform_indices = @transform_4, window_bounds = array<i64: 6, 1, 32>}, {pipeline_mode = #tpu.pipeline_mode<synchronous>, transform_indices = @transform_5, window_bounds = array<i64: 2, 32, 32>}, {pipeline_mode = #tpu.pipeline_mode<synchronous>, transform_indices = @transform_6, window_bounds = array<i64: 1, 32>}, {pipeline_mode = #tpu.pipeline_mode<synchronous>, transform_indices = @transform_7, window_bounds = array<i64: 8, 4, 64>}, {pipeline_mode = #tpu.pipeline_mode<synchronous>, transform_indices = @transform_8, window_bounds = array<i64: 4, 32>}]} {
    %c0 = arith.constant 0 : index
    %c0_0 = arith.constant 0 : index
    %c0_1 = arith.constant 0 : index
    %0 = vector.load %arg1[%c0, %c0_0, %c0_1] : memref<8x4x64xf32, #tpu.memory_space<vmem>>, vector<8x4x64xf32>
    %1 = vector.shape_cast %0 : vector<8x4x64xf32> to vector<32x64xf32>
    %2 = arith.truncf %1 : vector<32x64xf32> to vector<32x64xbf16>
    %c0_2 = arith.constant 0 : index
    %c0_3 = arith.constant 0 : index
    %c0_4 = arith.constant 0 : index
    %3 = vector.load %arg2[%c0_2, %c0_3, %c0_4] : memref<6x64x32xbf16, #tpu.memory_space<vmem>>, vector<1x64x32xbf16>
    %4 = vector.shape_cast %3 : vector<1x64x32xbf16> to vector<64x32xbf16>
    %cst = arith.constant dense<0.000000e+00> : vector<32x32xf32>
    %5 = tpu.matmul %2, %4, %cst {dimension_numbers = #tpu.dot_dimension_numbers<[1], [0], [0], [1], [0, 0, 1, 1], [], []>} : vector<32x64xbf16>, vector<64x32xbf16>, vector<32x32xf32> -> vector<32x32xf32>
    %c0_5 = arith.constant 0 : index
    %c0_6 = arith.constant 0 : index
    %c0_7 = arith.constant 0 : index
    %6 = vector.load %arg4[%c0_5, %c0_6, %c0_7] : memref<6x1x32xf32, #tpu.memory_space<vmem>>, vector<1x1x32xf32>
    %7 = vector.shape_cast %6 : vector<1x1x32xf32> to vector<1x32xf32>
    %8 = vector.broadcast %7 : vector<1x32xf32> to vector<32x32xf32>
    %9 = arith.addf %5, %8 : vector<32x32xf32>
    %10 = vector.shape_cast %9 : vector<32x32xf32> to vector<8x4x32xf32>
    %c0_8 = arith.constant 0 : index
    %c0_9 = arith.constant 0 : index
    %c0_10 = arith.constant 0 : index
    %c0_11 = arith.constant 0 : index
    %11 = vector.load %arg10[%c0_8, %c0_9, %c0_10, %c0_11] : memref<6x8x4x32xf32, #tpu.memory_space<vmem>>, vector<1x8x4x32xf32>
    %12 = vector.shape_cast %11 : vector<1x8x4x32xf32> to vector<8x4x32xf32>
    %13 = vector.shape_cast %10 : vector<8x4x32xf32> to vector<1x8x4x32xf32>
    tpu.vector_store %arg10[%c0_8, %c0_9, %c0_10, %c0_11], %13 {strides = array<i32>} : memref<6x8x4x32xf32, #tpu.memory_space<vmem>>, vector<1x8x4x32xf32>,
    %c1 = arith.constant 1 : index
    %c0_12 = arith.constant 0 : index
    %c0_13 = arith.constant 0 : index
    %14 = vector.load %arg2[%c1, %c0_12, %c0_13] : memref<6x64x32xbf16, #tpu.memory_space<vmem>>, vector<1x64x32xbf16>
    %15 = vector.shape_cast %14 : vector<1x64x32xbf16> to vector<64x32xbf16>
    %cst_14 = arith.constant dense<0.000000e+00> : vector<32x32xf32>
    %16 = tpu.matmul %2, %15, %cst_14 {dimension_numbers = #tpu.dot_dimension_numbers<[1], [0], [0], [1], [0, 0, 1, 1], [], []>} : vector<32x64xbf16>, vector<64x32xbf16>, vector<32x32xf32> -> vector<32x32xf32>
    %c1_15 = arith.constant 1 : index
    %c0_16 = arith.constant 0 : index
    %c0_17 = arith.constant 0 : index
    %17 = vector.load %arg4[%c1_15, %c0_16, %c0_17] : memref<6x1x32xf32, #tpu.memory_space<vmem>>, vector<1x1x32xf32>
    %18 = vector.shape_cast %17 : vector<1x1x32xf32> to vector<1x32xf32>
    %19 = vector.broadcast %18 : vector<1x32xf32> to vector<32x32xf32>
    %20 = arith.addf %16, %19 : vector<32x32xf32>
    %21 = vector.shape_cast %20 : vector<32x32xf32> to vector<8x4x32xf32>
    %c1_18 = arith.constant 1 : index
    %c0_19 = arith.constant 0 : index
    %c0_20 = arith.constant 0 : index
    %c0_21 = arith.constant 0 : index
    %22 = vector.load %arg10[%c1_18, %c0_19, %c0_20, %c0_21] : memref<6x8x4x32xf32, #tpu.memory_space<vmem>>, vector<1x8x4x32xf32>
    %23 = vector.shape_cast %22 : vector<1x8x4x32xf32> to vector<8x4x32xf32>
    %24 = vector.shape_cast %21 : vector<8x4x32xf32> to vector<1x8x4x32xf32>
    tpu.vector_store %arg10[%c1_18, %c0_19, %c0_20, %c0_21], %24 {strides = array<i32>} : memref<6x8x4x32xf32, #tpu.memory_space<vmem>>, vector<1x8x4x32xf32>,
    %c2 = arith.constant 2 : index
    %c0_22 = arith.constant 0 : index
    %c0_23 = arith.constant 0 : index
    %25 = vector.load %arg2[%c2, %c0_22, %c0_23] : memref<6x64x32xbf16, #tpu.memory_space<vmem>>, vector<1x64x32xbf16>
    %26 = vector.shape_cast %25 : vector<1x64x32xbf16> to vector<64x32xbf16>
    %cst_24 = arith.constant dense<0.000000e+00> : vector<32x32xf32>
    %27 = tpu.matmul %2, %26, %cst_24 {dimension_numbers = #tpu.dot_dimension_numbers<[1], [0], [0], [1], [0, 0, 1, 1], [], []>} : vector<32x64xbf16>, vector<64x32xbf16>, vector<32x32xf32> -> vector<32x32xf32>
    %c2_25 = arith.constant 2 : index
    %c0_26 = arith.constant 0 : index
    %c0_27 = arith.constant 0 : index
    %28 = vector.load %arg4[%c2_25, %c0_26, %c0_27] : memref<6x1x32xf32, #tpu.memory_space<vmem>>, vector<1x1x32xf32>
    %29 = vector.shape_cast %28 : vector<1x1x32xf32> to vector<1x32xf32>
    %30 = vector.broadcast %29 : vector<1x32xf32> to vector<32x32xf32>
    %31 = arith.addf %27, %30 : vector<32x32xf32>
    %32 = vector.shape_cast %31 : vector<32x32xf32> to vector<8x4x32xf32>
    %c2_28 = arith.constant 2 : index
    %c0_29 = arith.constant 0 : index
    %c0_30 = arith.constant 0 : index
    %c0_31 = arith.constant 0 : index
    %33 = vector.load %arg10[%c2_28, %c0_29, %c0_30, %c0_31] : memref<6x8x4x32xf32, #tpu.memory_space<vmem>>, vector<1x8x4x32xf32>
    %34 = vector.shape_cast %33 : vector<1x8x4x32xf32> to vector<8x4x32xf32>
    %35 = vector.shape_cast %32 : vector<8x4x32xf32> to vector<1x8x4x32xf32>
    tpu.vector_store %arg10[%c2_28, %c0_29, %c0_30, %c0_31], %35 {strides = array<i32>} : memref<6x8x4x32xf32, #tpu.memory_space<vmem>>, vector<1x8x4x32xf32>,
    %c3 = arith.constant 3 : index
    %c0_32 = arith.constant 0 : index
    %c0_33 = arith.constant 0 : index
    %36 = vector.load %arg2[%c3, %c0_32, %c0_33] : memref<6x64x32xbf16, #tpu.memory_space<vmem>>, vector<1x64x32xbf16>
    %37 = vector.shape_cast %36 : vector<1x64x32xbf16> to vector<64x32xbf16>
    %cst_34 = arith.constant dense<0.000000e+00> : vector<32x32xf32>
    %38 = tpu.matmul %2, %37, %cst_34 {dimension_numbers = #tpu.dot_dimension_numbers<[1], [0], [0], [1], [0, 0, 1, 1], [], []>} : vector<32x64xbf16>, vector<64x32xbf16>, vector<32x32xf32> -> vector<32x32xf32>
    %c3_35 = arith.constant 3 : index
    %c0_36 = arith.constant 0 : index
    %c0_37 = arith.constant 0 : index
    %39 = vector.load %arg4[%c3_35, %c0_36, %c0_37] : memref<6x1x32xf32, #tpu.memory_space<vmem>>, vector<1x1x32xf32>
    %40 = vector.shape_cast %39 : vector<1x1x32xf32> to vector<1x32xf32>
    %41 = vector.broadcast %40 : vector<1x32xf32> to vector<32x32xf32>
    %42 = arith.addf %38, %41 : vector<32x32xf32>
    %43 = vector.shape_cast %42 : vector<32x32xf32> to vector<8x4x32xf32>
    %c3_38 = arith.constant 3 : index
    %c0_39 = arith.constant 0 : index
    %c0_40 = arith.constant 0 : index
    %c0_41 = arith.constant 0 : index
    %44 = vector.load %arg10[%c3_38, %c0_39, %c0_40, %c0_41] : memref<6x8x4x32xf32, #tpu.memory_space<vmem>>, vector<1x8x4x32xf32>
    %45 = vector.shape_cast %44 : vector<1x8x4x32xf32> to vector<8x4x32xf32>
    %46 = vector.shape_cast %43 : vector<8x4x32xf32> to vector<1x8x4x32xf32>
    tpu.vector_store %arg10[%c3_38, %c0_39, %c0_40, %c0_41], %46 {strides = array<i32>} : memref<6x8x4x32xf32, #tpu.memory_space<vmem>>, vector<1x8x4x32xf32>,
    %c4 = arith.constant 4 : index
    %c0_42 = arith.constant 0 : index
    %c0_43 = arith.constant 0 : index
    %47 = vector.load %arg2[%c4, %c0_42, %c0_43] : memref<6x64x32xbf16, #tpu.memory_space<vmem>>, vector<1x64x32xbf16>
    %48 = vector.shape_cast %47 : vector<1x64x32xbf16> to vector<64x32xbf16>
    %cst_44 = arith.constant dense<0.000000e+00> : vector<32x32xf32>
    %49 = tpu.matmul %2, %48, %cst_44 {dimension_numbers = #tpu.dot_dimension_numbers<[1], [0], [0], [1], [0, 0, 1, 1], [], []>} : vector<32x64xbf16>, vector<64x32xbf16>, vector<32x32xf32> -> vector<32x32xf32>
    %c4_45 = arith.constant 4 : index
    %c0_46 = arith.constant 0 : index
    %c0_47 = arith.constant 0 : index
    %50 = vector.load %arg4[%c4_45, %c0_46, %c0_47] : memref<6x1x32xf32, #tpu.memory_space<vmem>>, vector<1x1x32xf32>
    %51 = vector.shape_cast %50 : vector<1x1x32xf32> to vector<1x32xf32>
    %52 = vector.broadcast %51 : vector<1x32xf32> to vector<32x32xf32>
    %53 = arith.addf %49, %52 : vector<32x32xf32>
    %54 = vector.shape_cast %53 : vector<32x32xf32> to vector<8x4x32xf32>
    %c4_48 = arith.constant 4 : index
    %c0_49 = arith.constant 0 : index
    %c0_50 = arith.constant 0 : index
    %c0_51 = arith.constant 0 : index
    %55 = vector.load %arg10[%c4_48, %c0_49, %c0_50, %c0_51] : memref<6x8x4x32xf32, #tpu.memory_space<vmem>>, vector<1x8x4x32xf32>
    %56 = vector.shape_cast %55 : vector<1x8x4x32xf32> to vector<8x4x32xf32>
    %57 = vector.shape_cast %54 : vector<8x4x32xf32> to vector<1x8x4x32xf32>
    tpu.vector_store %arg10[%c4_48, %c0_49, %c0_50, %c0_51], %57 {strides = array<i32>} : memref<6x8x4x32xf32, #tpu.memory_space<vmem>>, vector<1x8x4x32xf32>,
    %c5 = arith.constant 5 : index
    %c0_52 = arith.constant 0 : index
    %c0_53 = arith.constant 0 : index
    %58 = vector.load %arg2[%c5, %c0_52, %c0_53] : memref<6x64x32xbf16, #tpu.memory_space<vmem>>, vector<1x64x32xbf16>
    %59 = vector.shape_cast %58 : vector<1x64x32xbf16> to vector<64x32xbf16>
    %cst_54 = arith.constant dense<0.000000e+00> : vector<32x32xf32>
    %60 = tpu.matmul %2, %59, %cst_54 {dimension_numbers = #tpu.dot_dimension_numbers<[1], [0], [0], [1], [0, 0, 1, 1], [], []>} : vector<32x64xbf16>, vector<64x32xbf16>, vector<32x32xf32> -> vector<32x32xf32>
    %c5_55 = arith.constant 5 : index
    %c0_56 = arith.constant 0 : index
    %c0_57 = arith.constant 0 : index
    %61 = vector.load %arg4[%c5_55, %c0_56, %c0_57] : memref<6x1x32xf32, #tpu.memory_space<vmem>>, vector<1x1x32xf32>
    %62 = vector.shape_cast %61 : vector<1x1x32xf32> to vector<1x32xf32>
    %63 = vector.broadcast %62 : vector<1x32xf32> to vector<32x32xf32>
    %64 = arith.addf %60, %63 : vector<32x32xf32>
    %65 = vector.shape_cast %64 : vector<32x32xf32> to vector<8x4x32xf32>
    %c5_58 = arith.constant 5 : index
    %c0_59 = arith.constant 0 : index
    %c0_60 = arith.constant 0 : index
    %c0_61 = arith.constant 0 : index
    %66 = vector.load %arg10[%c5_58, %c0_59, %c0_60, %c0_61] : memref<6x8x4x32xf32, #tpu.memory_space<vmem>>, vector<1x8x4x32xf32>
    %67 = vector.shape_cast %66 : vector<1x8x4x32xf32> to vector<8x4x32xf32>
    %68 = vector.shape_cast %65 : vector<8x4x32xf32> to vector<1x8x4x32xf32>
    tpu.vector_store %arg10[%c5_58, %c0_59, %c0_60, %c0_61], %68 {strides = array<i32>} : memref<6x8x4x32xf32, #tpu.memory_space<vmem>>, vector<1x8x4x32xf32>,
    %c0_62 = arith.constant 0 : index
    %c0_63 = arith.constant 0 : index
    %c0_64 = arith.constant 0 : index
    %69 = vector.load %arg3[%c0_62, %c0_63, %c0_64] : memref<6x32x32xbf16, #tpu.memory_space<vmem>>, vector<1x32x32xbf16>
    %70 = vector.shape_cast %69 : vector<1x32x32xbf16> to vector<32x32xbf16>
    %c1_65 = arith.constant 1 : index
    %c0_66 = arith.constant 0 : index
    %c0_67 = arith.constant 0 : index
    %71 = vector.load %arg3[%c1_65, %c0_66, %c0_67] : memref<6x32x32xbf16, #tpu.memory_space<vmem>>, vector<1x32x32xbf16>
    %72 = vector.shape_cast %71 : vector<1x32x32xbf16> to vector<32x32xbf16>
    %c2_68 = arith.constant 2 : index
    %c0_69 = arith.constant 0 : index
    %c0_70 = arith.constant 0 : index
    %73 = vector.load %arg3[%c2_68, %c0_69, %c0_70] : memref<6x32x32xbf16, #tpu.memory_space<vmem>>, vector<1x32x32xbf16>
    %74 = vector.shape_cast %73 : vector<1x32x32xbf16> to vector<32x32xbf16>
    %c3_71 = arith.constant 3 : index
    %c0_72 = arith.constant 0 : index
    %c0_73 = arith.constant 0 : index
    %75 = vector.load %arg3[%c3_71, %c0_72, %c0_73] : memref<6x32x32xbf16, #tpu.memory_space<vmem>>, vector<1x32x32xbf16>
    %76 = vector.shape_cast %75 : vector<1x32x32xbf16> to vector<32x32xbf16>
    %c4_74 = arith.constant 4 : index
    %c0_75 = arith.constant 0 : index
    %c0_76 = arith.constant 0 : index
    %77 = vector.load %arg3[%c4_74, %c0_75, %c0_76] : memref<6x32x32xbf16, #tpu.memory_space<vmem>>, vector<1x32x32xbf16>
    %78 = vector.shape_cast %77 : vector<1x32x32xbf16> to vector<32x32xbf16>
    %c5_77 = arith.constant 5 : index
    %c0_78 = arith.constant 0 : index
    %c0_79 = arith.constant 0 : index
    %79 = vector.load %arg3[%c5_77, %c0_78, %c0_79] : memref<6x32x32xbf16, #tpu.memory_space<vmem>>, vector<1x32x32xbf16>
    %80 = vector.shape_cast %79 : vector<1x32x32xbf16> to vector<32x32xbf16>
    %c0_80 = arith.constant 0 : index
    %c0_81 = arith.constant 0 : index
    %c0_82 = arith.constant 0 : index
    %81 = vector.load %arg5[%c0_80, %c0_81, %c0_82] : memref<6x1x32xf32, #tpu.memory_space<vmem>>, vector<1x1x32xf32>
    %82 = vector.shape_cast %81 : vector<1x1x32xf32> to vector<1x32xf32>
    %c1_83 = arith.constant 1 : index
    %c0_84 = arith.constant 0 : index
    %c0_85 = arith.constant 0 : index
    %83 = vector.load %arg5[%c1_83, %c0_84, %c0_85] : memref<6x1x32xf32, #tpu.memory_space<vmem>>, vector<1x1x32xf32>
    %84 = vector.shape_cast %83 : vector<1x1x32xf32> to vector<1x32xf32>
    %c2_86 = arith.constant 2 : index
    %c0_87 = arith.constant 0 : index
    %c0_88 = arith.constant 0 : index
    %85 = vector.load %arg5[%c2_86, %c0_87, %c0_88] : memref<6x1x32xf32, #tpu.memory_space<vmem>>, vector<1x1x32xf32>
    %86 = vector.shape_cast %85 : vector<1x1x32xf32> to vector<1x32xf32>
    %c3_89 = arith.constant 3 : index
    %c0_90 = arith.constant 0 : index
    %c0_91 = arith.constant 0 : index
    %87 = vector.load %arg5[%c3_89, %c0_90, %c0_91] : memref<6x1x32xf32, #tpu.memory_space<vmem>>, vector<1x1x32xf32>
    %88 = vector.shape_cast %87 : vector<1x1x32xf32> to vector<1x32xf32>
    %c4_92 = arith.constant 4 : index
    %c0_93 = arith.constant 0 : index
    %c0_94 = arith.constant 0 : index
    %89 = vector.load %arg5[%c4_92, %c0_93, %c0_94] : memref<6x1x32xf32, #tpu.memory_space<vmem>>, vector<1x1x32xf32>
    %90 = vector.shape_cast %89 : vector<1x1x32xf32> to vector<1x32xf32>
    %c5_95 = arith.constant 5 : index
    %c0_96 = arith.constant 0 : index
    %c0_97 = arith.constant 0 : index
    %91 = vector.load %arg5[%c5_95, %c0_96, %c0_97] : memref<6x1x32xf32, #tpu.memory_space<vmem>>, vector<1x1x32xf32>
    %92 = vector.shape_cast %91 : vector<1x1x32xf32> to vector<1x32xf32>
    %cst_98 = arith.constant 0.000000e+00 : f32
    %93 = vector.broadcast %cst_98 : f32 to vector<4x32xf32>
    %c0_i32 = arith.constant 0 : i32
    %c7_i32 = arith.constant 7 : i32
    %94 = arith.subi %c7_i32, %c0_i32 : i32
    %c0_99 = arith.constant 0 : index
    %95 = arith.index_cast %c0_i32 : i32 to index
    %c0_100 = arith.constant 0 : index
    %c0_101 = arith.constant 0 : index
    %96 = vector.load %arg10[%c0_99, %95, %c0_100, %c0_101] : memref<6x8x4x32xf32, #tpu.memory_space<vmem>>, vector<1x1x4x32xf32>
    %97 = vector.shape_cast %96 : vector<1x1x4x32xf32> to vector<4x32xf32>
    %c1_102 = arith.constant 1 : index
    %98 = arith.index_cast %c0_i32 : i32 to index
    %c0_103 = arith.constant 0 : index
    %c0_104 = arith.constant 0 : index
    %99 = vector.load %arg10[%c1_102, %98, %c0_103, %c0_104] : memref<6x8x4x32xf32, #tpu.memory_space<vmem>>, vector<1x1x4x32xf32>
    %100 = vector.shape_cast %99 : vector<1x1x4x32xf32> to vector<4x32xf32>
    %c2_105 = arith.constant 2 : index
    %101 = arith.index_cast %c0_i32 : i32 to index
    %c0_106 = arith.constant 0 : index
    %c0_107 = arith.constant 0 : index
    %102 = vector.load %arg10[%c2_105, %101, %c0_106, %c0_107] : memref<6x8x4x32xf32, #tpu.memory_space<vmem>>, vector<1x1x4x32xf32>
    %103 = vector.shape_cast %102 : vector<1x1x4x32xf32> to vector<4x32xf32>
    %104 = arith.truncf %93 : vector<4x32xf32> to vector<4x32xbf16>
    %cst_108 = arith.constant dense<0.000000e+00> : vector<4x32xf32>
    %105 = tpu.matmul %104, %70, %cst_108 {dimension_numbers = #tpu.dot_dimension_numbers<[1], [0], [0], [1], [0, 0, 1, 1], [], []>} : vector<4x32xbf16>, vector<32x32xbf16>, vector<4x32xf32> -> vector<4x32xf32>
    %106 = vector.broadcast %82 : vector<1x32xf32> to vector<4x32xf32>
    %107 = arith.addf %105, %106 : vector<4x32xf32>
    %cst_109 = arith.constant dense<0.000000e+00> : vector<4x32xf32>
    %108 = tpu.matmul %104, %72, %cst_109 {dimension_numbers = #tpu.dot_dimension_numbers<[1], [0], [0], [1], [0, 0, 1, 1], [], []>} : vector<4x32xbf16>, vector<32x32xbf16>, vector<4x32xf32> -> vector<4x32xf32>
    %109 = vector.broadcast %84 : vector<1x32xf32> to vector<4x32xf32>
    %110 = arith.addf %108, %109 : vector<4x32xf32>
    %cst_110 = arith.constant dense<0.000000e+00> : vector<4x32xf32>
    %111 = tpu.matmul %104, %74, %cst_110 {dimension_numbers = #tpu.dot_dimension_numbers<[1], [0], [0], [1], [0, 0, 1, 1], [], []>} : vector<4x32xbf16>, vector<32x32xbf16>, vector<4x32xf32> -> vector<4x32xf32>
    %112 = vector.broadcast %86 : vector<1x32xf32> to vector<4x32xf32>
    %113 = arith.addf %111, %112 : vector<4x32xf32>
    %114 = arith.addf %97, %107 : vector<4x32xf32>
    %115 = arith.negf %114 : vector<4x32xf32>
    %116 = math.exp %115 : vector<4x32xf32>
    %cst_111 = arith.constant 1.000000e+00 : f32
    %117 = vector.broadcast %cst_111 : f32 to vector<4x32xf32>
    %118 = arith.addf %117, %116 : vector<4x32xf32>
    %119 = arith.divf %117, %118 : vector<4x32xf32>
    %120 = arith.addf %100, %110 : vector<4x32xf32>
    %121 = arith.negf %120 : vector<4x32xf32>
    %122 = math.exp %121 : vector<4x32xf32>
    %cst_112 = arith.constant 1.000000e+00 : f32
    %123 = vector.broadcast %cst_112 : f32 to vector<4x32xf32>
    %124 = arith.addf %123, %122 : vector<4x32xf32>
    %125 = arith.divf %123, %124 : vector<4x32xf32>
    %126 = arith.mulf %119, %113 : vector<4x32xf32>
    %127 = arith.addf %103, %126 : vector<4x32xf32>
    %128 = math.tanh %127 : vector<4x32xf32>
    %cst_113 = arith.constant 1.000000e+00 : f32
    %129 = vector.broadcast %cst_113 : f32 to vector<4x32xf32>
    %130 = arith.subf %129, %125 : vector<4x32xf32>
    %131 = arith.mulf %130, %128 : vector<4x32xf32>
    %132 = arith.mulf %125, %93 : vector<4x32xf32>
    %133 = arith.addf %131, %132 : vector<4x32xf32>
    %c3_114 = arith.constant 3 : index
    %134 = arith.index_cast %94 : i32 to index
    %c0_115 = arith.constant 0 : index
    %c0_116 = arith.constant 0 : index
    %135 = vector.load %arg10[%c3_114, %134, %c0_115, %c0_116] : memref<6x8x4x32xf32, #tpu.memory_space<vmem>>, vector<1x1x4x32xf32>
    %136 = vector.shape_cast %135 : vector<1x1x4x32xf32> to vector<4x32xf32>
    %c4_117 = arith.constant 4 : index
    %137 = arith.index_cast %94 : i32 to index
    %c0_118 = arith.constant 0 : index
    %c0_119 = arith.constant 0 : index
    %138 = vector.load %arg10[%c4_117, %137, %c0_118, %c0_119] : memref<6x8x4x32xf32, #tpu.memory_space<vmem>>, vector<1x1x4x32xf32>
    %139 = vector.shape_cast %138 : vector<1x1x4x32xf32> to vector<4x32xf32>
    %c5_120 = arith.constant 5 : index
    %140 = arith.index_cast %94 : i32 to index
    %c0_121 = arith.constant 0 : index
    %c0_122 = arith.constant 0 : index
    %141 = vector.load %arg10[%c5_120, %140, %c0_121, %c0_122] : memref<6x8x4x32xf32, #tpu.memory_space<vmem>>, vector<1x1x4x32xf32>
    %142 = vector.shape_cast %141 : vector<1x1x4x32xf32> to vector<4x32xf32>
    %143 = arith.truncf %93 : vector<4x32xf32> to vector<4x32xbf16>
    %cst_123 = arith.constant dense<0.000000e+00> : vector<4x32xf32>
    %144 = tpu.matmul %143, %76, %cst_123 {dimension_numbers = #tpu.dot_dimension_numbers<[1], [0], [0], [1], [0, 0, 1, 1], [], []>} : vector<4x32xbf16>, vector<32x32xbf16>, vector<4x32xf32> -> vector<4x32xf32>
    %145 = vector.broadcast %88 : vector<1x32xf32> to vector<4x32xf32>
    %146 = arith.addf %144, %145 : vector<4x32xf32>
    %cst_124 = arith.constant dense<0.000000e+00> : vector<4x32xf32>
    %147 = tpu.matmul %143, %78, %cst_124 {dimension_numbers = #tpu.dot_dimension_numbers<[1], [0], [0], [1], [0, 0, 1, 1], [], []>} : vector<4x32xbf16>, vector<32x32xbf16>, vector<4x32xf32> -> vector<4x32xf32>
    %148 = vector.broadcast %90 : vector<1x32xf32> to vector<4x32xf32>
    %149 = arith.addf %147, %148 : vector<4x32xf32>
    %cst_125 = arith.constant dense<0.000000e+00> : vector<4x32xf32>
    %150 = tpu.matmul %143, %80, %cst_125 {dimension_numbers = #tpu.dot_dimension_numbers<[1], [0], [0], [1], [0, 0, 1, 1], [], []>} : vector<4x32xbf16>, vector<32x32xbf16>, vector<4x32xf32> -> vector<4x32xf32>
    %151 = vector.broadcast %92 : vector<1x32xf32> to vector<4x32xf32>
    %152 = arith.addf %150, %151 : vector<4x32xf32>
    %153 = arith.addf %136, %146 : vector<4x32xf32>
    %154 = arith.negf %153 : vector<4x32xf32>
    %155 = math.exp %154 : vector<4x32xf32>
    %cst_126 = arith.constant 1.000000e+00 : f32
    %156 = vector.broadcast %cst_126 : f32 to vector<4x32xf32>
    %157 = arith.addf %156, %155 : vector<4x32xf32>
    %158 = arith.divf %156, %157 : vector<4x32xf32>
    %159 = arith.addf %139, %149 : vector<4x32xf32>
    %160 = arith.negf %159 : vector<4x32xf32>
    %161 = math.exp %160 : vector<4x32xf32>
    %cst_127 = arith.constant 1.000000e+00 : f32
    %162 = vector.broadcast %cst_127 : f32 to vector<4x32xf32>
    %163 = arith.addf %162, %161 : vector<4x32xf32>
    %164 = arith.divf %162, %163 : vector<4x32xf32>
    %165 = arith.mulf %158, %152 : vector<4x32xf32>
    %166 = arith.addf %142, %165 : vector<4x32xf32>
    %167 = math.tanh %166 : vector<4x32xf32>
    %cst_128 = arith.constant 1.000000e+00 : f32
    %168 = vector.broadcast %cst_128 : f32 to vector<4x32xf32>
    %169 = arith.subf %168, %164 : vector<4x32xf32>
    %170 = arith.mulf %169, %167 : vector<4x32xf32>
    %171 = arith.mulf %164, %93 : vector<4x32xf32>
    %172 = arith.addf %170, %171 : vector<4x32xf32>
    %173 = arith.index_cast %c0_i32 : i32 to index
    %c0_129 = arith.constant 0 : index
    %c0_130 = arith.constant 0 : index
    %174 = vector.load %arg11[%173, %c0_129, %c0_130] : memref<8x4x32xf32, #tpu.memory_space<vmem>>, vector<1x4x32xf32>
    %175 = vector.shape_cast %174 : vector<1x4x32xf32> to vector<4x32xf32>
    %176 = vector.shape_cast %133 : vector<4x32xf32> to vector<1x4x32xf32>
    tpu.vector_store %arg11[%173, %c0_129, %c0_130], %176 {strides = array<i32>} : memref<8x4x32xf32, #tpu.memory_space<vmem>>, vector<1x4x32xf32>,
    %177 = arith.index_cast %94 : i32 to index
    %c0_131 = arith.constant 0 : index
    %c0_132 = arith.constant 0 : index
    %178 = vector.load %arg12[%177, %c0_131, %c0_132] : memref<8x4x32xf32, #tpu.memory_space<vmem>>, vector<1x4x32xf32>
    %179 = vector.shape_cast %178 : vector<1x4x32xf32> to vector<4x32xf32>
    %180 = vector.shape_cast %172 : vector<4x32xf32> to vector<1x4x32xf32>
    tpu.vector_store %arg12[%177, %c0_131, %c0_132], %180 {strides = array<i32>} : memref<8x4x32xf32, #tpu.memory_space<vmem>>, vector<1x4x32xf32>,
    %c1_i32 = arith.constant 1 : i32
    %c7_i32_133 = arith.constant 7 : i32
    %181 = arith.subi %c7_i32_133, %c1_i32 : i32
    %c0_134 = arith.constant 0 : index
    %182 = arith.index_cast %c1_i32 : i32 to index
    %c0_135 = arith.constant 0 : index
    %c0_136 = arith.constant 0 : index
    %183 = vector.load %arg10[%c0_134, %182, %c0_135, %c0_136] : memref<6x8x4x32xf32, #tpu.memory_space<vmem>>, vector<1x1x4x32xf32>
    %184 = vector.shape_cast %183 : vector<1x1x4x32xf32> to vector<4x32xf32>
    %c1_137 = arith.constant 1 : index
    %185 = arith.index_cast %c1_i32 : i32 to index
    %c0_138 = arith.constant 0 : index
    %c0_139 = arith.constant 0 : index
    %186 = vector.load %arg10[%c1_137, %185, %c0_138, %c0_139] : memref<6x8x4x32xf32, #tpu.memory_space<vmem>>, vector<1x1x4x32xf32>
    %187 = vector.shape_cast %186 : vector<1x1x4x32xf32> to vector<4x32xf32>
    %c2_140 = arith.constant 2 : index
    %188 = arith.index_cast %c1_i32 : i32 to index
    %c0_141 = arith.constant 0 : index
    %c0_142 = arith.constant 0 : index
    %189 = vector.load %arg10[%c2_140, %188, %c0_141, %c0_142] : memref<6x8x4x32xf32, #tpu.memory_space<vmem>>, vector<1x1x4x32xf32>
    %190 = vector.shape_cast %189 : vector<1x1x4x32xf32> to vector<4x32xf32>
    %191 = arith.truncf %133 : vector<4x32xf32> to vector<4x32xbf16>
    %cst_143 = arith.constant dense<0.000000e+00> : vector<4x32xf32>
    %192 = tpu.matmul %191, %70, %cst_143 {dimension_numbers = #tpu.dot_dimension_numbers<[1], [0], [0], [1], [0, 0, 1, 1], [], []>} : vector<4x32xbf16>, vector<32x32xbf16>, vector<4x32xf32> -> vector<4x32xf32>
    %193 = vector.broadcast %82 : vector<1x32xf32> to vector<4x32xf32>
    %194 = arith.addf %192, %193 : vector<4x32xf32>
    %cst_144 = arith.constant dense<0.000000e+00> : vector<4x32xf32>
    %195 = tpu.matmul %191, %72, %cst_144 {dimension_numbers = #tpu.dot_dimension_numbers<[1], [0], [0], [1], [0, 0, 1, 1], [], []>} : vector<4x32xbf16>, vector<32x32xbf16>, vector<4x32xf32> -> vector<4x32xf32>
    %196 = vector.broadcast %84 : vector<1x32xf32> to vector<4x32xf32>
    %197 = arith.addf %195, %196 : vector<4x32xf32>
    %cst_145 = arith.constant dense<0.000000e+00> : vector<4x32xf32>
    %198 = tpu.matmul %191, %74, %cst_145 {dimension_numbers = #tpu.dot_dimension_numbers<[1], [0], [0], [1], [0, 0, 1, 1], [], []>} : vector<4x32xbf16>, vector<32x32xbf16>, vector<4x32xf32> -> vector<4x32xf32>
    %199 = vector.broadcast %86 : vector<1x32xf32> to vector<4x32xf32>
    %200 = arith.addf %198, %199 : vector<4x32xf32>
    %201 = arith.addf %184, %194 : vector<4x32xf32>
    %202 = arith.negf %201 : vector<4x32xf32>
    %203 = math.exp %202 : vector<4x32xf32>
    %cst_146 = arith.constant 1.000000e+00 : f32
    %204 = vector.broadcast %cst_146 : f32 to vector<4x32xf32>
    %205 = arith.addf %204, %203 : vector<4x32xf32>
    %206 = arith.divf %204, %205 : vector<4x32xf32>
    %207 = arith.addf %187, %197 : vector<4x32xf32>
    %208 = arith.negf %207 : vector<4x32xf32>
    %209 = math.exp %208 : vector<4x32xf32>
    %cst_147 = arith.constant 1.000000e+00 : f32
    %210 = vector.broadcast %cst_147 : f32 to vector<4x32xf32>
    %211 = arith.addf %210, %209 : vector<4x32xf32>
    %212 = arith.divf %210, %211 : vector<4x32xf32>
    %213 = arith.mulf %206, %200 : vector<4x32xf32>
    %214 = arith.addf %190, %213 : vector<4x32xf32>
    %215 = math.tanh %214 : vector<4x32xf32>
    %cst_148 = arith.constant 1.000000e+00 : f32
    %216 = vector.broadcast %cst_148 : f32 to vector<4x32xf32>
    %217 = arith.subf %216, %212 : vector<4x32xf32>
    %218 = arith.mulf %217, %215 : vector<4x32xf32>
    %219 = arith.mulf %212, %133 : vector<4x32xf32>
    %220 = arith.addf %218, %219 : vector<4x32xf32>
    %c3_149 = arith.constant 3 : index
    %221 = arith.index_cast %181 : i32 to index
    %c0_150 = arith.constant 0 : index
    %c0_151 = arith.constant 0 : index
    %222 = vector.load %arg10[%c3_149, %221, %c0_150, %c0_151] : memref<6x8x4x32xf32, #tpu.memory_space<vmem>>, vector<1x1x4x32xf32>
    %223 = vector.shape_cast %222 : vector<1x1x4x32xf32> to vector<4x32xf32>
    %c4_152 = arith.constant 4 : index
    %224 = arith.index_cast %181 : i32 to index
    %c0_153 = arith.constant 0 : index
    %c0_154 = arith.constant 0 : index
    %225 = vector.load %arg10[%c4_152, %224, %c0_153, %c0_154] : memref<6x8x4x32xf32, #tpu.memory_space<vmem>>, vector<1x1x4x32xf32>
    %226 = vector.shape_cast %225 : vector<1x1x4x32xf32> to vector<4x32xf32>
    %c5_155 = arith.constant 5 : index
    %227 = arith.index_cast %181 : i32 to index
    %c0_156 = arith.constant 0 : index
    %c0_157 = arith.constant 0 : index
    %228 = vector.load %arg10[%c5_155, %227, %c0_156, %c0_157] : memref<6x8x4x32xf32, #tpu.memory_space<vmem>>, vector<1x1x4x32xf32>
    %229 = vector.shape_cast %228 : vector<1x1x4x32xf32> to vector<4x32xf32>
    %230 = arith.truncf %172 : vector<4x32xf32> to vector<4x32xbf16>
    %cst_158 = arith.constant dense<0.000000e+00> : vector<4x32xf32>
    %231 = tpu.matmul %230, %76, %cst_158 {dimension_numbers = #tpu.dot_dimension_numbers<[1], [0], [0], [1], [0, 0, 1, 1], [], []>} : vector<4x32xbf16>, vector<32x32xbf16>, vector<4x32xf32> -> vector<4x32xf32>
    %232 = vector.broadcast %88 : vector<1x32xf32> to vector<4x32xf32>
    %233 = arith.addf %231, %232 : vector<4x32xf32>
    %cst_159 = arith.constant dense<0.000000e+00> : vector<4x32xf32>
    %234 = tpu.matmul %230, %78, %cst_159 {dimension_numbers = #tpu.dot_dimension_numbers<[1], [0], [0], [1], [0, 0, 1, 1], [], []>} : vector<4x32xbf16>, vector<32x32xbf16>, vector<4x32xf32> -> vector<4x32xf32>
    %235 = vector.broadcast %90 : vector<1x32xf32> to vector<4x32xf32>
    %236 = arith.addf %234, %235 : vector<4x32xf32>
    %cst_160 = arith.constant dense<0.000000e+00> : vector<4x32xf32>
    %237 = tpu.matmul %230, %80, %cst_160 {dimension_numbers = #tpu.dot_dimension_numbers<[1], [0], [0], [1], [0, 0, 1, 1], [], []>} : vector<4x32xbf16>, vector<32x32xbf16>, vector<4x32xf32> -> vector<4x32xf32>
    %238 = vector.broadcast %92 : vector<1x32xf32> to vector<4x32xf32>
    %239 = arith.addf %237, %238 : vector<4x32xf32>
    %240 = arith.addf %223, %233 : vector<4x32xf32>
    %241 = arith.negf %240 : vector<4x32xf32>
    %242 = math.exp %241 : vector<4x32xf32>
    %cst_161 = arith.constant 1.000000e+00 : f32
    %243 = vector.broadcast %cst_161 : f32 to vector<4x32xf32>
    %244 = arith.addf %243, %242 : vector<4x32xf32>
    %245 = arith.divf %243, %244 : vector<4x32xf32>
    %246 = arith.addf %226, %236 : vector<4x32xf32>
    %247 = arith.negf %246 : vector<4x32xf32>
    %248 = math.exp %247 : vector<4x32xf32>
    %cst_162 = arith.constant 1.000000e+00 : f32
    %249 = vector.broadcast %cst_162 : f32 to vector<4x32xf32>
    %250 = arith.addf %249, %248 : vector<4x32xf32>
    %251 = arith.divf %249, %250 : vector<4x32xf32>
    %252 = arith.mulf %245, %239 : vector<4x32xf32>
    %253 = arith.addf %229, %252 : vector<4x32xf32>
    %254 = math.tanh %253 : vector<4x32xf32>
    %cst_163 = arith.constant 1.000000e+00 : f32
    %255 = vector.broadcast %cst_163 : f32 to vector<4x32xf32>
    %256 = arith.subf %255, %251 : vector<4x32xf32>
    %257 = arith.mulf %256, %254 : vector<4x32xf32>
    %258 = arith.mulf %251, %172 : vector<4x32xf32>
    %259 = arith.addf %257, %258 : vector<4x32xf32>
    %260 = arith.index_cast %c1_i32 : i32 to index
    %c0_164 = arith.constant 0 : index
    %c0_165 = arith.constant 0 : index
    %261 = vector.load %arg11[%260, %c0_164, %c0_165] : memref<8x4x32xf32, #tpu.memory_space<vmem>>, vector<1x4x32xf32>
    %262 = vector.shape_cast %261 : vector<1x4x32xf32> to vector<4x32xf32>
    %263 = vector.shape_cast %220 : vector<4x32xf32> to vector<1x4x32xf32>
    tpu.vector_store %arg11[%260, %c0_164, %c0_165], %263 {strides = array<i32>} : memref<8x4x32xf32, #tpu.memory_space<vmem>>, vector<1x4x32xf32>,
    %264 = arith.index_cast %181 : i32 to index
    %c0_166 = arith.constant 0 : index
    %c0_167 = arith.constant 0 : index
    %265 = vector.load %arg12[%264, %c0_166, %c0_167] : memref<8x4x32xf32, #tpu.memory_space<vmem>>, vector<1x4x32xf32>
    %266 = vector.shape_cast %265 : vector<1x4x32xf32> to vector<4x32xf32>
    %267 = vector.shape_cast %259 : vector<4x32xf32> to vector<1x4x32xf32>
    tpu.vector_store %arg12[%264, %c0_166, %c0_167], %267 {strides = array<i32>} : memref<8x4x32xf32, #tpu.memory_space<vmem>>, vector<1x4x32xf32>,
    %c2_i32 = arith.constant 2 : i32
    %c7_i32_168 = arith.constant 7 : i32
    %268 = arith.subi %c7_i32_168, %c2_i32 : i32
    %c0_169 = arith.constant 0 : index
    %269 = arith.index_cast %c2_i32 : i32 to index
    %c0_170 = arith.constant 0 : index
    %c0_171 = arith.constant 0 : index
    %270 = vector.load %arg10[%c0_169, %269, %c0_170, %c0_171] : memref<6x8x4x32xf32, #tpu.memory_space<vmem>>, vector<1x1x4x32xf32>
    %271 = vector.shape_cast %270 : vector<1x1x4x32xf32> to vector<4x32xf32>
    %c1_172 = arith.constant 1 : index
    %272 = arith.index_cast %c2_i32 : i32 to index
    %c0_173 = arith.constant 0 : index
    %c0_174 = arith.constant 0 : index
    %273 = vector.load %arg10[%c1_172, %272, %c0_173, %c0_174] : memref<6x8x4x32xf32, #tpu.memory_space<vmem>>, vector<1x1x4x32xf32>
    %274 = vector.shape_cast %273 : vector<1x1x4x32xf32> to vector<4x32xf32>
    %c2_175 = arith.constant 2 : index
    %275 = arith.index_cast %c2_i32 : i32 to index
    %c0_176 = arith.constant 0 : index
    %c0_177 = arith.constant 0 : index
    %276 = vector.load %arg10[%c2_175, %275, %c0_176, %c0_177] : memref<6x8x4x32xf32, #tpu.memory_space<vmem>>, vector<1x1x4x32xf32>
    %277 = vector.shape_cast %276 : vector<1x1x4x32xf32> to vector<4x32xf32>
    %278 = arith.truncf %220 : vector<4x32xf32> to vector<4x32xbf16>
    %cst_178 = arith.constant dense<0.000000e+00> : vector<4x32xf32>
    %279 = tpu.matmul %278, %70, %cst_178 {dimension_numbers = #tpu.dot_dimension_numbers<[1], [0], [0], [1], [0, 0, 1, 1], [], []>} : vector<4x32xbf16>, vector<32x32xbf16>, vector<4x32xf32> -> vector<4x32xf32>
    %280 = vector.broadcast %82 : vector<1x32xf32> to vector<4x32xf32>
    %281 = arith.addf %279, %280 : vector<4x32xf32>
    %cst_179 = arith.constant dense<0.000000e+00> : vector<4x32xf32>
    %282 = tpu.matmul %278, %72, %cst_179 {dimension_numbers = #tpu.dot_dimension_numbers<[1], [0], [0], [1], [0, 0, 1, 1], [], []>} : vector<4x32xbf16>, vector<32x32xbf16>, vector<4x32xf32> -> vector<4x32xf32>
    %283 = vector.broadcast %84 : vector<1x32xf32> to vector<4x32xf32>
    %284 = arith.addf %282, %283 : vector<4x32xf32>
    %cst_180 = arith.constant dense<0.000000e+00> : vector<4x32xf32>
    %285 = tpu.matmul %278, %74, %cst_180 {dimension_numbers = #tpu.dot_dimension_numbers<[1], [0], [0], [1], [0, 0, 1, 1], [], []>} : vector<4x32xbf16>, vector<32x32xbf16>, vector<4x32xf32> -> vector<4x32xf32>
    %286 = vector.broadcast %86 : vector<1x32xf32> to vector<4x32xf32>
    %287 = arith.addf %285, %286 : vector<4x32xf32>
    %288 = arith.addf %271, %281 : vector<4x32xf32>
    %289 = arith.negf %288 : vector<4x32xf32>
    %290 = math.exp %289 : vector<4x32xf32>
    %cst_181 = arith.constant 1.000000e+00 : f32
    %291 = vector.broadcast %cst_181 : f32 to vector<4x32xf32>
    %292 = arith.addf %291, %290 : vector<4x32xf32>
    %293 = arith.divf %291, %292 : vector<4x32xf32>
    %294 = arith.addf %274, %284 : vector<4x32xf32>
    %295 = arith.negf %294 : vector<4x32xf32>
    %296 = math.exp %295 : vector<4x32xf32>
    %cst_182 = arith.constant 1.000000e+00 : f32
    %297 = vector.broadcast %cst_182 : f32 to vector<4x32xf32>
    %298 = arith.addf %297, %296 : vector<4x32xf32>
    %299 = arith.divf %297, %298 : vector<4x32xf32>
    %300 = arith.mulf %293, %287 : vector<4x32xf32>
    %301 = arith.addf %277, %300 : vector<4x32xf32>
    %302 = math.tanh %301 : vector<4x32xf32>
    %cst_183 = arith.constant 1.000000e+00 : f32
    %303 = vector.broadcast %cst_183 : f32 to vector<4x32xf32>
    %304 = arith.subf %303, %299 : vector<4x32xf32>
    %305 = arith.mulf %304, %302 : vector<4x32xf32>
    %306 = arith.mulf %299, %220 : vector<4x32xf32>
    %307 = arith.addf %305, %306 : vector<4x32xf32>
    %c3_184 = arith.constant 3 : index
    %308 = arith.index_cast %268 : i32 to index
    %c0_185 = arith.constant 0 : index
    %c0_186 = arith.constant 0 : index
    %309 = vector.load %arg10[%c3_184, %308, %c0_185, %c0_186] : memref<6x8x4x32xf32, #tpu.memory_space<vmem>>, vector<1x1x4x32xf32>
    %310 = vector.shape_cast %309 : vector<1x1x4x32xf32> to vector<4x32xf32>
    %c4_187 = arith.constant 4 : index
    %311 = arith.index_cast %268 : i32 to index
    %c0_188 = arith.constant 0 : index
    %c0_189 = arith.constant 0 : index
    %312 = vector.load %arg10[%c4_187, %311, %c0_188, %c0_189] : memref<6x8x4x32xf32, #tpu.memory_space<vmem>>, vector<1x1x4x32xf32>
    %313 = vector.shape_cast %312 : vector<1x1x4x32xf32> to vector<4x32xf32>
    %c5_190 = arith.constant 5 : index
    %314 = arith.index_cast %268 : i32 to index
    %c0_191 = arith.constant 0 : index
    %c0_192 = arith.constant 0 : index
    %315 = vector.load %arg10[%c5_190, %314, %c0_191, %c0_192] : memref<6x8x4x32xf32, #tpu.memory_space<vmem>>, vector<1x1x4x32xf32>
    %316 = vector.shape_cast %315 : vector<1x1x4x32xf32> to vector<4x32xf32>
    %317 = arith.truncf %259 : vector<4x32xf32> to vector<4x32xbf16>
    %cst_193 = arith.constant dense<0.000000e+00> : vector<4x32xf32>
    %318 = tpu.matmul %317, %76, %cst_193 {dimension_numbers = #tpu.dot_dimension_numbers<[1], [0], [0], [1], [0, 0, 1, 1], [], []>} : vector<4x32xbf16>, vector<32x32xbf16>, vector<4x32xf32> -> vector<4x32xf32>
    %319 = vector.broadcast %88 : vector<1x32xf32> to vector<4x32xf32>
    %320 = arith.addf %318, %319 : vector<4x32xf32>
    %cst_194 = arith.constant dense<0.000000e+00> : vector<4x32xf32>
    %321 = tpu.matmul %317, %78, %cst_194 {dimension_numbers = #tpu.dot_dimension_numbers<[1], [0], [0], [1], [0, 0, 1, 1], [], []>} : vector<4x32xbf16>, vector<32x32xbf16>, vector<4x32xf32> -> vector<4x32xf32>
    %322 = vector.broadcast %90 : vector<1x32xf32> to vector<4x32xf32>
    %323 = arith.addf %321, %322 : vector<4x32xf32>
    %cst_195 = arith.constant dense<0.000000e+00> : vector<4x32xf32>
    %324 = tpu.matmul %317, %80, %cst_195 {dimension_numbers = #tpu.dot_dimension_numbers<[1], [0], [0], [1], [0, 0, 1, 1], [], []>} : vector<4x32xbf16>, vector<32x32xbf16>, vector<4x32xf32> -> vector<4x32xf32>
    %325 = vector.broadcast %92 : vector<1x32xf32> to vector<4x32xf32>
    %326 = arith.addf %324, %325 : vector<4x32xf32>
    %327 = arith.addf %310, %320 : vector<4x32xf32>
    %328 = arith.negf %327 : vector<4x32xf32>
    %329 = math.exp %328 : vector<4x32xf32>
    %cst_196 = arith.constant 1.000000e+00 : f32
    %330 = vector.broadcast %cst_196 : f32 to vector<4x32xf32>
    %331 = arith.addf %330, %329 : vector<4x32xf32>
    %332 = arith.divf %330, %331 : vector<4x32xf32>
    %333 = arith.addf %313, %323 : vector<4x32xf32>
    %334 = arith.negf %333 : vector<4x32xf32>
    %335 = math.exp %334 : vector<4x32xf32>
    %cst_197 = arith.constant 1.000000e+00 : f32
    %336 = vector.broadcast %cst_197 : f32 to vector<4x32xf32>
    %337 = arith.addf %336, %335 : vector<4x32xf32>
    %338 = arith.divf %336, %337 : vector<4x32xf32>
    %339 = arith.mulf %332, %326 : vector<4x32xf32>
    %340 = arith.addf %316, %339 : vector<4x32xf32>
    %341 = math.tanh %340 : vector<4x32xf32>
    %cst_198 = arith.constant 1.000000e+00 : f32
    %342 = vector.broadcast %cst_198 : f32 to vector<4x32xf32>
    %343 = arith.subf %342, %338 : vector<4x32xf32>
    %344 = arith.mulf %343, %341 : vector<4x32xf32>
    %345 = arith.mulf %338, %259 : vector<4x32xf32>
    %346 = arith.addf %344, %345 : vector<4x32xf32>
    %347 = arith.index_cast %c2_i32 : i32 to index
    %c0_199 = arith.constant 0 : index
    %c0_200 = arith.constant 0 : index
    %348 = vector.load %arg11[%347, %c0_199, %c0_200] : memref<8x4x32xf32, #tpu.memory_space<vmem>>, vector<1x4x32xf32>
    %349 = vector.shape_cast %348 : vector<1x4x32xf32> to vector<4x32xf32>
    %350 = vector.shape_cast %307 : vector<4x32xf32> to vector<1x4x32xf32>
    tpu.vector_store %arg11[%347, %c0_199, %c0_200], %350 {strides = array<i32>} : memref<8x4x32xf32, #tpu.memory_space<vmem>>, vector<1x4x32xf32>,
    %351 = arith.index_cast %268 : i32 to index
    %c0_201 = arith.constant 0 : index
    %c0_202 = arith.constant 0 : index
    %352 = vector.load %arg12[%351, %c0_201, %c0_202] : memref<8x4x32xf32, #tpu.memory_space<vmem>>, vector<1x4x32xf32>
    %353 = vector.shape_cast %352 : vector<1x4x32xf32> to vector<4x32xf32>
    %354 = vector.shape_cast %346 : vector<4x32xf32> to vector<1x4x32xf32>
    tpu.vector_store %arg12[%351, %c0_201, %c0_202], %354 {strides = array<i32>} : memref<8x4x32xf32, #tpu.memory_space<vmem>>, vector<1x4x32xf32>,
    %c3_i32 = arith.constant 3 : i32
    %c7_i32_203 = arith.constant 7 : i32
    %355 = arith.subi %c7_i32_203, %c3_i32 : i32
    %c0_204 = arith.constant 0 : index
    %356 = arith.index_cast %c3_i32 : i32 to index
    %c0_205 = arith.constant 0 : index
    %c0_206 = arith.constant 0 : index
    %357 = vector.load %arg10[%c0_204, %356, %c0_205, %c0_206] : memref<6x8x4x32xf32, #tpu.memory_space<vmem>>, vector<1x1x4x32xf32>
    %358 = vector.shape_cast %357 : vector<1x1x4x32xf32> to vector<4x32xf32>
    %c1_207 = arith.constant 1 : index
    %359 = arith.index_cast %c3_i32 : i32 to index
    %c0_208 = arith.constant 0 : index
    %c0_209 = arith.constant 0 : index
    %360 = vector.load %arg10[%c1_207, %359, %c0_208, %c0_209] : memref<6x8x4x32xf32, #tpu.memory_space<vmem>>, vector<1x1x4x32xf32>
    %361 = vector.shape_cast %360 : vector<1x1x4x32xf32> to vector<4x32xf32>
    %c2_210 = arith.constant 2 : index
    %362 = arith.index_cast %c3_i32 : i32 to index
    %c0_211 = arith.constant 0 : index
    %c0_212 = arith.constant 0 : index
    %363 = vector.load %arg10[%c2_210, %362, %c0_211, %c0_212] : memref<6x8x4x32xf32, #tpu.memory_space<vmem>>, vector<1x1x4x32xf32>
    %364 = vector.shape_cast %363 : vector<1x1x4x32xf32> to vector<4x32xf32>
    %365 = arith.truncf %307 : vector<4x32xf32> to vector<4x32xbf16>
    %cst_213 = arith.constant dense<0.000000e+00> : vector<4x32xf32>
    %366 = tpu.matmul %365, %70, %cst_213 {dimension_numbers = #tpu.dot_dimension_numbers<[1], [0], [0], [1], [0, 0, 1, 1], [], []>} : vector<4x32xbf16>, vector<32x32xbf16>, vector<4x32xf32> -> vector<4x32xf32>
    %367 = vector.broadcast %82 : vector<1x32xf32> to vector<4x32xf32>
    %368 = arith.addf %366, %367 : vector<4x32xf32>
    %cst_214 = arith.constant dense<0.000000e+00> : vector<4x32xf32>
    %369 = tpu.matmul %365, %72, %cst_214 {dimension_numbers = #tpu.dot_dimension_numbers<[1], [0], [0], [1], [0, 0, 1, 1], [], []>} : vector<4x32xbf16>, vector<32x32xbf16>, vector<4x32xf32> -> vector<4x32xf32>
    %370 = vector.broadcast %84 : vector<1x32xf32> to vector<4x32xf32>
    %371 = arith.addf %369, %370 : vector<4x32xf32>
    %cst_215 = arith.constant dense<0.000000e+00> : vector<4x32xf32>
    %372 = tpu.matmul %365, %74, %cst_215 {dimension_numbers = #tpu.dot_dimension_numbers<[1], [0], [0], [1], [0, 0, 1, 1], [], []>} : vector<4x32xbf16>, vector<32x32xbf16>, vector<4x32xf32> -> vector<4x32xf32>
    %373 = vector.broadcast %86 : vector<1x32xf32> to vector<4x32xf32>
    %374 = arith.addf %372, %373 : vector<4x32xf32>
    %375 = arith.addf %358, %368 : vector<4x32xf32>
    %376 = arith.negf %375 : vector<4x32xf32>
    %377 = math.exp %376 : vector<4x32xf32>
    %cst_216 = arith.constant 1.000000e+00 : f32
    %378 = vector.broadcast %cst_216 : f32 to vector<4x32xf32>
    %379 = arith.addf %378, %377 : vector<4x32xf32>
    %380 = arith.divf %378, %379 : vector<4x32xf32>
    %381 = arith.addf %361, %371 : vector<4x32xf32>
    %382 = arith.negf %381 : vector<4x32xf32>
    %383 = math.exp %382 : vector<4x32xf32>
    %cst_217 = arith.constant 1.000000e+00 : f32
    %384 = vector.broadcast %cst_217 : f32 to vector<4x32xf32>
    %385 = arith.addf %384, %383 : vector<4x32xf32>
    %386 = arith.divf %384, %385 : vector<4x32xf32>
    %387 = arith.mulf %380, %374 : vector<4x32xf32>
    %388 = arith.addf %364, %387 : vector<4x32xf32>
    %389 = math.tanh %388 : vector<4x32xf32>
    %cst_218 = arith.constant 1.000000e+00 : f32
    %390 = vector.broadcast %cst_218 : f32 to vector<4x32xf32>
    %391 = arith.subf %390, %386 : vector<4x32xf32>
    %392 = arith.mulf %391, %389 : vector<4x32xf32>
    %393 = arith.mulf %386, %307 : vector<4x32xf32>
    %394 = arith.addf %392, %393 : vector<4x32xf32>
    %c3_219 = arith.constant 3 : index
    %395 = arith.index_cast %355 : i32 to index
    %c0_220 = arith.constant 0 : index
    %c0_221 = arith.constant 0 : index
    %396 = vector.load %arg10[%c3_219, %395, %c0_220, %c0_221] : memref<6x8x4x32xf32, #tpu.memory_space<vmem>>, vector<1x1x4x32xf32>
    %397 = vector.shape_cast %396 : vector<1x1x4x32xf32> to vector<4x32xf32>
    %c4_222 = arith.constant 4 : index
    %398 = arith.index_cast %355 : i32 to index
    %c0_223 = arith.constant 0 : index
    %c0_224 = arith.constant 0 : index
    %399 = vector.load %arg10[%c4_222, %398, %c0_223, %c0_224] : memref<6x8x4x32xf32, #tpu.memory_space<vmem>>, vector<1x1x4x32xf32>
    %400 = vector.shape_cast %399 : vector<1x1x4x32xf32> to vector<4x32xf32>
    %c5_225 = arith.constant 5 : index
    %401 = arith.index_cast %355 : i32 to index
    %c0_226 = arith.constant 0 : index
    %c0_227 = arith.constant 0 : index
    %402 = vector.load %arg10[%c5_225, %401, %c0_226, %c0_227] : memref<6x8x4x32xf32, #tpu.memory_space<vmem>>, vector<1x1x4x32xf32>
    %403 = vector.shape_cast %402 : vector<1x1x4x32xf32> to vector<4x32xf32>
    %404 = arith.truncf %346 : vector<4x32xf32> to vector<4x32xbf16>
    %cst_228 = arith.constant dense<0.000000e+00> : vector<4x32xf32>
    %405 = tpu.matmul %404, %76, %cst_228 {dimension_numbers = #tpu.dot_dimension_numbers<[1], [0], [0], [1], [0, 0, 1, 1], [], []>} : vector<4x32xbf16>, vector<32x32xbf16>, vector<4x32xf32> -> vector<4x32xf32>
    %406 = vector.broadcast %88 : vector<1x32xf32> to vector<4x32xf32>
    %407 = arith.addf %405, %406 : vector<4x32xf32>
    %cst_229 = arith.constant dense<0.000000e+00> : vector<4x32xf32>
    %408 = tpu.matmul %404, %78, %cst_229 {dimension_numbers = #tpu.dot_dimension_numbers<[1], [0], [0], [1], [0, 0, 1, 1], [], []>} : vector<4x32xbf16>, vector<32x32xbf16>, vector<4x32xf32> -> vector<4x32xf32>
    %409 = vector.broadcast %90 : vector<1x32xf32> to vector<4x32xf32>
    %410 = arith.addf %408, %409 : vector<4x32xf32>
    %cst_230 = arith.constant dense<0.000000e+00> : vector<4x32xf32>
    %411 = tpu.matmul %404, %80, %cst_230 {dimension_numbers = #tpu.dot_dimension_numbers<[1], [0], [0], [1], [0, 0, 1, 1], [], []>} : vector<4x32xbf16>, vector<32x32xbf16>, vector<4x32xf32> -> vector<4x32xf32>
    %412 = vector.broadcast %92 : vector<1x32xf32> to vector<4x32xf32>
    %413 = arith.addf %411, %412 : vector<4x32xf32>
    %414 = arith.addf %397, %407 : vector<4x32xf32>
    %415 = arith.negf %414 : vector<4x32xf32>
    %416 = math.exp %415 : vector<4x32xf32>
    %cst_231 = arith.constant 1.000000e+00 : f32
    %417 = vector.broadcast %cst_231 : f32 to vector<4x32xf32>
    %418 = arith.addf %417, %416 : vector<4x32xf32>
    %419 = arith.divf %417, %418 : vector<4x32xf32>
    %420 = arith.addf %400, %410 : vector<4x32xf32>
    %421 = arith.negf %420 : vector<4x32xf32>
    %422 = math.exp %421 : vector<4x32xf32>
    %cst_232 = arith.constant 1.000000e+00 : f32
    %423 = vector.broadcast %cst_232 : f32 to vector<4x32xf32>
    %424 = arith.addf %423, %422 : vector<4x32xf32>
    %425 = arith.divf %423, %424 : vector<4x32xf32>
    %426 = arith.mulf %419, %413 : vector<4x32xf32>
    %427 = arith.addf %403, %426 : vector<4x32xf32>
    %428 = math.tanh %427 : vector<4x32xf32>
    %cst_233 = arith.constant 1.000000e+00 : f32
    %429 = vector.broadcast %cst_233 : f32 to vector<4x32xf32>
    %430 = arith.subf %429, %425 : vector<4x32xf32>
    %431 = arith.mulf %430, %428 : vector<4x32xf32>
    %432 = arith.mulf %425, %346 : vector<4x32xf32>
    %433 = arith.addf %431, %432 : vector<4x32xf32>
    %434 = arith.index_cast %c3_i32 : i32 to index
    %c0_234 = arith.constant 0 : index
    %c0_235 = arith.constant 0 : index
    %435 = vector.load %arg11[%434, %c0_234, %c0_235] : memref<8x4x32xf32, #tpu.memory_space<vmem>>, vector<1x4x32xf32>
    %436 = vector.shape_cast %435 : vector<1x4x32xf32> to vector<4x32xf32>
    %437 = vector.shape_cast %394 : vector<4x32xf32> to vector<1x4x32xf32>
    tpu.vector_store %arg11[%434, %c0_234, %c0_235], %437 {strides = array<i32>} : memref<8x4x32xf32, #tpu.memory_space<vmem>>, vector<1x4x32xf32>,
    %438 = arith.index_cast %355 : i32 to index
    %c0_236 = arith.constant 0 : index
    %c0_237 = arith.constant 0 : index
    %439 = vector.load %arg12[%438, %c0_236, %c0_237] : memref<8x4x32xf32, #tpu.memory_space<vmem>>, vector<1x4x32xf32>
    %440 = vector.shape_cast %439 : vector<1x4x32xf32> to vector<4x32xf32>
    %441 = vector.shape_cast %433 : vector<4x32xf32> to vector<1x4x32xf32>
    tpu.vector_store %arg12[%438, %c0_236, %c0_237], %441 {strides = array<i32>} : memref<8x4x32xf32, #tpu.memory_space<vmem>>, vector<1x4x32xf32>,
    %c4_i32 = arith.constant 4 : i32
    %c7_i32_238 = arith.constant 7 : i32
    %442 = arith.subi %c7_i32_238, %c4_i32 : i32
    %c0_239 = arith.constant 0 : index
    %443 = arith.index_cast %c4_i32 : i32 to index
    %c0_240 = arith.constant 0 : index
    %c0_241 = arith.constant 0 : index
    %444 = vector.load %arg10[%c0_239, %443, %c0_240, %c0_241] : memref<6x8x4x32xf32, #tpu.memory_space<vmem>>, vector<1x1x4x32xf32>
    %445 = vector.shape_cast %444 : vector<1x1x4x32xf32> to vector<4x32xf32>
    %c1_242 = arith.constant 1 : index
    %446 = arith.index_cast %c4_i32 : i32 to index
    %c0_243 = arith.constant 0 : index
    %c0_244 = arith.constant 0 : index
    %447 = vector.load %arg10[%c1_242, %446, %c0_243, %c0_244] : memref<6x8x4x32xf32, #tpu.memory_space<vmem>>, vector<1x1x4x32xf32>
    %448 = vector.shape_cast %447 : vector<1x1x4x32xf32> to vector<4x32xf32>
    %c2_245 = arith.constant 2 : index
    %449 = arith.index_cast %c4_i32 : i32 to index
    %c0_246 = arith.constant 0 : index
    %c0_247 = arith.constant 0 : index
    %450 = vector.load %arg10[%c2_245, %449, %c0_246, %c0_247] : memref<6x8x4x32xf32, #tpu.memory_space<vmem>>, vector<1x1x4x32xf32>
    %451 = vector.shape_cast %450 : vector<1x1x4x32xf32> to vector<4x32xf32>
    %452 = arith.truncf %394 : vector<4x32xf32> to vector<4x32xbf16>
    %cst_248 = arith.constant dense<0.000000e+00> : vector<4x32xf32>
    %453 = tpu.matmul %452, %70, %cst_248 {dimension_numbers = #tpu.dot_dimension_numbers<[1], [0], [0], [1], [0, 0, 1, 1], [], []>} : vector<4x32xbf16>, vector<32x32xbf16>, vector<4x32xf32> -> vector<4x32xf32>
    %454 = vector.broadcast %82 : vector<1x32xf32> to vector<4x32xf32>
    %455 = arith.addf %453, %454 : vector<4x32xf32>
    %cst_249 = arith.constant dense<0.000000e+00> : vector<4x32xf32>
    %456 = tpu.matmul %452, %72, %cst_249 {dimension_numbers = #tpu.dot_dimension_numbers<[1], [0], [0], [1], [0, 0, 1, 1], [], []>} : vector<4x32xbf16>, vector<32x32xbf16>, vector<4x32xf32> -> vector<4x32xf32>
    %457 = vector.broadcast %84 : vector<1x32xf32> to vector<4x32xf32>
    %458 = arith.addf %456, %457 : vector<4x32xf32>
    %cst_250 = arith.constant dense<0.000000e+00> : vector<4x32xf32>
    %459 = tpu.matmul %452, %74, %cst_250 {dimension_numbers = #tpu.dot_dimension_numbers<[1], [0], [0], [1], [0, 0, 1, 1], [], []>} : vector<4x32xbf16>, vector<32x32xbf16>, vector<4x32xf32> -> vector<4x32xf32>
    %460 = vector.broadcast %86 : vector<1x32xf32> to vector<4x32xf32>
    %461 = arith.addf %459, %460 : vector<4x32xf32>
    %462 = arith.addf %445, %455 : vector<4x32xf32>
    %463 = arith.negf %462 : vector<4x32xf32>
    %464 = math.exp %463 : vector<4x32xf32>
    %cst_251 = arith.constant 1.000000e+00 : f32
    %465 = vector.broadcast %cst_251 : f32 to vector<4x32xf32>
    %466 = arith.addf %465, %464 : vector<4x32xf32>
    %467 = arith.divf %465, %466 : vector<4x32xf32>
    %468 = arith.addf %448, %458 : vector<4x32xf32>
    %469 = arith.negf %468 : vector<4x32xf32>
    %470 = math.exp %469 : vector<4x32xf32>
    %cst_252 = arith.constant 1.000000e+00 : f32
    %471 = vector.broadcast %cst_252 : f32 to vector<4x32xf32>
    %472 = arith.addf %471, %470 : vector<4x32xf32>
    %473 = arith.divf %471, %472 : vector<4x32xf32>
    %474 = arith.mulf %467, %461 : vector<4x32xf32>
    %475 = arith.addf %451, %474 : vector<4x32xf32>
    %476 = math.tanh %475 : vector<4x32xf32>
    %cst_253 = arith.constant 1.000000e+00 : f32
    %477 = vector.broadcast %cst_253 : f32 to vector<4x32xf32>
    %478 = arith.subf %477, %473 : vector<4x32xf32>
    %479 = arith.mulf %478, %476 : vector<4x32xf32>
    %480 = arith.mulf %473, %394 : vector<4x32xf32>
    %481 = arith.addf %479, %480 : vector<4x32xf32>
    %c3_254 = arith.constant 3 : index
    %482 = arith.index_cast %442 : i32 to index
    %c0_255 = arith.constant 0 : index
    %c0_256 = arith.constant 0 : index
    %483 = vector.load %arg10[%c3_254, %482, %c0_255, %c0_256] : memref<6x8x4x32xf32, #tpu.memory_space<vmem>>, vector<1x1x4x32xf32>
    %484 = vector.shape_cast %483 : vector<1x1x4x32xf32> to vector<4x32xf32>
    %c4_257 = arith.constant 4 : index
    %485 = arith.index_cast %442 : i32 to index
    %c0_258 = arith.constant 0 : index
    %c0_259 = arith.constant 0 : index
    %486 = vector.load %arg10[%c4_257, %485, %c0_258, %c0_259] : memref<6x8x4x32xf32, #tpu.memory_space<vmem>>, vector<1x1x4x32xf32>
    %487 = vector.shape_cast %486 : vector<1x1x4x32xf32> to vector<4x32xf32>
    %c5_260 = arith.constant 5 : index
    %488 = arith.index_cast %442 : i32 to index
    %c0_261 = arith.constant 0 : index
    %c0_262 = arith.constant 0 : index
    %489 = vector.load %arg10[%c5_260, %488, %c0_261, %c0_262] : memref<6x8x4x32xf32, #tpu.memory_space<vmem>>, vector<1x1x4x32xf32>
    %490 = vector.shape_cast %489 : vector<1x1x4x32xf32> to vector<4x32xf32>
    %491 = arith.truncf %433 : vector<4x32xf32> to vector<4x32xbf16>
    %cst_263 = arith.constant dense<0.000000e+00> : vector<4x32xf32>
    %492 = tpu.matmul %491, %76, %cst_263 {dimension_numbers = #tpu.dot_dimension_numbers<[1], [0], [0], [1], [0, 0, 1, 1], [], []>} : vector<4x32xbf16>, vector<32x32xbf16>, vector<4x32xf32> -> vector<4x32xf32>
    %493 = vector.broadcast %88 : vector<1x32xf32> to vector<4x32xf32>
    %494 = arith.addf %492, %493 : vector<4x32xf32>
    %cst_264 = arith.constant dense<0.000000e+00> : vector<4x32xf32>
    %495 = tpu.matmul %491, %78, %cst_264 {dimension_numbers = #tpu.dot_dimension_numbers<[1], [0], [0], [1], [0, 0, 1, 1], [], []>} : vector<4x32xbf16>, vector<32x32xbf16>, vector<4x32xf32> -> vector<4x32xf32>
    %496 = vector.broadcast %90 : vector<1x32xf32> to vector<4x32xf32>
    %497 = arith.addf %495, %496 : vector<4x32xf32>
    %cst_265 = arith.constant dense<0.000000e+00> : vector<4x32xf32>
    %498 = tpu.matmul %491, %80, %cst_265 {dimension_numbers = #tpu.dot_dimension_numbers<[1], [0], [0], [1], [0, 0, 1, 1], [], []>} : vector<4x32xbf16>, vector<32x32xbf16>, vector<4x32xf32> -> vector<4x32xf32>
    %499 = vector.broadcast %92 : vector<1x32xf32> to vector<4x32xf32>
    %500 = arith.addf %498, %499 : vector<4x32xf32>
    %501 = arith.addf %484, %494 : vector<4x32xf32>
    %502 = arith.negf %501 : vector<4x32xf32>
    %503 = math.exp %502 : vector<4x32xf32>
    %cst_266 = arith.constant 1.000000e+00 : f32
    %504 = vector.broadcast %cst_266 : f32 to vector<4x32xf32>
    %505 = arith.addf %504, %503 : vector<4x32xf32>
    %506 = arith.divf %504, %505 : vector<4x32xf32>
    %507 = arith.addf %487, %497 : vector<4x32xf32>
    %508 = arith.negf %507 : vector<4x32xf32>
    %509 = math.exp %508 : vector<4x32xf32>
    %cst_267 = arith.constant 1.000000e+00 : f32
    %510 = vector.broadcast %cst_267 : f32 to vector<4x32xf32>
    %511 = arith.addf %510, %509 : vector<4x32xf32>
    %512 = arith.divf %510, %511 : vector<4x32xf32>
    %513 = arith.mulf %506, %500 : vector<4x32xf32>
    %514 = arith.addf %490, %513 : vector<4x32xf32>
    %515 = math.tanh %514 : vector<4x32xf32>
    %cst_268 = arith.constant 1.000000e+00 : f32
    %516 = vector.broadcast %cst_268 : f32 to vector<4x32xf32>
    %517 = arith.subf %516, %512 : vector<4x32xf32>
    %518 = arith.mulf %517, %515 : vector<4x32xf32>
    %519 = arith.mulf %512, %433 : vector<4x32xf32>
    %520 = arith.addf %518, %519 : vector<4x32xf32>
    %521 = arith.index_cast %c4_i32 : i32 to index
    %c0_269 = arith.constant 0 : index
    %c0_270 = arith.constant 0 : index
    %522 = vector.load %arg11[%521, %c0_269, %c0_270] : memref<8x4x32xf32, #tpu.memory_space<vmem>>, vector<1x4x32xf32>
    %523 = vector.shape_cast %522 : vector<1x4x32xf32> to vector<4x32xf32>
    %524 = vector.shape_cast %481 : vector<4x32xf32> to vector<1x4x32xf32>
    tpu.vector_store %arg11[%521, %c0_269, %c0_270], %524 {strides = array<i32>} : memref<8x4x32xf32, #tpu.memory_space<vmem>>, vector<1x4x32xf32>,
    %525 = arith.index_cast %442 : i32 to index
    %c0_271 = arith.constant 0 : index
    %c0_272 = arith.constant 0 : index
    %526 = vector.load %arg12[%525, %c0_271, %c0_272] : memref<8x4x32xf32, #tpu.memory_space<vmem>>, vector<1x4x32xf32>
    %527 = vector.shape_cast %526 : vector<1x4x32xf32> to vector<4x32xf32>
    %528 = vector.shape_cast %520 : vector<4x32xf32> to vector<1x4x32xf32>
    tpu.vector_store %arg12[%525, %c0_271, %c0_272], %528 {strides = array<i32>} : memref<8x4x32xf32, #tpu.memory_space<vmem>>, vector<1x4x32xf32>,
    %c5_i32 = arith.constant 5 : i32
    %c7_i32_273 = arith.constant 7 : i32
    %529 = arith.subi %c7_i32_273, %c5_i32 : i32
    %c0_274 = arith.constant 0 : index
    %530 = arith.index_cast %c5_i32 : i32 to index
    %c0_275 = arith.constant 0 : index
    %c0_276 = arith.constant 0 : index
    %531 = vector.load %arg10[%c0_274, %530, %c0_275, %c0_276] : memref<6x8x4x32xf32, #tpu.memory_space<vmem>>, vector<1x1x4x32xf32>
    %532 = vector.shape_cast %531 : vector<1x1x4x32xf32> to vector<4x32xf32>
    %c1_277 = arith.constant 1 : index
    %533 = arith.index_cast %c5_i32 : i32 to index
    %c0_278 = arith.constant 0 : index
    %c0_279 = arith.constant 0 : index
    %534 = vector.load %arg10[%c1_277, %533, %c0_278, %c0_279] : memref<6x8x4x32xf32, #tpu.memory_space<vmem>>, vector<1x1x4x32xf32>
    %535 = vector.shape_cast %534 : vector<1x1x4x32xf32> to vector<4x32xf32>
    %c2_280 = arith.constant 2 : index
    %536 = arith.index_cast %c5_i32 : i32 to index
    %c0_281 = arith.constant 0 : index
    %c0_282 = arith.constant 0 : index
    %537 = vector.load %arg10[%c2_280, %536, %c0_281, %c0_282] : memref<6x8x4x32xf32, #tpu.memory_space<vmem>>, vector<1x1x4x32xf32>
    %538 = vector.shape_cast %537 : vector<1x1x4x32xf32> to vector<4x32xf32>
    %539 = arith.truncf %481 : vector<4x32xf32> to vector<4x32xbf16>
    %cst_283 = arith.constant dense<0.000000e+00> : vector<4x32xf32>
    %540 = tpu.matmul %539, %70, %cst_283 {dimension_numbers = #tpu.dot_dimension_numbers<[1], [0], [0], [1], [0, 0, 1, 1], [], []>} : vector<4x32xbf16>, vector<32x32xbf16>, vector<4x32xf32> -> vector<4x32xf32>
    %541 = vector.broadcast %82 : vector<1x32xf32> to vector<4x32xf32>
    %542 = arith.addf %540, %541 : vector<4x32xf32>
    %cst_284 = arith.constant dense<0.000000e+00> : vector<4x32xf32>
    %543 = tpu.matmul %539, %72, %cst_284 {dimension_numbers = #tpu.dot_dimension_numbers<[1], [0], [0], [1], [0, 0, 1, 1], [], []>} : vector<4x32xbf16>, vector<32x32xbf16>, vector<4x32xf32> -> vector<4x32xf32>
    %544 = vector.broadcast %84 : vector<1x32xf32> to vector<4x32xf32>
    %545 = arith.addf %543, %544 : vector<4x32xf32>
    %cst_285 = arith.constant dense<0.000000e+00> : vector<4x32xf32>
    %546 = tpu.matmul %539, %74, %cst_285 {dimension_numbers = #tpu.dot_dimension_numbers<[1], [0], [0], [1], [0, 0, 1, 1], [], []>} : vector<4x32xbf16>, vector<32x32xbf16>, vector<4x32xf32> -> vector<4x32xf32>
    %547 = vector.broadcast %86 : vector<1x32xf32> to vector<4x32xf32>
    %548 = arith.addf %546, %547 : vector<4x32xf32>
    %549 = arith.addf %532, %542 : vector<4x32xf32>
    %550 = arith.negf %549 : vector<4x32xf32>
    %551 = math.exp %550 : vector<4x32xf32>
    %cst_286 = arith.constant 1.000000e+00 : f32
    %552 = vector.broadcast %cst_286 : f32 to vector<4x32xf32>
    %553 = arith.addf %552, %551 : vector<4x32xf32>
    %554 = arith.divf %552, %553 : vector<4x32xf32>
    %555 = arith.addf %535, %545 : vector<4x32xf32>
    %556 = arith.negf %555 : vector<4x32xf32>
    %557 = math.exp %556 : vector<4x32xf32>
    %cst_287 = arith.constant 1.000000e+00 : f32
    %558 = vector.broadcast %cst_287 : f32 to vector<4x32xf32>
    %559 = arith.addf %558, %557 : vector<4x32xf32>
    %560 = arith.divf %558, %559 : vector<4x32xf32>
    %561 = arith.mulf %554, %548 : vector<4x32xf32>
    %562 = arith.addf %538, %561 : vector<4x32xf32>
    %563 = math.tanh %562 : vector<4x32xf32>
    %cst_288 = arith.constant 1.000000e+00 : f32
    %564 = vector.broadcast %cst_288 : f32 to vector<4x32xf32>
    %565 = arith.subf %564, %560 : vector<4x32xf32>
    %566 = arith.mulf %565, %563 : vector<4x32xf32>
    %567 = arith.mulf %560, %481 : vector<4x32xf32>
    %568 = arith.addf %566, %567 : vector<4x32xf32>
    %c3_289 = arith.constant 3 : index
    %569 = arith.index_cast %529 : i32 to index
    %c0_290 = arith.constant 0 : index
    %c0_291 = arith.constant 0 : index
    %570 = vector.load %arg10[%c3_289, %569, %c0_290, %c0_291] : memref<6x8x4x32xf32, #tpu.memory_space<vmem>>, vector<1x1x4x32xf32>
    %571 = vector.shape_cast %570 : vector<1x1x4x32xf32> to vector<4x32xf32>
    %c4_292 = arith.constant 4 : index
    %572 = arith.index_cast %529 : i32 to index
    %c0_293 = arith.constant 0 : index
    %c0_294 = arith.constant 0 : index
    %573 = vector.load %arg10[%c4_292, %572, %c0_293, %c0_294] : memref<6x8x4x32xf32, #tpu.memory_space<vmem>>, vector<1x1x4x32xf32>
    %574 = vector.shape_cast %573 : vector<1x1x4x32xf32> to vector<4x32xf32>
    %c5_295 = arith.constant 5 : index
    %575 = arith.index_cast %529 : i32 to index
    %c0_296 = arith.constant 0 : index
    %c0_297 = arith.constant 0 : index
    %576 = vector.load %arg10[%c5_295, %575, %c0_296, %c0_297] : memref<6x8x4x32xf32, #tpu.memory_space<vmem>>, vector<1x1x4x32xf32>
    %577 = vector.shape_cast %576 : vector<1x1x4x32xf32> to vector<4x32xf32>
    %578 = arith.truncf %520 : vector<4x32xf32> to vector<4x32xbf16>
    %cst_298 = arith.constant dense<0.000000e+00> : vector<4x32xf32>
    %579 = tpu.matmul %578, %76, %cst_298 {dimension_numbers = #tpu.dot_dimension_numbers<[1], [0], [0], [1], [0, 0, 1, 1], [], []>} : vector<4x32xbf16>, vector<32x32xbf16>, vector<4x32xf32> -> vector<4x32xf32>
    %580 = vector.broadcast %88 : vector<1x32xf32> to vector<4x32xf32>
    %581 = arith.addf %579, %580 : vector<4x32xf32>
    %cst_299 = arith.constant dense<0.000000e+00> : vector<4x32xf32>
    %582 = tpu.matmul %578, %78, %cst_299 {dimension_numbers = #tpu.dot_dimension_numbers<[1], [0], [0], [1], [0, 0, 1, 1], [], []>} : vector<4x32xbf16>, vector<32x32xbf16>, vector<4x32xf32> -> vector<4x32xf32>
    %583 = vector.broadcast %90 : vector<1x32xf32> to vector<4x32xf32>
    %584 = arith.addf %582, %583 : vector<4x32xf32>
    %cst_300 = arith.constant dense<0.000000e+00> : vector<4x32xf32>
    %585 = tpu.matmul %578, %80, %cst_300 {dimension_numbers = #tpu.dot_dimension_numbers<[1], [0], [0], [1], [0, 0, 1, 1], [], []>} : vector<4x32xbf16>, vector<32x32xbf16>, vector<4x32xf32> -> vector<4x32xf32>
    %586 = vector.broadcast %92 : vector<1x32xf32> to vector<4x32xf32>
    %587 = arith.addf %585, %586 : vector<4x32xf32>
    %588 = arith.addf %571, %581 : vector<4x32xf32>
    %589 = arith.negf %588 : vector<4x32xf32>
    %590 = math.exp %589 : vector<4x32xf32>
    %cst_301 = arith.constant 1.000000e+00 : f32
    %591 = vector.broadcast %cst_301 : f32 to vector<4x32xf32>
    %592 = arith.addf %591, %590 : vector<4x32xf32>
    %593 = arith.divf %591, %592 : vector<4x32xf32>
    %594 = arith.addf %574, %584 : vector<4x32xf32>
    %595 = arith.negf %594 : vector<4x32xf32>
    %596 = math.exp %595 : vector<4x32xf32>
    %cst_302 = arith.constant 1.000000e+00 : f32
    %597 = vector.broadcast %cst_302 : f32 to vector<4x32xf32>
    %598 = arith.addf %597, %596 : vector<4x32xf32>
    %599 = arith.divf %597, %598 : vector<4x32xf32>
    %600 = arith.mulf %593, %587 : vector<4x32xf32>
    %601 = arith.addf %577, %600 : vector<4x32xf32>
    %602 = math.tanh %601 : vector<4x32xf32>
    %cst_303 = arith.constant 1.000000e+00 : f32
    %603 = vector.broadcast %cst_303 : f32 to vector<4x32xf32>
    %604 = arith.subf %603, %599 : vector<4x32xf32>
    %605 = arith.mulf %604, %602 : vector<4x32xf32>
    %606 = arith.mulf %599, %520 : vector<4x32xf32>
    %607 = arith.addf %605, %606 : vector<4x32xf32>
    %608 = arith.index_cast %c5_i32 : i32 to index
    %c0_304 = arith.constant 0 : index
    %c0_305 = arith.constant 0 : index
    %609 = vector.load %arg11[%608, %c0_304, %c0_305] : memref<8x4x32xf32, #tpu.memory_space<vmem>>, vector<1x4x32xf32>
    %610 = vector.shape_cast %609 : vector<1x4x32xf32> to vector<4x32xf32>
    %611 = vector.shape_cast %568 : vector<4x32xf32> to vector<1x4x32xf32>
    tpu.vector_store %arg11[%608, %c0_304, %c0_305], %611 {strides = array<i32>} : memref<8x4x32xf32, #tpu.memory_space<vmem>>, vector<1x4x32xf32>,
    %612 = arith.index_cast %529 : i32 to index
    %c0_306 = arith.constant 0 : index
    %c0_307 = arith.constant 0 : index
    %613 = vector.load %arg12[%612, %c0_306, %c0_307] : memref<8x4x32xf32, #tpu.memory_space<vmem>>, vector<1x4x32xf32>
    %614 = vector.shape_cast %613 : vector<1x4x32xf32> to vector<4x32xf32>
    %615 = vector.shape_cast %607 : vector<4x32xf32> to vector<1x4x32xf32>
    tpu.vector_store %arg12[%612, %c0_306, %c0_307], %615 {strides = array<i32>} : memref<8x4x32xf32, #tpu.memory_space<vmem>>, vector<1x4x32xf32>,
    %c6_i32 = arith.constant 6 : i32
    %c7_i32_308 = arith.constant 7 : i32
    %616 = arith.subi %c7_i32_308, %c6_i32 : i32
    %c0_309 = arith.constant 0 : index
    %617 = arith.index_cast %c6_i32 : i32 to index
    %c0_310 = arith.constant 0 : index
    %c0_311 = arith.constant 0 : index
    %618 = vector.load %arg10[%c0_309, %617, %c0_310, %c0_311] : memref<6x8x4x32xf32, #tpu.memory_space<vmem>>, vector<1x1x4x32xf32>
    %619 = vector.shape_cast %618 : vector<1x1x4x32xf32> to vector<4x32xf32>
    %c1_312 = arith.constant 1 : index
    %620 = arith.index_cast %c6_i32 : i32 to index
    %c0_313 = arith.constant 0 : index
    %c0_314 = arith.constant 0 : index
    %621 = vector.load %arg10[%c1_312, %620, %c0_313, %c0_314] : memref<6x8x4x32xf32, #tpu.memory_space<vmem>>, vector<1x1x4x32xf32>
    %622 = vector.shape_cast %621 : vector<1x1x4x32xf32> to vector<4x32xf32>
    %c2_315 = arith.constant 2 : index
    %623 = arith.index_cast %c6_i32 : i32 to index
    %c0_316 = arith.constant 0 : index
    %c0_317 = arith.constant 0 : index
    %624 = vector.load %arg10[%c2_315, %623, %c0_316, %c0_317] : memref<6x8x4x32xf32, #tpu.memory_space<vmem>>, vector<1x1x4x32xf32>
    %625 = vector.shape_cast %624 : vector<1x1x4x32xf32> to vector<4x32xf32>
    %626 = arith.truncf %568 : vector<4x32xf32> to vector<4x32xbf16>
    %cst_318 = arith.constant dense<0.000000e+00> : vector<4x32xf32>
    %627 = tpu.matmul %626, %70, %cst_318 {dimension_numbers = #tpu.dot_dimension_numbers<[1], [0], [0], [1], [0, 0, 1, 1], [], []>} : vector<4x32xbf16>, vector<32x32xbf16>, vector<4x32xf32> -> vector<4x32xf32>
    %628 = vector.broadcast %82 : vector<1x32xf32> to vector<4x32xf32>
    %629 = arith.addf %627, %628 : vector<4x32xf32>
    %cst_319 = arith.constant dense<0.000000e+00> : vector<4x32xf32>
    %630 = tpu.matmul %626, %72, %cst_319 {dimension_numbers = #tpu.dot_dimension_numbers<[1], [0], [0], [1], [0, 0, 1, 1], [], []>} : vector<4x32xbf16>, vector<32x32xbf16>, vector<4x32xf32> -> vector<4x32xf32>
    %631 = vector.broadcast %84 : vector<1x32xf32> to vector<4x32xf32>
    %632 = arith.addf %630, %631 : vector<4x32xf32>
    %cst_320 = arith.constant dense<0.000000e+00> : vector<4x32xf32>
    %633 = tpu.matmul %626, %74, %cst_320 {dimension_numbers = #tpu.dot_dimension_numbers<[1], [0], [0], [1], [0, 0, 1, 1], [], []>} : vector<4x32xbf16>, vector<32x32xbf16>, vector<4x32xf32> -> vector<4x32xf32>
    %634 = vector.broadcast %86 : vector<1x32xf32> to vector<4x32xf32>
    %635 = arith.addf %633, %634 : vector<4x32xf32>
    %636 = arith.addf %619, %629 : vector<4x32xf32>
    %637 = arith.negf %636 : vector<4x32xf32>
    %638 = math.exp %637 : vector<4x32xf32>
    %cst_321 = arith.constant 1.000000e+00 : f32
    %639 = vector.broadcast %cst_321 : f32 to vector<4x32xf32>
    %640 = arith.addf %639, %638 : vector<4x32xf32>
    %641 = arith.divf %639, %640 : vector<4x32xf32>
    %642 = arith.addf %622, %632 : vector<4x32xf32>
    %643 = arith.negf %642 : vector<4x32xf32>
    %644 = math.exp %643 : vector<4x32xf32>
    %cst_322 = arith.constant 1.000000e+00 : f32
    %645 = vector.broadcast %cst_322 : f32 to vector<4x32xf32>
    %646 = arith.addf %645, %644 : vector<4x32xf32>
    %647 = arith.divf %645, %646 : vector<4x32xf32>
    %648 = arith.mulf %641, %635 : vector<4x32xf32>
    %649 = arith.addf %625, %648 : vector<4x32xf32>
    %650 = math.tanh %649 : vector<4x32xf32>
    %cst_323 = arith.constant 1.000000e+00 : f32
    %651 = vector.broadcast %cst_323 : f32 to vector<4x32xf32>
    %652 = arith.subf %651, %647 : vector<4x32xf32>
    %653 = arith.mulf %652, %650 : vector<4x32xf32>
    %654 = arith.mulf %647, %568 : vector<4x32xf32>
    %655 = arith.addf %653, %654 : vector<4x32xf32>
    %c3_324 = arith.constant 3 : index
    %656 = arith.index_cast %616 : i32 to index
    %c0_325 = arith.constant 0 : index
    %c0_326 = arith.constant 0 : index
    %657 = vector.load %arg10[%c3_324, %656, %c0_325, %c0_326] : memref<6x8x4x32xf32, #tpu.memory_space<vmem>>, vector<1x1x4x32xf32>
    %658 = vector.shape_cast %657 : vector<1x1x4x32xf32> to vector<4x32xf32>
    %c4_327 = arith.constant 4 : index
    %659 = arith.index_cast %616 : i32 to index
    %c0_328 = arith.constant 0 : index
    %c0_329 = arith.constant 0 : index
    %660 = vector.load %arg10[%c4_327, %659, %c0_328, %c0_329] : memref<6x8x4x32xf32, #tpu.memory_space<vmem>>, vector<1x1x4x32xf32>
    %661 = vector.shape_cast %660 : vector<1x1x4x32xf32> to vector<4x32xf32>
    %c5_330 = arith.constant 5 : index
    %662 = arith.index_cast %616 : i32 to index
    %c0_331 = arith.constant 0 : index
    %c0_332 = arith.constant 0 : index
    %663 = vector.load %arg10[%c5_330, %662, %c0_331, %c0_332] : memref<6x8x4x32xf32, #tpu.memory_space<vmem>>, vector<1x1x4x32xf32>
    %664 = vector.shape_cast %663 : vector<1x1x4x32xf32> to vector<4x32xf32>
    %665 = arith.truncf %607 : vector<4x32xf32> to vector<4x32xbf16>
    %cst_333 = arith.constant dense<0.000000e+00> : vector<4x32xf32>
    %666 = tpu.matmul %665, %76, %cst_333 {dimension_numbers = #tpu.dot_dimension_numbers<[1], [0], [0], [1], [0, 0, 1, 1], [], []>} : vector<4x32xbf16>, vector<32x32xbf16>, vector<4x32xf32> -> vector<4x32xf32>
    %667 = vector.broadcast %88 : vector<1x32xf32> to vector<4x32xf32>
    %668 = arith.addf %666, %667 : vector<4x32xf32>
    %cst_334 = arith.constant dense<0.000000e+00> : vector<4x32xf32>
    %669 = tpu.matmul %665, %78, %cst_334 {dimension_numbers = #tpu.dot_dimension_numbers<[1], [0], [0], [1], [0, 0, 1, 1], [], []>} : vector<4x32xbf16>, vector<32x32xbf16>, vector<4x32xf32> -> vector<4x32xf32>
    %670 = vector.broadcast %90 : vector<1x32xf32> to vector<4x32xf32>
    %671 = arith.addf %669, %670 : vector<4x32xf32>
    %cst_335 = arith.constant dense<0.000000e+00> : vector<4x32xf32>
    %672 = tpu.matmul %665, %80, %cst_335 {dimension_numbers = #tpu.dot_dimension_numbers<[1], [0], [0], [1], [0, 0, 1, 1], [], []>} : vector<4x32xbf16>, vector<32x32xbf16>, vector<4x32xf32> -> vector<4x32xf32>
    %673 = vector.broadcast %92 : vector<1x32xf32> to vector<4x32xf32>
    %674 = arith.addf %672, %673 : vector<4x32xf32>
    %675 = arith.addf %658, %668 : vector<4x32xf32>
    %676 = arith.negf %675 : vector<4x32xf32>
    %677 = math.exp %676 : vector<4x32xf32>
    %cst_336 = arith.constant 1.000000e+00 : f32
    %678 = vector.broadcast %cst_336 : f32 to vector<4x32xf32>
    %679 = arith.addf %678, %677 : vector<4x32xf32>
    %680 = arith.divf %678, %679 : vector<4x32xf32>
    %681 = arith.addf %661, %671 : vector<4x32xf32>
    %682 = arith.negf %681 : vector<4x32xf32>
    %683 = math.exp %682 : vector<4x32xf32>
    %cst_337 = arith.constant 1.000000e+00 : f32
    %684 = vector.broadcast %cst_337 : f32 to vector<4x32xf32>
    %685 = arith.addf %684, %683 : vector<4x32xf32>
    %686 = arith.divf %684, %685 : vector<4x32xf32>
    %687 = arith.mulf %680, %674 : vector<4x32xf32>
    %688 = arith.addf %664, %687 : vector<4x32xf32>
    %689 = math.tanh %688 : vector<4x32xf32>
    %cst_338 = arith.constant 1.000000e+00 : f32
    %690 = vector.broadcast %cst_338 : f32 to vector<4x32xf32>
    %691 = arith.subf %690, %686 : vector<4x32xf32>
    %692 = arith.mulf %691, %689 : vector<4x32xf32>
    %693 = arith.mulf %686, %607 : vector<4x32xf32>
    %694 = arith.addf %692, %693 : vector<4x32xf32>
    %695 = arith.index_cast %c6_i32 : i32 to index
    %c0_339 = arith.constant 0 : index
    %c0_340 = arith.constant 0 : index
    %696 = vector.load %arg11[%695, %c0_339, %c0_340] : memref<8x4x32xf32, #tpu.memory_space<vmem>>, vector<1x4x32xf32>
    %697 = vector.shape_cast %696 : vector<1x4x32xf32> to vector<4x32xf32>
    %698 = vector.shape_cast %655 : vector<4x32xf32> to vector<1x4x32xf32>
    tpu.vector_store %arg11[%695, %c0_339, %c0_340], %698 {strides = array<i32>} : memref<8x4x32xf32, #tpu.memory_space<vmem>>, vector<1x4x32xf32>,
    %699 = arith.index_cast %616 : i32 to index
    %c0_341 = arith.constant 0 : index
    %c0_342 = arith.constant 0 : index
    %700 = vector.load %arg12[%699, %c0_341, %c0_342] : memref<8x4x32xf32, #tpu.memory_space<vmem>>, vector<1x4x32xf32>
    %701 = vector.shape_cast %700 : vector<1x4x32xf32> to vector<4x32xf32>
    %702 = vector.shape_cast %694 : vector<4x32xf32> to vector<1x4x32xf32>
    tpu.vector_store %arg12[%699, %c0_341, %c0_342], %702 {strides = array<i32>} : memref<8x4x32xf32, #tpu.memory_space<vmem>>, vector<1x4x32xf32>,
    %c7_i32_343 = arith.constant 7 : i32
    %c7_i32_344 = arith.constant 7 : i32
    %703 = arith.subi %c7_i32_344, %c7_i32_343 : i32
    %c0_345 = arith.constant 0 : index
    %704 = arith.index_cast %c7_i32_343 : i32 to index
    %c0_346 = arith.constant 0 : index
    %c0_347 = arith.constant 0 : index
    %705 = vector.load %arg10[%c0_345, %704, %c0_346, %c0_347] : memref<6x8x4x32xf32, #tpu.memory_space<vmem>>, vector<1x1x4x32xf32>
    %706 = vector.shape_cast %705 : vector<1x1x4x32xf32> to vector<4x32xf32>
    %c1_348 = arith.constant 1 : index
    %707 = arith.index_cast %c7_i32_343 : i32 to index
    %c0_349 = arith.constant 0 : index
    %c0_350 = arith.constant 0 : index
    %708 = vector.load %arg10[%c1_348, %707, %c0_349, %c0_350] : memref<6x8x4x32xf32, #tpu.memory_space<vmem>>, vector<1x1x4x32xf32>
    %709 = vector.shape_cast %708 : vector<1x1x4x32xf32> to vector<4x32xf32>
    %c2_351 = arith.constant 2 : index
    %710 = arith.index_cast %c7_i32_343 : i32 to index
    %c0_352 = arith.constant 0 : index
    %c0_353 = arith.constant 0 : index
    %711 = vector.load %arg10[%c2_351, %710, %c0_352, %c0_353] : memref<6x8x4x32xf32, #tpu.memory_space<vmem>>, vector<1x1x4x32xf32>
    %712 = vector.shape_cast %711 : vector<1x1x4x32xf32> to vector<4x32xf32>
    %713 = arith.truncf %655 : vector<4x32xf32> to vector<4x32xbf16>
    %cst_354 = arith.constant dense<0.000000e+00> : vector<4x32xf32>
    %714 = tpu.matmul %713, %70, %cst_354 {dimension_numbers = #tpu.dot_dimension_numbers<[1], [0], [0], [1], [0, 0, 1, 1], [], []>} : vector<4x32xbf16>, vector<32x32xbf16>, vector<4x32xf32> -> vector<4x32xf32>
    %715 = vector.broadcast %82 : vector<1x32xf32> to vector<4x32xf32>
    %716 = arith.addf %714, %715 : vector<4x32xf32>
    %cst_355 = arith.constant dense<0.000000e+00> : vector<4x32xf32>
    %717 = tpu.matmul %713, %72, %cst_355 {dimension_numbers = #tpu.dot_dimension_numbers<[1], [0], [0], [1], [0, 0, 1, 1], [], []>} : vector<4x32xbf16>, vector<32x32xbf16>, vector<4x32xf32> -> vector<4x32xf32>
    %718 = vector.broadcast %84 : vector<1x32xf32> to vector<4x32xf32>
    %719 = arith.addf %717, %718 : vector<4x32xf32>
    %cst_356 = arith.constant dense<0.000000e+00> : vector<4x32xf32>
    %720 = tpu.matmul %713, %74, %cst_356 {dimension_numbers = #tpu.dot_dimension_numbers<[1], [0], [0], [1], [0, 0, 1, 1], [], []>} : vector<4x32xbf16>, vector<32x32xbf16>, vector<4x32xf32> -> vector<4x32xf32>
    %721 = vector.broadcast %86 : vector<1x32xf32> to vector<4x32xf32>
    %722 = arith.addf %720, %721 : vector<4x32xf32>
    %723 = arith.addf %706, %716 : vector<4x32xf32>
    %724 = arith.negf %723 : vector<4x32xf32>
    %725 = math.exp %724 : vector<4x32xf32>
    %cst_357 = arith.constant 1.000000e+00 : f32
    %726 = vector.broadcast %cst_357 : f32 to vector<4x32xf32>
    %727 = arith.addf %726, %725 : vector<4x32xf32>
    %728 = arith.divf %726, %727 : vector<4x32xf32>
    %729 = arith.addf %709, %719 : vector<4x32xf32>
    %730 = arith.negf %729 : vector<4x32xf32>
    %731 = math.exp %730 : vector<4x32xf32>
    %cst_358 = arith.constant 1.000000e+00 : f32
    %732 = vector.broadcast %cst_358 : f32 to vector<4x32xf32>
    %733 = arith.addf %732, %731 : vector<4x32xf32>
    %734 = arith.divf %732, %733 : vector<4x32xf32>
    %735 = arith.mulf %728, %722 : vector<4x32xf32>
    %736 = arith.addf %712, %735 : vector<4x32xf32>
    %737 = math.tanh %736 : vector<4x32xf32>
    %cst_359 = arith.constant 1.000000e+00 : f32
    %738 = vector.broadcast %cst_359 : f32 to vector<4x32xf32>
    %739 = arith.subf %738, %734 : vector<4x32xf32>
    %740 = arith.mulf %739, %737 : vector<4x32xf32>
    %741 = arith.mulf %734, %655 : vector<4x32xf32>
    %742 = arith.addf %740, %741 : vector<4x32xf32>
    %c3_360 = arith.constant 3 : index
    %743 = arith.index_cast %703 : i32 to index
    %c0_361 = arith.constant 0 : index
    %c0_362 = arith.constant 0 : index
    %744 = vector.load %arg10[%c3_360, %743, %c0_361, %c0_362] : memref<6x8x4x32xf32, #tpu.memory_space<vmem>>, vector<1x1x4x32xf32>
    %745 = vector.shape_cast %744 : vector<1x1x4x32xf32> to vector<4x32xf32>
    %c4_363 = arith.constant 4 : index
    %746 = arith.index_cast %703 : i32 to index
    %c0_364 = arith.constant 0 : index
    %c0_365 = arith.constant 0 : index
    %747 = vector.load %arg10[%c4_363, %746, %c0_364, %c0_365] : memref<6x8x4x32xf32, #tpu.memory_space<vmem>>, vector<1x1x4x32xf32>
    %748 = vector.shape_cast %747 : vector<1x1x4x32xf32> to vector<4x32xf32>
    %c5_366 = arith.constant 5 : index
    %749 = arith.index_cast %703 : i32 to index
    %c0_367 = arith.constant 0 : index
    %c0_368 = arith.constant 0 : index
    %750 = vector.load %arg10[%c5_366, %749, %c0_367, %c0_368] : memref<6x8x4x32xf32, #tpu.memory_space<vmem>>, vector<1x1x4x32xf32>
    %751 = vector.shape_cast %750 : vector<1x1x4x32xf32> to vector<4x32xf32>
    %752 = arith.truncf %694 : vector<4x32xf32> to vector<4x32xbf16>
    %cst_369 = arith.constant dense<0.000000e+00> : vector<4x32xf32>
    %753 = tpu.matmul %752, %76, %cst_369 {dimension_numbers = #tpu.dot_dimension_numbers<[1], [0], [0], [1], [0, 0, 1, 1], [], []>} : vector<4x32xbf16>, vector<32x32xbf16>, vector<4x32xf32> -> vector<4x32xf32>
    %754 = vector.broadcast %88 : vector<1x32xf32> to vector<4x32xf32>
    %755 = arith.addf %753, %754 : vector<4x32xf32>
    %cst_370 = arith.constant dense<0.000000e+00> : vector<4x32xf32>
    %756 = tpu.matmul %752, %78, %cst_370 {dimension_numbers = #tpu.dot_dimension_numbers<[1], [0], [0], [1], [0, 0, 1, 1], [], []>} : vector<4x32xbf16>, vector<32x32xbf16>, vector<4x32xf32> -> vector<4x32xf32>
    %757 = vector.broadcast %90 : vector<1x32xf32> to vector<4x32xf32>
    %758 = arith.addf %756, %757 : vector<4x32xf32>
    %cst_371 = arith.constant dense<0.000000e+00> : vector<4x32xf32>
    %759 = tpu.matmul %752, %80, %cst_371 {dimension_numbers = #tpu.dot_dimension_numbers<[1], [0], [0], [1], [0, 0, 1, 1], [], []>} : vector<4x32xbf16>, vector<32x32xbf16>, vector<4x32xf32> -> vector<4x32xf32>
    %760 = vector.broadcast %92 : vector<1x32xf32> to vector<4x32xf32>
    %761 = arith.addf %759, %760 : vector<4x32xf32>
    %762 = arith.addf %745, %755 : vector<4x32xf32>
    %763 = arith.negf %762 : vector<4x32xf32>
    %764 = math.exp %763 : vector<4x32xf32>
    %cst_372 = arith.constant 1.000000e+00 : f32
    %765 = vector.broadcast %cst_372 : f32 to vector<4x32xf32>
    %766 = arith.addf %765, %764 : vector<4x32xf32>
    %767 = arith.divf %765, %766 : vector<4x32xf32>
    %768 = arith.addf %748, %758 : vector<4x32xf32>
    %769 = arith.negf %768 : vector<4x32xf32>
    %770 = math.exp %769 : vector<4x32xf32>
    %cst_373 = arith.constant 1.000000e+00 : f32
    %771 = vector.broadcast %cst_373 : f32 to vector<4x32xf32>
    %772 = arith.addf %771, %770 : vector<4x32xf32>
    %773 = arith.divf %771, %772 : vector<4x32xf32>
    %774 = arith.mulf %767, %761 : vector<4x32xf32>
    %775 = arith.addf %751, %774 : vector<4x32xf32>
    %776 = math.tanh %775 : vector<4x32xf32>
    %cst_374 = arith.constant 1.000000e+00 : f32
    %777 = vector.broadcast %cst_374 : f32 to vector<4x32xf32>
    %778 = arith.subf %777, %773 : vector<4x32xf32>
    %779 = arith.mulf %778, %776 : vector<4x32xf32>
    %780 = arith.mulf %773, %694 : vector<4x32xf32>
    %781 = arith.addf %779, %780 : vector<4x32xf32>
    %782 = arith.index_cast %c7_i32_343 : i32 to index
    %c0_375 = arith.constant 0 : index
    %c0_376 = arith.constant 0 : index
    %783 = vector.load %arg11[%782, %c0_375, %c0_376] : memref<8x4x32xf32, #tpu.memory_space<vmem>>, vector<1x4x32xf32>
    %784 = vector.shape_cast %783 : vector<1x4x32xf32> to vector<4x32xf32>
    %785 = vector.shape_cast %742 : vector<4x32xf32> to vector<1x4x32xf32>
    tpu.vector_store %arg11[%782, %c0_375, %c0_376], %785 {strides = array<i32>} : memref<8x4x32xf32, #tpu.memory_space<vmem>>, vector<1x4x32xf32>,
    %786 = arith.index_cast %703 : i32 to index
    %c0_377 = arith.constant 0 : index
    %c0_378 = arith.constant 0 : index
    %787 = vector.load %arg12[%786, %c0_377, %c0_378] : memref<8x4x32xf32, #tpu.memory_space<vmem>>, vector<1x4x32xf32>
    %788 = vector.shape_cast %787 : vector<1x4x32xf32> to vector<4x32xf32>
    %789 = vector.shape_cast %781 : vector<4x32xf32> to vector<1x4x32xf32>
    tpu.vector_store %arg12[%786, %c0_377, %c0_378], %789 {strides = array<i32>} : memref<8x4x32xf32, #tpu.memory_space<vmem>>, vector<1x4x32xf32>,
    %c8_i32 = arith.constant 8 : i32
    %c0_379 = arith.constant 0 : index
    %c0_380 = arith.constant 0 : index
    %c0_381 = arith.constant 0 : index
    %790 = vector.load %arg11[%c0_379, %c0_380, %c0_381] : memref<8x4x32xf32, #tpu.memory_space<vmem>>, vector<8x4x32xf32>
    %c0_382 = arith.constant 0 : index
    %c0_383 = arith.constant 0 : index
    %c0_384 = arith.constant 0 : index
    %791 = vector.load %arg12[%c0_382, %c0_383, %c0_384] : memref<8x4x32xf32, #tpu.memory_space<vmem>>, vector<8x4x32xf32>
    %792 = tpu.concatenate %790, %791 in 2 : vector<8x4x32xf32>, vector<8x4x32xf32> -> vector<8x4x64xf32>
    %c0_385 = arith.constant 0 : index
    %c0_386 = arith.constant 0 : index
    %c0_387 = arith.constant 0 : index
    %793 = vector.load %arg8[%c0_385, %c0_386, %c0_387] : memref<8x4x64xf32, #tpu.memory_space<vmem>>, vector<8x4x64xf32>
    tpu.vector_store %arg8[%c0_385, %c0_386, %c0_387], %792 {strides = array<i32>} : memref<8x4x64xf32, #tpu.memory_space<vmem>>, vector<8x4x64xf32>,
    %794 = arith.truncf %742 : vector<4x32xf32> to vector<4x32xbf16>
    %c0_388 = arith.constant 0 : index
    %c0_389 = arith.constant 0 : index
    %c0_390 = arith.constant 0 : index
    %795 = vector.load %arg6[%c0_388, %c0_389, %c0_390] : memref<2x32x32xbf16, #tpu.memory_space<vmem>>, vector<1x32x32xbf16>
    %796 = vector.shape_cast %795 : vector<1x32x32xbf16> to vector<32x32xbf16>
    %cst_391 = arith.constant dense<0.000000e+00> : vector<4x32xf32>
    %797 = tpu.matmul %794, %796, %cst_391 {dimension_numbers = #tpu.dot_dimension_numbers<[1], [0], [0], [1], [0, 0, 1, 1], [], []>} : vector<4x32xbf16>, vector<32x32xbf16>, vector<4x32xf32> -> vector<4x32xf32>
    %798 = arith.truncf %781 : vector<4x32xf32> to vector<4x32xbf16>
    %c1_392 = arith.constant 1 : index
    %c0_393 = arith.constant 0 : index
    %c0_394 = arith.constant 0 : index
    %799 = vector.load %arg6[%c1_392, %c0_393, %c0_394] : memref<2x32x32xbf16, #tpu.memory_space<vmem>>, vector<1x32x32xbf16>
    %800 = vector.shape_cast %799 : vector<1x32x32xbf16> to vector<32x32xbf16>
    %cst_395 = arith.constant dense<0.000000e+00> : vector<4x32xf32>
    %801 = tpu.matmul %798, %800, %cst_395 {dimension_numbers = #tpu.dot_dimension_numbers<[1], [0], [0], [1], [0, 0, 1, 1], [], []>} : vector<4x32xbf16>, vector<32x32xbf16>, vector<4x32xf32> -> vector<4x32xf32>
    %802 = arith.addf %797, %801 : vector<4x32xf32>
    %c0_396 = arith.constant 0 : index
    %c0_397 = arith.constant 0 : index
    %803 = vector.load %arg7[%c0_396, %c0_397] : memref<1x32xf32, #tpu.memory_space<vmem>>, vector<1x32xf32>
    %804 = vector.broadcast %803 : vector<1x32xf32> to vector<4x32xf32>
    %805 = arith.addf %802, %804 : vector<4x32xf32>
    %806 = math.tanh %805 : vector<4x32xf32>
    %c0_398 = arith.constant 0 : index
    %c0_399 = arith.constant 0 : index
    %807 = vector.load %arg9[%c0_398, %c0_399] : memref<4x32xf32, #tpu.memory_space<vmem>>, vector<4x32xf32>
    tpu.vector_store %arg9[%c0_398, %c0_399], %806 {strides = array<i32>} : memref<4x32xf32, #tpu.memory_space<vmem>>, vector<4x32xf32>,
    return
  }
  func.func @transform_0(%arg0: i32) -> (i32, i32, i32) {
    %c0_i32 = arith.constant 0 : i32
    %c0_i32_0 = arith.constant 0 : i32
    %c0_i32_1 = arith.constant 0 : i32
    %c0_i32_2 = arith.constant 0 : i32
    return %c0_i32, %c0_i32_0, %c0_i32_1 : i32, i32, i32
  }
  func.func @transform_1(%arg0: i32) -> (i32, i32, i32) {
    %c0_i32 = arith.constant 0 : i32
    %c0_i32_0 = arith.constant 0 : i32
    %c0_i32_1 = arith.constant 0 : i32
    %c0_i32_2 = arith.constant 0 : i32
    return %c0_i32, %c0_i32_0, %c0_i32_1 : i32, i32, i32
  }
  func.func @transform_2(%arg0: i32) -> (i32, i32, i32) {
    %c0_i32 = arith.constant 0 : i32
    %c0_i32_0 = arith.constant 0 : i32
    %c0_i32_1 = arith.constant 0 : i32
    %c0_i32_2 = arith.constant 0 : i32
    return %c0_i32, %c0_i32_0, %c0_i32_1 : i32, i32, i32
  }
  func.func @transform_3(%arg0: i32) -> (i32, i32, i32) {
    %c0_i32 = arith.constant 0 : i32
    %c0_i32_0 = arith.constant 0 : i32
    %c0_i32_1 = arith.constant 0 : i32
    %c0_i32_2 = arith.constant 0 : i32
    return %c0_i32, %c0_i32_0, %c0_i32_1 : i32, i32, i32
  }
  func.func @transform_4(%arg0: i32) -> (i32, i32, i32) {
    %c0_i32 = arith.constant 0 : i32
    %c0_i32_0 = arith.constant 0 : i32
    %c0_i32_1 = arith.constant 0 : i32
    %c0_i32_2 = arith.constant 0 : i32
    return %c0_i32, %c0_i32_0, %c0_i32_1 : i32, i32, i32
  }
  func.func @transform_5(%arg0: i32) -> (i32, i32, i32) {
    %c0_i32 = arith.constant 0 : i32
    %c0_i32_0 = arith.constant 0 : i32
    %c0_i32_1 = arith.constant 0 : i32
    %c0_i32_2 = arith.constant 0 : i32
    return %c0_i32, %c0_i32_0, %c0_i32_1 : i32, i32, i32
  }
  func.func @transform_6(%arg0: i32) -> (i32, i32) {
    %c0_i32 = arith.constant 0 : i32
    %c0_i32_0 = arith.constant 0 : i32
    %c0_i32_1 = arith.constant 0 : i32
    return %c0_i32, %c0_i32_0 : i32, i32
  }
  func.func @transform_7(%arg0: i32) -> (i32, i32, i32) {
    %c0_i32 = arith.constant 0 : i32
    %c0_i32_0 = arith.constant 0 : i32
    %c0_i32_1 = arith.constant 0 : i32
    %c0_i32_2 = arith.constant 0 : i32
    return %c0_i32, %c0_i32_0, %c0_i32_1 : i32, i32, i32
  }
  func.func @transform_8(%arg0: i32) -> (i32, i32) {
    %c0_i32 = arith.constant 0 : i32
    %c0_i32_0 = arith.constant 0 : i32
    %c0_i32_1 = arith.constant 0 : i32
    return %c0_i32, %c0_i32_0 : i32, i32
  }
}

module attributes {stable_mosaic.version = 11 : i64} {
  func.func @_bigru_layer_kernel(%arg0: i32, %arg1: memref<8x4x8xf32, #tpu.memory_space<vmem>>, %arg2: memref<6x8x32xbf16, #tpu.memory_space<vmem>>, %arg3: memref<6x32x32xbf16, #tpu.memory_space<vmem>>, %arg4: memref<6x1x32xf32, #tpu.memory_space<vmem>>, %arg5: memref<6x1x32xf32, #tpu.memory_space<vmem>>, %arg6: memref<2x32x32xbf16, #tpu.memory_space<vmem>>, %arg7: memref<1x32xf32, #tpu.memory_space<vmem>>, %arg8: memref<8x4x64xf32, #tpu.memory_space<vmem>>, %arg9: memref<4x32xf32, #tpu.memory_space<vmem>>, %arg10: memref<6x8x4x32xf32, #tpu.memory_space<vmem>>, %arg11: memref<8x4x32xf32, #tpu.memory_space<vmem>>, %arg12: memref<8x4x32xf32, #tpu.memory_space<vmem>>) attributes {dimension_semantics = [#tpu.dimension_semantics<arbitrary>], iteration_bounds = array<i64: 1>, scalar_prefetch = 0 : i64, scratch_operands = 3 : i64, tpu.core_type = #tpu.core_type<tc>, window_params = [{pipeline_mode = #tpu.pipeline_mode<synchronous>, transform_indices = @transform_0, window_bounds = array<i64: 8, 4, 8>}, {pipeline_mode = #tpu.pipeline_mode<synchronous>, transform_indices = @transform_1, window_bounds = array<i64: 6, 8, 32>}, {pipeline_mode = #tpu.pipeline_mode<synchronous>, transform_indices = @transform_2, window_bounds = array<i64: 6, 32, 32>}, {pipeline_mode = #tpu.pipeline_mode<synchronous>, transform_indices = @transform_3, window_bounds = array<i64: 6, 1, 32>}, {pipeline_mode = #tpu.pipeline_mode<synchronous>, transform_indices = @transform_4, window_bounds = array<i64: 6, 1, 32>}, {pipeline_mode = #tpu.pipeline_mode<synchronous>, transform_indices = @transform_5, window_bounds = array<i64: 2, 32, 32>}, {pipeline_mode = #tpu.pipeline_mode<synchronous>, transform_indices = @transform_6, window_bounds = array<i64: 1, 32>}, {pipeline_mode = #tpu.pipeline_mode<synchronous>, transform_indices = @transform_7, window_bounds = array<i64: 8, 4, 64>}, {pipeline_mode = #tpu.pipeline_mode<synchronous>, transform_indices = @transform_8, window_bounds = array<i64: 4, 32>}]} {
    %c0 = arith.constant 0 : index
    %c0_0 = arith.constant 0 : index
    %c0_1 = arith.constant 0 : index
    %0 = vector.load %arg1[%c0, %c0_0, %c0_1] : memref<8x4x8xf32, #tpu.memory_space<vmem>>, vector<8x4x8xf32>
    %1 = vector.shape_cast %0 : vector<8x4x8xf32> to vector<32x8xf32>
    %2 = arith.truncf %1 : vector<32x8xf32> to vector<32x8xbf16>
    %c0_2 = arith.constant 0 : index
    %c0_3 = arith.constant 0 : index
    %c0_4 = arith.constant 0 : index
    %3 = vector.load %arg2[%c0_2, %c0_3, %c0_4] : memref<6x8x32xbf16, #tpu.memory_space<vmem>>, vector<1x8x32xbf16>
    %4 = vector.shape_cast %3 : vector<1x8x32xbf16> to vector<8x32xbf16>
    %cst = arith.constant dense<0.000000e+00> : vector<32x32xf32>
    %5 = tpu.matmul %2, %4, %cst {dimension_numbers = #tpu.dot_dimension_numbers<[1], [0], [0], [1], [0, 0, 1, 1], [], []>} : vector<32x8xbf16>, vector<8x32xbf16>, vector<32x32xf32> -> vector<32x32xf32>
    %c0_5 = arith.constant 0 : index
    %c0_6 = arith.constant 0 : index
    %c0_7 = arith.constant 0 : index
    %6 = vector.load %arg4[%c0_5, %c0_6, %c0_7] : memref<6x1x32xf32, #tpu.memory_space<vmem>>, vector<1x1x32xf32>
    %7 = vector.shape_cast %6 : vector<1x1x32xf32> to vector<1x32xf32>
    %8 = vector.broadcast %7 : vector<1x32xf32> to vector<32x32xf32>
    %9 = arith.addf %5, %8 : vector<32x32xf32>
    %10 = vector.shape_cast %9 : vector<32x32xf32> to vector<8x4x32xf32>
    %c0_8 = arith.constant 0 : index
    %c0_9 = arith.constant 0 : index
    %c0_10 = arith.constant 0 : index
    %c0_11 = arith.constant 0 : index
    %11 = vector.load %arg10[%c0_8, %c0_9, %c0_10, %c0_11] : memref<6x8x4x32xf32, #tpu.memory_space<vmem>>, vector<1x8x4x32xf32>
    %12 = vector.shape_cast %11 : vector<1x8x4x32xf32> to vector<8x4x32xf32>
    %13 = vector.shape_cast %10 : vector<8x4x32xf32> to vector<1x8x4x32xf32>
    tpu.vector_store %arg10[%c0_8, %c0_9, %c0_10, %c0_11], %13 {strides = array<i32>} : memref<6x8x4x32xf32, #tpu.memory_space<vmem>>, vector<1x8x4x32xf32>,
    %c1 = arith.constant 1 : index
    %c0_12 = arith.constant 0 : index
    %c0_13 = arith.constant 0 : index
    %14 = vector.load %arg2[%c1, %c0_12, %c0_13] : memref<6x8x32xbf16, #tpu.memory_space<vmem>>, vector<1x8x32xbf16>
    %15 = vector.shape_cast %14 : vector<1x8x32xbf16> to vector<8x32xbf16>
    %cst_14 = arith.constant dense<0.000000e+00> : vector<32x32xf32>
    %16 = tpu.matmul %2, %15, %cst_14 {dimension_numbers = #tpu.dot_dimension_numbers<[1], [0], [0], [1], [0, 0, 1, 1], [], []>} : vector<32x8xbf16>, vector<8x32xbf16>, vector<32x32xf32> -> vector<32x32xf32>
    %c1_15 = arith.constant 1 : index
    %c0_16 = arith.constant 0 : index
    %c0_17 = arith.constant 0 : index
    %17 = vector.load %arg4[%c1_15, %c0_16, %c0_17] : memref<6x1x32xf32, #tpu.memory_space<vmem>>, vector<1x1x32xf32>
    %18 = vector.shape_cast %17 : vector<1x1x32xf32> to vector<1x32xf32>
    %19 = vector.broadcast %18 : vector<1x32xf32> to vector<32x32xf32>
    %20 = arith.addf %16, %19 : vector<32x32xf32>
    %21 = vector.shape_cast %20 : vector<32x32xf32> to vector<8x4x32xf32>
    %c1_18 = arith.constant 1 : index
    %c0_19 = arith.constant 0 : index
    %c0_20 = arith.constant 0 : index
    %c0_21 = arith.constant 0 : index
    %22 = vector.load %arg10[%c1_18, %c0_19, %c0_20, %c0_21] : memref<6x8x4x32xf32, #tpu.memory_space<vmem>>, vector<1x8x4x32xf32>
    %23 = vector.shape_cast %22 : vector<1x8x4x32xf32> to vector<8x4x32xf32>
    %24 = vector.shape_cast %21 : vector<8x4x32xf32> to vector<1x8x4x32xf32>
    tpu.vector_store %arg10[%c1_18, %c0_19, %c0_20, %c0_21], %24 {strides = array<i32>} : memref<6x8x4x32xf32, #tpu.memory_space<vmem>>, vector<1x8x4x32xf32>,
    %c2 = arith.constant 2 : index
    %c0_22 = arith.constant 0 : index
    %c0_23 = arith.constant 0 : index
    %25 = vector.load %arg2[%c2, %c0_22, %c0_23] : memref<6x8x32xbf16, #tpu.memory_space<vmem>>, vector<1x8x32xbf16>
    %26 = vector.shape_cast %25 : vector<1x8x32xbf16> to vector<8x32xbf16>
    %cst_24 = arith.constant dense<0.000000e+00> : vector<32x32xf32>
    %27 = tpu.matmul %2, %26, %cst_24 {dimension_numbers = #tpu.dot_dimension_numbers<[1], [0], [0], [1], [0, 0, 1, 1], [], []>} : vector<32x8xbf16>, vector<8x32xbf16>, vector<32x32xf32> -> vector<32x32xf32>
    %c2_25 = arith.constant 2 : index
    %c0_26 = arith.constant 0 : index
    %c0_27 = arith.constant 0 : index
    %28 = vector.load %arg4[%c2_25, %c0_26, %c0_27] : memref<6x1x32xf32, #tpu.memory_space<vmem>>, vector<1x1x32xf32>
    %29 = vector.shape_cast %28 : vector<1x1x32xf32> to vector<1x32xf32>
    %30 = vector.broadcast %29 : vector<1x32xf32> to vector<32x32xf32>
    %31 = arith.addf %27, %30 : vector<32x32xf32>
    %32 = vector.shape_cast %31 : vector<32x32xf32> to vector<8x4x32xf32>
    %c2_28 = arith.constant 2 : index
    %c0_29 = arith.constant 0 : index
    %c0_30 = arith.constant 0 : index
    %c0_31 = arith.constant 0 : index
    %33 = vector.load %arg10[%c2_28, %c0_29, %c0_30, %c0_31] : memref<6x8x4x32xf32, #tpu.memory_space<vmem>>, vector<1x8x4x32xf32>
    %34 = vector.shape_cast %33 : vector<1x8x4x32xf32> to vector<8x4x32xf32>
    %35 = vector.shape_cast %32 : vector<8x4x32xf32> to vector<1x8x4x32xf32>
    tpu.vector_store %arg10[%c2_28, %c0_29, %c0_30, %c0_31], %35 {strides = array<i32>} : memref<6x8x4x32xf32, #tpu.memory_space<vmem>>, vector<1x8x4x32xf32>,
    %c3 = arith.constant 3 : index
    %c0_32 = arith.constant 0 : index
    %c0_33 = arith.constant 0 : index
    %36 = vector.load %arg2[%c3, %c0_32, %c0_33] : memref<6x8x32xbf16, #tpu.memory_space<vmem>>, vector<1x8x32xbf16>
    %37 = vector.shape_cast %36 : vector<1x8x32xbf16> to vector<8x32xbf16>
    %cst_34 = arith.constant dense<0.000000e+00> : vector<32x32xf32>
    %38 = tpu.matmul %2, %37, %cst_34 {dimension_numbers = #tpu.dot_dimension_numbers<[1], [0], [0], [1], [0, 0, 1, 1], [], []>} : vector<32x8xbf16>, vector<8x32xbf16>, vector<32x32xf32> -> vector<32x32xf32>
    %c3_35 = arith.constant 3 : index
    %c0_36 = arith.constant 0 : index
    %c0_37 = arith.constant 0 : index
    %39 = vector.load %arg4[%c3_35, %c0_36, %c0_37] : memref<6x1x32xf32, #tpu.memory_space<vmem>>, vector<1x1x32xf32>
    %40 = vector.shape_cast %39 : vector<1x1x32xf32> to vector<1x32xf32>
    %41 = vector.broadcast %40 : vector<1x32xf32> to vector<32x32xf32>
    %42 = arith.addf %38, %41 : vector<32x32xf32>
    %43 = vector.shape_cast %42 : vector<32x32xf32> to vector<8x4x32xf32>
    %c3_38 = arith.constant 3 : index
    %c0_39 = arith.constant 0 : index
    %c0_40 = arith.constant 0 : index
    %c0_41 = arith.constant 0 : index
    %44 = vector.load %arg10[%c3_38, %c0_39, %c0_40, %c0_41] : memref<6x8x4x32xf32, #tpu.memory_space<vmem>>, vector<1x8x4x32xf32>
    %45 = vector.shape_cast %44 : vector<1x8x4x32xf32> to vector<8x4x32xf32>
    %46 = vector.shape_cast %43 : vector<8x4x32xf32> to vector<1x8x4x32xf32>
    tpu.vector_store %arg10[%c3_38, %c0_39, %c0_40, %c0_41], %46 {strides = array<i32>} : memref<6x8x4x32xf32, #tpu.memory_space<vmem>>, vector<1x8x4x32xf32>,
    %c4 = arith.constant 4 : index
    %c0_42 = arith.constant 0 : index
    %c0_43 = arith.constant 0 : index
    %47 = vector.load %arg2[%c4, %c0_42, %c0_43] : memref<6x8x32xbf16, #tpu.memory_space<vmem>>, vector<1x8x32xbf16>
    %48 = vector.shape_cast %47 : vector<1x8x32xbf16> to vector<8x32xbf16>
    %cst_44 = arith.constant dense<0.000000e+00> : vector<32x32xf32>
    %49 = tpu.matmul %2, %48, %cst_44 {dimension_numbers = #tpu.dot_dimension_numbers<[1], [0], [0], [1], [0, 0, 1, 1], [], []>} : vector<32x8xbf16>, vector<8x32xbf16>, vector<32x32xf32> -> vector<32x32xf32>
    %c4_45 = arith.constant 4 : index
    %c0_46 = arith.constant 0 : index
    %c0_47 = arith.constant 0 : index
    %50 = vector.load %arg4[%c4_45, %c0_46, %c0_47] : memref<6x1x32xf32, #tpu.memory_space<vmem>>, vector<1x1x32xf32>
    %51 = vector.shape_cast %50 : vector<1x1x32xf32> to vector<1x32xf32>
    %52 = vector.broadcast %51 : vector<1x32xf32> to vector<32x32xf32>
    %53 = arith.addf %49, %52 : vector<32x32xf32>
    %54 = vector.shape_cast %53 : vector<32x32xf32> to vector<8x4x32xf32>
    %c4_48 = arith.constant 4 : index
    %c0_49 = arith.constant 0 : index
    %c0_50 = arith.constant 0 : index
    %c0_51 = arith.constant 0 : index
    %55 = vector.load %arg10[%c4_48, %c0_49, %c0_50, %c0_51] : memref<6x8x4x32xf32, #tpu.memory_space<vmem>>, vector<1x8x4x32xf32>
    %56 = vector.shape_cast %55 : vector<1x8x4x32xf32> to vector<8x4x32xf32>
    %57 = vector.shape_cast %54 : vector<8x4x32xf32> to vector<1x8x4x32xf32>
    tpu.vector_store %arg10[%c4_48, %c0_49, %c0_50, %c0_51], %57 {strides = array<i32>} : memref<6x8x4x32xf32, #tpu.memory_space<vmem>>, vector<1x8x4x32xf32>,
    %c5 = arith.constant 5 : index
    %c0_52 = arith.constant 0 : index
    %c0_53 = arith.constant 0 : index
    %58 = vector.load %arg2[%c5, %c0_52, %c0_53] : memref<6x8x32xbf16, #tpu.memory_space<vmem>>, vector<1x8x32xbf16>
    %59 = vector.shape_cast %58 : vector<1x8x32xbf16> to vector<8x32xbf16>
    %cst_54 = arith.constant dense<0.000000e+00> : vector<32x32xf32>
    %60 = tpu.matmul %2, %59, %cst_54 {dimension_numbers = #tpu.dot_dimension_numbers<[1], [0], [0], [1], [0, 0, 1, 1], [], []>} : vector<32x8xbf16>, vector<8x32xbf16>, vector<32x32xf32> -> vector<32x32xf32>
    %c5_55 = arith.constant 5 : index
    %c0_56 = arith.constant 0 : index
    %c0_57 = arith.constant 0 : index
    %61 = vector.load %arg4[%c5_55, %c0_56, %c0_57] : memref<6x1x32xf32, #tpu.memory_space<vmem>>, vector<1x1x32xf32>
    %62 = vector.shape_cast %61 : vector<1x1x32xf32> to vector<1x32xf32>
    %63 = vector.broadcast %62 : vector<1x32xf32> to vector<32x32xf32>
    %64 = arith.addf %60, %63 : vector<32x32xf32>
    %65 = vector.shape_cast %64 : vector<32x32xf32> to vector<8x4x32xf32>
    %c5_58 = arith.constant 5 : index
    %c0_59 = arith.constant 0 : index
    %c0_60 = arith.constant 0 : index
    %c0_61 = arith.constant 0 : index
    %66 = vector.load %arg10[%c5_58, %c0_59, %c0_60, %c0_61] : memref<6x8x4x32xf32, #tpu.memory_space<vmem>>, vector<1x8x4x32xf32>
    %67 = vector.shape_cast %66 : vector<1x8x4x32xf32> to vector<8x4x32xf32>
    %68 = vector.shape_cast %65 : vector<8x4x32xf32> to vector<1x8x4x32xf32>
    tpu.vector_store %arg10[%c5_58, %c0_59, %c0_60, %c0_61], %68 {strides = array<i32>} : memref<6x8x4x32xf32, #tpu.memory_space<vmem>>, vector<1x8x4x32xf32>,
    %c0_62 = arith.constant 0 : index
    %c0_63 = arith.constant 0 : index
    %c0_64 = arith.constant 0 : index
    %69 = vector.load %arg3[%c0_62, %c0_63, %c0_64] : memref<6x32x32xbf16, #tpu.memory_space<vmem>>, vector<1x32x32xbf16>
    %70 = vector.shape_cast %69 : vector<1x32x32xbf16> to vector<32x32xbf16>
    %c1_65 = arith.constant 1 : index
    %c0_66 = arith.constant 0 : index
    %c0_67 = arith.constant 0 : index
    %71 = vector.load %arg3[%c1_65, %c0_66, %c0_67] : memref<6x32x32xbf16, #tpu.memory_space<vmem>>, vector<1x32x32xbf16>
    %72 = vector.shape_cast %71 : vector<1x32x32xbf16> to vector<32x32xbf16>
    %c2_68 = arith.constant 2 : index
    %c0_69 = arith.constant 0 : index
    %c0_70 = arith.constant 0 : index
    %73 = vector.load %arg3[%c2_68, %c0_69, %c0_70] : memref<6x32x32xbf16, #tpu.memory_space<vmem>>, vector<1x32x32xbf16>
    %74 = vector.shape_cast %73 : vector<1x32x32xbf16> to vector<32x32xbf16>
    %c3_71 = arith.constant 3 : index
    %c0_72 = arith.constant 0 : index
    %c0_73 = arith.constant 0 : index
    %75 = vector.load %arg3[%c3_71, %c0_72, %c0_73] : memref<6x32x32xbf16, #tpu.memory_space<vmem>>, vector<1x32x32xbf16>
    %76 = vector.shape_cast %75 : vector<1x32x32xbf16> to vector<32x32xbf16>
    %c4_74 = arith.constant 4 : index
    %c0_75 = arith.constant 0 : index
    %c0_76 = arith.constant 0 : index
    %77 = vector.load %arg3[%c4_74, %c0_75, %c0_76] : memref<6x32x32xbf16, #tpu.memory_space<vmem>>, vector<1x32x32xbf16>
    %78 = vector.shape_cast %77 : vector<1x32x32xbf16> to vector<32x32xbf16>
    %c5_77 = arith.constant 5 : index
    %c0_78 = arith.constant 0 : index
    %c0_79 = arith.constant 0 : index
    %79 = vector.load %arg3[%c5_77, %c0_78, %c0_79] : memref<6x32x32xbf16, #tpu.memory_space<vmem>>, vector<1x32x32xbf16>
    %80 = vector.shape_cast %79 : vector<1x32x32xbf16> to vector<32x32xbf16>
    %c0_80 = arith.constant 0 : index
    %c0_81 = arith.constant 0 : index
    %c0_82 = arith.constant 0 : index
    %81 = vector.load %arg5[%c0_80, %c0_81, %c0_82] : memref<6x1x32xf32, #tpu.memory_space<vmem>>, vector<1x1x32xf32>
    %82 = vector.shape_cast %81 : vector<1x1x32xf32> to vector<1x32xf32>
    %c1_83 = arith.constant 1 : index
    %c0_84 = arith.constant 0 : index
    %c0_85 = arith.constant 0 : index
    %83 = vector.load %arg5[%c1_83, %c0_84, %c0_85] : memref<6x1x32xf32, #tpu.memory_space<vmem>>, vector<1x1x32xf32>
    %84 = vector.shape_cast %83 : vector<1x1x32xf32> to vector<1x32xf32>
    %c2_86 = arith.constant 2 : index
    %c0_87 = arith.constant 0 : index
    %c0_88 = arith.constant 0 : index
    %85 = vector.load %arg5[%c2_86, %c0_87, %c0_88] : memref<6x1x32xf32, #tpu.memory_space<vmem>>, vector<1x1x32xf32>
    %86 = vector.shape_cast %85 : vector<1x1x32xf32> to vector<1x32xf32>
    %c3_89 = arith.constant 3 : index
    %c0_90 = arith.constant 0 : index
    %c0_91 = arith.constant 0 : index
    %87 = vector.load %arg5[%c3_89, %c0_90, %c0_91] : memref<6x1x32xf32, #tpu.memory_space<vmem>>, vector<1x1x32xf32>
    %88 = vector.shape_cast %87 : vector<1x1x32xf32> to vector<1x32xf32>
    %c4_92 = arith.constant 4 : index
    %c0_93 = arith.constant 0 : index
    %c0_94 = arith.constant 0 : index
    %89 = vector.load %arg5[%c4_92, %c0_93, %c0_94] : memref<6x1x32xf32, #tpu.memory_space<vmem>>, vector<1x1x32xf32>
    %90 = vector.shape_cast %89 : vector<1x1x32xf32> to vector<1x32xf32>
    %c5_95 = arith.constant 5 : index
    %c0_96 = arith.constant 0 : index
    %c0_97 = arith.constant 0 : index
    %91 = vector.load %arg5[%c5_95, %c0_96, %c0_97] : memref<6x1x32xf32, #tpu.memory_space<vmem>>, vector<1x1x32xf32>
    %92 = vector.shape_cast %91 : vector<1x1x32xf32> to vector<1x32xf32>
    %cst_98 = arith.constant 0.000000e+00 : f32
    %93 = vector.broadcast %cst_98 : f32 to vector<4x32xf32>
    %c0_i32 = arith.constant 0 : i32
    %c7_i32 = arith.constant 7 : i32
    %94 = arith.subi %c7_i32, %c0_i32 : i32
    %c0_99 = arith.constant 0 : index
    %95 = arith.index_cast %c0_i32 : i32 to index
    %c0_100 = arith.constant 0 : index
    %c0_101 = arith.constant 0 : index
    %96 = vector.load %arg10[%c0_99, %95, %c0_100, %c0_101] : memref<6x8x4x32xf32, #tpu.memory_space<vmem>>, vector<1x1x4x32xf32>
    %97 = vector.shape_cast %96 : vector<1x1x4x32xf32> to vector<4x32xf32>
    %c1_102 = arith.constant 1 : index
    %98 = arith.index_cast %c0_i32 : i32 to index
    %c0_103 = arith.constant 0 : index
    %c0_104 = arith.constant 0 : index
    %99 = vector.load %arg10[%c1_102, %98, %c0_103, %c0_104] : memref<6x8x4x32xf32, #tpu.memory_space<vmem>>, vector<1x1x4x32xf32>
    %100 = vector.shape_cast %99 : vector<1x1x4x32xf32> to vector<4x32xf32>
    %c2_105 = arith.constant 2 : index
    %101 = arith.index_cast %c0_i32 : i32 to index
    %c0_106 = arith.constant 0 : index
    %c0_107 = arith.constant 0 : index
    %102 = vector.load %arg10[%c2_105, %101, %c0_106, %c0_107] : memref<6x8x4x32xf32, #tpu.memory_space<vmem>>, vector<1x1x4x32xf32>
    %103 = vector.shape_cast %102 : vector<1x1x4x32xf32> to vector<4x32xf32>
    %104 = arith.truncf %93 : vector<4x32xf32> to vector<4x32xbf16>
    %cst_108 = arith.constant dense<0.000000e+00> : vector<4x32xf32>
    %105 = tpu.matmul %104, %70, %cst_108 {dimension_numbers = #tpu.dot_dimension_numbers<[1], [0], [0], [1], [0, 0, 1, 1], [], []>} : vector<4x32xbf16>, vector<32x32xbf16>, vector<4x32xf32> -> vector<4x32xf32>
    %106 = vector.broadcast %82 : vector<1x32xf32> to vector<4x32xf32>
    %107 = arith.addf %105, %106 : vector<4x32xf32>
    %cst_109 = arith.constant dense<0.000000e+00> : vector<4x32xf32>
    %108 = tpu.matmul %104, %72, %cst_109 {dimension_numbers = #tpu.dot_dimension_numbers<[1], [0], [0], [1], [0, 0, 1, 1], [], []>} : vector<4x32xbf16>, vector<32x32xbf16>, vector<4x32xf32> -> vector<4x32xf32>
    %109 = vector.broadcast %84 : vector<1x32xf32> to vector<4x32xf32>
    %110 = arith.addf %108, %109 : vector<4x32xf32>
    %cst_110 = arith.constant dense<0.000000e+00> : vector<4x32xf32>
    %111 = tpu.matmul %104, %74, %cst_110 {dimension_numbers = #tpu.dot_dimension_numbers<[1], [0], [0], [1], [0, 0, 1, 1], [], []>} : vector<4x32xbf16>, vector<32x32xbf16>, vector<4x32xf32> -> vector<4x32xf32>
    %112 = vector.broadcast %86 : vector<1x32xf32> to vector<4x32xf32>
    %113 = arith.addf %111, %112 : vector<4x32xf32>
    %114 = arith.addf %97, %107 : vector<4x32xf32>
    %115 = arith.negf %114 : vector<4x32xf32>
    %116 = math.exp %115 : vector<4x32xf32>
    %cst_111 = arith.constant 1.000000e+00 : f32
    %117 = vector.broadcast %cst_111 : f32 to vector<4x32xf32>
    %118 = arith.addf %117, %116 : vector<4x32xf32>
    %119 = arith.divf %117, %118 : vector<4x32xf32>
    %120 = arith.addf %100, %110 : vector<4x32xf32>
    %121 = arith.negf %120 : vector<4x32xf32>
    %122 = math.exp %121 : vector<4x32xf32>
    %cst_112 = arith.constant 1.000000e+00 : f32
    %123 = vector.broadcast %cst_112 : f32 to vector<4x32xf32>
    %124 = arith.addf %123, %122 : vector<4x32xf32>
    %125 = arith.divf %123, %124 : vector<4x32xf32>
    %126 = arith.mulf %119, %113 : vector<4x32xf32>
    %127 = arith.addf %103, %126 : vector<4x32xf32>
    %128 = math.tanh %127 : vector<4x32xf32>
    %cst_113 = arith.constant 1.000000e+00 : f32
    %129 = vector.broadcast %cst_113 : f32 to vector<4x32xf32>
    %130 = arith.subf %129, %125 : vector<4x32xf32>
    %131 = arith.mulf %130, %128 : vector<4x32xf32>
    %132 = arith.mulf %125, %93 : vector<4x32xf32>
    %133 = arith.addf %131, %132 : vector<4x32xf32>
    %c3_114 = arith.constant 3 : index
    %134 = arith.index_cast %94 : i32 to index
    %c0_115 = arith.constant 0 : index
    %c0_116 = arith.constant 0 : index
    %135 = vector.load %arg10[%c3_114, %134, %c0_115, %c0_116] : memref<6x8x4x32xf32, #tpu.memory_space<vmem>>, vector<1x1x4x32xf32>
    %136 = vector.shape_cast %135 : vector<1x1x4x32xf32> to vector<4x32xf32>
    %c4_117 = arith.constant 4 : index
    %137 = arith.index_cast %94 : i32 to index
    %c0_118 = arith.constant 0 : index
    %c0_119 = arith.constant 0 : index
    %138 = vector.load %arg10[%c4_117, %137, %c0_118, %c0_119] : memref<6x8x4x32xf32, #tpu.memory_space<vmem>>, vector<1x1x4x32xf32>
    %139 = vector.shape_cast %138 : vector<1x1x4x32xf32> to vector<4x32xf32>
    %c5_120 = arith.constant 5 : index
    %140 = arith.index_cast %94 : i32 to index
    %c0_121 = arith.constant 0 : index
    %c0_122 = arith.constant 0 : index
    %141 = vector.load %arg10[%c5_120, %140, %c0_121, %c0_122] : memref<6x8x4x32xf32, #tpu.memory_space<vmem>>, vector<1x1x4x32xf32>
    %142 = vector.shape_cast %141 : vector<1x1x4x32xf32> to vector<4x32xf32>
    %143 = arith.truncf %93 : vector<4x32xf32> to vector<4x32xbf16>
    %cst_123 = arith.constant dense<0.000000e+00> : vector<4x32xf32>
    %144 = tpu.matmul %143, %76, %cst_123 {dimension_numbers = #tpu.dot_dimension_numbers<[1], [0], [0], [1], [0, 0, 1, 1], [], []>} : vector<4x32xbf16>, vector<32x32xbf16>, vector<4x32xf32> -> vector<4x32xf32>
    %145 = vector.broadcast %88 : vector<1x32xf32> to vector<4x32xf32>
    %146 = arith.addf %144, %145 : vector<4x32xf32>
    %cst_124 = arith.constant dense<0.000000e+00> : vector<4x32xf32>
    %147 = tpu.matmul %143, %78, %cst_124 {dimension_numbers = #tpu.dot_dimension_numbers<[1], [0], [0], [1], [0, 0, 1, 1], [], []>} : vector<4x32xbf16>, vector<32x32xbf16>, vector<4x32xf32> -> vector<4x32xf32>
    %148 = vector.broadcast %90 : vector<1x32xf32> to vector<4x32xf32>
    %149 = arith.addf %147, %148 : vector<4x32xf32>
    %cst_125 = arith.constant dense<0.000000e+00> : vector<4x32xf32>
    %150 = tpu.matmul %143, %80, %cst_125 {dimension_numbers = #tpu.dot_dimension_numbers<[1], [0], [0], [1], [0, 0, 1, 1], [], []>} : vector<4x32xbf16>, vector<32x32xbf16>, vector<4x32xf32> -> vector<4x32xf32>
    %151 = vector.broadcast %92 : vector<1x32xf32> to vector<4x32xf32>
    %152 = arith.addf %150, %151 : vector<4x32xf32>
    %153 = arith.addf %136, %146 : vector<4x32xf32>
    %154 = arith.negf %153 : vector<4x32xf32>
    %155 = math.exp %154 : vector<4x32xf32>
    %cst_126 = arith.constant 1.000000e+00 : f32
    %156 = vector.broadcast %cst_126 : f32 to vector<4x32xf32>
    %157 = arith.addf %156, %155 : vector<4x32xf32>
    %158 = arith.divf %156, %157 : vector<4x32xf32>
    %159 = arith.addf %139, %149 : vector<4x32xf32>
    %160 = arith.negf %159 : vector<4x32xf32>
    %161 = math.exp %160 : vector<4x32xf32>
    %cst_127 = arith.constant 1.000000e+00 : f32
    %162 = vector.broadcast %cst_127 : f32 to vector<4x32xf32>
    %163 = arith.addf %162, %161 : vector<4x32xf32>
    %164 = arith.divf %162, %163 : vector<4x32xf32>
    %165 = arith.mulf %158, %152 : vector<4x32xf32>
    %166 = arith.addf %142, %165 : vector<4x32xf32>
    %167 = math.tanh %166 : vector<4x32xf32>
    %cst_128 = arith.constant 1.000000e+00 : f32
    %168 = vector.broadcast %cst_128 : f32 to vector<4x32xf32>
    %169 = arith.subf %168, %164 : vector<4x32xf32>
    %170 = arith.mulf %169, %167 : vector<4x32xf32>
    %171 = arith.mulf %164, %93 : vector<4x32xf32>
    %172 = arith.addf %170, %171 : vector<4x32xf32>
    %173 = arith.index_cast %c0_i32 : i32 to index
    %c0_129 = arith.constant 0 : index
    %c0_130 = arith.constant 0 : index
    %174 = vector.load %arg11[%173, %c0_129, %c0_130] : memref<8x4x32xf32, #tpu.memory_space<vmem>>, vector<1x4x32xf32>
    %175 = vector.shape_cast %174 : vector<1x4x32xf32> to vector<4x32xf32>
    %176 = vector.shape_cast %133 : vector<4x32xf32> to vector<1x4x32xf32>
    tpu.vector_store %arg11[%173, %c0_129, %c0_130], %176 {strides = array<i32>} : memref<8x4x32xf32, #tpu.memory_space<vmem>>, vector<1x4x32xf32>,
    %177 = arith.index_cast %94 : i32 to index
    %c0_131 = arith.constant 0 : index
    %c0_132 = arith.constant 0 : index
    %178 = vector.load %arg12[%177, %c0_131, %c0_132] : memref<8x4x32xf32, #tpu.memory_space<vmem>>, vector<1x4x32xf32>
    %179 = vector.shape_cast %178 : vector<1x4x32xf32> to vector<4x32xf32>
    %180 = vector.shape_cast %172 : vector<4x32xf32> to vector<1x4x32xf32>
    tpu.vector_store %arg12[%177, %c0_131, %c0_132], %180 {strides = array<i32>} : memref<8x4x32xf32, #tpu.memory_space<vmem>>, vector<1x4x32xf32>,
    %c1_i32 = arith.constant 1 : i32
    %c7_i32_133 = arith.constant 7 : i32
    %181 = arith.subi %c7_i32_133, %c1_i32 : i32
    %c0_134 = arith.constant 0 : index
    %182 = arith.index_cast %c1_i32 : i32 to index
    %c0_135 = arith.constant 0 : index
    %c0_136 = arith.constant 0 : index
    %183 = vector.load %arg10[%c0_134, %182, %c0_135, %c0_136] : memref<6x8x4x32xf32, #tpu.memory_space<vmem>>, vector<1x1x4x32xf32>
    %184 = vector.shape_cast %183 : vector<1x1x4x32xf32> to vector<4x32xf32>
    %c1_137 = arith.constant 1 : index
    %185 = arith.index_cast %c1_i32 : i32 to index
    %c0_138 = arith.constant 0 : index
    %c0_139 = arith.constant 0 : index
    %186 = vector.load %arg10[%c1_137, %185, %c0_138, %c0_139] : memref<6x8x4x32xf32, #tpu.memory_space<vmem>>, vector<1x1x4x32xf32>
    %187 = vector.shape_cast %186 : vector<1x1x4x32xf32> to vector<4x32xf32>
    %c2_140 = arith.constant 2 : index
    %188 = arith.index_cast %c1_i32 : i32 to index
    %c0_141 = arith.constant 0 : index
    %c0_142 = arith.constant 0 : index
    %189 = vector.load %arg10[%c2_140, %188, %c0_141, %c0_142] : memref<6x8x4x32xf32, #tpu.memory_space<vmem>>, vector<1x1x4x32xf32>
    %190 = vector.shape_cast %189 : vector<1x1x4x32xf32> to vector<4x32xf32>
    %191 = arith.truncf %133 : vector<4x32xf32> to vector<4x32xbf16>
    %cst_143 = arith.constant dense<0.000000e+00> : vector<4x32xf32>
    %192 = tpu.matmul %191, %70, %cst_143 {dimension_numbers = #tpu.dot_dimension_numbers<[1], [0], [0], [1], [0, 0, 1, 1], [], []>} : vector<4x32xbf16>, vector<32x32xbf16>, vector<4x32xf32> -> vector<4x32xf32>
    %193 = vector.broadcast %82 : vector<1x32xf32> to vector<4x32xf32>
    %194 = arith.addf %192, %193 : vector<4x32xf32>
    %cst_144 = arith.constant dense<0.000000e+00> : vector<4x32xf32>
    %195 = tpu.matmul %191, %72, %cst_144 {dimension_numbers = #tpu.dot_dimension_numbers<[1], [0], [0], [1], [0, 0, 1, 1], [], []>} : vector<4x32xbf16>, vector<32x32xbf16>, vector<4x32xf32> -> vector<4x32xf32>
    %196 = vector.broadcast %84 : vector<1x32xf32> to vector<4x32xf32>
    %197 = arith.addf %195, %196 : vector<4x32xf32>
    %cst_145 = arith.constant dense<0.000000e+00> : vector<4x32xf32>
    %198 = tpu.matmul %191, %74, %cst_145 {dimension_numbers = #tpu.dot_dimension_numbers<[1], [0], [0], [1], [0, 0, 1, 1], [], []>} : vector<4x32xbf16>, vector<32x32xbf16>, vector<4x32xf32> -> vector<4x32xf32>
    %199 = vector.broadcast %86 : vector<1x32xf32> to vector<4x32xf32>
    %200 = arith.addf %198, %199 : vector<4x32xf32>
    %201 = arith.addf %184, %194 : vector<4x32xf32>
    %202 = arith.negf %201 : vector<4x32xf32>
    %203 = math.exp %202 : vector<4x32xf32>
    %cst_146 = arith.constant 1.000000e+00 : f32
    %204 = vector.broadcast %cst_146 : f32 to vector<4x32xf32>
    %205 = arith.addf %204, %203 : vector<4x32xf32>
    %206 = arith.divf %204, %205 : vector<4x32xf32>
    %207 = arith.addf %187, %197 : vector<4x32xf32>
    %208 = arith.negf %207 : vector<4x32xf32>
    %209 = math.exp %208 : vector<4x32xf32>
    %cst_147 = arith.constant 1.000000e+00 : f32
    %210 = vector.broadcast %cst_147 : f32 to vector<4x32xf32>
    %211 = arith.addf %210, %209 : vector<4x32xf32>
    %212 = arith.divf %210, %211 : vector<4x32xf32>
    %213 = arith.mulf %206, %200 : vector<4x32xf32>
    %214 = arith.addf %190, %213 : vector<4x32xf32>
    %215 = math.tanh %214 : vector<4x32xf32>
    %cst_148 = arith.constant 1.000000e+00 : f32
    %216 = vector.broadcast %cst_148 : f32 to vector<4x32xf32>
    %217 = arith.subf %216, %212 : vector<4x32xf32>
    %218 = arith.mulf %217, %215 : vector<4x32xf32>
    %219 = arith.mulf %212, %133 : vector<4x32xf32>
    %220 = arith.addf %218, %219 : vector<4x32xf32>
    %c3_149 = arith.constant 3 : index
    %221 = arith.index_cast %181 : i32 to index
    %c0_150 = arith.constant 0 : index
    %c0_151 = arith.constant 0 : index
    %222 = vector.load %arg10[%c3_149, %221, %c0_150, %c0_151] : memref<6x8x4x32xf32, #tpu.memory_space<vmem>>, vector<1x1x4x32xf32>
    %223 = vector.shape_cast %222 : vector<1x1x4x32xf32> to vector<4x32xf32>
    %c4_152 = arith.constant 4 : index
    %224 = arith.index_cast %181 : i32 to index
    %c0_153 = arith.constant 0 : index
    %c0_154 = arith.constant 0 : index
    %225 = vector.load %arg10[%c4_152, %224, %c0_153, %c0_154] : memref<6x8x4x32xf32, #tpu.memory_space<vmem>>, vector<1x1x4x32xf32>
    %226 = vector.shape_cast %225 : vector<1x1x4x32xf32> to vector<4x32xf32>
    %c5_155 = arith.constant 5 : index
    %227 = arith.index_cast %181 : i32 to index
    %c0_156 = arith.constant 0 : index
    %c0_157 = arith.constant 0 : index
    %228 = vector.load %arg10[%c5_155, %227, %c0_156, %c0_157] : memref<6x8x4x32xf32, #tpu.memory_space<vmem>>, vector<1x1x4x32xf32>
    %229 = vector.shape_cast %228 : vector<1x1x4x32xf32> to vector<4x32xf32>
    %230 = arith.truncf %172 : vector<4x32xf32> to vector<4x32xbf16>
    %cst_158 = arith.constant dense<0.000000e+00> : vector<4x32xf32>
    %231 = tpu.matmul %230, %76, %cst_158 {dimension_numbers = #tpu.dot_dimension_numbers<[1], [0], [0], [1], [0, 0, 1, 1], [], []>} : vector<4x32xbf16>, vector<32x32xbf16>, vector<4x32xf32> -> vector<4x32xf32>
    %232 = vector.broadcast %88 : vector<1x32xf32> to vector<4x32xf32>
    %233 = arith.addf %231, %232 : vector<4x32xf32>
    %cst_159 = arith.constant dense<0.000000e+00> : vector<4x32xf32>
    %234 = tpu.matmul %230, %78, %cst_159 {dimension_numbers = #tpu.dot_dimension_numbers<[1], [0], [0], [1], [0, 0, 1, 1], [], []>} : vector<4x32xbf16>, vector<32x32xbf16>, vector<4x32xf32> -> vector<4x32xf32>
    %235 = vector.broadcast %90 : vector<1x32xf32> to vector<4x32xf32>
    %236 = arith.addf %234, %235 : vector<4x32xf32>
    %cst_160 = arith.constant dense<0.000000e+00> : vector<4x32xf32>
    %237 = tpu.matmul %230, %80, %cst_160 {dimension_numbers = #tpu.dot_dimension_numbers<[1], [0], [0], [1], [0, 0, 1, 1], [], []>} : vector<4x32xbf16>, vector<32x32xbf16>, vector<4x32xf32> -> vector<4x32xf32>
    %238 = vector.broadcast %92 : vector<1x32xf32> to vector<4x32xf32>
    %239 = arith.addf %237, %238 : vector<4x32xf32>
    %240 = arith.addf %223, %233 : vector<4x32xf32>
    %241 = arith.negf %240 : vector<4x32xf32>
    %242 = math.exp %241 : vector<4x32xf32>
    %cst_161 = arith.constant 1.000000e+00 : f32
    %243 = vector.broadcast %cst_161 : f32 to vector<4x32xf32>
    %244 = arith.addf %243, %242 : vector<4x32xf32>
    %245 = arith.divf %243, %244 : vector<4x32xf32>
    %246 = arith.addf %226, %236 : vector<4x32xf32>
    %247 = arith.negf %246 : vector<4x32xf32>
    %248 = math.exp %247 : vector<4x32xf32>
    %cst_162 = arith.constant 1.000000e+00 : f32
    %249 = vector.broadcast %cst_162 : f32 to vector<4x32xf32>
    %250 = arith.addf %249, %248 : vector<4x32xf32>
    %251 = arith.divf %249, %250 : vector<4x32xf32>
    %252 = arith.mulf %245, %239 : vector<4x32xf32>
    %253 = arith.addf %229, %252 : vector<4x32xf32>
    %254 = math.tanh %253 : vector<4x32xf32>
    %cst_163 = arith.constant 1.000000e+00 : f32
    %255 = vector.broadcast %cst_163 : f32 to vector<4x32xf32>
    %256 = arith.subf %255, %251 : vector<4x32xf32>
    %257 = arith.mulf %256, %254 : vector<4x32xf32>
    %258 = arith.mulf %251, %172 : vector<4x32xf32>
    %259 = arith.addf %257, %258 : vector<4x32xf32>
    %260 = arith.index_cast %c1_i32 : i32 to index
    %c0_164 = arith.constant 0 : index
    %c0_165 = arith.constant 0 : index
    %261 = vector.load %arg11[%260, %c0_164, %c0_165] : memref<8x4x32xf32, #tpu.memory_space<vmem>>, vector<1x4x32xf32>
    %262 = vector.shape_cast %261 : vector<1x4x32xf32> to vector<4x32xf32>
    %263 = vector.shape_cast %220 : vector<4x32xf32> to vector<1x4x32xf32>
    tpu.vector_store %arg11[%260, %c0_164, %c0_165], %263 {strides = array<i32>} : memref<8x4x32xf32, #tpu.memory_space<vmem>>, vector<1x4x32xf32>,
    %264 = arith.index_cast %181 : i32 to index
    %c0_166 = arith.constant 0 : index
    %c0_167 = arith.constant 0 : index
    %265 = vector.load %arg12[%264, %c0_166, %c0_167] : memref<8x4x32xf32, #tpu.memory_space<vmem>>, vector<1x4x32xf32>
    %266 = vector.shape_cast %265 : vector<1x4x32xf32> to vector<4x32xf32>
    %267 = vector.shape_cast %259 : vector<4x32xf32> to vector<1x4x32xf32>
    tpu.vector_store %arg12[%264, %c0_166, %c0_167], %267 {strides = array<i32>} : memref<8x4x32xf32, #tpu.memory_space<vmem>>, vector<1x4x32xf32>,
    %c2_i32 = arith.constant 2 : i32
    %c7_i32_168 = arith.constant 7 : i32
    %268 = arith.subi %c7_i32_168, %c2_i32 : i32
    %c0_169 = arith.constant 0 : index
    %269 = arith.index_cast %c2_i32 : i32 to index
    %c0_170 = arith.constant 0 : index
    %c0_171 = arith.constant 0 : index
    %270 = vector.load %arg10[%c0_169, %269, %c0_170, %c0_171] : memref<6x8x4x32xf32, #tpu.memory_space<vmem>>, vector<1x1x4x32xf32>
    %271 = vector.shape_cast %270 : vector<1x1x4x32xf32> to vector<4x32xf32>
    %c1_172 = arith.constant 1 : index
    %272 = arith.index_cast %c2_i32 : i32 to index
    %c0_173 = arith.constant 0 : index
    %c0_174 = arith.constant 0 : index
    %273 = vector.load %arg10[%c1_172, %272, %c0_173, %c0_174] : memref<6x8x4x32xf32, #tpu.memory_space<vmem>>, vector<1x1x4x32xf32>
    %274 = vector.shape_cast %273 : vector<1x1x4x32xf32> to vector<4x32xf32>
    %c2_175 = arith.constant 2 : index
    %275 = arith.index_cast %c2_i32 : i32 to index
    %c0_176 = arith.constant 0 : index
    %c0_177 = arith.constant 0 : index
    %276 = vector.load %arg10[%c2_175, %275, %c0_176, %c0_177] : memref<6x8x4x32xf32, #tpu.memory_space<vmem>>, vector<1x1x4x32xf32>
    %277 = vector.shape_cast %276 : vector<1x1x4x32xf32> to vector<4x32xf32>
    %278 = arith.truncf %220 : vector<4x32xf32> to vector<4x32xbf16>
    %cst_178 = arith.constant dense<0.000000e+00> : vector<4x32xf32>
    %279 = tpu.matmul %278, %70, %cst_178 {dimension_numbers = #tpu.dot_dimension_numbers<[1], [0], [0], [1], [0, 0, 1, 1], [], []>} : vector<4x32xbf16>, vector<32x32xbf16>, vector<4x32xf32> -> vector<4x32xf32>
    %280 = vector.broadcast %82 : vector<1x32xf32> to vector<4x32xf32>
    %281 = arith.addf %279, %280 : vector<4x32xf32>
    %cst_179 = arith.constant dense<0.000000e+00> : vector<4x32xf32>
    %282 = tpu.matmul %278, %72, %cst_179 {dimension_numbers = #tpu.dot_dimension_numbers<[1], [0], [0], [1], [0, 0, 1, 1], [], []>} : vector<4x32xbf16>, vector<32x32xbf16>, vector<4x32xf32> -> vector<4x32xf32>
    %283 = vector.broadcast %84 : vector<1x32xf32> to vector<4x32xf32>
    %284 = arith.addf %282, %283 : vector<4x32xf32>
    %cst_180 = arith.constant dense<0.000000e+00> : vector<4x32xf32>
    %285 = tpu.matmul %278, %74, %cst_180 {dimension_numbers = #tpu.dot_dimension_numbers<[1], [0], [0], [1], [0, 0, 1, 1], [], []>} : vector<4x32xbf16>, vector<32x32xbf16>, vector<4x32xf32> -> vector<4x32xf32>
    %286 = vector.broadcast %86 : vector<1x32xf32> to vector<4x32xf32>
    %287 = arith.addf %285, %286 : vector<4x32xf32>
    %288 = arith.addf %271, %281 : vector<4x32xf32>
    %289 = arith.negf %288 : vector<4x32xf32>
    %290 = math.exp %289 : vector<4x32xf32>
    %cst_181 = arith.constant 1.000000e+00 : f32
    %291 = vector.broadcast %cst_181 : f32 to vector<4x32xf32>
    %292 = arith.addf %291, %290 : vector<4x32xf32>
    %293 = arith.divf %291, %292 : vector<4x32xf32>
    %294 = arith.addf %274, %284 : vector<4x32xf32>
    %295 = arith.negf %294 : vector<4x32xf32>
    %296 = math.exp %295 : vector<4x32xf32>
    %cst_182 = arith.constant 1.000000e+00 : f32
    %297 = vector.broadcast %cst_182 : f32 to vector<4x32xf32>
    %298 = arith.addf %297, %296 : vector<4x32xf32>
    %299 = arith.divf %297, %298 : vector<4x32xf32>
    %300 = arith.mulf %293, %287 : vector<4x32xf32>
    %301 = arith.addf %277, %300 : vector<4x32xf32>
    %302 = math.tanh %301 : vector<4x32xf32>
    %cst_183 = arith.constant 1.000000e+00 : f32
    %303 = vector.broadcast %cst_183 : f32 to vector<4x32xf32>
    %304 = arith.subf %303, %299 : vector<4x32xf32>
    %305 = arith.mulf %304, %302 : vector<4x32xf32>
    %306 = arith.mulf %299, %220 : vector<4x32xf32>
    %307 = arith.addf %305, %306 : vector<4x32xf32>
    %c3_184 = arith.constant 3 : index
    %308 = arith.index_cast %268 : i32 to index
    %c0_185 = arith.constant 0 : index
    %c0_186 = arith.constant 0 : index
    %309 = vector.load %arg10[%c3_184, %308, %c0_185, %c0_186] : memref<6x8x4x32xf32, #tpu.memory_space<vmem>>, vector<1x1x4x32xf32>
    %310 = vector.shape_cast %309 : vector<1x1x4x32xf32> to vector<4x32xf32>
    %c4_187 = arith.constant 4 : index
    %311 = arith.index_cast %268 : i32 to index
    %c0_188 = arith.constant 0 : index
    %c0_189 = arith.constant 0 : index
    %312 = vector.load %arg10[%c4_187, %311, %c0_188, %c0_189] : memref<6x8x4x32xf32, #tpu.memory_space<vmem>>, vector<1x1x4x32xf32>
    %313 = vector.shape_cast %312 : vector<1x1x4x32xf32> to vector<4x32xf32>
    %c5_190 = arith.constant 5 : index
    %314 = arith.index_cast %268 : i32 to index
    %c0_191 = arith.constant 0 : index
    %c0_192 = arith.constant 0 : index
    %315 = vector.load %arg10[%c5_190, %314, %c0_191, %c0_192] : memref<6x8x4x32xf32, #tpu.memory_space<vmem>>, vector<1x1x4x32xf32>
    %316 = vector.shape_cast %315 : vector<1x1x4x32xf32> to vector<4x32xf32>
    %317 = arith.truncf %259 : vector<4x32xf32> to vector<4x32xbf16>
    %cst_193 = arith.constant dense<0.000000e+00> : vector<4x32xf32>
    %318 = tpu.matmul %317, %76, %cst_193 {dimension_numbers = #tpu.dot_dimension_numbers<[1], [0], [0], [1], [0, 0, 1, 1], [], []>} : vector<4x32xbf16>, vector<32x32xbf16>, vector<4x32xf32> -> vector<4x32xf32>
    %319 = vector.broadcast %88 : vector<1x32xf32> to vector<4x32xf32>
    %320 = arith.addf %318, %319 : vector<4x32xf32>
    %cst_194 = arith.constant dense<0.000000e+00> : vector<4x32xf32>
    %321 = tpu.matmul %317, %78, %cst_194 {dimension_numbers = #tpu.dot_dimension_numbers<[1], [0], [0], [1], [0, 0, 1, 1], [], []>} : vector<4x32xbf16>, vector<32x32xbf16>, vector<4x32xf32> -> vector<4x32xf32>
    %322 = vector.broadcast %90 : vector<1x32xf32> to vector<4x32xf32>
    %323 = arith.addf %321, %322 : vector<4x32xf32>
    %cst_195 = arith.constant dense<0.000000e+00> : vector<4x32xf32>
    %324 = tpu.matmul %317, %80, %cst_195 {dimension_numbers = #tpu.dot_dimension_numbers<[1], [0], [0], [1], [0, 0, 1, 1], [], []>} : vector<4x32xbf16>, vector<32x32xbf16>, vector<4x32xf32> -> vector<4x32xf32>
    %325 = vector.broadcast %92 : vector<1x32xf32> to vector<4x32xf32>
    %326 = arith.addf %324, %325 : vector<4x32xf32>
    %327 = arith.addf %310, %320 : vector<4x32xf32>
    %328 = arith.negf %327 : vector<4x32xf32>
    %329 = math.exp %328 : vector<4x32xf32>
    %cst_196 = arith.constant 1.000000e+00 : f32
    %330 = vector.broadcast %cst_196 : f32 to vector<4x32xf32>
    %331 = arith.addf %330, %329 : vector<4x32xf32>
    %332 = arith.divf %330, %331 : vector<4x32xf32>
    %333 = arith.addf %313, %323 : vector<4x32xf32>
    %334 = arith.negf %333 : vector<4x32xf32>
    %335 = math.exp %334 : vector<4x32xf32>
    %cst_197 = arith.constant 1.000000e+00 : f32
    %336 = vector.broadcast %cst_197 : f32 to vector<4x32xf32>
    %337 = arith.addf %336, %335 : vector<4x32xf32>
    %338 = arith.divf %336, %337 : vector<4x32xf32>
    %339 = arith.mulf %332, %326 : vector<4x32xf32>
    %340 = arith.addf %316, %339 : vector<4x32xf32>
    %341 = math.tanh %340 : vector<4x32xf32>
    %cst_198 = arith.constant 1.000000e+00 : f32
    %342 = vector.broadcast %cst_198 : f32 to vector<4x32xf32>
    %343 = arith.subf %342, %338 : vector<4x32xf32>
    %344 = arith.mulf %343, %341 : vector<4x32xf32>
    %345 = arith.mulf %338, %259 : vector<4x32xf32>
    %346 = arith.addf %344, %345 : vector<4x32xf32>
    %347 = arith.index_cast %c2_i32 : i32 to index
    %c0_199 = arith.constant 0 : index
    %c0_200 = arith.constant 0 : index
    %348 = vector.load %arg11[%347, %c0_199, %c0_200] : memref<8x4x32xf32, #tpu.memory_space<vmem>>, vector<1x4x32xf32>
    %349 = vector.shape_cast %348 : vector<1x4x32xf32> to vector<4x32xf32>
    %350 = vector.shape_cast %307 : vector<4x32xf32> to vector<1x4x32xf32>
    tpu.vector_store %arg11[%347, %c0_199, %c0_200], %350 {strides = array<i32>} : memref<8x4x32xf32, #tpu.memory_space<vmem>>, vector<1x4x32xf32>,
    %351 = arith.index_cast %268 : i32 to index
    %c0_201 = arith.constant 0 : index
    %c0_202 = arith.constant 0 : index
    %352 = vector.load %arg12[%351, %c0_201, %c0_202] : memref<8x4x32xf32, #tpu.memory_space<vmem>>, vector<1x4x32xf32>
    %353 = vector.shape_cast %352 : vector<1x4x32xf32> to vector<4x32xf32>
    %354 = vector.shape_cast %346 : vector<4x32xf32> to vector<1x4x32xf32>
    tpu.vector_store %arg12[%351, %c0_201, %c0_202], %354 {strides = array<i32>} : memref<8x4x32xf32, #tpu.memory_space<vmem>>, vector<1x4x32xf32>,
    %c3_i32 = arith.constant 3 : i32
    %c7_i32_203 = arith.constant 7 : i32
    %355 = arith.subi %c7_i32_203, %c3_i32 : i32
    %c0_204 = arith.constant 0 : index
    %356 = arith.index_cast %c3_i32 : i32 to index
    %c0_205 = arith.constant 0 : index
    %c0_206 = arith.constant 0 : index
    %357 = vector.load %arg10[%c0_204, %356, %c0_205, %c0_206] : memref<6x8x4x32xf32, #tpu.memory_space<vmem>>, vector<1x1x4x32xf32>
    %358 = vector.shape_cast %357 : vector<1x1x4x32xf32> to vector<4x32xf32>
    %c1_207 = arith.constant 1 : index
    %359 = arith.index_cast %c3_i32 : i32 to index
    %c0_208 = arith.constant 0 : index
    %c0_209 = arith.constant 0 : index
    %360 = vector.load %arg10[%c1_207, %359, %c0_208, %c0_209] : memref<6x8x4x32xf32, #tpu.memory_space<vmem>>, vector<1x1x4x32xf32>
    %361 = vector.shape_cast %360 : vector<1x1x4x32xf32> to vector<4x32xf32>
    %c2_210 = arith.constant 2 : index
    %362 = arith.index_cast %c3_i32 : i32 to index
    %c0_211 = arith.constant 0 : index
    %c0_212 = arith.constant 0 : index
    %363 = vector.load %arg10[%c2_210, %362, %c0_211, %c0_212] : memref<6x8x4x32xf32, #tpu.memory_space<vmem>>, vector<1x1x4x32xf32>
    %364 = vector.shape_cast %363 : vector<1x1x4x32xf32> to vector<4x32xf32>
    %365 = arith.truncf %307 : vector<4x32xf32> to vector<4x32xbf16>
    %cst_213 = arith.constant dense<0.000000e+00> : vector<4x32xf32>
    %366 = tpu.matmul %365, %70, %cst_213 {dimension_numbers = #tpu.dot_dimension_numbers<[1], [0], [0], [1], [0, 0, 1, 1], [], []>} : vector<4x32xbf16>, vector<32x32xbf16>, vector<4x32xf32> -> vector<4x32xf32>
    %367 = vector.broadcast %82 : vector<1x32xf32> to vector<4x32xf32>
    %368 = arith.addf %366, %367 : vector<4x32xf32>
    %cst_214 = arith.constant dense<0.000000e+00> : vector<4x32xf32>
    %369 = tpu.matmul %365, %72, %cst_214 {dimension_numbers = #tpu.dot_dimension_numbers<[1], [0], [0], [1], [0, 0, 1, 1], [], []>} : vector<4x32xbf16>, vector<32x32xbf16>, vector<4x32xf32> -> vector<4x32xf32>
    %370 = vector.broadcast %84 : vector<1x32xf32> to vector<4x32xf32>
    %371 = arith.addf %369, %370 : vector<4x32xf32>
    %cst_215 = arith.constant dense<0.000000e+00> : vector<4x32xf32>
    %372 = tpu.matmul %365, %74, %cst_215 {dimension_numbers = #tpu.dot_dimension_numbers<[1], [0], [0], [1], [0, 0, 1, 1], [], []>} : vector<4x32xbf16>, vector<32x32xbf16>, vector<4x32xf32> -> vector<4x32xf32>
    %373 = vector.broadcast %86 : vector<1x32xf32> to vector<4x32xf32>
    %374 = arith.addf %372, %373 : vector<4x32xf32>
    %375 = arith.addf %358, %368 : vector<4x32xf32>
    %376 = arith.negf %375 : vector<4x32xf32>
    %377 = math.exp %376 : vector<4x32xf32>
    %cst_216 = arith.constant 1.000000e+00 : f32
    %378 = vector.broadcast %cst_216 : f32 to vector<4x32xf32>
    %379 = arith.addf %378, %377 : vector<4x32xf32>
    %380 = arith.divf %378, %379 : vector<4x32xf32>
    %381 = arith.addf %361, %371 : vector<4x32xf32>
    %382 = arith.negf %381 : vector<4x32xf32>
    %383 = math.exp %382 : vector<4x32xf32>
    %cst_217 = arith.constant 1.000000e+00 : f32
    %384 = vector.broadcast %cst_217 : f32 to vector<4x32xf32>
    %385 = arith.addf %384, %383 : vector<4x32xf32>
    %386 = arith.divf %384, %385 : vector<4x32xf32>
    %387 = arith.mulf %380, %374 : vector<4x32xf32>
    %388 = arith.addf %364, %387 : vector<4x32xf32>
    %389 = math.tanh %388 : vector<4x32xf32>
    %cst_218 = arith.constant 1.000000e+00 : f32
    %390 = vector.broadcast %cst_218 : f32 to vector<4x32xf32>
    %391 = arith.subf %390, %386 : vector<4x32xf32>
    %392 = arith.mulf %391, %389 : vector<4x32xf32>
    %393 = arith.mulf %386, %307 : vector<4x32xf32>
    %394 = arith.addf %392, %393 : vector<4x32xf32>
    %c3_219 = arith.constant 3 : index
    %395 = arith.index_cast %355 : i32 to index
    %c0_220 = arith.constant 0 : index
    %c0_221 = arith.constant 0 : index
    %396 = vector.load %arg10[%c3_219, %395, %c0_220, %c0_221] : memref<6x8x4x32xf32, #tpu.memory_space<vmem>>, vector<1x1x4x32xf32>
    %397 = vector.shape_cast %396 : vector<1x1x4x32xf32> to vector<4x32xf32>
    %c4_222 = arith.constant 4 : index
    %398 = arith.index_cast %355 : i32 to index
    %c0_223 = arith.constant 0 : index
    %c0_224 = arith.constant 0 : index
    %399 = vector.load %arg10[%c4_222, %398, %c0_223, %c0_224] : memref<6x8x4x32xf32, #tpu.memory_space<vmem>>, vector<1x1x4x32xf32>
    %400 = vector.shape_cast %399 : vector<1x1x4x32xf32> to vector<4x32xf32>
    %c5_225 = arith.constant 5 : index
    %401 = arith.index_cast %355 : i32 to index
    %c0_226 = arith.constant 0 : index
    %c0_227 = arith.constant 0 : index
    %402 = vector.load %arg10[%c5_225, %401, %c0_226, %c0_227] : memref<6x8x4x32xf32, #tpu.memory_space<vmem>>, vector<1x1x4x32xf32>
    %403 = vector.shape_cast %402 : vector<1x1x4x32xf32> to vector<4x32xf32>
    %404 = arith.truncf %346 : vector<4x32xf32> to vector<4x32xbf16>
    %cst_228 = arith.constant dense<0.000000e+00> : vector<4x32xf32>
    %405 = tpu.matmul %404, %76, %cst_228 {dimension_numbers = #tpu.dot_dimension_numbers<[1], [0], [0], [1], [0, 0, 1, 1], [], []>} : vector<4x32xbf16>, vector<32x32xbf16>, vector<4x32xf32> -> vector<4x32xf32>
    %406 = vector.broadcast %88 : vector<1x32xf32> to vector<4x32xf32>
    %407 = arith.addf %405, %406 : vector<4x32xf32>
    %cst_229 = arith.constant dense<0.000000e+00> : vector<4x32xf32>
    %408 = tpu.matmul %404, %78, %cst_229 {dimension_numbers = #tpu.dot_dimension_numbers<[1], [0], [0], [1], [0, 0, 1, 1], [], []>} : vector<4x32xbf16>, vector<32x32xbf16>, vector<4x32xf32> -> vector<4x32xf32>
    %409 = vector.broadcast %90 : vector<1x32xf32> to vector<4x32xf32>
    %410 = arith.addf %408, %409 : vector<4x32xf32>
    %cst_230 = arith.constant dense<0.000000e+00> : vector<4x32xf32>
    %411 = tpu.matmul %404, %80, %cst_230 {dimension_numbers = #tpu.dot_dimension_numbers<[1], [0], [0], [1], [0, 0, 1, 1], [], []>} : vector<4x32xbf16>, vector<32x32xbf16>, vector<4x32xf32> -> vector<4x32xf32>
    %412 = vector.broadcast %92 : vector<1x32xf32> to vector<4x32xf32>
    %413 = arith.addf %411, %412 : vector<4x32xf32>
    %414 = arith.addf %397, %407 : vector<4x32xf32>
    %415 = arith.negf %414 : vector<4x32xf32>
    %416 = math.exp %415 : vector<4x32xf32>
    %cst_231 = arith.constant 1.000000e+00 : f32
    %417 = vector.broadcast %cst_231 : f32 to vector<4x32xf32>
    %418 = arith.addf %417, %416 : vector<4x32xf32>
    %419 = arith.divf %417, %418 : vector<4x32xf32>
    %420 = arith.addf %400, %410 : vector<4x32xf32>
    %421 = arith.negf %420 : vector<4x32xf32>
    %422 = math.exp %421 : vector<4x32xf32>
    %cst_232 = arith.constant 1.000000e+00 : f32
    %423 = vector.broadcast %cst_232 : f32 to vector<4x32xf32>
    %424 = arith.addf %423, %422 : vector<4x32xf32>
    %425 = arith.divf %423, %424 : vector<4x32xf32>
    %426 = arith.mulf %419, %413 : vector<4x32xf32>
    %427 = arith.addf %403, %426 : vector<4x32xf32>
    %428 = math.tanh %427 : vector<4x32xf32>
    %cst_233 = arith.constant 1.000000e+00 : f32
    %429 = vector.broadcast %cst_233 : f32 to vector<4x32xf32>
    %430 = arith.subf %429, %425 : vector<4x32xf32>
    %431 = arith.mulf %430, %428 : vector<4x32xf32>
    %432 = arith.mulf %425, %346 : vector<4x32xf32>
    %433 = arith.addf %431, %432 : vector<4x32xf32>
    %434 = arith.index_cast %c3_i32 : i32 to index
    %c0_234 = arith.constant 0 : index
    %c0_235 = arith.constant 0 : index
    %435 = vector.load %arg11[%434, %c0_234, %c0_235] : memref<8x4x32xf32, #tpu.memory_space<vmem>>, vector<1x4x32xf32>
    %436 = vector.shape_cast %435 : vector<1x4x32xf32> to vector<4x32xf32>
    %437 = vector.shape_cast %394 : vector<4x32xf32> to vector<1x4x32xf32>
    tpu.vector_store %arg11[%434, %c0_234, %c0_235], %437 {strides = array<i32>} : memref<8x4x32xf32, #tpu.memory_space<vmem>>, vector<1x4x32xf32>,
    %438 = arith.index_cast %355 : i32 to index
    %c0_236 = arith.constant 0 : index
    %c0_237 = arith.constant 0 : index
    %439 = vector.load %arg12[%438, %c0_236, %c0_237] : memref<8x4x32xf32, #tpu.memory_space<vmem>>, vector<1x4x32xf32>
    %440 = vector.shape_cast %439 : vector<1x4x32xf32> to vector<4x32xf32>
    %441 = vector.shape_cast %433 : vector<4x32xf32> to vector<1x4x32xf32>
    tpu.vector_store %arg12[%438, %c0_236, %c0_237], %441 {strides = array<i32>} : memref<8x4x32xf32, #tpu.memory_space<vmem>>, vector<1x4x32xf32>,
    %c4_i32 = arith.constant 4 : i32
    %c7_i32_238 = arith.constant 7 : i32
    %442 = arith.subi %c7_i32_238, %c4_i32 : i32
    %c0_239 = arith.constant 0 : index
    %443 = arith.index_cast %c4_i32 : i32 to index
    %c0_240 = arith.constant 0 : index
    %c0_241 = arith.constant 0 : index
    %444 = vector.load %arg10[%c0_239, %443, %c0_240, %c0_241] : memref<6x8x4x32xf32, #tpu.memory_space<vmem>>, vector<1x1x4x32xf32>
    %445 = vector.shape_cast %444 : vector<1x1x4x32xf32> to vector<4x32xf32>
    %c1_242 = arith.constant 1 : index
    %446 = arith.index_cast %c4_i32 : i32 to index
    %c0_243 = arith.constant 0 : index
    %c0_244 = arith.constant 0 : index
    %447 = vector.load %arg10[%c1_242, %446, %c0_243, %c0_244] : memref<6x8x4x32xf32, #tpu.memory_space<vmem>>, vector<1x1x4x32xf32>
    %448 = vector.shape_cast %447 : vector<1x1x4x32xf32> to vector<4x32xf32>
    %c2_245 = arith.constant 2 : index
    %449 = arith.index_cast %c4_i32 : i32 to index
    %c0_246 = arith.constant 0 : index
    %c0_247 = arith.constant 0 : index
    %450 = vector.load %arg10[%c2_245, %449, %c0_246, %c0_247] : memref<6x8x4x32xf32, #tpu.memory_space<vmem>>, vector<1x1x4x32xf32>
    %451 = vector.shape_cast %450 : vector<1x1x4x32xf32> to vector<4x32xf32>
    %452 = arith.truncf %394 : vector<4x32xf32> to vector<4x32xbf16>
    %cst_248 = arith.constant dense<0.000000e+00> : vector<4x32xf32>
    %453 = tpu.matmul %452, %70, %cst_248 {dimension_numbers = #tpu.dot_dimension_numbers<[1], [0], [0], [1], [0, 0, 1, 1], [], []>} : vector<4x32xbf16>, vector<32x32xbf16>, vector<4x32xf32> -> vector<4x32xf32>
    %454 = vector.broadcast %82 : vector<1x32xf32> to vector<4x32xf32>
    %455 = arith.addf %453, %454 : vector<4x32xf32>
    %cst_249 = arith.constant dense<0.000000e+00> : vector<4x32xf32>
    %456 = tpu.matmul %452, %72, %cst_249 {dimension_numbers = #tpu.dot_dimension_numbers<[1], [0], [0], [1], [0, 0, 1, 1], [], []>} : vector<4x32xbf16>, vector<32x32xbf16>, vector<4x32xf32> -> vector<4x32xf32>
    %457 = vector.broadcast %84 : vector<1x32xf32> to vector<4x32xf32>
    %458 = arith.addf %456, %457 : vector<4x32xf32>
    %cst_250 = arith.constant dense<0.000000e+00> : vector<4x32xf32>
    %459 = tpu.matmul %452, %74, %cst_250 {dimension_numbers = #tpu.dot_dimension_numbers<[1], [0], [0], [1], [0, 0, 1, 1], [], []>} : vector<4x32xbf16>, vector<32x32xbf16>, vector<4x32xf32> -> vector<4x32xf32>
    %460 = vector.broadcast %86 : vector<1x32xf32> to vector<4x32xf32>
    %461 = arith.addf %459, %460 : vector<4x32xf32>
    %462 = arith.addf %445, %455 : vector<4x32xf32>
    %463 = arith.negf %462 : vector<4x32xf32>
    %464 = math.exp %463 : vector<4x32xf32>
    %cst_251 = arith.constant 1.000000e+00 : f32
    %465 = vector.broadcast %cst_251 : f32 to vector<4x32xf32>
    %466 = arith.addf %465, %464 : vector<4x32xf32>
    %467 = arith.divf %465, %466 : vector<4x32xf32>
    %468 = arith.addf %448, %458 : vector<4x32xf32>
    %469 = arith.negf %468 : vector<4x32xf32>
    %470 = math.exp %469 : vector<4x32xf32>
    %cst_252 = arith.constant 1.000000e+00 : f32
    %471 = vector.broadcast %cst_252 : f32 to vector<4x32xf32>
    %472 = arith.addf %471, %470 : vector<4x32xf32>
    %473 = arith.divf %471, %472 : vector<4x32xf32>
    %474 = arith.mulf %467, %461 : vector<4x32xf32>
    %475 = arith.addf %451, %474 : vector<4x32xf32>
    %476 = math.tanh %475 : vector<4x32xf32>
    %cst_253 = arith.constant 1.000000e+00 : f32
    %477 = vector.broadcast %cst_253 : f32 to vector<4x32xf32>
    %478 = arith.subf %477, %473 : vector<4x32xf32>
    %479 = arith.mulf %478, %476 : vector<4x32xf32>
    %480 = arith.mulf %473, %394 : vector<4x32xf32>
    %481 = arith.addf %479, %480 : vector<4x32xf32>
    %c3_254 = arith.constant 3 : index
    %482 = arith.index_cast %442 : i32 to index
    %c0_255 = arith.constant 0 : index
    %c0_256 = arith.constant 0 : index
    %483 = vector.load %arg10[%c3_254, %482, %c0_255, %c0_256] : memref<6x8x4x32xf32, #tpu.memory_space<vmem>>, vector<1x1x4x32xf32>
    %484 = vector.shape_cast %483 : vector<1x1x4x32xf32> to vector<4x32xf32>
    %c4_257 = arith.constant 4 : index
    %485 = arith.index_cast %442 : i32 to index
    %c0_258 = arith.constant 0 : index
    %c0_259 = arith.constant 0 : index
    %486 = vector.load %arg10[%c4_257, %485, %c0_258, %c0_259] : memref<6x8x4x32xf32, #tpu.memory_space<vmem>>, vector<1x1x4x32xf32>
    %487 = vector.shape_cast %486 : vector<1x1x4x32xf32> to vector<4x32xf32>
    %c5_260 = arith.constant 5 : index
    %488 = arith.index_cast %442 : i32 to index
    %c0_261 = arith.constant 0 : index
    %c0_262 = arith.constant 0 : index
    %489 = vector.load %arg10[%c5_260, %488, %c0_261, %c0_262] : memref<6x8x4x32xf32, #tpu.memory_space<vmem>>, vector<1x1x4x32xf32>
    %490 = vector.shape_cast %489 : vector<1x1x4x32xf32> to vector<4x32xf32>
    %491 = arith.truncf %433 : vector<4x32xf32> to vector<4x32xbf16>
    %cst_263 = arith.constant dense<0.000000e+00> : vector<4x32xf32>
    %492 = tpu.matmul %491, %76, %cst_263 {dimension_numbers = #tpu.dot_dimension_numbers<[1], [0], [0], [1], [0, 0, 1, 1], [], []>} : vector<4x32xbf16>, vector<32x32xbf16>, vector<4x32xf32> -> vector<4x32xf32>
    %493 = vector.broadcast %88 : vector<1x32xf32> to vector<4x32xf32>
    %494 = arith.addf %492, %493 : vector<4x32xf32>
    %cst_264 = arith.constant dense<0.000000e+00> : vector<4x32xf32>
    %495 = tpu.matmul %491, %78, %cst_264 {dimension_numbers = #tpu.dot_dimension_numbers<[1], [0], [0], [1], [0, 0, 1, 1], [], []>} : vector<4x32xbf16>, vector<32x32xbf16>, vector<4x32xf32> -> vector<4x32xf32>
    %496 = vector.broadcast %90 : vector<1x32xf32> to vector<4x32xf32>
    %497 = arith.addf %495, %496 : vector<4x32xf32>
    %cst_265 = arith.constant dense<0.000000e+00> : vector<4x32xf32>
    %498 = tpu.matmul %491, %80, %cst_265 {dimension_numbers = #tpu.dot_dimension_numbers<[1], [0], [0], [1], [0, 0, 1, 1], [], []>} : vector<4x32xbf16>, vector<32x32xbf16>, vector<4x32xf32> -> vector<4x32xf32>
    %499 = vector.broadcast %92 : vector<1x32xf32> to vector<4x32xf32>
    %500 = arith.addf %498, %499 : vector<4x32xf32>
    %501 = arith.addf %484, %494 : vector<4x32xf32>
    %502 = arith.negf %501 : vector<4x32xf32>
    %503 = math.exp %502 : vector<4x32xf32>
    %cst_266 = arith.constant 1.000000e+00 : f32
    %504 = vector.broadcast %cst_266 : f32 to vector<4x32xf32>
    %505 = arith.addf %504, %503 : vector<4x32xf32>
    %506 = arith.divf %504, %505 : vector<4x32xf32>
    %507 = arith.addf %487, %497 : vector<4x32xf32>
    %508 = arith.negf %507 : vector<4x32xf32>
    %509 = math.exp %508 : vector<4x32xf32>
    %cst_267 = arith.constant 1.000000e+00 : f32
    %510 = vector.broadcast %cst_267 : f32 to vector<4x32xf32>
    %511 = arith.addf %510, %509 : vector<4x32xf32>
    %512 = arith.divf %510, %511 : vector<4x32xf32>
    %513 = arith.mulf %506, %500 : vector<4x32xf32>
    %514 = arith.addf %490, %513 : vector<4x32xf32>
    %515 = math.tanh %514 : vector<4x32xf32>
    %cst_268 = arith.constant 1.000000e+00 : f32
    %516 = vector.broadcast %cst_268 : f32 to vector<4x32xf32>
    %517 = arith.subf %516, %512 : vector<4x32xf32>
    %518 = arith.mulf %517, %515 : vector<4x32xf32>
    %519 = arith.mulf %512, %433 : vector<4x32xf32>
    %520 = arith.addf %518, %519 : vector<4x32xf32>
    %521 = arith.index_cast %c4_i32 : i32 to index
    %c0_269 = arith.constant 0 : index
    %c0_270 = arith.constant 0 : index
    %522 = vector.load %arg11[%521, %c0_269, %c0_270] : memref<8x4x32xf32, #tpu.memory_space<vmem>>, vector<1x4x32xf32>
    %523 = vector.shape_cast %522 : vector<1x4x32xf32> to vector<4x32xf32>
    %524 = vector.shape_cast %481 : vector<4x32xf32> to vector<1x4x32xf32>
    tpu.vector_store %arg11[%521, %c0_269, %c0_270], %524 {strides = array<i32>} : memref<8x4x32xf32, #tpu.memory_space<vmem>>, vector<1x4x32xf32>,
    %525 = arith.index_cast %442 : i32 to index
    %c0_271 = arith.constant 0 : index
    %c0_272 = arith.constant 0 : index
    %526 = vector.load %arg12[%525, %c0_271, %c0_272] : memref<8x4x32xf32, #tpu.memory_space<vmem>>, vector<1x4x32xf32>
    %527 = vector.shape_cast %526 : vector<1x4x32xf32> to vector<4x32xf32>
    %528 = vector.shape_cast %520 : vector<4x32xf32> to vector<1x4x32xf32>
    tpu.vector_store %arg12[%525, %c0_271, %c0_272], %528 {strides = array<i32>} : memref<8x4x32xf32, #tpu.memory_space<vmem>>, vector<1x4x32xf32>,
    %c5_i32 = arith.constant 5 : i32
    %c7_i32_273 = arith.constant 7 : i32
    %529 = arith.subi %c7_i32_273, %c5_i32 : i32
    %c0_274 = arith.constant 0 : index
    %530 = arith.index_cast %c5_i32 : i32 to index
    %c0_275 = arith.constant 0 : index
    %c0_276 = arith.constant 0 : index
    %531 = vector.load %arg10[%c0_274, %530, %c0_275, %c0_276] : memref<6x8x4x32xf32, #tpu.memory_space<vmem>>, vector<1x1x4x32xf32>
    %532 = vector.shape_cast %531 : vector<1x1x4x32xf32> to vector<4x32xf32>
    %c1_277 = arith.constant 1 : index
    %533 = arith.index_cast %c5_i32 : i32 to index
    %c0_278 = arith.constant 0 : index
    %c0_279 = arith.constant 0 : index
    %534 = vector.load %arg10[%c1_277, %533, %c0_278, %c0_279] : memref<6x8x4x32xf32, #tpu.memory_space<vmem>>, vector<1x1x4x32xf32>
    %535 = vector.shape_cast %534 : vector<1x1x4x32xf32> to vector<4x32xf32>
    %c2_280 = arith.constant 2 : index
    %536 = arith.index_cast %c5_i32 : i32 to index
    %c0_281 = arith.constant 0 : index
    %c0_282 = arith.constant 0 : index
    %537 = vector.load %arg10[%c2_280, %536, %c0_281, %c0_282] : memref<6x8x4x32xf32, #tpu.memory_space<vmem>>, vector<1x1x4x32xf32>
    %538 = vector.shape_cast %537 : vector<1x1x4x32xf32> to vector<4x32xf32>
    %539 = arith.truncf %481 : vector<4x32xf32> to vector<4x32xbf16>
    %cst_283 = arith.constant dense<0.000000e+00> : vector<4x32xf32>
    %540 = tpu.matmul %539, %70, %cst_283 {dimension_numbers = #tpu.dot_dimension_numbers<[1], [0], [0], [1], [0, 0, 1, 1], [], []>} : vector<4x32xbf16>, vector<32x32xbf16>, vector<4x32xf32> -> vector<4x32xf32>
    %541 = vector.broadcast %82 : vector<1x32xf32> to vector<4x32xf32>
    %542 = arith.addf %540, %541 : vector<4x32xf32>
    %cst_284 = arith.constant dense<0.000000e+00> : vector<4x32xf32>
    %543 = tpu.matmul %539, %72, %cst_284 {dimension_numbers = #tpu.dot_dimension_numbers<[1], [0], [0], [1], [0, 0, 1, 1], [], []>} : vector<4x32xbf16>, vector<32x32xbf16>, vector<4x32xf32> -> vector<4x32xf32>
    %544 = vector.broadcast %84 : vector<1x32xf32> to vector<4x32xf32>
    %545 = arith.addf %543, %544 : vector<4x32xf32>
    %cst_285 = arith.constant dense<0.000000e+00> : vector<4x32xf32>
    %546 = tpu.matmul %539, %74, %cst_285 {dimension_numbers = #tpu.dot_dimension_numbers<[1], [0], [0], [1], [0, 0, 1, 1], [], []>} : vector<4x32xbf16>, vector<32x32xbf16>, vector<4x32xf32> -> vector<4x32xf32>
    %547 = vector.broadcast %86 : vector<1x32xf32> to vector<4x32xf32>
    %548 = arith.addf %546, %547 : vector<4x32xf32>
    %549 = arith.addf %532, %542 : vector<4x32xf32>
    %550 = arith.negf %549 : vector<4x32xf32>
    %551 = math.exp %550 : vector<4x32xf32>
    %cst_286 = arith.constant 1.000000e+00 : f32
    %552 = vector.broadcast %cst_286 : f32 to vector<4x32xf32>
    %553 = arith.addf %552, %551 : vector<4x32xf32>
    %554 = arith.divf %552, %553 : vector<4x32xf32>
    %555 = arith.addf %535, %545 : vector<4x32xf32>
    %556 = arith.negf %555 : vector<4x32xf32>
    %557 = math.exp %556 : vector<4x32xf32>
    %cst_287 = arith.constant 1.000000e+00 : f32
    %558 = vector.broadcast %cst_287 : f32 to vector<4x32xf32>
    %559 = arith.addf %558, %557 : vector<4x32xf32>
    %560 = arith.divf %558, %559 : vector<4x32xf32>
    %561 = arith.mulf %554, %548 : vector<4x32xf32>
    %562 = arith.addf %538, %561 : vector<4x32xf32>
    %563 = math.tanh %562 : vector<4x32xf32>
    %cst_288 = arith.constant 1.000000e+00 : f32
    %564 = vector.broadcast %cst_288 : f32 to vector<4x32xf32>
    %565 = arith.subf %564, %560 : vector<4x32xf32>
    %566 = arith.mulf %565, %563 : vector<4x32xf32>
    %567 = arith.mulf %560, %481 : vector<4x32xf32>
    %568 = arith.addf %566, %567 : vector<4x32xf32>
    %c3_289 = arith.constant 3 : index
    %569 = arith.index_cast %529 : i32 to index
    %c0_290 = arith.constant 0 : index
    %c0_291 = arith.constant 0 : index
    %570 = vector.load %arg10[%c3_289, %569, %c0_290, %c0_291] : memref<6x8x4x32xf32, #tpu.memory_space<vmem>>, vector<1x1x4x32xf32>
    %571 = vector.shape_cast %570 : vector<1x1x4x32xf32> to vector<4x32xf32>
    %c4_292 = arith.constant 4 : index
    %572 = arith.index_cast %529 : i32 to index
    %c0_293 = arith.constant 0 : index
    %c0_294 = arith.constant 0 : index
    %573 = vector.load %arg10[%c4_292, %572, %c0_293, %c0_294] : memref<6x8x4x32xf32, #tpu.memory_space<vmem>>, vector<1x1x4x32xf32>
    %574 = vector.shape_cast %573 : vector<1x1x4x32xf32> to vector<4x32xf32>
    %c5_295 = arith.constant 5 : index
    %575 = arith.index_cast %529 : i32 to index
    %c0_296 = arith.constant 0 : index
    %c0_297 = arith.constant 0 : index
    %576 = vector.load %arg10[%c5_295, %575, %c0_296, %c0_297] : memref<6x8x4x32xf32, #tpu.memory_space<vmem>>, vector<1x1x4x32xf32>
    %577 = vector.shape_cast %576 : vector<1x1x4x32xf32> to vector<4x32xf32>
    %578 = arith.truncf %520 : vector<4x32xf32> to vector<4x32xbf16>
    %cst_298 = arith.constant dense<0.000000e+00> : vector<4x32xf32>
    %579 = tpu.matmul %578, %76, %cst_298 {dimension_numbers = #tpu.dot_dimension_numbers<[1], [0], [0], [1], [0, 0, 1, 1], [], []>} : vector<4x32xbf16>, vector<32x32xbf16>, vector<4x32xf32> -> vector<4x32xf32>
    %580 = vector.broadcast %88 : vector<1x32xf32> to vector<4x32xf32>
    %581 = arith.addf %579, %580 : vector<4x32xf32>
    %cst_299 = arith.constant dense<0.000000e+00> : vector<4x32xf32>
    %582 = tpu.matmul %578, %78, %cst_299 {dimension_numbers = #tpu.dot_dimension_numbers<[1], [0], [0], [1], [0, 0, 1, 1], [], []>} : vector<4x32xbf16>, vector<32x32xbf16>, vector<4x32xf32> -> vector<4x32xf32>
    %583 = vector.broadcast %90 : vector<1x32xf32> to vector<4x32xf32>
    %584 = arith.addf %582, %583 : vector<4x32xf32>
    %cst_300 = arith.constant dense<0.000000e+00> : vector<4x32xf32>
    %585 = tpu.matmul %578, %80, %cst_300 {dimension_numbers = #tpu.dot_dimension_numbers<[1], [0], [0], [1], [0, 0, 1, 1], [], []>} : vector<4x32xbf16>, vector<32x32xbf16>, vector<4x32xf32> -> vector<4x32xf32>
    %586 = vector.broadcast %92 : vector<1x32xf32> to vector<4x32xf32>
    %587 = arith.addf %585, %586 : vector<4x32xf32>
    %588 = arith.addf %571, %581 : vector<4x32xf32>
    %589 = arith.negf %588 : vector<4x32xf32>
    %590 = math.exp %589 : vector<4x32xf32>
    %cst_301 = arith.constant 1.000000e+00 : f32
    %591 = vector.broadcast %cst_301 : f32 to vector<4x32xf32>
    %592 = arith.addf %591, %590 : vector<4x32xf32>
    %593 = arith.divf %591, %592 : vector<4x32xf32>
    %594 = arith.addf %574, %584 : vector<4x32xf32>
    %595 = arith.negf %594 : vector<4x32xf32>
    %596 = math.exp %595 : vector<4x32xf32>
    %cst_302 = arith.constant 1.000000e+00 : f32
    %597 = vector.broadcast %cst_302 : f32 to vector<4x32xf32>
    %598 = arith.addf %597, %596 : vector<4x32xf32>
    %599 = arith.divf %597, %598 : vector<4x32xf32>
    %600 = arith.mulf %593, %587 : vector<4x32xf32>
    %601 = arith.addf %577, %600 : vector<4x32xf32>
    %602 = math.tanh %601 : vector<4x32xf32>
    %cst_303 = arith.constant 1.000000e+00 : f32
    %603 = vector.broadcast %cst_303 : f32 to vector<4x32xf32>
    %604 = arith.subf %603, %599 : vector<4x32xf32>
    %605 = arith.mulf %604, %602 : vector<4x32xf32>
    %606 = arith.mulf %599, %520 : vector<4x32xf32>
    %607 = arith.addf %605, %606 : vector<4x32xf32>
    %608 = arith.index_cast %c5_i32 : i32 to index
    %c0_304 = arith.constant 0 : index
    %c0_305 = arith.constant 0 : index
    %609 = vector.load %arg11[%608, %c0_304, %c0_305] : memref<8x4x32xf32, #tpu.memory_space<vmem>>, vector<1x4x32xf32>
    %610 = vector.shape_cast %609 : vector<1x4x32xf32> to vector<4x32xf32>
    %611 = vector.shape_cast %568 : vector<4x32xf32> to vector<1x4x32xf32>
    tpu.vector_store %arg11[%608, %c0_304, %c0_305], %611 {strides = array<i32>} : memref<8x4x32xf32, #tpu.memory_space<vmem>>, vector<1x4x32xf32>,
    %612 = arith.index_cast %529 : i32 to index
    %c0_306 = arith.constant 0 : index
    %c0_307 = arith.constant 0 : index
    %613 = vector.load %arg12[%612, %c0_306, %c0_307] : memref<8x4x32xf32, #tpu.memory_space<vmem>>, vector<1x4x32xf32>
    %614 = vector.shape_cast %613 : vector<1x4x32xf32> to vector<4x32xf32>
    %615 = vector.shape_cast %607 : vector<4x32xf32> to vector<1x4x32xf32>
    tpu.vector_store %arg12[%612, %c0_306, %c0_307], %615 {strides = array<i32>} : memref<8x4x32xf32, #tpu.memory_space<vmem>>, vector<1x4x32xf32>,
    %c6_i32 = arith.constant 6 : i32
    %c7_i32_308 = arith.constant 7 : i32
    %616 = arith.subi %c7_i32_308, %c6_i32 : i32
    %c0_309 = arith.constant 0 : index
    %617 = arith.index_cast %c6_i32 : i32 to index
    %c0_310 = arith.constant 0 : index
    %c0_311 = arith.constant 0 : index
    %618 = vector.load %arg10[%c0_309, %617, %c0_310, %c0_311] : memref<6x8x4x32xf32, #tpu.memory_space<vmem>>, vector<1x1x4x32xf32>
    %619 = vector.shape_cast %618 : vector<1x1x4x32xf32> to vector<4x32xf32>
    %c1_312 = arith.constant 1 : index
    %620 = arith.index_cast %c6_i32 : i32 to index
    %c0_313 = arith.constant 0 : index
    %c0_314 = arith.constant 0 : index
    %621 = vector.load %arg10[%c1_312, %620, %c0_313, %c0_314] : memref<6x8x4x32xf32, #tpu.memory_space<vmem>>, vector<1x1x4x32xf32>
    %622 = vector.shape_cast %621 : vector<1x1x4x32xf32> to vector<4x32xf32>
    %c2_315 = arith.constant 2 : index
    %623 = arith.index_cast %c6_i32 : i32 to index
    %c0_316 = arith.constant 0 : index
    %c0_317 = arith.constant 0 : index
    %624 = vector.load %arg10[%c2_315, %623, %c0_316, %c0_317] : memref<6x8x4x32xf32, #tpu.memory_space<vmem>>, vector<1x1x4x32xf32>
    %625 = vector.shape_cast %624 : vector<1x1x4x32xf32> to vector<4x32xf32>
    %626 = arith.truncf %568 : vector<4x32xf32> to vector<4x32xbf16>
    %cst_318 = arith.constant dense<0.000000e+00> : vector<4x32xf32>
    %627 = tpu.matmul %626, %70, %cst_318 {dimension_numbers = #tpu.dot_dimension_numbers<[1], [0], [0], [1], [0, 0, 1, 1], [], []>} : vector<4x32xbf16>, vector<32x32xbf16>, vector<4x32xf32> -> vector<4x32xf32>
    %628 = vector.broadcast %82 : vector<1x32xf32> to vector<4x32xf32>
    %629 = arith.addf %627, %628 : vector<4x32xf32>
    %cst_319 = arith.constant dense<0.000000e+00> : vector<4x32xf32>
    %630 = tpu.matmul %626, %72, %cst_319 {dimension_numbers = #tpu.dot_dimension_numbers<[1], [0], [0], [1], [0, 0, 1, 1], [], []>} : vector<4x32xbf16>, vector<32x32xbf16>, vector<4x32xf32> -> vector<4x32xf32>
    %631 = vector.broadcast %84 : vector<1x32xf32> to vector<4x32xf32>
    %632 = arith.addf %630, %631 : vector<4x32xf32>
    %cst_320 = arith.constant dense<0.000000e+00> : vector<4x32xf32>
    %633 = tpu.matmul %626, %74, %cst_320 {dimension_numbers = #tpu.dot_dimension_numbers<[1], [0], [0], [1], [0, 0, 1, 1], [], []>} : vector<4x32xbf16>, vector<32x32xbf16>, vector<4x32xf32> -> vector<4x32xf32>
    %634 = vector.broadcast %86 : vector<1x32xf32> to vector<4x32xf32>
    %635 = arith.addf %633, %634 : vector<4x32xf32>
    %636 = arith.addf %619, %629 : vector<4x32xf32>
    %637 = arith.negf %636 : vector<4x32xf32>
    %638 = math.exp %637 : vector<4x32xf32>
    %cst_321 = arith.constant 1.000000e+00 : f32
    %639 = vector.broadcast %cst_321 : f32 to vector<4x32xf32>
    %640 = arith.addf %639, %638 : vector<4x32xf32>
    %641 = arith.divf %639, %640 : vector<4x32xf32>
    %642 = arith.addf %622, %632 : vector<4x32xf32>
    %643 = arith.negf %642 : vector<4x32xf32>
    %644 = math.exp %643 : vector<4x32xf32>
    %cst_322 = arith.constant 1.000000e+00 : f32
    %645 = vector.broadcast %cst_322 : f32 to vector<4x32xf32>
    %646 = arith.addf %645, %644 : vector<4x32xf32>
    %647 = arith.divf %645, %646 : vector<4x32xf32>
    %648 = arith.mulf %641, %635 : vector<4x32xf32>
    %649 = arith.addf %625, %648 : vector<4x32xf32>
    %650 = math.tanh %649 : vector<4x32xf32>
    %cst_323 = arith.constant 1.000000e+00 : f32
    %651 = vector.broadcast %cst_323 : f32 to vector<4x32xf32>
    %652 = arith.subf %651, %647 : vector<4x32xf32>
    %653 = arith.mulf %652, %650 : vector<4x32xf32>
    %654 = arith.mulf %647, %568 : vector<4x32xf32>
    %655 = arith.addf %653, %654 : vector<4x32xf32>
    %c3_324 = arith.constant 3 : index
    %656 = arith.index_cast %616 : i32 to index
    %c0_325 = arith.constant 0 : index
    %c0_326 = arith.constant 0 : index
    %657 = vector.load %arg10[%c3_324, %656, %c0_325, %c0_326] : memref<6x8x4x32xf32, #tpu.memory_space<vmem>>, vector<1x1x4x32xf32>
    %658 = vector.shape_cast %657 : vector<1x1x4x32xf32> to vector<4x32xf32>
    %c4_327 = arith.constant 4 : index
    %659 = arith.index_cast %616 : i32 to index
    %c0_328 = arith.constant 0 : index
    %c0_329 = arith.constant 0 : index
    %660 = vector.load %arg10[%c4_327, %659, %c0_328, %c0_329] : memref<6x8x4x32xf32, #tpu.memory_space<vmem>>, vector<1x1x4x32xf32>
    %661 = vector.shape_cast %660 : vector<1x1x4x32xf32> to vector<4x32xf32>
    %c5_330 = arith.constant 5 : index
    %662 = arith.index_cast %616 : i32 to index
    %c0_331 = arith.constant 0 : index
    %c0_332 = arith.constant 0 : index
    %663 = vector.load %arg10[%c5_330, %662, %c0_331, %c0_332] : memref<6x8x4x32xf32, #tpu.memory_space<vmem>>, vector<1x1x4x32xf32>
    %664 = vector.shape_cast %663 : vector<1x1x4x32xf32> to vector<4x32xf32>
    %665 = arith.truncf %607 : vector<4x32xf32> to vector<4x32xbf16>
    %cst_333 = arith.constant dense<0.000000e+00> : vector<4x32xf32>
    %666 = tpu.matmul %665, %76, %cst_333 {dimension_numbers = #tpu.dot_dimension_numbers<[1], [0], [0], [1], [0, 0, 1, 1], [], []>} : vector<4x32xbf16>, vector<32x32xbf16>, vector<4x32xf32> -> vector<4x32xf32>
    %667 = vector.broadcast %88 : vector<1x32xf32> to vector<4x32xf32>
    %668 = arith.addf %666, %667 : vector<4x32xf32>
    %cst_334 = arith.constant dense<0.000000e+00> : vector<4x32xf32>
    %669 = tpu.matmul %665, %78, %cst_334 {dimension_numbers = #tpu.dot_dimension_numbers<[1], [0], [0], [1], [0, 0, 1, 1], [], []>} : vector<4x32xbf16>, vector<32x32xbf16>, vector<4x32xf32> -> vector<4x32xf32>
    %670 = vector.broadcast %90 : vector<1x32xf32> to vector<4x32xf32>
    %671 = arith.addf %669, %670 : vector<4x32xf32>
    %cst_335 = arith.constant dense<0.000000e+00> : vector<4x32xf32>
    %672 = tpu.matmul %665, %80, %cst_335 {dimension_numbers = #tpu.dot_dimension_numbers<[1], [0], [0], [1], [0, 0, 1, 1], [], []>} : vector<4x32xbf16>, vector<32x32xbf16>, vector<4x32xf32> -> vector<4x32xf32>
    %673 = vector.broadcast %92 : vector<1x32xf32> to vector<4x32xf32>
    %674 = arith.addf %672, %673 : vector<4x32xf32>
    %675 = arith.addf %658, %668 : vector<4x32xf32>
    %676 = arith.negf %675 : vector<4x32xf32>
    %677 = math.exp %676 : vector<4x32xf32>
    %cst_336 = arith.constant 1.000000e+00 : f32
    %678 = vector.broadcast %cst_336 : f32 to vector<4x32xf32>
    %679 = arith.addf %678, %677 : vector<4x32xf32>
    %680 = arith.divf %678, %679 : vector<4x32xf32>
    %681 = arith.addf %661, %671 : vector<4x32xf32>
    %682 = arith.negf %681 : vector<4x32xf32>
    %683 = math.exp %682 : vector<4x32xf32>
    %cst_337 = arith.constant 1.000000e+00 : f32
    %684 = vector.broadcast %cst_337 : f32 to vector<4x32xf32>
    %685 = arith.addf %684, %683 : vector<4x32xf32>
    %686 = arith.divf %684, %685 : vector<4x32xf32>
    %687 = arith.mulf %680, %674 : vector<4x32xf32>
    %688 = arith.addf %664, %687 : vector<4x32xf32>
    %689 = math.tanh %688 : vector<4x32xf32>
    %cst_338 = arith.constant 1.000000e+00 : f32
    %690 = vector.broadcast %cst_338 : f32 to vector<4x32xf32>
    %691 = arith.subf %690, %686 : vector<4x32xf32>
    %692 = arith.mulf %691, %689 : vector<4x32xf32>
    %693 = arith.mulf %686, %607 : vector<4x32xf32>
    %694 = arith.addf %692, %693 : vector<4x32xf32>
    %695 = arith.index_cast %c6_i32 : i32 to index
    %c0_339 = arith.constant 0 : index
    %c0_340 = arith.constant 0 : index
    %696 = vector.load %arg11[%695, %c0_339, %c0_340] : memref<8x4x32xf32, #tpu.memory_space<vmem>>, vector<1x4x32xf32>
    %697 = vector.shape_cast %696 : vector<1x4x32xf32> to vector<4x32xf32>
    %698 = vector.shape_cast %655 : vector<4x32xf32> to vector<1x4x32xf32>
    tpu.vector_store %arg11[%695, %c0_339, %c0_340], %698 {strides = array<i32>} : memref<8x4x32xf32, #tpu.memory_space<vmem>>, vector<1x4x32xf32>,
    %699 = arith.index_cast %616 : i32 to index
    %c0_341 = arith.constant 0 : index
    %c0_342 = arith.constant 0 : index
    %700 = vector.load %arg12[%699, %c0_341, %c0_342] : memref<8x4x32xf32, #tpu.memory_space<vmem>>, vector<1x4x32xf32>
    %701 = vector.shape_cast %700 : vector<1x4x32xf32> to vector<4x32xf32>
    %702 = vector.shape_cast %694 : vector<4x32xf32> to vector<1x4x32xf32>
    tpu.vector_store %arg12[%699, %c0_341, %c0_342], %702 {strides = array<i32>} : memref<8x4x32xf32, #tpu.memory_space<vmem>>, vector<1x4x32xf32>,
    %c7_i32_343 = arith.constant 7 : i32
    %c7_i32_344 = arith.constant 7 : i32
    %703 = arith.subi %c7_i32_344, %c7_i32_343 : i32
    %c0_345 = arith.constant 0 : index
    %704 = arith.index_cast %c7_i32_343 : i32 to index
    %c0_346 = arith.constant 0 : index
    %c0_347 = arith.constant 0 : index
    %705 = vector.load %arg10[%c0_345, %704, %c0_346, %c0_347] : memref<6x8x4x32xf32, #tpu.memory_space<vmem>>, vector<1x1x4x32xf32>
    %706 = vector.shape_cast %705 : vector<1x1x4x32xf32> to vector<4x32xf32>
    %c1_348 = arith.constant 1 : index
    %707 = arith.index_cast %c7_i32_343 : i32 to index
    %c0_349 = arith.constant 0 : index
    %c0_350 = arith.constant 0 : index
    %708 = vector.load %arg10[%c1_348, %707, %c0_349, %c0_350] : memref<6x8x4x32xf32, #tpu.memory_space<vmem>>, vector<1x1x4x32xf32>
    %709 = vector.shape_cast %708 : vector<1x1x4x32xf32> to vector<4x32xf32>
    %c2_351 = arith.constant 2 : index
    %710 = arith.index_cast %c7_i32_343 : i32 to index
    %c0_352 = arith.constant 0 : index
    %c0_353 = arith.constant 0 : index
    %711 = vector.load %arg10[%c2_351, %710, %c0_352, %c0_353] : memref<6x8x4x32xf32, #tpu.memory_space<vmem>>, vector<1x1x4x32xf32>
    %712 = vector.shape_cast %711 : vector<1x1x4x32xf32> to vector<4x32xf32>
    %713 = arith.truncf %655 : vector<4x32xf32> to vector<4x32xbf16>
    %cst_354 = arith.constant dense<0.000000e+00> : vector<4x32xf32>
    %714 = tpu.matmul %713, %70, %cst_354 {dimension_numbers = #tpu.dot_dimension_numbers<[1], [0], [0], [1], [0, 0, 1, 1], [], []>} : vector<4x32xbf16>, vector<32x32xbf16>, vector<4x32xf32> -> vector<4x32xf32>
    %715 = vector.broadcast %82 : vector<1x32xf32> to vector<4x32xf32>
    %716 = arith.addf %714, %715 : vector<4x32xf32>
    %cst_355 = arith.constant dense<0.000000e+00> : vector<4x32xf32>
    %717 = tpu.matmul %713, %72, %cst_355 {dimension_numbers = #tpu.dot_dimension_numbers<[1], [0], [0], [1], [0, 0, 1, 1], [], []>} : vector<4x32xbf16>, vector<32x32xbf16>, vector<4x32xf32> -> vector<4x32xf32>
    %718 = vector.broadcast %84 : vector<1x32xf32> to vector<4x32xf32>
    %719 = arith.addf %717, %718 : vector<4x32xf32>
    %cst_356 = arith.constant dense<0.000000e+00> : vector<4x32xf32>
    %720 = tpu.matmul %713, %74, %cst_356 {dimension_numbers = #tpu.dot_dimension_numbers<[1], [0], [0], [1], [0, 0, 1, 1], [], []>} : vector<4x32xbf16>, vector<32x32xbf16>, vector<4x32xf32> -> vector<4x32xf32>
    %721 = vector.broadcast %86 : vector<1x32xf32> to vector<4x32xf32>
    %722 = arith.addf %720, %721 : vector<4x32xf32>
    %723 = arith.addf %706, %716 : vector<4x32xf32>
    %724 = arith.negf %723 : vector<4x32xf32>
    %725 = math.exp %724 : vector<4x32xf32>
    %cst_357 = arith.constant 1.000000e+00 : f32
    %726 = vector.broadcast %cst_357 : f32 to vector<4x32xf32>
    %727 = arith.addf %726, %725 : vector<4x32xf32>
    %728 = arith.divf %726, %727 : vector<4x32xf32>
    %729 = arith.addf %709, %719 : vector<4x32xf32>
    %730 = arith.negf %729 : vector<4x32xf32>
    %731 = math.exp %730 : vector<4x32xf32>
    %cst_358 = arith.constant 1.000000e+00 : f32
    %732 = vector.broadcast %cst_358 : f32 to vector<4x32xf32>
    %733 = arith.addf %732, %731 : vector<4x32xf32>
    %734 = arith.divf %732, %733 : vector<4x32xf32>
    %735 = arith.mulf %728, %722 : vector<4x32xf32>
    %736 = arith.addf %712, %735 : vector<4x32xf32>
    %737 = math.tanh %736 : vector<4x32xf32>
    %cst_359 = arith.constant 1.000000e+00 : f32
    %738 = vector.broadcast %cst_359 : f32 to vector<4x32xf32>
    %739 = arith.subf %738, %734 : vector<4x32xf32>
    %740 = arith.mulf %739, %737 : vector<4x32xf32>
    %741 = arith.mulf %734, %655 : vector<4x32xf32>
    %742 = arith.addf %740, %741 : vector<4x32xf32>
    %c3_360 = arith.constant 3 : index
    %743 = arith.index_cast %703 : i32 to index
    %c0_361 = arith.constant 0 : index
    %c0_362 = arith.constant 0 : index
    %744 = vector.load %arg10[%c3_360, %743, %c0_361, %c0_362] : memref<6x8x4x32xf32, #tpu.memory_space<vmem>>, vector<1x1x4x32xf32>
    %745 = vector.shape_cast %744 : vector<1x1x4x32xf32> to vector<4x32xf32>
    %c4_363 = arith.constant 4 : index
    %746 = arith.index_cast %703 : i32 to index
    %c0_364 = arith.constant 0 : index
    %c0_365 = arith.constant 0 : index
    %747 = vector.load %arg10[%c4_363, %746, %c0_364, %c0_365] : memref<6x8x4x32xf32, #tpu.memory_space<vmem>>, vector<1x1x4x32xf32>
    %748 = vector.shape_cast %747 : vector<1x1x4x32xf32> to vector<4x32xf32>
    %c5_366 = arith.constant 5 : index
    %749 = arith.index_cast %703 : i32 to index
    %c0_367 = arith.constant 0 : index
    %c0_368 = arith.constant 0 : index
    %750 = vector.load %arg10[%c5_366, %749, %c0_367, %c0_368] : memref<6x8x4x32xf32, #tpu.memory_space<vmem>>, vector<1x1x4x32xf32>
    %751 = vector.shape_cast %750 : vector<1x1x4x32xf32> to vector<4x32xf32>
    %752 = arith.truncf %694 : vector<4x32xf32> to vector<4x32xbf16>
    %cst_369 = arith.constant dense<0.000000e+00> : vector<4x32xf32>
    %753 = tpu.matmul %752, %76, %cst_369 {dimension_numbers = #tpu.dot_dimension_numbers<[1], [0], [0], [1], [0, 0, 1, 1], [], []>} : vector<4x32xbf16>, vector<32x32xbf16>, vector<4x32xf32> -> vector<4x32xf32>
    %754 = vector.broadcast %88 : vector<1x32xf32> to vector<4x32xf32>
    %755 = arith.addf %753, %754 : vector<4x32xf32>
    %cst_370 = arith.constant dense<0.000000e+00> : vector<4x32xf32>
    %756 = tpu.matmul %752, %78, %cst_370 {dimension_numbers = #tpu.dot_dimension_numbers<[1], [0], [0], [1], [0, 0, 1, 1], [], []>} : vector<4x32xbf16>, vector<32x32xbf16>, vector<4x32xf32> -> vector<4x32xf32>
    %757 = vector.broadcast %90 : vector<1x32xf32> to vector<4x32xf32>
    %758 = arith.addf %756, %757 : vector<4x32xf32>
    %cst_371 = arith.constant dense<0.000000e+00> : vector<4x32xf32>
    %759 = tpu.matmul %752, %80, %cst_371 {dimension_numbers = #tpu.dot_dimension_numbers<[1], [0], [0], [1], [0, 0, 1, 1], [], []>} : vector<4x32xbf16>, vector<32x32xbf16>, vector<4x32xf32> -> vector<4x32xf32>
    %760 = vector.broadcast %92 : vector<1x32xf32> to vector<4x32xf32>
    %761 = arith.addf %759, %760 : vector<4x32xf32>
    %762 = arith.addf %745, %755 : vector<4x32xf32>
    %763 = arith.negf %762 : vector<4x32xf32>
    %764 = math.exp %763 : vector<4x32xf32>
    %cst_372 = arith.constant 1.000000e+00 : f32
    %765 = vector.broadcast %cst_372 : f32 to vector<4x32xf32>
    %766 = arith.addf %765, %764 : vector<4x32xf32>
    %767 = arith.divf %765, %766 : vector<4x32xf32>
    %768 = arith.addf %748, %758 : vector<4x32xf32>
    %769 = arith.negf %768 : vector<4x32xf32>
    %770 = math.exp %769 : vector<4x32xf32>
    %cst_373 = arith.constant 1.000000e+00 : f32
    %771 = vector.broadcast %cst_373 : f32 to vector<4x32xf32>
    %772 = arith.addf %771, %770 : vector<4x32xf32>
    %773 = arith.divf %771, %772 : vector<4x32xf32>
    %774 = arith.mulf %767, %761 : vector<4x32xf32>
    %775 = arith.addf %751, %774 : vector<4x32xf32>
    %776 = math.tanh %775 : vector<4x32xf32>
    %cst_374 = arith.constant 1.000000e+00 : f32
    %777 = vector.broadcast %cst_374 : f32 to vector<4x32xf32>
    %778 = arith.subf %777, %773 : vector<4x32xf32>
    %779 = arith.mulf %778, %776 : vector<4x32xf32>
    %780 = arith.mulf %773, %694 : vector<4x32xf32>
    %781 = arith.addf %779, %780 : vector<4x32xf32>
    %782 = arith.index_cast %c7_i32_343 : i32 to index
    %c0_375 = arith.constant 0 : index
    %c0_376 = arith.constant 0 : index
    %783 = vector.load %arg11[%782, %c0_375, %c0_376] : memref<8x4x32xf32, #tpu.memory_space<vmem>>, vector<1x4x32xf32>
    %784 = vector.shape_cast %783 : vector<1x4x32xf32> to vector<4x32xf32>
    %785 = vector.shape_cast %742 : vector<4x32xf32> to vector<1x4x32xf32>
    tpu.vector_store %arg11[%782, %c0_375, %c0_376], %785 {strides = array<i32>} : memref<8x4x32xf32, #tpu.memory_space<vmem>>, vector<1x4x32xf32>,
    %786 = arith.index_cast %703 : i32 to index
    %c0_377 = arith.constant 0 : index
    %c0_378 = arith.constant 0 : index
    %787 = vector.load %arg12[%786, %c0_377, %c0_378] : memref<8x4x32xf32, #tpu.memory_space<vmem>>, vector<1x4x32xf32>
    %788 = vector.shape_cast %787 : vector<1x4x32xf32> to vector<4x32xf32>
    %789 = vector.shape_cast %781 : vector<4x32xf32> to vector<1x4x32xf32>
    tpu.vector_store %arg12[%786, %c0_377, %c0_378], %789 {strides = array<i32>} : memref<8x4x32xf32, #tpu.memory_space<vmem>>, vector<1x4x32xf32>,
    %c8_i32 = arith.constant 8 : i32
    %c0_379 = arith.constant 0 : index
    %c0_380 = arith.constant 0 : index
    %c0_381 = arith.constant 0 : index
    %790 = vector.load %arg11[%c0_379, %c0_380, %c0_381] : memref<8x4x32xf32, #tpu.memory_space<vmem>>, vector<8x4x32xf32>
    %c0_382 = arith.constant 0 : index
    %c0_383 = arith.constant 0 : index
    %c0_384 = arith.constant 0 : index
    %791 = vector.load %arg12[%c0_382, %c0_383, %c0_384] : memref<8x4x32xf32, #tpu.memory_space<vmem>>, vector<8x4x32xf32>
    %792 = tpu.concatenate %790, %791 in 2 : vector<8x4x32xf32>, vector<8x4x32xf32> -> vector<8x4x64xf32>
    %c0_385 = arith.constant 0 : index
    %c0_386 = arith.constant 0 : index
    %c0_387 = arith.constant 0 : index
    %793 = vector.load %arg8[%c0_385, %c0_386, %c0_387] : memref<8x4x64xf32, #tpu.memory_space<vmem>>, vector<8x4x64xf32>
    tpu.vector_store %arg8[%c0_385, %c0_386, %c0_387], %792 {strides = array<i32>} : memref<8x4x64xf32, #tpu.memory_space<vmem>>, vector<8x4x64xf32>,
    %794 = arith.truncf %742 : vector<4x32xf32> to vector<4x32xbf16>
    %c0_388 = arith.constant 0 : index
    %c0_389 = arith.constant 0 : index
    %c0_390 = arith.constant 0 : index
    %795 = vector.load %arg6[%c0_388, %c0_389, %c0_390] : memref<2x32x32xbf16, #tpu.memory_space<vmem>>, vector<1x32x32xbf16>
    %796 = vector.shape_cast %795 : vector<1x32x32xbf16> to vector<32x32xbf16>
    %cst_391 = arith.constant dense<0.000000e+00> : vector<4x32xf32>
    %797 = tpu.matmul %794, %796, %cst_391 {dimension_numbers = #tpu.dot_dimension_numbers<[1], [0], [0], [1], [0, 0, 1, 1], [], []>} : vector<4x32xbf16>, vector<32x32xbf16>, vector<4x32xf32> -> vector<4x32xf32>
    %798 = arith.truncf %781 : vector<4x32xf32> to vector<4x32xbf16>
    %c1_392 = arith.constant 1 : index
    %c0_393 = arith.constant 0 : index
    %c0_394 = arith.constant 0 : index
    %799 = vector.load %arg6[%c1_392, %c0_393, %c0_394] : memref<2x32x32xbf16, #tpu.memory_space<vmem>>, vector<1x32x32xbf16>
    %800 = vector.shape_cast %799 : vector<1x32x32xbf16> to vector<32x32xbf16>
    %cst_395 = arith.constant dense<0.000000e+00> : vector<4x32xf32>
    %801 = tpu.matmul %798, %800, %cst_395 {dimension_numbers = #tpu.dot_dimension_numbers<[1], [0], [0], [1], [0, 0, 1, 1], [], []>} : vector<4x32xbf16>, vector<32x32xbf16>, vector<4x32xf32> -> vector<4x32xf32>
    %802 = arith.addf %797, %801 : vector<4x32xf32>
    %c0_396 = arith.constant 0 : index
    %c0_397 = arith.constant 0 : index
    %803 = vector.load %arg7[%c0_396, %c0_397] : memref<1x32xf32, #tpu.memory_space<vmem>>, vector<1x32xf32>
    %804 = vector.broadcast %803 : vector<1x32xf32> to vector<4x32xf32>
    %805 = arith.addf %802, %804 : vector<4x32xf32>
    %806 = math.tanh %805 : vector<4x32xf32>
    %c0_398 = arith.constant 0 : index
    %c0_399 = arith.constant 0 : index
    %807 = vector.load %arg9[%c0_398, %c0_399] : memref<4x32xf32, #tpu.memory_space<vmem>>, vector<4x32xf32>
    tpu.vector_store %arg9[%c0_398, %c0_399], %806 {strides = array<i32>} : memref<4x32xf32, #tpu.memory_space<vmem>>, vector<4x32xf32>,
    return
  }
  func.func @transform_0(%arg0: i32) -> (i32, i32, i32) {
    %c0_i32 = arith.constant 0 : i32
    %c0_i32_0 = arith.constant 0 : i32
    %c0_i32_1 = arith.constant 0 : i32
    %c0_i32_2 = arith.constant 0 : i32
    return %c0_i32, %c0_i32_0, %c0_i32_1 : i32, i32, i32
  }
  func.func @transform_1(%arg0: i32) -> (i32, i32, i32) {
    %c0_i32 = arith.constant 0 : i32
    %c0_i32_0 = arith.constant 0 : i32
    %c0_i32_1 = arith.constant 0 : i32
    %c0_i32_2 = arith.constant 0 : i32
    return %c0_i32, %c0_i32_0, %c0_i32_1 : i32, i32, i32
  }
  func.func @transform_2(%arg0: i32) -> (i32, i32, i32) {
    %c0_i32 = arith.constant 0 : i32
    %c0_i32_0 = arith.constant 0 : i32
    %c0_i32_1 = arith.constant 0 : i32
    %c0_i32_2 = arith.constant 0 : i32
    return %c0_i32, %c0_i32_0, %c0_i32_1 : i32, i32, i32
  }
  func.func @transform_3(%arg0: i32) -> (i32, i32, i32) {
    %c0_i32 = arith.constant 0 : i32
    %c0_i32_0 = arith.constant 0 : i32
    %c0_i32_1 = arith.constant 0 : i32
    %c0_i32_2 = arith.constant 0 : i32
    return %c0_i32, %c0_i32_0, %c0_i32_1 : i32, i32, i32
  }
  func.func @transform_4(%arg0: i32) -> (i32, i32, i32) {
    %c0_i32 = arith.constant 0 : i32
    %c0_i32_0 = arith.constant 0 : i32
    %c0_i32_1 = arith.constant 0 : i32
    %c0_i32_2 = arith.constant 0 : i32
    return %c0_i32, %c0_i32_0, %c0_i32_1 : i32, i32, i32
  }
  func.func @transform_5(%arg0: i32) -> (i32, i32, i32) {
    %c0_i32 = arith.constant 0 : i32
    %c0_i32_0 = arith.constant 0 : i32
    %c0_i32_1 = arith.constant 0 : i32
    %c0_i32_2 = arith.constant 0 : i32
    return %c0_i32, %c0_i32_0, %c0_i32_1 : i32, i32, i32
  }
  func.func @transform_6(%arg0: i32) -> (i32, i32) {
    %c0_i32 = arith.constant 0 : i32
    %c0_i32_0 = arith.constant 0 : i32
    %c0_i32_1 = arith.constant 0 : i32
    return %c0_i32, %c0_i32_0 : i32, i32
  }
  func.func @transform_7(%arg0: i32) -> (i32, i32, i32) {
    %c0_i32 = arith.constant 0 : i32
    %c0_i32_0 = arith.constant 0 : i32
    %c0_i32_1 = arith.constant 0 : i32
    %c0_i32_2 = arith.constant 0 : i32
    return %c0_i32, %c0_i32_0, %c0_i32_1 : i32, i32, i32
  }
  func.func @transform_8(%arg0: i32) -> (i32, i32) {
    %c0_i32 = arith.constant 0 : i32
    %c0_i32_0 = arith.constant 0 : i32
    %c0_i32_1 = arith.constant 0 : i32
    return %c0_i32, %c0_i32_0 : i32, i32
  }
}

</mosaic_0001>

<llo_original>
// kernel: encoder_forward.3
$region0: #{encoder_forward.3}
  #allocation0 [shape = 'u32[]', space=smem, size = 0x4, offset = 0x4, fixed_abs, tag = 'smem constant byte address 0x4 - core index']
  #allocation1 [shape = 'u32[144,128]{1,0:T(1,128)}', space=vmem, size = 0x12000, scoped, tag = 'internal scratch']
  #allocation2 [shape = 'f32[6,8,4,32]{3,2,1,0:T(4,128)}', space=vmem, size = 0x18000, scoped, tag = 'scratch operand']
  #allocation3 [shape = 'f32[8,4,32]{2,1,0:T(4,128)}', space=vmem, size = 0x4000, scoped, tag = 'scratch operand']
  #allocation4 [shape = 'f32[8,4,32]{2,1,0:T(4,128)}', space=vmem, size = 0x4000, scoped, tag = 'scratch operand']
  %s0 = inlined_call_operand.vmem [shape: f32[8,4,64], index: 0, kind: input, shape index: {}]
  %s1 = inlined_call_operand.vmem [shape: bf16[6,64,32], index: 1, kind: input, shape index: {}]
  %s2 = inlined_call_operand.vmem [shape: bf16[6,32,32], index: 2, kind: input, shape index: {}]
  %s3 = inlined_call_operand.vmem [shape: f32[6,1,32], index: 3, kind: input, shape index: {}]
  %s4 = inlined_call_operand.vmem [shape: f32[6,1,32], index: 4, kind: input, shape index: {}]
  %s5 = inlined_call_operand.vmem [shape: bf16[2,32,32], index: 5, kind: input, shape index: {}]
  %s6 = inlined_call_operand.vmem [shape: f32[1,32], index: 6, kind: input, shape index: {}]
  %s7 = inlined_call_operand.hbm [shape: f32[8,4,64], index: 7, kind: output, shape index: {0}]
  %s8 = inlined_call_operand.hbm [shape: f32[4,32], index: 8, kind: output, shape index: {1}]
  %9 = xla_tuple %s7, %s8
  %s10 = sld [smem:[#allocation0]]
  $region46: #{encoder_forward.3} parent=0
    _
  %s12 = ssub.s32 1, %s10
  %s13 = scalar_select 0, %s12, %s10
  $region1: #{encoder_forward.3} parent=0
    #allocation5 [shape = 'u8[16384]{0}', space=vmem, size = 0x4000, scoped, tag = 'output window, operand 0, single buffered']
    #allocation6 [shape = 's32[1]{0}', space=sflag, size = 0x4, scoped, tag = 'scoped memory for encoder_forward.3']
    #allocation7 [shape = 'u8[2048]{0}', space=vmem, size = 0x800, scoped, tag = 'output window, operand 1, single buffered']
    #allocation8 [shape = 's32[1]{0}', space=sflag, size = 0x4, scoped, tag = 'scoped memory for encoder_forward.3']
    %14 = vsyncpa [#allocation6], 0
    %15 = vsyncpa [#allocation8], 0
    // Predicated region
    $region2: #{encoder_forward.3} parent=1 // pred_check
      _
    $region3: #{encoder_forward.3} parent=1 // pred_check_branch
      %17 = sbr.rel (0) target = $region5
    $region4: #{encoder_forward.3} parent=1 // pred_region
      _
    $region5: #{encoder_forward.3} parent=1 // pred_fallthru
      _
    // Predicated region
    $region6: #{encoder_forward.3} parent=1 // pred_check
      _
    $region7: #{encoder_forward.3} parent=1 // pred_check_branch
      %19 = sbr.rel (0) target = $region9
    $region8: #{encoder_forward.3} parent=1 // pred_region
      _
    $region9: #{encoder_forward.3} parent=1 // pred_fallthru
      _
    // Predicated region
    $region10: #{encoder_forward.3} parent=1 // pred_check
      _
    $region11: #{encoder_forward.3} parent=1 // pred_check_branch
      %21 = sbr.rel (0) target = $region13
    $region12: #{encoder_forward.3} parent=1 // pred_region
      _
    $region13: #{encoder_forward.3} parent=1 // pred_fallthru
      _
    // Predicated region
    $region14: #{encoder_forward.3} parent=1 // pred_check
      _
    $region15: #{encoder_forward.3} parent=1 // pred_check_branch
      %23 = sbr.rel (0) target = $region17
    $region16: #{encoder_forward.3} parent=1 // pred_region
      _
    $region17: #{encoder_forward.3} parent=1 // pred_fallthru
      _
    // Predicated region
    $region18: #{encoder_forward.3} parent=1 // pred_check
      _
    $region19: #{encoder_forward.3} parent=1 // pred_check_branch
      %25 = sbr.rel (0) target = $region21
    $region20: #{encoder_forward.3} parent=1 // pred_region
      _
    $region21: #{encoder_forward.3} parent=1 // pred_fallthru
      _
    // Predicated region
    $region22: #{encoder_forward.3} parent=1 // pred_check
      _
    $region23: #{encoder_forward.3} parent=1 // pred_check_branch
      %27 = sbr.rel (0) target = $region25
    $region24: #{encoder_forward.3} parent=1 // pred_region
      _
    $region25: #{encoder_forward.3} parent=1 // pred_fallthru
      _
    // Predicated region
    $region26: #{encoder_forward.3} parent=1 // pred_check
      _
    $region27: #{encoder_forward.3} parent=1 // pred_check_branch
      %29 = sbr.rel (0) target = $region29
    $region28: #{encoder_forward.3} parent=1 // pred_region
      _
    $region29: #{encoder_forward.3} parent=1 // pred_fallthru
      _
    %v31 = vld [vmem:[%s0] sm:$0xf]
    %v32 = vld [vmem:[%s0 + $0x4] sm:$0xf]
    %v33 = vld [vmem:[%s0 + $0x8] sm:$0xf]
    %v34 = vld [vmem:[%s0 + $0xc] sm:$0xf]
    %v35 = vld [vmem:[%s0 + $0x10] sm:$0xf]
    %v36 = vld [vmem:[%s0 + $0x14] sm:$0xf]
    %v37 = vld [vmem:[%s0 + $0x18] sm:$0xf]
    %v38 = vld [vmem:[%s0 + $0x1c] sm:$0xf]
    %v47 = vcombine.low %v31, %v32
    %v48 = vcombine.low %v33, %v34
    %v49 = vcombine.low %v35, %v36
    %v50 = vcombine.low %v37, %v38
    %v55 = vpack.c.bf16 %v48, %v47
    %v56 = vpack.c.bf16 %v50, %v49
    %v57 = vld [vmem:[%s1] sm:$0xf]
    %v58 = vld [vmem:[%s1 + $0x4] sm:$0xf]
    %v59 = vld [vmem:[%s1 + $0x8] sm:$0xf]
    %v60 = vld [vmem:[%s1 + $0xc] sm:$0xf]
    %v61 = vld [vmem:[%s1 + $0x10] sm:$0xf]
    %v62 = vld [vmem:[%s1 + $0x14] sm:$0xf]
    %v63 = vld [vmem:[%s1 + $0x18] sm:$0xf]
    %v64 = vld [vmem:[%s1 + $0x1c] sm:$0xf]
    %v65 = vld [vmem:[%s3] sm:$0x1]
    %v67 = vlaneseq
    %v68 = vshrl.u32 %v67, 7
    %v69 = vsub.s32 0, %v68
    %v70 = vrot.slane %v65, %v69
    %v80 = vunpack.c.l.b16 %v57
    %v81 = vunpack.c.l.b16 %v58
    %v82 = vunpack.c.l.b16 %v59
    %v83 = vunpack.c.l.b16 %v60
    %v84 = vunpack.c.l.b16 %v61
    %v85 = vunpack.c.l.b16 %v62
    %v86 = vunpack.c.l.b16 %v63
    %v87 = vunpack.c.l.b16 %v64
    %v88 = vpack.c.b16 %v81, %v80
    %v89 = vpack.c.b16 %v83, %v82
    %v90 = vpack.c.b16 %v85, %v84
    %v91 = vpack.c.b16 %v87, %v86
    %vm96 = vcmask 523264
    %v98 = vsel %vm96, %v55, 0
    %v101 = vsel %vm96, %v56, 0
    %103 = vmatprep.subr.bf16.mxu0 0
    %104 = vmatpush1.bf16.msra.mxu0 %v88
    %105 = vmatprep.subr.bf16.mxu0 0
    %106 = vmatpush1.bf16.msra.mxu0 %v89
    %107 = vmatprep.subr.bf16.mxu0 0
    %108 = vmatpush1.bf16.msra.mxu0 %v90
    %109 = vmatprep.subr.bf16.mxu0 0
    %110 = vmatpush1.bf16.msra.mxu0 %v91
    %111 = vmatprep.subr.bf16.mxu0 0
    %112 = vmatpush1.bf16.msra.mxu0 0
    %113 = vmatprep.subr.bf16.mxu0 0
    %114 = vmatpush1.bf16.msra.mxu0 0
    %115 = vmatprep.subr.bf16.mxu0 0
    %116 = vmatpush1.bf16.msra.mxu0 0
    %117 = vmatprep.subr.bf16.mxu0 0
    %118 = vmatpush1.bf16.msra.mxu0 0
    %119 = vmatprep.subr.bf16.mxu0 0
    %120 = vmatpush1.bf16.msra.mxu0 0
    %121 = vmatprep.subr.bf16.mxu0 0
    %122 = vmatpush1.bf16.msra.mxu0 0
    %123 = vmatprep.subr.bf16.mxu0 0
    %124 = vmatpush1.bf16.msra.mxu0 0
    %125 = vmatprep.subr.bf16.mxu0 0
    %126 = vmatpush1.bf16.msra.mxu0 0
    %127 = vmatprep.subr.bf16.mxu0 0
    %128 = vmatpush1.bf16.msra.mxu0 0
    %129 = vmatprep.subr.bf16.mxu0 0
    %130 = vmatpush1.bf16.msra.mxu0 0
    %131 = vmatprep.subr.bf16.mxu0 0
    %132 = vmatpush1.bf16.msra.mxu0 0
    %133 = vmatprep.subr.bf16.mxu0 0
    %134 = vmatpush1.bf16.msra.mxu0 0
    %135 = vmatprep.mubr.bf16.mxu0 0
    %136 = vmatmul.mubr.bf16.gmra.mrb[0].mxu0 %v98
    %v137 = vpop.f32.mrb[0].mxu0
    %v138 = vadd.f32 %v70, %v137
    %v139 = vpop.f32.mrb[0].mxu0
    %v140 = vpop.f32.mrb[0].mxu0
    %v141 = vadd.f32 %v70, %v140
    %v142 = vpop.f32.mrb[0].mxu0
    %143 = vmatprep.mubr.bf16.mxu0 0
    %144 = vmatmul.mubr.bf16.gmra.mrb[0].mxu0 %v101
    %v145 = vpop.f32.mrb[0].mxu0
    %v146 = vadd.f32 %v70, %v145
    %v147 = vpop.f32.mrb[0].mxu0
    %v148 = vpop.f32.mrb[0].mxu0
    %v149 = vadd.f32 %v70, %v148
    %v150 = vpop.f32.mrb[0].mxu0
    %151 = vdwg.mxu0
    %v156 = vcombine.high %v138, %v138
    %v157 = vcombine.high %v141, %v141
    %v158 = vcombine.high %v146, %v146
    %v159 = vcombine.high %v149, %v149
    %vm164 = vcmask 257024
    %165 = vst.msk [vmem:[#allocation2] sm:$0xf] %vm164, %v138
    %166 = vst.msk [vmem:[#allocation2 + $0x4] sm:$0xf] %vm164, %v156
    %167 = vst.msk [vmem:[#allocation2 + $0x8] sm:$0xf] %vm164, %v141
    %168 = vst.msk [vmem:[#allocation2 + $0xc] sm:$0xf] %vm164, %v157
    %169 = vst.msk [vmem:[#allocation2 + $0x10] sm:$0xf] %vm164, %v146
    %170 = vst.msk [vmem:[#allocation2 + $0x14] sm:$0xf] %vm164, %v158
    %171 = vst.msk [vmem:[#allocation2 + $0x18] sm:$0xf] %vm164, %v149
    %172 = vst.msk [vmem:[#allocation2 + $0x1c] sm:$0xf] %vm164, %v159
    %s173 = scalar_lea.vmem %s1, 32
    %v174 = vld [vmem:[%s173] sm:$0xf]
    %v175 = vld [vmem:[%s173 + $0x4] sm:$0xf]
    %v176 = vld [vmem:[%s173 + $0x8] sm:$0xf]
    %v177 = vld [vmem:[%s173 + $0xc] sm:$0xf]
    %v178 = vld [vmem:[%s173 + $0x10] sm:$0xf]
    %v179 = vld [vmem:[%s173 + $0x14] sm:$0xf]
    %v180 = vld [vmem:[%s173 + $0x18] sm:$0xf]
    %v181 = vld [vmem:[%s173 + $0x1c] sm:$0xf]
    %s182 = scalar_lea.vmem %s3, 1
    %v183 = vld [vmem:[%s182] sm:$0x1]
    %v185 = vlaneseq
    %v186 = vshrl.u32 %v185, 7
    %v187 = vsub.s32 0, %v186
    %v188 = vrot.slane %v183, %v187
    %v198 = vunpack.c.l.b16 %v174
    %v199 = vunpack.c.l.b16 %v175
    %v200 = vunpack.c.l.b16 %v176
    %v201 = vunpack.c.l.b16 %v177
    %v202 = vunpack.c.l.b16 %v178
    %v203 = vunpack.c.l.b16 %v179
    %v204 = vunpack.c.l.b16 %v180
    %v205 = vunpack.c.l.b16 %v181
    %v206 = vpack.c.b16 %v199, %v198
    %v207 = vpack.c.b16 %v201, %v200
    %v208 = vpack.c.b16 %v203, %v202
    %v209 = vpack.c.b16 %v205, %v204
    %214 = vmatprep.subr.bf16.mxu0 0
    %215 = vmatpush1.bf16.msra.mxu0 %v206
    %216 = vmatprep.subr.bf16.mxu0 0
    %217 = vmatpush1.bf16.msra.mxu0 %v207
    %218 = vmatprep.subr.bf16.mxu0 0
    %219 = vmatpush1.bf16.msra.mxu0 %v208
    %220 = vmatprep.subr.bf16.mxu0 0
    %221 = vmatpush1.bf16.msra.mxu0 %v209
    %222 = vmatprep.subr.bf16.mxu0 0
    %223 = vmatpush1.bf16.msra.mxu0 0
    %224 = vmatprep.subr.bf16.mxu0 0
    %225 = vmatpush1.bf16.msra.mxu0 0
    %226 = vmatprep.subr.bf16.mxu0 0
    %227 = vmatpush1.bf16.msra.mxu0 0
    %228 = vmatprep.subr.bf16.mxu0 0
    %229 = vmatpush1.bf16.msra.mxu0 0
    %230 = vmatprep.subr.bf16.mxu0 0
    %231 = vmatpush1.bf16.msra.mxu0 0
    %232 = vmatprep.subr.bf16.mxu0 0
    %233 = vmatpush1.bf16.msra.mxu0 0
    %234 = vmatprep.subr.bf16.mxu0 0
    %235 = vmatpush1.bf16.msra.mxu0 0
    %236 = vmatprep.subr.bf16.mxu0 0
    %237 = vmatpush1.bf16.msra.mxu0 0
    %238 = vmatprep.subr.bf16.mxu0 0
    %239 = vmatpush1.bf16.msra.mxu0 0
    %240 = vmatprep.subr.bf16.mxu0 0
    %241 = vmatpush1.bf16.msra.mxu0 0
    %242 = vmatprep.subr.bf16.mxu0 0
    %243 = vmatpush1.bf16.msra.mxu0 0
    %244 = vmatprep.subr.bf16.mxu0 0
    %245 = vmatpush1.bf16.msra.mxu0 0
    %246 = vmatprep.mubr.bf16.mxu0 0
    %247 = vmatmul.mubr.bf16.gmra.mrb[0].mxu0 %v98
    %v248 = vpop.f32.mrb[0].mxu0
    %v249 = vadd.f32 %v188, %v248
    %v250 = vpop.f32.mrb[0].mxu0
    %v251 = vpop.f32.mrb[0].mxu0
    %v252 = vadd.f32 %v188, %v251
    %v253 = vpop.f32.mrb[0].mxu0
    %254 = vmatprep.mubr.bf16.mxu0 0
    %255 = vmatmul.mubr.bf16.gmra.mrb[0].mxu0 %v101
    %v256 = vpop.f32.mrb[0].mxu0
    %v257 = vadd.f32 %v188, %v256
    %v258 = vpop.f32.mrb[0].mxu0
    %v259 = vpop.f32.mrb[0].mxu0
    %v260 = vadd.f32 %v188, %v259
    %v261 = vpop.f32.mrb[0].mxu0
    %262 = vdwg.mxu0
    %v267 = vcombine.high %v249, %v249
    %v268 = vcombine.high %v252, %v252
    %v269 = vcombine.high %v257, %v257
    %v270 = vcombine.high %v260, %v260
    %s275 = scalar_lea.vmem [#allocation2], 32
    %276 = vst.msk [vmem:[%s275] sm:$0xf] %vm164, %v249
    %277 = vst.msk [vmem:[%s275 + $0x4] sm:$0xf] %vm164, %v267
    %278 = vst.msk [vmem:[%s275 + $0x8] sm:$0xf] %vm164, %v252
    %279 = vst.msk [vmem:[%s275 + $0xc] sm:$0xf] %vm164, %v268
    %280 = vst.msk [vmem:[%s275 + $0x10] sm:$0xf] %vm164, %v257
    %281 = vst.msk [vmem:[%s275 + $0x14] sm:$0xf] %vm164, %v269
    %282 = vst.msk [vmem:[%s275 + $0x18] sm:$0xf] %vm164, %v260
    %283 = vst.msk [vmem:[%s275 + $0x1c] sm:$0xf] %vm164, %v270
    %s284 = scalar_lea.vmem %s1, 64
    %v285 = vld [vmem:[%s284] sm:$0xf]
    %v286 = vld [vmem:[%s284 + $0x4] sm:$0xf]
    %v287 = vld [vmem:[%s284 + $0x8] sm:$0xf]
    %v288 = vld [vmem:[%s284 + $0xc] sm:$0xf]
    %v289 = vld [vmem:[%s284 + $0x10] sm:$0xf]
    %v290 = vld [vmem:[%s284 + $0x14] sm:$0xf]
    %v291 = vld [vmem:[%s284 + $0x18] sm:$0xf]
    %v292 = vld [vmem:[%s284 + $0x1c] sm:$0xf]
    %s293 = scalar_lea.vmem %s3, 2
    %v294 = vld [vmem:[%s293] sm:$0x1]
    %v296 = vlaneseq
    %v297 = vshrl.u32 %v296, 7
    %v298 = vsub.s32 0, %v297
    %v299 = vrot.slane %v294, %v298
    %v309 = vunpack.c.l.b16 %v285
    %v310 = vunpack.c.l.b16 %v286
    %v311 = vunpack.c.l.b16 %v287
    %v312 = vunpack.c.l.b16 %v288
    %v313 = vunpack.c.l.b16 %v289
    %v314 = vunpack.c.l.b16 %v290
    %v315 = vunpack.c.l.b16 %v291
    %v316 = vunpack.c.l.b16 %v292
    %v317 = vpack.c.b16 %v310, %v309
    %v318 = vpack.c.b16 %v312, %v311
    %v319 = vpack.c.b16 %v314, %v313
    %v320 = vpack.c.b16 %v316, %v315
    %325 = vmatprep.subr.bf16.mxu0 0
    %326 = vmatpush1.bf16.msra.mxu0 %v317
    %327 = vmatprep.subr.bf16.mxu0 0
    %328 = vmatpush1.bf16.msra.mxu0 %v318
    %329 = vmatprep.subr.bf16.mxu0 0
    %330 = vmatpush1.bf16.msra.mxu0 %v319
    %331 = vmatprep.subr.bf16.mxu0 0
    %332 = vmatpush1.bf16.msra.mxu0 %v320
    %333 = vmatprep.subr.bf16.mxu0 0
    %334 = vmatpush1.bf16.msra.mxu0 0
    %335 = vmatprep.subr.bf16.mxu0 0
    %336 = vmatpush1.bf16.msra.mxu0 0
    %337 = vmatprep.subr.bf16.mxu0 0
    %338 = vmatpush1.bf16.msra.mxu0 0
    %339 = vmatprep.subr.bf16.mxu0 0
    %340 = vmatpush1.bf16.msra.mxu0 0
    %341 = vmatprep.subr.bf16.mxu0 0
    %342 = vmatpush1.bf16.msra.mxu0 0
    %343 = vmatprep.subr.bf16.mxu0 0
    %344 = vmatpush1.bf16.msra.mxu0 0
    %345 = vmatprep.subr.bf16.mxu0 0
    %346 = vmatpush1.bf16.msra.mxu0 0
    %347 = vmatprep.subr.bf16.mxu0 0
    %348 = vmatpush1.bf16.msra.mxu0 0
    %349 = vmatprep.subr.bf16.mxu0 0
    %350 = vmatpush1.bf16.msra.mxu0 0
    %351 = vmatprep.subr.bf16.mxu0 0
    %352 = vmatpush1.bf16.msra.mxu0 0
    %353 = vmatprep.subr.bf16.mxu0 0
    %354 = vmatpush1.bf16.msra.mxu0 0
    %355 = vmatprep.subr.bf16.mxu0 0
    %356 = vmatpush1.bf16.msra.mxu0 0
    %357 = vmatprep.mubr.bf16.mxu0 0
    %358 = vmatmul.mubr.bf16.gmra.mrb[0].mxu0 %v98
    %v359 = vpop.f32.mrb[0].mxu0
    %v360 = vadd.f32 %v299, %v359
    %v361 = vpop.f32.mrb[0].mxu0
    %v362 = vpop.f32.mrb[0].mxu0
    %v363 = vadd.f32 %v299, %v362
    %v364 = vpop.f32.mrb[0].mxu0
    %365 = vmatprep.mubr.bf16.mxu0 0
    %366 = vmatmul.mubr.bf16.gmra.mrb[0].mxu0 %v101
    %v367 = vpop.f32.mrb[0].mxu0
    %v368 = vadd.f32 %v299, %v367
    %v369 = vpop.f32.mrb[0].mxu0
    %v370 = vpop.f32.mrb[0].mxu0
    %v371 = vadd.f32 %v299, %v370
    %v372 = vpop.f32.mrb[0].mxu0
    %373 = vdwg.mxu0
    %v378 = vcombine.high %v360, %v360
    %v379 = vcombine.high %v363, %v363
    %v380 = vcombine.high %v368, %v368
    %v381 = vcombine.high %v371, %v371
    %s386 = scalar_lea.vmem [#allocation2], 64
    %387 = vst.msk [vmem:[%s386] sm:$0xf] %vm164, %v360
    %388 = vst.msk [vmem:[%s386 + $0x4] sm:$0xf] %vm164, %v378
    %389 = vst.msk [vmem:[%s386 + $0x8] sm:$0xf] %vm164, %v363
    %390 = vst.msk [vmem:[%s386 + $0xc] sm:$0xf] %vm164, %v379
    %391 = vst.msk [vmem:[%s386 + $0x10] sm:$0xf] %vm164, %v368
    %392 = vst.msk [vmem:[%s386 + $0x14] sm:$0xf] %vm164, %v380
    %393 = vst.msk [vmem:[%s386 + $0x18] sm:$0xf] %vm164, %v371
    %394 = vst.msk [vmem:[%s386 + $0x1c] sm:$0xf] %vm164, %v381
    %s395 = scalar_lea.vmem %s1, 96
    %v396 = vld [vmem:[%s395] sm:$0xf]
    %v397 = vld [vmem:[%s395 + $0x4] sm:$0xf]
    %v398 = vld [vmem:[%s395 + $0x8] sm:$0xf]
    %v399 = vld [vmem:[%s395 + $0xc] sm:$0xf]
    %v400 = vld [vmem:[%s395 + $0x10] sm:$0xf]
    %v401 = vld [vmem:[%s395 + $0x14] sm:$0xf]
    %v402 = vld [vmem:[%s395 + $0x18] sm:$0xf]
    %v403 = vld [vmem:[%s395 + $0x1c] sm:$0xf]
    %s404 = scalar_lea.vmem %s3, 3
    %v405 = vld [vmem:[%s404] sm:$0x1]
    %v407 = vlaneseq
    %v408 = vshrl.u32 %v407, 7
    %v409 = vsub.s32 0, %v408
    %v410 = vrot.slane %v405, %v409
    %v420 = vunpack.c.l.b16 %v396
    %v421 = vunpack.c.l.b16 %v397
    %v422 = vunpack.c.l.b16 %v398
    %v423 = vunpack.c.l.b16 %v399
    %v424 = vunpack.c.l.b16 %v400
    %v425 = vunpack.c.l.b16 %v401
    %v426 = vunpack.c.l.b16 %v402
    %v427 = vunpack.c.l.b16 %v403
    %v428 = vpack.c.b16 %v421, %v420
    %v429 = vpack.c.b16 %v423, %v422
    %v430 = vpack.c.b16 %v425, %v424
    %v431 = vpack.c.b16 %v427, %v426
    %436 = vmatprep.subr.bf16.mxu0 0
    %437 = vmatpush1.bf16.msra.mxu0 %v428
    %438 = vmatprep.subr.bf16.mxu0 0
    %439 = vmatpush1.bf16.msra.mxu0 %v429
    %440 = vmatprep.subr.bf16.mxu0 0
    %441 = vmatpush1.bf16.msra.mxu0 %v430
    %442 = vmatprep.subr.bf16.mxu0 0
    %443 = vmatpush1.bf16.msra.mxu0 %v431
    %444 = vmatprep.subr.bf16.mxu0 0
    %445 = vmatpush1.bf16.msra.mxu0 0
    %446 = vmatprep.subr.bf16.mxu0 0
    %447 = vmatpush1.bf16.msra.mxu0 0
    %448 = vmatprep.subr.bf16.mxu0 0
    %449 = vmatpush1.bf16.msra.mxu0 0
    %450 = vmatprep.subr.bf16.mxu0 0
    %451 = vmatpush1.bf16.msra.mxu0 0
    %452 = vmatprep.subr.bf16.mxu0 0
    %453 = vmatpush1.bf16.msra.mxu0 0
    %454 = vmatprep.subr.bf16.mxu0 0
    %455 = vmatpush1.bf16.msra.mxu0 0
    %456 = vmatprep.subr.bf16.mxu0 0
    %457 = vmatpush1.bf16.msra.mxu0 0
    %458 = vmatprep.subr.bf16.mxu0 0
    %459 = vmatpush1.bf16.msra.mxu0 0
    %460 = vmatprep.subr.bf16.mxu0 0
    %461 = vmatpush1.bf16.msra.mxu0 0
    %462 = vmatprep.subr.bf16.mxu0 0
    %463 = vmatpush1.bf16.msra.mxu0 0
    %464 = vmatprep.subr.bf16.mxu0 0
    %465 = vmatpush1.bf16.msra.mxu0 0
    %466 = vmatprep.subr.bf16.mxu0 0
    %467 = vmatpush1.bf16.msra.mxu0 0
    %468 = vmatprep.mubr.bf16.mxu0 0
    %469 = vmatmul.mubr.bf16.gmra.mrb[0].mxu0 %v98
    %v470 = vpop.f32.mrb[0].mxu0
    %v471 = vadd.f32 %v410, %v470
    %v472 = vpop.f32.mrb[0].mxu0
    %v473 = vpop.f32.mrb[0].mxu0
    %v474 = vadd.f32 %v410, %v473
    %v475 = vpop.f32.mrb[0].mxu0
    %476 = vmatprep.mubr.bf16.mxu0 0
    %477 = vmatmul.mubr.bf16.gmra.mrb[0].mxu0 %v101
    %v478 = vpop.f32.mrb[0].mxu0
    %v479 = vadd.f32 %v410, %v478
    %v480 = vpop.f32.mrb[0].mxu0
    %v481 = vpop.f32.mrb[0].mxu0
    %v482 = vadd.f32 %v410, %v481
    %v483 = vpop.f32.mrb[0].mxu0
    %484 = vdwg.mxu0
    %v489 = vcombine.high %v471, %v471
    %v490 = vcombine.high %v474, %v474
    %v491 = vcombine.high %v479, %v479
    %v492 = vcombine.high %v482, %v482
    %s497 = scalar_lea.vmem [#allocation2], 96
    %498 = vst.msk [vmem:[%s497] sm:$0xf] %vm164, %v471
    %499 = vst.msk [vmem:[%s497 + $0x4] sm:$0xf] %vm164, %v489
    %500 = vst.msk [vmem:[%s497 + $0x8] sm:$0xf] %vm164, %v474
    %501 = vst.msk [vmem:[%s497 + $0xc] sm:$0xf] %vm164, %v490
    %502 = vst.msk [vmem:[%s497 + $0x10] sm:$0xf] %vm164, %v479
    %503 = vst.msk [vmem:[%s497 + $0x14] sm:$0xf] %vm164, %v491
    %504 = vst.msk [vmem:[%s497 + $0x18] sm:$0xf] %vm164, %v482
    %505 = vst.msk [vmem:[%s497 + $0x1c] sm:$0xf] %vm164, %v492
    %s506 = scalar_lea.vmem %s1, 128
    %v507 = vld [vmem:[%s506] sm:$0xf]
    %v508 = vld [vmem:[%s506 + $0x4] sm:$0xf]
    %v509 = vld [vmem:[%s506 + $0x8] sm:$0xf]
    %v510 = vld [vmem:[%s506 + $0xc] sm:$0xf]
    %v511 = vld [vmem:[%s506 + $0x10] sm:$0xf]
    %v512 = vld [vmem:[%s506 + $0x14] sm:$0xf]
    %v513 = vld [vmem:[%s506 + $0x18] sm:$0xf]
    %v514 = vld [vmem:[%s506 + $0x1c] sm:$0xf]
    %s515 = scalar_lea.vmem %s3, 4
    %v516 = vld [vmem:[%s515] sm:$0x1]
    %v518 = vlaneseq
    %v519 = vshrl.u32 %v518, 7
    %v520 = vsub.s32 0, %v519
    %v521 = vrot.slane %v516, %v520
    %v531 = vunpack.c.l.b16 %v507
    %v532 = vunpack.c.l.b16 %v508
    %v533 = vunpack.c.l.b16 %v509
    %v534 = vunpack.c.l.b16 %v510
    %v535 = vunpack.c.l.b16 %v511
    %v536 = vunpack.c.l.b16 %v512
    %v537 = vunpack.c.l.b16 %v513
    %v538 = vunpack.c.l.b16 %v514
    %v539 = vpack.c.b16 %v532, %v531
    %v540 = vpack.c.b16 %v534, %v533
    %v541 = vpack.c.b16 %v536, %v535
    %v542 = vpack.c.b16 %v538, %v537
    %547 = vmatprep.subr.bf16.mxu0 0
    %548 = vmatpush1.bf16.msra.mxu0 %v539
    %549 = vmatprep.subr.bf16.mxu0 0
    %550 = vmatpush1.bf16.msra.mxu0 %v540
    %551 = vmatprep.subr.bf16.mxu0 0
    %552 = vmatpush1.bf16.msra.mxu0 %v541
    %553 = vmatprep.subr.bf16.mxu0 0
    %554 = vmatpush1.bf16.msra.mxu0 %v542
    %555 = vmatprep.subr.bf16.mxu0 0
    %556 = vmatpush1.bf16.msra.mxu0 0
    %557 = vmatprep.subr.bf16.mxu0 0
    %558 = vmatpush1.bf16.msra.mxu0 0
    %559 = vmatprep.subr.bf16.mxu0 0
    %560 = vmatpush1.bf16.msra.mxu0 0
    %561 = vmatprep.subr.bf16.mxu0 0
    %562 = vmatpush1.bf16.msra.mxu0 0
    %563 = vmatprep.subr.bf16.mxu0 0
    %564 = vmatpush1.bf16.msra.mxu0 0
    %565 = vmatprep.subr.bf16.mxu0 0
    %566 = vmatpush1.bf16.msra.mxu0 0
    %567 = vmatprep.subr.bf16.mxu0 0
    %568 = vmatpush1.bf16.msra.mxu0 0
    %569 = vmatprep.subr.bf16.mxu0 0
    %570 = vmatpush1.bf16.msra.mxu0 0
    %571 = vmatprep.subr.bf16.mxu0 0
    %572 = vmatpush1.bf16.msra.mxu0 0
    %573 = vmatprep.subr.bf16.mxu0 0
    %574 = vmatpush1.bf16.msra.mxu0 0
    %575 = vmatprep.subr.bf16.mxu0 0
    %576 = vmatpush1.bf16.msra.mxu0 0
    %577 = vmatprep.subr.bf16.mxu0 0
    %578 = vmatpush1.bf16.msra.mxu0 0
    %579 = vmatprep.mubr.bf16.mxu0 0
    %580 = vmatmul.mubr.bf16.gmra.mrb[0].mxu0 %v98
    %v581 = vpop.f32.mrb[0].mxu0
    %v582 = vadd.f32 %v521, %v581
    %v583 = vpop.f32.mrb[0].mxu0
    %v584 = vpop.f32.mrb[0].mxu0
    %v585 = vadd.f32 %v521, %v584
    %v586 = vpop.f32.mrb[0].mxu0
    %587 = vmatprep.mubr.bf16.mxu0 0
    %588 = vmatmul.mubr.bf16.gmra.mrb[0].mxu0 %v101
    %v589 = vpop.f32.mrb[0].mxu0
    %v590 = vadd.f32 %v521, %v589
    %v591 = vpop.f32.mrb[0].mxu0
    %v592 = vpop.f32.mrb[0].mxu0
    %v593 = vadd.f32 %v521, %v592
    %v594 = vpop.f32.mrb[0].mxu0
    %595 = vdwg.mxu0
    %v600 = vcombine.high %v582, %v582
    %v601 = vcombine.high %v585, %v585
    %v602 = vcombine.high %v590, %v590
    %v603 = vcombine.high %v593, %v593
    %s608 = scalar_lea.vmem [#allocation2], 128
    %609 = vst.msk [vmem:[%s608] sm:$0xf] %vm164, %v582
    %610 = vst.msk [vmem:[%s608 + $0x4] sm:$0xf] %vm164, %v600
    %611 = vst.msk [vmem:[%s608 + $0x8] sm:$0xf] %vm164, %v585
    %612 = vst.msk [vmem:[%s608 + $0xc] sm:$0xf] %vm164, %v601
    %613 = vst.msk [vmem:[%s608 + $0x10] sm:$0xf] %vm164, %v590
    %614 = vst.msk [vmem:[%s608 + $0x14] sm:$0xf] %vm164, %v602
    %615 = vst.msk [vmem:[%s608 + $0x18] sm:$0xf] %vm164, %v593
    %616 = vst.msk [vmem:[%s608 + $0x1c] sm:$0xf] %vm164, %v603
    %s617 = scalar_lea.vmem %s1, 160
    %v618 = vld [vmem:[%s617] sm:$0xf]
    %v619 = vld [vmem:[%s617 + $0x4] sm:$0xf]
    %v620 = vld [vmem:[%s617 + $0x8] sm:$0xf]
    %v621 = vld [vmem:[%s617 + $0xc] sm:$0xf]
    %v622 = vld [vmem:[%s617 + $0x10] sm:$0xf]
    %v623 = vld [vmem:[%s617 + $0x14] sm:$0xf]
    %v624 = vld [vmem:[%s617 + $0x18] sm:$0xf]
    %v625 = vld [vmem:[%s617 + $0x1c] sm:$0xf]
    %s626 = scalar_lea.vmem %s3, 5
    %v627 = vld [vmem:[%s626] sm:$0x1]
    %v629 = vlaneseq
    %v630 = vshrl.u32 %v629, 7
    %v631 = vsub.s32 0, %v630
    %v632 = vrot.slane %v627, %v631
    %v642 = vunpack.c.l.b16 %v618
    %v643 = vunpack.c.l.b16 %v619
    %v644 = vunpack.c.l.b16 %v620
    %v645 = vunpack.c.l.b16 %v621
    %v646 = vunpack.c.l.b16 %v622
    %v647 = vunpack.c.l.b16 %v623
    %v648 = vunpack.c.l.b16 %v624
    %v649 = vunpack.c.l.b16 %v625
    %v650 = vpack.c.b16 %v643, %v642
    %v651 = vpack.c.b16 %v645, %v644
    %v652 = vpack.c.b16 %v647, %v646
    %v653 = vpack.c.b16 %v649, %v648
    %658 = vmatprep.subr.bf16.mxu0 0
    %659 = vmatpush1.bf16.msra.mxu0 %v650
    %660 = vmatprep.subr.bf16.mxu0 0
    %661 = vmatpush1.bf16.msra.mxu0 %v651
    %662 = vmatprep.subr.bf16.mxu0 0
    %663 = vmatpush1.bf16.msra.mxu0 %v652
    %664 = vmatprep.subr.bf16.mxu0 0
    %665 = vmatpush1.bf16.msra.mxu0 %v653
    %666 = vmatprep.subr.bf16.mxu0 0
    %667 = vmatpush1.bf16.msra.mxu0 0
    %668 = vmatprep.subr.bf16.mxu0 0
    %669 = vmatpush1.bf16.msra.mxu0 0
    %670 = vmatprep.subr.bf16.mxu0 0
    %671 = vmatpush1.bf16.msra.mxu0 0
    %672 = vmatprep.subr.bf16.mxu0 0
    %673 = vmatpush1.bf16.msra.mxu0 0
    %674 = vmatprep.subr.bf16.mxu0 0
    %675 = vmatpush1.bf16.msra.mxu0 0
    %676 = vmatprep.subr.bf16.mxu0 0
    %677 = vmatpush1.bf16.msra.mxu0 0
    %678 = vmatprep.subr.bf16.mxu0 0
    %679 = vmatpush1.bf16.msra.mxu0 0
    %680 = vmatprep.subr.bf16.mxu0 0
    %681 = vmatpush1.bf16.msra.mxu0 0
    %682 = vmatprep.subr.bf16.mxu0 0
    %683 = vmatpush1.bf16.msra.mxu0 0
    %684 = vmatprep.subr.bf16.mxu0 0
    %685 = vmatpush1.bf16.msra.mxu0 0
    %686 = vmatprep.subr.bf16.mxu0 0
    %687 = vmatpush1.bf16.msra.mxu0 0
    %688 = vmatprep.subr.bf16.mxu0 0
    %689 = vmatpush1.bf16.msra.mxu0 0
    %690 = vmatprep.mubr.bf16.mxu0 0
    %691 = vmatmul.mubr.bf16.gmra.mrb[0].mxu0 %v98
    %v692 = vpop.f32.mrb[0].mxu0
    %v693 = vadd.f32 %v632, %v692
    %v694 = vpop.f32.mrb[0].mxu0
    %v695 = vpop.f32.mrb[0].mxu0
    %v696 = vadd.f32 %v632, %v695
    %v697 = vpop.f32.mrb[0].mxu0
    %698 = vmatprep.mubr.bf16.mxu0 0
    %699 = vmatmul.mubr.bf16.gmra.mrb[0].mxu0 %v101
    %v700 = vpop.f32.mrb[0].mxu0
    %v701 = vadd.f32 %v632, %v700
    %v702 = vpop.f32.mrb[0].mxu0
    %v703 = vpop.f32.mrb[0].mxu0
    %v704 = vadd.f32 %v632, %v703
    %v705 = vpop.f32.mrb[0].mxu0
    %706 = vdwg.mxu0
    %v711 = vcombine.high %v693, %v693
    %v712 = vcombine.high %v696, %v696
    %v713 = vcombine.high %v701, %v701
    %v714 = vcombine.high %v704, %v704
    %s719 = scalar_lea.vmem [#allocation2], 160
    %720 = vst.msk [vmem:[%s719] sm:$0xf] %vm164, %v693
    %721 = vst.msk [vmem:[%s719 + $0x4] sm:$0xf] %vm164, %v711
    %722 = vst.msk [vmem:[%s719 + $0x8] sm:$0xf] %vm164, %v696
    %723 = vst.msk [vmem:[%s719 + $0xc] sm:$0xf] %vm164, %v712
    %724 = vst.msk [vmem:[%s719 + $0x10] sm:$0xf] %vm164, %v701
    %725 = vst.msk [vmem:[%s719 + $0x14] sm:$0xf] %vm164, %v713
    %726 = vst.msk [vmem:[%s719 + $0x18] sm:$0xf] %vm164, %v704
    %727 = vst.msk [vmem:[%s719 + $0x1c] sm:$0xf] %vm164, %v714
    %v728 = vld [vmem:[%s2] sm:$0xf]
    %v729 = vld [vmem:[%s2 + $0x4] sm:$0xf]
    %v730 = vld [vmem:[%s2 + $0x8] sm:$0xf]
    %v731 = vld [vmem:[%s2 + $0xc] sm:$0xf]
    %s732 = scalar_lea.vmem %s2, 16
    %v733 = vld [vmem:[%s732] sm:$0xf]
    %v734 = vld [vmem:[%s732 + $0x4] sm:$0xf]
    %v735 = vld [vmem:[%s732 + $0x8] sm:$0xf]
    %v736 = vld [vmem:[%s732 + $0xc] sm:$0xf]
    %s737 = scalar_lea.vmem %s2, 32
    %v738 = vld [vmem:[%s737] sm:$0xf]
    %v739 = vld [vmem:[%s737 + $0x4] sm:$0xf]
    %v740 = vld [vmem:[%s737 + $0x8] sm:$0xf]
    %v741 = vld [vmem:[%s737 + $0xc] sm:$0xf]
    %s742 = scalar_lea.vmem %s2, 48
    %v743 = vld [vmem:[%s742] sm:$0xf]
    %v744 = vld [vmem:[%s742 + $0x4] sm:$0xf]
    %v745 = vld [vmem:[%s742 + $0x8] sm:$0xf]
    %v746 = vld [vmem:[%s742 + $0xc] sm:$0xf]
    %s747 = scalar_lea.vmem %s2, 64
    %v748 = vld [vmem:[%s747] sm:$0xf]
    %v749 = vld [vmem:[%s747 + $0x4] sm:$0xf]
    %v750 = vld [vmem:[%s747 + $0x8] sm:$0xf]
    %v751 = vld [vmem:[%s747 + $0xc] sm:$0xf]
    %s752 = scalar_lea.vmem %s2, 80
    %v753 = vld [vmem:[%s752] sm:$0xf]
    %v754 = vld [vmem:[%s752 + $0x4] sm:$0xf]
    %v755 = vld [vmem:[%s752 + $0x8] sm:$0xf]
    %v756 = vld [vmem:[%s752 + $0xc] sm:$0xf]
    %v757 = vld [vmem:[%s4] sm:$0x1]
    %s758 = scalar_lea.vmem %s4, 1
    %v759 = vld [vmem:[%s758] sm:$0x1]
    %s760 = scalar_lea.vmem %s4, 2
    %v761 = vld [vmem:[%s760] sm:$0x1]
    %s762 = scalar_lea.vmem %s4, 3
    %v763 = vld [vmem:[%s762] sm:$0x1]
    %s764 = scalar_lea.vmem %s4, 4
    %v765 = vld [vmem:[%s764] sm:$0x1]
    %s766 = scalar_lea.vmem %s4, 5
    %v767 = vld [vmem:[%s766] sm:$0x1]
    %v768 = vld [vmem:[#allocation2] sm:$0xf]
    %v769 = vld [vmem:[%s275] sm:$0xf]
    %v770 = vld [vmem:[%s386] sm:$0xf]
    %v772 = vlaneseq
    %v773 = vshrl.u32 %v772, 7
    %v774 = vsub.s32 0, %v773
    %v775 = vrot.slane %v757, %v774
    %v781 = vunpack.c.l.b16 %v728
    %v782 = vunpack.c.l.b16 %v729
    %v783 = vunpack.c.l.b16 %v730
    %v784 = vunpack.c.l.b16 %v731
    %v785 = vpack.c.b16 %v782, %v781
    %v786 = vpack.c.b16 %v784, %v783
    %vm789 = vcmask 261120
    %v791 = vsel %vm789, 0, 0
    %793 = vmatprep.subr.bf16.mxu0 0
    %794 = vmatpush1.bf16.msra.mxu0 %v785
    %795 = vmatprep.subr.bf16.mxu0 0
    %796 = vmatpush1.bf16.msra.mxu0 %v786
    %797 = vmatprep.subr.bf16.mxu0 0
    %798 = vmatpush1.bf16.msra.mxu0 0
    %799 = vmatprep.subr.bf16.mxu0 0
    %800 = vmatpush1.bf16.msra.mxu0 0
    %801 = vmatprep.subr.bf16.mxu0 0
    %802 = vmatpush1.bf16.msra.mxu0 0
    %803 = vmatprep.subr.bf16.mxu0 0
    %804 = vmatpush1.bf16.msra.mxu0 0
    %805 = vmatprep.subr.bf16.mxu0 0
    %806 = vmatpush1.bf16.msra.mxu0 0
    %807 = vmatprep.subr.bf16.mxu0 0
    %808 = vmatpush1.bf16.msra.mxu0 0
    %809 = vmatprep.subr.bf16.mxu0 0
    %810 = vmatpush1.bf16.msra.mxu0 0
    %811 = vmatprep.subr.bf16.mxu0 0
    %812 = vmatpush1.bf16.msra.mxu0 0
    %813 = vmatprep.subr.bf16.mxu0 0
    %814 = vmatpush1.bf16.msra.mxu0 0
    %815 = vmatprep.subr.bf16.mxu0 0
    %816 = vmatpush1.bf16.msra.mxu0 0
    %817 = vmatprep.subr.bf16.mxu0 0
    %818 = vmatpush1.bf16.msra.mxu0 0
    %819 = vmatprep.subr.bf16.mxu0 0
    %820 = vmatpush1.bf16.msra.mxu0 0
    %821 = vmatprep.subr.bf16.mxu0 0
    %822 = vmatpush1.bf16.msra.mxu0 0
    %823 = vmatprep.subr.bf16.mxu0 0
    %824 = vmatpush1.bf16.msra.mxu0 0
    %825 = vmatprep.mubr.bf16.mxu0 0
    %826 = vmatmul.mubr.bf16.gmra.mrb[0].mxu0 %v791
    %v827 = vpop.f32.mrb[0].mxu0
    %v828 = vadd.f32 %v775, %v827
    %v829 = vpop.f32.mrb[0].mxu0
    %v830 = vpop.f32.mrb[0].mxu0
    %v831 = vpop.f32.mrb[0].mxu0
    %832 = vdwg.mxu0
    %v834 = vlaneseq
    %v835 = vshrl.u32 %v834, 7
    %v836 = vsub.s32 0, %v835
    %v837 = vrot.slane %v759, %v836
    %v843 = vunpack.c.l.b16 %v733
    %v844 = vunpack.c.l.b16 %v734
    %v845 = vunpack.c.l.b16 %v735
    %v846 = vunpack.c.l.b16 %v736
    %v847 = vpack.c.b16 %v844, %v843
    %v848 = vpack.c.b16 %v846, %v845
    %851 = vmatprep.subr.bf16.mxu0 0
    %852 = vmatpush1.bf16.msra.mxu0 %v847
    %853 = vmatprep.subr.bf16.mxu0 0
    %854 = vmatpush1.bf16.msra.mxu0 %v848
    %855 = vmatprep.subr.bf16.mxu0 0
    %856 = vmatpush1.bf16.msra.mxu0 0
    %857 = vmatprep.subr.bf16.mxu0 0
    %858 = vmatpush1.bf16.msra.mxu0 0
    %859 = vmatprep.subr.bf16.mxu0 0
    %860 = vmatpush1.bf16.msra.mxu0 0
    %861 = vmatprep.subr.bf16.mxu0 0
    %862 = vmatpush1.bf16.msra.mxu0 0
    %863 = vmatprep.subr.bf16.mxu0 0
    %864 = vmatpush1.bf16.msra.mxu0 0
    %865 = vmatprep.subr.bf16.mxu0 0
    %866 = vmatpush1.bf16.msra.mxu0 0
    %867 = vmatprep.subr.bf16.mxu0 0
    %868 = vmatpush1.bf16.msra.mxu0 0
    %869 = vmatprep.subr.bf16.mxu0 0
    %870 = vmatpush1.bf16.msra.mxu0 0
    %871 = vmatprep.subr.bf16.mxu0 0
    %872 = vmatpush1.bf16.msra.mxu0 0
    %873 = vmatprep.subr.bf16.mxu0 0
    %874 = vmatpush1.bf16.msra.mxu0 0
    %875 = vmatprep.subr.bf16.mxu0 0
    %876 = vmatpush1.bf16.msra.mxu0 0
    %877 = vmatprep.subr.bf16.mxu0 0
    %878 = vmatpush1.bf16.msra.mxu0 0
    %879 = vmatprep.subr.bf16.mxu0 0
    %880 = vmatpush1.bf16.msra.mxu0 0
    %881 = vmatprep.subr.bf16.mxu0 0
    %882 = vmatpush1.bf16.msra.mxu0 0
    %883 = vmatprep.mubr.bf16.mxu0 0
    %884 = vmatmul.mubr.bf16.gmra.mrb[0].mxu0 %v791
    %v885 = vpop.f32.mrb[0].mxu0
    %v886 = vadd.f32 %v837, %v885
    %v887 = vpop.f32.mrb[0].mxu0
    %v888 = vpop.f32.mrb[0].mxu0
    %v889 = vpop.f32.mrb[0].mxu0
    %890 = vdwg.mxu0
    %v892 = vlaneseq
    %v893 = vshrl.u32 %v892, 7
    %v894 = vsub.s32 0, %v893
    %v895 = vrot.slane %v761, %v894
    %v901 = vunpack.c.l.b16 %v738
    %v902 = vunpack.c.l.b16 %v739
    %v903 = vunpack.c.l.b16 %v740
    %v904 = vunpack.c.l.b16 %v741
    %v905 = vpack.c.b16 %v902, %v901
    %v906 = vpack.c.b16 %v904, %v903
    %909 = vmatprep.subr.bf16.mxu0 0
    %910 = vmatpush1.bf16.msra.mxu0 %v905
    %911 = vmatprep.subr.bf16.mxu0 0
    %912 = vmatpush1.bf16.msra.mxu0 %v906
    %913 = vmatprep.subr.bf16.mxu0 0
    %914 = vmatpush1.bf16.msra.mxu0 0
    %915 = vmatprep.subr.bf16.mxu0 0
    %916 = vmatpush1.bf16.msra.mxu0 0
    %917 = vmatprep.subr.bf16.mxu0 0
    %918 = vmatpush1.bf16.msra.mxu0 0
    %919 = vmatprep.subr.bf16.mxu0 0
    %920 = vmatpush1.bf16.msra.mxu0 0
    %921 = vmatprep.subr.bf16.mxu0 0
    %922 = vmatpush1.bf16.msra.mxu0 0
    %923 = vmatprep.subr.bf16.mxu0 0
    %924 = vmatpush1.bf16.msra.mxu0 0
    %925 = vmatprep.subr.bf16.mxu0 0
    %926 = vmatpush1.bf16.msra.mxu0 0
    %927 = vmatprep.subr.bf16.mxu0 0
    %928 = vmatpush1.bf16.msra.mxu0 0
    %929 = vmatprep.subr.bf16.mxu0 0
    %930 = vmatpush1.bf16.msra.mxu0 0
    %931 = vmatprep.subr.bf16.mxu0 0
    %932 = vmatpush1.bf16.msra.mxu0 0
    %933 = vmatprep.subr.bf16.mxu0 0
    %934 = vmatpush1.bf16.msra.mxu0 0
    %935 = vmatprep.subr.bf16.mxu0 0
    %936 = vmatpush1.bf16.msra.mxu0 0
    %937 = vmatprep.subr.bf16.mxu0 0
    %938 = vmatpush1.bf16.msra.mxu0 0
    %939 = vmatprep.subr.bf16.mxu0 0
    %940 = vmatpush1.bf16.msra.mxu0 0
    %941 = vmatprep.mubr.bf16.mxu0 0
    %942 = vmatmul.mubr.bf16.gmra.mrb[0].mxu0 %v791
    %v943 = vpop.f32.mrb[0].mxu0
    %v944 = vadd.f32 %v895, %v943
    %v945 = vpop.f32.mrb[0].mxu0
    %v946 = vpop.f32.mrb[0].mxu0
    %v947 = vpop.f32.mrb[0].mxu0
    %948 = vdwg.mxu0
    %v949 = vadd.f32 %v768, %v828
    %v950 = vxor.u32 %v949, 2147483648
    %v951 = vmul.f32 %v950, 1.442695
    %v952 = vpow.pop %v951
    %v953 = vadd.f32 %v952, 1.0
    %v954 = vrcp.pop %v953
    %v955 = vmul.f32 1.0, %v954
    %v956 = vadd.f32 %v769, %v886
    %v957 = vxor.u32 %v956, 2147483648
    %v958 = vmul.f32 %v957, 1.442695
    %v959 = vpow.pop %v958
    %v960 = vadd.f32 %v959, 1.0
    %v961 = vrcp.pop %v960
    %v962 = vmul.f32 1.0, %v961
    %v963 = vmul.f32 %v955, %v944
    %v964 = vadd.f32 %v770, %v963
    %v965 = vtanh.pop %v964
    %v966 = vsub.f32 1.0, %v962
    %v967 = vmul.f32 %v966, %v965
    %v968 = vmul.f32 %v962, 0.0
    %v969 = vadd.f32 %v967, %v968
    %s970 = scalar_lea.vmem [#allocation2], 124
    %v971 = vld [vmem:[%s970] sm:$0xf]
    %s972 = scalar_lea.vmem [#allocation2], 156
    %v973 = vld [vmem:[%s972] sm:$0xf]
    %s974 = scalar_lea.vmem [#allocation2], 188
    %v975 = vld [vmem:[%s974] sm:$0xf]
    %v977 = vlaneseq
    %v978 = vshrl.u32 %v977, 7
    %v979 = vsub.s32 0, %v978
    %v980 = vrot.slane %v763, %v979
    %v986 = vunpack.c.l.b16 %v743
    %v987 = vunpack.c.l.b16 %v744
    %v988 = vunpack.c.l.b16 %v745
    %v989 = vunpack.c.l.b16 %v746
    %v990 = vpack.c.b16 %v987, %v986
    %v991 = vpack.c.b16 %v989, %v988
    %994 = vmatprep.subr.bf16.mxu0 0
    %995 = vmatpush1.bf16.msra.mxu0 %v990
    %996 = vmatprep.subr.bf16.mxu0 0
    %997 = vmatpush1.bf16.msra.mxu0 %v991
    %998 = vmatprep.subr.bf16.mxu0 0
    %999 = vmatpush1.bf16.msra.mxu0 0
    %1000 = vmatprep.subr.bf16.mxu0 0
    %1001 = vmatpush1.bf16.msra.mxu0 0
    %1002 = vmatprep.subr.bf16.mxu0 0
    %1003 = vmatpush1.bf16.msra.mxu0 0
    %1004 = vmatprep.subr.bf16.mxu0 0
    %1005 = vmatpush1.bf16.msra.mxu0 0
    %1006 = vmatprep.subr.bf16.mxu0 0
    %1007 = vmatpush1.bf16.msra.mxu0 0
    %1008 = vmatprep.subr.bf16.mxu0 0
    %1009 = vmatpush1.bf16.msra.mxu0 0
    %1010 = vmatprep.subr.bf16.mxu0 0
    %1011 = vmatpush1.bf16.msra.mxu0 0
    %1012 = vmatprep.subr.bf16.mxu0 0
    %1013 = vmatpush1.bf16.msra.mxu0 0
    %1014 = vmatprep.subr.bf16.mxu0 0
    %1015 = vmatpush1.bf16.msra.mxu0 0
    %1016 = vmatprep.subr.bf16.mxu0 0
    %1017 = vmatpush1.bf16.msra.mxu0 0
    %1018 = vmatprep.subr.bf16.mxu0 0
    %1019 = vmatpush1.bf16.msra.mxu0 0
    %1020 = vmatprep.subr.bf16.mxu0 0
    %1021 = vmatpush1.bf16.msra.mxu0 0
    %1022 = vmatprep.subr.bf16.mxu0 0
    %1023 = vmatpush1.bf16.msra.mxu0 0
    %1024 = vmatprep.subr.bf16.mxu0 0
    %1025 = vmatpush1.bf16.msra.mxu0 0
    %1026 = vmatprep.mubr.bf16.mxu0 0
    %1027 = vmatmul.mubr.bf16.gmra.mrb[0].mxu0 %v791
    %v1028 = vpop.f32.mrb[0].mxu0
    %v1029 = vadd.f32 %v980, %v1028
    %v1030 = vpop.f32.mrb[0].mxu0
    %v1031 = vpop.f32.mrb[0].mxu0
    %v1032 = vpop.f32.mrb[0].mxu0
    %1033 = vdwg.mxu0
    %v1035 = vlaneseq
    %v1036 = vshrl.u32 %v1035, 7
    %v1037 = vsub.s32 0, %v1036
    %v1038 = vrot.slane %v765, %v1037
    %v1044 = vunpack.c.l.b16 %v748
    %v1045 = vunpack.c.l.b16 %v749
    %v1046 = vunpack.c.l.b16 %v750
    %v1047 = vunpack.c.l.b16 %v751
    %v1048 = vpack.c.b16 %v1045, %v1044
    %v1049 = vpack.c.b16 %v1047, %v1046
    %1052 = vmatprep.subr.bf16.mxu0 0
    %1053 = vmatpush1.bf16.msra.mxu0 %v1048
    %1054 = vmatprep.subr.bf16.mxu0 0
    %1055 = vmatpush1.bf16.msra.mxu0 %v1049
    %1056 = vmatprep.subr.bf16.mxu0 0
    %1057 = vmatpush1.bf16.msra.mxu0 0
    %1058 = vmatprep.subr.bf16.mxu0 0
    %1059 = vmatpush1.bf16.msra.mxu0 0
    %1060 = vmatprep.subr.bf16.mxu0 0
    %1061 = vmatpush1.bf16.msra.mxu0 0
    %1062 = vmatprep.subr.bf16.mxu0 0
    %1063 = vmatpush1.bf16.msra.mxu0 0
    %1064 = vmatprep.subr.bf16.mxu0 0
    %1065 = vmatpush1.bf16.msra.mxu0 0
    %1066 = vmatprep.subr.bf16.mxu0 0
    %1067 = vmatpush1.bf16.msra.mxu0 0
    %1068 = vmatprep.subr.bf16.mxu0 0
    %1069 = vmatpush1.bf16.msra.mxu0 0
    %1070 = vmatprep.subr.bf16.mxu0 0
    %1071 = vmatpush1.bf16.msra.mxu0 0
    %1072 = vmatprep.subr.bf16.mxu0 0
    %1073 = vmatpush1.bf16.msra.mxu0 0
    %1074 = vmatprep.subr.bf16.mxu0 0
    %1075 = vmatpush1.bf16.msra.mxu0 0
    %1076 = vmatprep.subr.bf16.mxu0 0
    %1077 = vmatpush1.bf16.msra.mxu0 0
    %1078 = vmatprep.subr.bf16.mxu0 0
    %1079 = vmatpush1.bf16.msra.mxu0 0
    %1080 = vmatprep.subr.bf16.mxu0 0
    %1081 = vmatpush1.bf16.msra.mxu0 0
    %1082 = vmatprep.subr.bf16.mxu0 0
    %1083 = vmatpush1.bf16.msra.mxu0 0
    %1084 = vmatprep.mubr.bf16.mxu0 0
    %1085 = vmatmul.mubr.bf16.gmra.mrb[0].mxu0 %v791
    %v1086 = vpop.f32.mrb[0].mxu0
    %v1087 = vadd.f32 %v1038, %v1086
    %v1088 = vpop.f32.mrb[0].mxu0
    %v1089 = vpop.f32.mrb[0].mxu0
    %v1090 = vpop.f32.mrb[0].mxu0
    %1091 = vdwg.mxu0
    %v1093 = vlaneseq
    %v1094 = vshrl.u32 %v1093, 7
    %v1095 = vsub.s32 0, %v1094
    %v1096 = vrot.slane %v767, %v1095
    %v1102 = vunpack.c.l.b16 %v753
    %v1103 = vunpack.c.l.b16 %v754
    %v1104 = vunpack.c.l.b16 %v755
    %v1105 = vunpack.c.l.b16 %v756
    %v1106 = vpack.c.b16 %v1103, %v1102
    %v1107 = vpack.c.b16 %v1105, %v1104
    %1110 = vmatprep.subr.bf16.mxu0 0
    %1111 = vmatpush1.bf16.msra.mxu0 %v1106
    %1112 = vmatprep.subr.bf16.mxu0 0
    %1113 = vmatpush1.bf16.msra.mxu0 %v1107
    %1114 = vmatprep.subr.bf16.mxu0 0
    %1115 = vmatpush1.bf16.msra.mxu0 0
    %1116 = vmatprep.subr.bf16.mxu0 0
    %1117 = vmatpush1.bf16.msra.mxu0 0
    %1118 = vmatprep.subr.bf16.mxu0 0
    %1119 = vmatpush1.bf16.msra.mxu0 0
    %1120 = vmatprep.subr.bf16.mxu0 0
    %1121 = vmatpush1.bf16.msra.mxu0 0
    %1122 = vmatprep.subr.bf16.mxu0 0
    %1123 = vmatpush1.bf16.msra.mxu0 0
    %1124 = vmatprep.subr.bf16.mxu0 0
    %1125 = vmatpush1.bf16.msra.mxu0 0
    %1126 = vmatprep.subr.bf16.mxu0 0
    %1127 = vmatpush1.bf16.msra.mxu0 0
    %1128 = vmatprep.subr.bf16.mxu0 0
    %1129 = vmatpush1.bf16.msra.mxu0 0
    %1130 = vmatprep.subr.bf16.mxu0 0
    %1131 = vmatpush1.bf16.msra.mxu0 0
    %1132 = vmatprep.subr.bf16.mxu0 0
    %1133 = vmatpush1.bf16.msra.mxu0 0
    %1134 = vmatprep.subr.bf16.mxu0 0
    %1135 = vmatpush1.bf16.msra.mxu0 0
    %1136 = vmatprep.subr.bf16.mxu0 0
    %1137 = vmatpush1.bf16.msra.mxu0 0
    %1138 = vmatprep.subr.bf16.mxu0 0
    %1139 = vmatpush1.bf16.msra.mxu0 0
    %1140 = vmatprep.subr.bf16.mxu0 0
    %1141 = vmatpush1.bf16.msra.mxu0 0
    %1142 = vmatprep.mubr.bf16.mxu0 0
    %1143 = vmatmul.mubr.bf16.gmra.mrb[0].mxu0 %v791
    %v1144 = vpop.f32.mrb[0].mxu0
    %v1145 = vadd.f32 %v1096, %v1144
    %v1146 = vpop.f32.mrb[0].mxu0
    %v1147 = vpop.f32.mrb[0].mxu0
    %v1148 = vpop.f32.mrb[0].mxu0
    %1149 = vdwg.mxu0
    %v1150 = vadd.f32 %v971, %v1029
    %v1151 = vxor.u32 %v1150, 2147483648
    %v1152 = vmul.f32 %v1151, 1.442695
    %v1153 = vpow.pop %v1152
    %v1154 = vadd.f32 %v1153, 1.0
    %v1155 = vrcp.pop %v1154
    %v1156 = vmul.f32 1.0, %v1155
    %v1157 = vadd.f32 %v973, %v1087
    %v1158 = vxor.u32 %v1157, 2147483648
    %v1159 = vmul.f32 %v1158, 1.442695
    %v1160 = vpow.pop %v1159
    %v1161 = vadd.f32 %v1160, 1.0
    %v1162 = vrcp.pop %v1161
    %v1163 = vmul.f32 1.0, %v1162
    %v1164 = vmul.f32 %v1156, %v1145
    %v1165 = vadd.f32 %v975, %v1164
    %v1166 = vtanh.pop %v1165
    %v1167 = vsub.f32 1.0, %v1163
    %v1168 = vmul.f32 %v1167, %v1166
    %v1169 = vmul.f32 %v1163, 0.0
    %v1170 = vadd.f32 %v1168, %v1169
    %1171 = vst.msk [vmem:[#allocation3] sm:$0xf] %vm164, %v969
    %s1172 = scalar_lea.vmem [#allocation4], 28
    %1173 = vst.msk [vmem:[%s1172] sm:$0xf] %vm164, %v1170
    %s1174 = scalar_lea.vmem [#allocation2], 4
    %v1175 = vld [vmem:[%s1174] sm:$0xf]
    %s1176 = scalar_lea.vmem [#allocation2], 36
    %v1177 = vld [vmem:[%s1176] sm:$0xf]
    %s1178 = scalar_lea.vmem [#allocation2], 68
    %v1179 = vld [vmem:[%s1178] sm:$0xf]
    %v1180 = vpack.c.bf16 %v969, %v969
    %v1182 = vsel %vm789, %v1180, 0
    %1184 = vmatprep.subr.bf16.mxu0 0
    %1185 = vmatpush1.bf16.msra.mxu0 %v785
    %1186 = vmatprep.subr.bf16.mxu0 0
    %1187 = vmatpush1.bf16.msra.mxu0 %v786
    %1188 = vmatprep.subr.bf16.mxu0 0
    %1189 = vmatpush1.bf16.msra.mxu0 0
    %1190 = vmatprep.subr.bf16.mxu0 0
    %1191 = vmatpush1.bf16.msra.mxu0 0
    %1192 = vmatprep.subr.bf16.mxu0 0
    %1193 = vmatpush1.bf16.msra.mxu0 0
    %1194 = vmatprep.subr.bf16.mxu0 0
    %1195 = vmatpush1.bf16.msra.mxu0 0
    %1196 = vmatprep.subr.bf16.mxu0 0
    %1197 = vmatpush1.bf16.msra.mxu0 0
    %1198 = vmatprep.subr.bf16.mxu0 0
    %1199 = vmatpush1.bf16.msra.mxu0 0
    %1200 = vmatprep.subr.bf16.mxu0 0
    %1201 = vmatpush1.bf16.msra.mxu0 0
    %1202 = vmatprep.subr.bf16.mxu0 0
    %1203 = vmatpush1.bf16.msra.mxu0 0
    %1204 = vmatprep.subr.bf16.mxu0 0
    %1205 = vmatpush1.bf16.msra.mxu0 0
    %1206 = vmatprep.subr.bf16.mxu0 0
    %1207 = vmatpush1.bf16.msra.mxu0 0
    %1208 = vmatprep.subr.bf16.mxu0 0
    %1209 = vmatpush1.bf16.msra.mxu0 0
    %1210 = vmatprep.subr.bf16.mxu0 0
    %1211 = vmatpush1.bf16.msra.mxu0 0
    %1212 = vmatprep.subr.bf16.mxu0 0
    %1213 = vmatpush1.bf16.msra.mxu0 0
    %1214 = vmatprep.subr.bf16.mxu0 0
    %1215 = vmatpush1.bf16.msra.mxu0 0
    %1216 = vmatprep.mubr.bf16.mxu0 0
    %1217 = vmatmul.mubr.bf16.gmra.mrb[0].mxu0 %v1182
    %v1218 = vpop.f32.mrb[0].mxu0
    %v1219 = vadd.f32 %v775, %v1218
    %v1220 = vpop.f32.mrb[0].mxu0
    %v1221 = vpop.f32.mrb[0].mxu0
    %v1222 = vpop.f32.mrb[0].mxu0
    %1223 = vdwg.mxu0
    %1224 = vmatprep.subr.bf16.mxu0 0
    %1225 = vmatpush1.bf16.msra.mxu0 %v847
    %1226 = vmatprep.subr.bf16.mxu0 0
    %1227 = vmatpush1.bf16.msra.mxu0 %v848
    %1228 = vmatprep.subr.bf16.mxu0 0
    %1229 = vmatpush1.bf16.msra.mxu0 0
    %1230 = vmatprep.subr.bf16.mxu0 0
    %1231 = vmatpush1.bf16.msra.mxu0 0
    %1232 = vmatprep.subr.bf16.mxu0 0
    %1233 = vmatpush1.bf16.msra.mxu0 0
    %1234 = vmatprep.subr.bf16.mxu0 0
    %1235 = vmatpush1.bf16.msra.mxu0 0
    %1236 = vmatprep.subr.bf16.mxu0 0
    %1237 = vmatpush1.bf16.msra.mxu0 0
    %1238 = vmatprep.subr.bf16.mxu0 0
    %1239 = vmatpush1.bf16.msra.mxu0 0
    %1240 = vmatprep.subr.bf16.mxu0 0
    %1241 = vmatpush1.bf16.msra.mxu0 0
    %1242 = vmatprep.subr.bf16.mxu0 0
    %1243 = vmatpush1.bf16.msra.mxu0 0
    %1244 = vmatprep.subr.bf16.mxu0 0
    %1245 = vmatpush1.bf16.msra.mxu0 0
    %1246 = vmatprep.subr.bf16.mxu0 0
    %1247 = vmatpush1.bf16.msra.mxu0 0
    %1248 = vmatprep.subr.bf16.mxu0 0
    %1249 = vmatpush1.bf16.msra.mxu0 0
    %1250 = vmatprep.subr.bf16.mxu0 0
    %1251 = vmatpush1.bf16.msra.mxu0 0
    %1252 = vmatprep.subr.bf16.mxu0 0
    %1253 = vmatpush1.bf16.msra.mxu0 0
    %1254 = vmatprep.subr.bf16.mxu0 0
    %1255 = vmatpush1.bf16.msra.mxu0 0
    %1256 = vmatprep.mubr.bf16.mxu0 0
    %1257 = vmatmul.mubr.bf16.gmra.mrb[0].mxu0 %v1182
    %v1258 = vpop.f32.mrb[0].mxu0
    %v1259 = vadd.f32 %v837, %v1258
    %v1260 = vpop.f32.mrb[0].mxu0
    %v1261 = vpop.f32.mrb[0].mxu0
    %v1262 = vpop.f32.mrb[0].mxu0
    %1263 = vdwg.mxu0
    %1264 = vmatprep.subr.bf16.mxu0 0
    %1265 = vmatpush1.bf16.msra.mxu0 %v905
    %1266 = vmatprep.subr.bf16.mxu0 0
    %1267 = vmatpush1.bf16.msra.mxu0 %v906
    %1268 = vmatprep.subr.bf16.mxu0 0
    %1269 = vmatpush1.bf16.msra.mxu0 0
    %1270 = vmatprep.subr.bf16.mxu0 0
    %1271 = vmatpush1.bf16.msra.mxu0 0
    %1272 = vmatprep.subr.bf16.mxu0 0
    %1273 = vmatpush1.bf16.msra.mxu0 0
    %1274 = vmatprep.subr.bf16.mxu0 0
    %1275 = vmatpush1.bf16.msra.mxu0 0
    %1276 = vmatprep.subr.bf16.mxu0 0
    %1277 = vmatpush1.bf16.msra.mxu0 0
    %1278 = vmatprep.subr.bf16.mxu0 0
    %1279 = vmatpush1.bf16.msra.mxu0 0
    %1280 = vmatprep.subr.bf16.mxu0 0
    %1281 = vmatpush1.bf16.msra.mxu0 0
    %1282 = vmatprep.subr.bf16.mxu0 0
    %1283 = vmatpush1.bf16.msra.mxu0 0
    %1284 = vmatprep.subr.bf16.mxu0 0
    %1285 = vmatpush1.bf16.msra.mxu0 0
    %1286 = vmatprep.subr.bf16.mxu0 0
    %1287 = vmatpush1.bf16.msra.mxu0 0
    %1288 = vmatprep.subr.bf16.mxu0 0
    %1289 = vmatpush1.bf16.msra.mxu0 0
    %1290 = vmatprep.subr.bf16.mxu0 0
    %1291 = vmatpush1.bf16.msra.mxu0 0
    %1292 = vmatprep.subr.bf16.mxu0 0
    %1293 = vmatpush1.bf16.msra.mxu0 0
    %1294 = vmatprep.subr.bf16.mxu0 0
    %1295 = vmatpush1.bf16.msra.mxu0 0
    %1296 = vmatprep.mubr.bf16.mxu0 0
    %1297 = vmatmul.mubr.bf16.gmra.mrb[0].mxu0 %v1182
    %v1298 = vpop.f32.mrb[0].mxu0
    %v1299 = vadd.f32 %v895, %v1298
    %v1300 = vpop.f32.mrb[0].mxu0
    %v1301 = vpop.f32.mrb[0].mxu0
    %v1302 = vpop.f32.mrb[0].mxu0
    %1303 = vdwg.mxu0
    %v1304 = vadd.f32 %v1175, %v1219
    %v1305 = vxor.u32 %v1304, 2147483648
    %v1306 = vmul.f32 %v1305, 1.442695
    %v1307 = vpow.pop %v1306
    %v1308 = vadd.f32 %v1307, 1.0
    %v1309 = vrcp.pop %v1308
    %v1310 = vmul.f32 1.0, %v1309
    %v1311 = vadd.f32 %v1177, %v1259
    %v1312 = vxor.u32 %v1311, 2147483648
    %v1313 = vmul.f32 %v1312, 1.442695
    %v1314 = vpow.pop %v1313
    %v1315 = vadd.f32 %v1314, 1.0
    %v1316 = vrcp.pop %v1315
    %v1317 = vmul.f32 1.0, %v1316
    %v1318 = vmul.f32 %v1310, %v1299
    %v1319 = vadd.f32 %v1179, %v1318
    %v1320 = vtanh.pop %v1319
    %v1321 = vsub.f32 1.0, %v1317
    %v1322 = vmul.f32 %v1321, %v1320
    %v1323 = vmul.f32 %v1317, %v969
    %v1324 = vadd.f32 %v1322, %v1323
    %s1325 = scalar_lea.vmem [#allocation2], 120
    %v1326 = vld [vmem:[%s1325] sm:$0xf]
    %s1327 = scalar_lea.vmem [#allocation2], 152
    %v1328 = vld [vmem:[%s1327] sm:$0xf]
    %s1329 = scalar_lea.vmem [#allocation2], 184
    %v1330 = vld [vmem:[%s1329] sm:$0xf]
    %v1331 = vpack.c.bf16 %v1170, %v1170
    %v1333 = vsel %vm789, %v1331, 0
    %1335 = vmatprep.subr.bf16.mxu0 0
    %1336 = vmatpush1.bf16.msra.mxu0 %v990
    %1337 = vmatprep.subr.bf16.mxu0 0
    %1338 = vmatpush1.bf16.msra.mxu0 %v991
    %1339 = vmatprep.subr.bf16.mxu0 0
    %1340 = vmatpush1.bf16.msra.mxu0 0
    %1341 = vmatprep.subr.bf16.mxu0 0
    %1342 = vmatpush1.bf16.msra.mxu0 0
    %1343 = vmatprep.subr.bf16.mxu0 0
    %1344 = vmatpush1.bf16.msra.mxu0 0
    %1345 = vmatprep.subr.bf16.mxu0 0
    %1346 = vmatpush1.bf16.msra.mxu0 0
    %1347 = vmatprep.subr.bf16.mxu0 0
    %1348 = vmatpush1.bf16.msra.mxu0 0
    %1349 = vmatprep.subr.bf16.mxu0 0
    %1350 = vmatpush1.bf16.msra.mxu0 0
    %1351 = vmatprep.subr.bf16.mxu0 0
    %1352 = vmatpush1.bf16.msra.mxu0 0
    %1353 = vmatprep.subr.bf16.mxu0 0
    %1354 = vmatpush1.bf16.msra.mxu0 0
    %1355 = vmatprep.subr.bf16.mxu0 0
    %1356 = vmatpush1.bf16.msra.mxu0 0
    %1357 = vmatprep.subr.bf16.mxu0 0
    %1358 = vmatpush1.bf16.msra.mxu0 0
    %1359 = vmatprep.subr.bf16.mxu0 0
    %1360 = vmatpush1.bf16.msra.mxu0 0
    %1361 = vmatprep.subr.bf16.mxu0 0
    %1362 = vmatpush1.bf16.msra.mxu0 0
    %1363 = vmatprep.subr.bf16.mxu0 0
    %1364 = vmatpush1.bf16.msra.mxu0 0
    %1365 = vmatprep.subr.bf16.mxu0 0
    %1366 = vmatpush1.bf16.msra.mxu0 0
    %1367 = vmatprep.mubr.bf16.mxu0 0
    %1368 = vmatmul.mubr.bf16.gmra.mrb[0].mxu0 %v1333
    %v1369 = vpop.f32.mrb[0].mxu0
    %v1370 = vadd.f32 %v980, %v1369
    %v1371 = vpop.f32.mrb[0].mxu0
    %v1372 = vpop.f32.mrb[0].mxu0
    %v1373 = vpop.f32.mrb[0].mxu0
    %1374 = vdwg.mxu0
    %1375 = vmatprep.subr.bf16.mxu0 0
    %1376 = vmatpush1.bf16.msra.mxu0 %v1048
    %1377 = vmatprep.subr.bf16.mxu0 0
    %1378 = vmatpush1.bf16.msra.mxu0 %v1049
    %1379 = vmatprep.subr.bf16.mxu0 0
    %1380 = vmatpush1.bf16.msra.mxu0 0
    %1381 = vmatprep.subr.bf16.mxu0 0
    %1382 = vmatpush1.bf16.msra.mxu0 0
    %1383 = vmatprep.subr.bf16.mxu0 0
    %1384 = vmatpush1.bf16.msra.mxu0 0
    %1385 = vmatprep.subr.bf16.mxu0 0
    %1386 = vmatpush1.bf16.msra.mxu0 0
    %1387 = vmatprep.subr.bf16.mxu0 0
    %1388 = vmatpush1.bf16.msra.mxu0 0
    %1389 = vmatprep.subr.bf16.mxu0 0
    %1390 = vmatpush1.bf16.msra.mxu0 0
    %1391 = vmatprep.subr.bf16.mxu0 0
    %1392 = vmatpush1.bf16.msra.mxu0 0
    %1393 = vmatprep.subr.bf16.mxu0 0
    %1394 = vmatpush1.bf16.msra.mxu0 0
    %1395 = vmatprep.subr.bf16.mxu0 0
    %1396 = vmatpush1.bf16.msra.mxu0 0
    %1397 = vmatprep.subr.bf16.mxu0 0
    %1398 = vmatpush1.bf16.msra.mxu0 0
    %1399 = vmatprep.subr.bf16.mxu0 0
    %1400 = vmatpush1.bf16.msra.mxu0 0
    %1401 = vmatprep.subr.bf16.mxu0 0
    %1402 = vmatpush1.bf16.msra.mxu0 0
    %1403 = vmatprep.subr.bf16.mxu0 0
    %1404 = vmatpush1.bf16.msra.mxu0 0
    %1405 = vmatprep.subr.bf16.mxu0 0
    %1406 = vmatpush1.bf16.msra.mxu0 0
    %1407 = vmatprep.mubr.bf16.mxu0 0
    %1408 = vmatmul.mubr.bf16.gmra.mrb[0].mxu0 %v1333
    %v1409 = vpop.f32.mrb[0].mxu0
    %v1410 = vadd.f32 %v1038, %v1409
    %v1411 = vpop.f32.mrb[0].mxu0
    %v1412 = vpop.f32.mrb[0].mxu0
    %v1413 = vpop.f32.mrb[0].mxu0
    %1414 = vdwg.mxu0
    %1415 = vmatprep.subr.bf16.mxu0 0
    %1416 = vmatpush1.bf16.msra.mxu0 %v1106
    %1417 = vmatprep.subr.bf16.mxu0 0
    %1418 = vmatpush1.bf16.msra.mxu0 %v1107
    %1419 = vmatprep.subr.bf16.mxu0 0
    %1420 = vmatpush1.bf16.msra.mxu0 0
    %1421 = vmatprep.subr.bf16.mxu0 0
    %1422 = vmatpush1.bf16.msra.mxu0 0
    %1423 = vmatprep.subr.bf16.mxu0 0
    %1424 = vmatpush1.bf16.msra.mxu0 0
    %1425 = vmatprep.subr.bf16.mxu0 0
    %1426 = vmatpush1.bf16.msra.mxu0 0
    %1427 = vmatprep.subr.bf16.mxu0 0
    %1428 = vmatpush1.bf16.msra.mxu0 0
    %1429 = vmatprep.subr.bf16.mxu0 0
    %1430 = vmatpush1.bf16.msra.mxu0 0
    %1431 = vmatprep.subr.bf16.mxu0 0
    %1432 = vmatpush1.bf16.msra.mxu0 0
    %1433 = vmatprep.subr.bf16.mxu0 0
    %1434 = vmatpush1.bf16.msra.mxu0 0
    %1435 = vmatprep.subr.bf16.mxu0 0
    %1436 = vmatpush1.bf16.msra.mxu0 0
    %1437 = vmatprep.subr.bf16.mxu0 0
    %1438 = vmatpush1.bf16.msra.mxu0 0
    %1439 = vmatprep.subr.bf16.mxu0 0
    %1440 = vmatpush1.bf16.msra.mxu0 0
    %1441 = vmatprep.subr.bf16.mxu0 0
    %1442 = vmatpush1.bf16.msra.mxu0 0
    %1443 = vmatprep.subr.bf16.mxu0 0
    %1444 = vmatpush1.bf16.msra.mxu0 0
    %1445 = vmatprep.subr.bf16.mxu0 0
    %1446 = vmatpush1.bf16.msra.mxu0 0
    %1447 = vmatprep.mubr.bf16.mxu0 0
    %1448 = vmatmul.mubr.bf16.gmra.mrb[0].mxu0 %v1333
    %v1449 = vpop.f32.mrb[0].mxu0
    %v1450 = vadd.f32 %v1096, %v1449
    %v1451 = vpop.f32.mrb[0].mxu0
    %v1452 = vpop.f32.mrb[0].mxu0
    %v1453 = vpop.f32.mrb[0].mxu0
    %1454 = vdwg.mxu0
    %v1455 = vadd.f32 %v1326, %v1370
    %v1456 = vxor.u32 %v1455, 2147483648
    %v1457 = vmul.f32 %v1456, 1.442695
    %v1458 = vpow.pop %v1457
    %v1459 = vadd.f32 %v1458, 1.0
    %v1460 = vrcp.pop %v1459
    %v1461 = vmul.f32 1.0, %v1460
    %v1462 = vadd.f32 %v1328, %v1410
    %v1463 = vxor.u32 %v1462, 2147483648
    %v1464 = vmul.f32 %v1463, 1.442695
    %v1465 = vpow.pop %v1464
    %v1466 = vadd.f32 %v1465, 1.0
    %v1467 = vrcp.pop %v1466
    %v1468 = vmul.f32 1.0, %v1467
    %v1469 = vmul.f32 %v1461, %v1450
    %v1470 = vadd.f32 %v1330, %v1469
    %v1471 = vtanh.pop %v1470
    %v1472 = vsub.f32 1.0, %v1468
    %v1473 = vmul.f32 %v1472, %v1471
    %v1474 = vmul.f32 %v1468, %v1170
    %v1475 = vadd.f32 %v1473, %v1474
    %s1476 = scalar_lea.vmem [#allocation3], 4
    %1477 = vst.msk [vmem:[%s1476] sm:$0xf] %vm164, %v1324
    %s1478 = scalar_lea.vmem [#allocation4], 24
    %1479 = vst.msk [vmem:[%s1478] sm:$0xf] %vm164, %v1475
    %s1480 = scalar_lea.vmem [#allocation2], 8
    %v1481 = vld [vmem:[%s1480] sm:$0xf]
    %s1482 = scalar_lea.vmem [#allocation2], 40
    %v1483 = vld [vmem:[%s1482] sm:$0xf]
    %s1484 = scalar_lea.vmem [#allocation2], 72
    %v1485 = vld [vmem:[%s1484] sm:$0xf]
    %v1486 = vpack.c.bf16 %v1324, %v1324
    %v1488 = vsel %vm789, %v1486, 0
    %1490 = vmatprep.subr.bf16.mxu0 0
    %1491 = vmatpush1.bf16.msra.mxu0 %v785
    %1492 = vmatprep.subr.bf16.mxu0 0
    %1493 = vmatpush1.bf16.msra.mxu0 %v786
    %1494 = vmatprep.subr.bf16.mxu0 0
    %1495 = vmatpush1.bf16.msra.mxu0 0
    %1496 = vmatprep.subr.bf16.mxu0 0
    %1497 = vmatpush1.bf16.msra.mxu0 0
    %1498 = vmatprep.subr.bf16.mxu0 0
    %1499 = vmatpush1.bf16.msra.mxu0 0
    %1500 = vmatprep.subr.bf16.mxu0 0
    %1501 = vmatpush1.bf16.msra.mxu0 0
    %1502 = vmatprep.subr.bf16.mxu0 0
    %1503 = vmatpush1.bf16.msra.mxu0 0
    %1504 = vmatprep.subr.bf16.mxu0 0
    %1505 = vmatpush1.bf16.msra.mxu0 0
    %1506 = vmatprep.subr.bf16.mxu0 0
    %1507 = vmatpush1.bf16.msra.mxu0 0
    %1508 = vmatprep.subr.bf16.mxu0 0
    %1509 = vmatpush1.bf16.msra.mxu0 0
    %1510 = vmatprep.subr.bf16.mxu0 0
    %1511 = vmatpush1.bf16.msra.mxu0 0
    %1512 = vmatprep.subr.bf16.mxu0 0
    %1513 = vmatpush1.bf16.msra.mxu0 0
    %1514 = vmatprep.subr.bf16.mxu0 0
    %1515 = vmatpush1.bf16.msra.mxu0 0
    %1516 = vmatprep.subr.bf16.mxu0 0
    %1517 = vmatpush1.bf16.msra.mxu0 0
    %1518 = vmatprep.subr.bf16.mxu0 0
    %1519 = vmatpush1.bf16.msra.mxu0 0
    %1520 = vmatprep.subr.bf16.mxu0 0
    %1521 = vmatpush1.bf16.msra.mxu0 0
    %1522 = vmatprep.mubr.bf16.mxu0 0
    %1523 = vmatmul.mubr.bf16.gmra.mrb[0].mxu0 %v1488
    %v1524 = vpop.f32.mrb[0].mxu0
    %v1525 = vadd.f32 %v775, %v1524
    %v1526 = vpop.f32.mrb[0].mxu0
    %v1527 = vpop.f32.mrb[0].mxu0
    %v1528 = vpop.f32.mrb[0].mxu0
    %1529 = vdwg.mxu0
    %1530 = vmatprep.subr.bf16.mxu0 0
    %1531 = vmatpush1.bf16.msra.mxu0 %v847
    %1532 = vmatprep.subr.bf16.mxu0 0
    %1533 = vmatpush1.bf16.msra.mxu0 %v848
    %1534 = vmatprep.subr.bf16.mxu0 0
    %1535 = vmatpush1.bf16.msra.mxu0 0
    %1536 = vmatprep.subr.bf16.mxu0 0
    %1537 = vmatpush1.bf16.msra.mxu0 0
    %1538 = vmatprep.subr.bf16.mxu0 0
    %1539 = vmatpush1.bf16.msra.mxu0 0
    %1540 = vmatprep.subr.bf16.mxu0 0
    %1541 = vmatpush1.bf16.msra.mxu0 0
    %1542 = vmatprep.subr.bf16.mxu0 0
    %1543 = vmatpush1.bf16.msra.mxu0 0
    %1544 = vmatprep.subr.bf16.mxu0 0
    %1545 = vmatpush1.bf16.msra.mxu0 0
    %1546 = vmatprep.subr.bf16.mxu0 0
    %1547 = vmatpush1.bf16.msra.mxu0 0
    %1548 = vmatprep.subr.bf16.mxu0 0
    %1549 = vmatpush1.bf16.msra.mxu0 0
    %1550 = vmatprep.subr.bf16.mxu0 0
    %1551 = vmatpush1.bf16.msra.mxu0 0
    %1552 = vmatprep.subr.bf16.mxu0 0
    %1553 = vmatpush1.bf16.msra.mxu0 0
    %1554 = vmatprep.subr.bf16.mxu0 0
    %1555 = vmatpush1.bf16.msra.mxu0 0
    %1556 = vmatprep.subr.bf16.mxu0 0
    %1557 = vmatpush1.bf16.msra.mxu0 0
    %1558 = vmatprep.subr.bf16.mxu0 0
    %1559 = vmatpush1.bf16.msra.mxu0 0
    %1560 = vmatprep.subr.bf16.mxu0 0
    %1561 = vmatpush1.bf16.msra.mxu0 0
    %1562 = vmatprep.mubr.bf16.mxu0 0
    %1563 = vmatmul.mubr.bf16.gmra.mrb[0].mxu0 %v1488
    %v1564 = vpop.f32.mrb[0].mxu0
    %v1565 = vadd.f32 %v837, %v1564
    %v1566 = vpop.f32.mrb[0].mxu0
    %v1567 = vpop.f32.mrb[0].mxu0
    %v1568 = vpop.f32.mrb[0].mxu0
    %1569 = vdwg.mxu0
    %1570 = vmatprep.subr.bf16.mxu0 0
    %1571 = vmatpush1.bf16.msra.mxu0 %v905
    %1572 = vmatprep.subr.bf16.mxu0 0
    %1573 = vmatpush1.bf16.msra.mxu0 %v906
    %1574 = vmatprep.subr.bf16.mxu0 0
    %1575 = vmatpush1.bf16.msra.mxu0 0
    %1576 = vmatprep.subr.bf16.mxu0 0
    %1577 = vmatpush1.bf16.msra.mxu0 0
    %1578 = vmatprep.subr.bf16.mxu0 0
    %1579 = vmatpush1.bf16.msra.mxu0 0
    %1580 = vmatprep.subr.bf16.mxu0 0
    %1581 = vmatpush1.bf16.msra.mxu0 0
    %1582 = vmatprep.subr.bf16.mxu0 0
    %1583 = vmatpush1.bf16.msra.mxu0 0
    %1584 = vmatprep.subr.bf16.mxu0 0
    %1585 = vmatpush1.bf16.msra.mxu0 0
    %1586 = vmatprep.subr.bf16.mxu0 0
    %1587 = vmatpush1.bf16.msra.mxu0 0
    %1588 = vmatprep.subr.bf16.mxu0 0
    %1589 = vmatpush1.bf16.msra.mxu0 0
    %1590 = vmatprep.subr.bf16.mxu0 0
    %1591 = vmatpush1.bf16.msra.mxu0 0
    %1592 = vmatprep.subr.bf16.mxu0 0
    %1593 = vmatpush1.bf16.msra.mxu0 0
    %1594 = vmatprep.subr.bf16.mxu0 0
    %1595 = vmatpush1.bf16.msra.mxu0 0
    %1596 = vmatprep.subr.bf16.mxu0 0
    %1597 = vmatpush1.bf16.msra.mxu0 0
    %1598 = vmatprep.subr.bf16.mxu0 0
    %1599 = vmatpush1.bf16.msra.mxu0 0
    %1600 = vmatprep.subr.bf16.mxu0 0
    %1601 = vmatpush1.bf16.msra.mxu0 0
    %1602 = vmatprep.mubr.bf16.mxu0 0
    %1603 = vmatmul.mubr.bf16.gmra.mrb[0].mxu0 %v1488
    %v1604 = vpop.f32.mrb[0].mxu0
    %v1605 = vadd.f32 %v895, %v1604
    %v1606 = vpop.f32.mrb[0].mxu0
    %v1607 = vpop.f32.mrb[0].mxu0
    %v1608 = vpop.f32.mrb[0].mxu0
    %1609 = vdwg.mxu0
    %v1610 = vadd.f32 %v1481, %v1525
    %v1611 = vxor.u32 %v1610, 2147483648
    %v1612 = vmul.f32 %v1611, 1.442695
    %v1613 = vpow.pop %v1612
    %v1614 = vadd.f32 %v1613, 1.0
    %v1615 = vrcp.pop %v1614
    %v1616 = vmul.f32 1.0, %v1615
    %v1617 = vadd.f32 %v1483, %v1565
    %v1618 = vxor.u32 %v1617, 2147483648
    %v1619 = vmul.f32 %v1618, 1.442695
    %v1620 = vpow.pop %v1619
    %v1621 = vadd.f32 %v1620, 1.0
    %v1622 = vrcp.pop %v1621
    %v1623 = vmul.f32 1.0, %v1622
    %v1624 = vmul.f32 %v1616, %v1605
    %v1625 = vadd.f32 %v1485, %v1624
    %v1626 = vtanh.pop %v1625
    %v1627 = vsub.f32 1.0, %v1623
    %v1628 = vmul.f32 %v1627, %v1626
    %v1629 = vmul.f32 %v1623, %v1324
    %v1630 = vadd.f32 %v1628, %v1629
    %s1631 = scalar_lea.vmem [#allocation2], 116
    %v1632 = vld [vmem:[%s1631] sm:$0xf]
    %s1633 = scalar_lea.vmem [#allocation2], 148
    %v1634 = vld [vmem:[%s1633] sm:$0xf]
    %s1635 = scalar_lea.vmem [#allocation2], 180
    %v1636 = vld [vmem:[%s1635] sm:$0xf]
    %v1637 = vpack.c.bf16 %v1475, %v1475
    %v1639 = vsel %vm789, %v1637, 0
    %1641 = vmatprep.subr.bf16.mxu0 0
    %1642 = vmatpush1.bf16.msra.mxu0 %v990
    %1643 = vmatprep.subr.bf16.mxu0 0
    %1644 = vmatpush1.bf16.msra.mxu0 %v991
    %1645 = vmatprep.subr.bf16.mxu0 0
    %1646 = vmatpush1.bf16.msra.mxu0 0
    %1647 = vmatprep.subr.bf16.mxu0 0
    %1648 = vmatpush1.bf16.msra.mxu0 0
    %1649 = vmatprep.subr.bf16.mxu0 0
    %1650 = vmatpush1.bf16.msra.mxu0 0
    %1651 = vmatprep.subr.bf16.mxu0 0
    %1652 = vmatpush1.bf16.msra.mxu0 0
    %1653 = vmatprep.subr.bf16.mxu0 0
    %1654 = vmatpush1.bf16.msra.mxu0 0
    %1655 = vmatprep.subr.bf16.mxu0 0
    %1656 = vmatpush1.bf16.msra.mxu0 0
    %1657 = vmatprep.subr.bf16.mxu0 0
    %1658 = vmatpush1.bf16.msra.mxu0 0
    %1659 = vmatprep.subr.bf16.mxu0 0
    %1660 = vmatpush1.bf16.msra.mxu0 0
    %1661 = vmatprep.subr.bf16.mxu0 0
    %1662 = vmatpush1.bf16.msra.mxu0 0
    %1663 = vmatprep.subr.bf16.mxu0 0
    %1664 = vmatpush1.bf16.msra.mxu0 0
    %1665 = vmatprep.subr.bf16.mxu0 0
    %1666 = vmatpush1.bf16.msra.mxu0 0
    %1667 = vmatprep.subr.bf16.mxu0 0
    %1668 = vmatpush1.bf16.msra.mxu0 0
    %1669 = vmatprep.subr.bf16.mxu0 0
    %1670 = vmatpush1.bf16.msra.mxu0 0
    %1671 = vmatprep.subr.bf16.mxu0 0
    %1672 = vmatpush1.bf16.msra.mxu0 0
    %1673 = vmatprep.mubr.bf16.mxu0 0
    %1674 = vmatmul.mubr.bf16.gmra.mrb[0].mxu0 %v1639
    %v1675 = vpop.f32.mrb[0].mxu0
    %v1676 = vadd.f32 %v980, %v1675
    %v1677 = vpop.f32.mrb[0].mxu0
    %v1678 = vpop.f32.mrb[0].mxu0
    %v1679 = vpop.f32.mrb[0].mxu0
    %1680 = vdwg.mxu0
    %1681 = vmatprep.subr.bf16.mxu0 0
    %1682 = vmatpush1.bf16.msra.mxu0 %v1048
    %1683 = vmatprep.subr.bf16.mxu0 0
    %1684 = vmatpush1.bf16.msra.mxu0 %v1049
    %1685 = vmatprep.subr.bf16.mxu0 0
    %1686 = vmatpush1.bf16.msra.mxu0 0
    %1687 = vmatprep.subr.bf16.mxu0 0
    %1688 = vmatpush1.bf16.msra.mxu0 0
    %1689 = vmatprep.subr.bf16.mxu0 0
    %1690 = vmatpush1.bf16.msra.mxu0 0
    %1691 = vmatprep.subr.bf16.mxu0 0
    %1692 = vmatpush1.bf16.msra.mxu0 0
    %1693 = vmatprep.subr.bf16.mxu0 0
    %1694 = vmatpush1.bf16.msra.mxu0 0
    %1695 = vmatprep.subr.bf16.mxu0 0
    %1696 = vmatpush1.bf16.msra.mxu0 0
    %1697 = vmatprep.subr.bf16.mxu0 0
    %1698 = vmatpush1.bf16.msra.mxu0 0
    %1699 = vmatprep.subr.bf16.mxu0 0
    %1700 = vmatpush1.bf16.msra.mxu0 0
    %1701 = vmatprep.subr.bf16.mxu0 0
    %1702 = vmatpush1.bf16.msra.mxu0 0
    %1703 = vmatprep.subr.bf16.mxu0 0
    %1704 = vmatpush1.bf16.msra.mxu0 0
    %1705 = vmatprep.subr.bf16.mxu0 0
    %1706 = vmatpush1.bf16.msra.mxu0 0
    %1707 = vmatprep.subr.bf16.mxu0 0
    %1708 = vmatpush1.bf16.msra.mxu0 0
    %1709 = vmatprep.subr.bf16.mxu0 0
    %1710 = vmatpush1.bf16.msra.mxu0 0
    %1711 = vmatprep.subr.bf16.mxu0 0
    %1712 = vmatpush1.bf16.msra.mxu0 0
    %1713 = vmatprep.mubr.bf16.mxu0 0
    %1714 = vmatmul.mubr.bf16.gmra.mrb[0].mxu0 %v1639
    %v1715 = vpop.f32.mrb[0].mxu0
    %v1716 = vadd.f32 %v1038, %v1715
    %v1717 = vpop.f32.mrb[0].mxu0
    %v1718 = vpop.f32.mrb[0].mxu0
    %v1719 = vpop.f32.mrb[0].mxu0
    %1720 = vdwg.mxu0
    %1721 = vmatprep.subr.bf16.mxu0 0
    %1722 = vmatpush1.bf16.msra.mxu0 %v1106
    %1723 = vmatprep.subr.bf16.mxu0 0
    %1724 = vmatpush1.bf16.msra.mxu0 %v1107
    %1725 = vmatprep.subr.bf16.mxu0 0
    %1726 = vmatpush1.bf16.msra.mxu0 0
    %1727 = vmatprep.subr.bf16.mxu0 0
    %1728 = vmatpush1.bf16.msra.mxu0 0
    %1729 = vmatprep.subr.bf16.mxu0 0
    %1730 = vmatpush1.bf16.msra.mxu0 0
    %1731 = vmatprep.subr.bf16.mxu0 0
    %1732 = vmatpush1.bf16.msra.mxu0 0
    %1733 = vmatprep.subr.bf16.mxu0 0
    %1734 = vmatpush1.bf16.msra.mxu0 0
    %1735 = vmatprep.subr.bf16.mxu0 0
    %1736 = vmatpush1.bf16.msra.mxu0 0
    %1737 = vmatprep.subr.bf16.mxu0 0
    %1738 = vmatpush1.bf16.msra.mxu0 0
    %1739 = vmatprep.subr.bf16.mxu0 0
    %1740 = vmatpush1.bf16.msra.mxu0 0
    %1741 = vmatprep.subr.bf16.mxu0 0
    %1742 = vmatpush1.bf16.msra.mxu0 0
    %1743 = vmatprep.subr.bf16.mxu0 0
    %1744 = vmatpush1.bf16.msra.mxu0 0
    %1745 = vmatprep.subr.bf16.mxu0 0
    %1746 = vmatpush1.bf16.msra.mxu0 0
    %1747 = vmatprep.subr.bf16.mxu0 0
    %1748 = vmatpush1.bf16.msra.mxu0 0
    %1749 = vmatprep.subr.bf16.mxu0 0
    %1750 = vmatpush1.bf16.msra.mxu0 0
    %1751 = vmatprep.subr.bf16.mxu0 0
    %1752 = vmatpush1.bf16.msra.mxu0 0
    %1753 = vmatprep.mubr.bf16.mxu0 0
    %1754 = vmatmul.mubr.bf16.gmra.mrb[0].mxu0 %v1639
    %v1755 = vpop.f32.mrb[0].mxu0
    %v1756 = vadd.f32 %v1096, %v1755
    %v1757 = vpop.f32.mrb[0].mxu0
    %v1758 = vpop.f32.mrb[0].mxu0
    %v1759 = vpop.f32.mrb[0].mxu0
    %1760 = vdwg.mxu0
    %v1761 = vadd.f32 %v1632, %v1676
    %v1762 = vxor.u32 %v1761, 2147483648
    %v1763 = vmul.f32 %v1762, 1.442695
    %v1764 = vpow.pop %v1763
    %v1765 = vadd.f32 %v1764, 1.0
    %v1766 = vrcp.pop %v1765
    %v1767 = vmul.f32 1.0, %v1766
    %v1768 = vadd.f32 %v1634, %v1716
    %v1769 = vxor.u32 %v1768, 2147483648
    %v1770 = vmul.f32 %v1769, 1.442695
    %v1771 = vpow.pop %v1770
    %v1772 = vadd.f32 %v1771, 1.0
    %v1773 = vrcp.pop %v1772
    %v1774 = vmul.f32 1.0, %v1773
    %v1775 = vmul.f32 %v1767, %v1756
    %v1776 = vadd.f32 %v1636, %v1775
    %v1777 = vtanh.pop %v1776
    %v1778 = vsub.f32 1.0, %v1774
    %v1779 = vmul.f32 %v1778, %v1777
    %v1780 = vmul.f32 %v1774, %v1475
    %v1781 = vadd.f32 %v1779, %v1780
    %s1782 = scalar_lea.vmem [#allocation3], 8
    %1783 = vst.msk [vmem:[%s1782] sm:$0xf] %vm164, %v1630
    %s1784 = scalar_lea.vmem [#allocation4], 20
    %1785 = vst.msk [vmem:[%s1784] sm:$0xf] %vm164, %v1781
    %s1786 = scalar_lea.vmem [#allocation2], 12
    %v1787 = vld [vmem:[%s1786] sm:$0xf]
    %s1788 = scalar_lea.vmem [#allocation2], 44
    %v1789 = vld [vmem:[%s1788] sm:$0xf]
    %s1790 = scalar_lea.vmem [#allocation2], 76
    %v1791 = vld [vmem:[%s1790] sm:$0xf]
    %v1792 = vpack.c.bf16 %v1630, %v1630
    %v1794 = vsel %vm789, %v1792, 0
    %1796 = vmatprep.subr.bf16.mxu0 0
    %1797 = vmatpush1.bf16.msra.mxu0 %v785
    %1798 = vmatprep.subr.bf16.mxu0 0
    %1799 = vmatpush1.bf16.msra.mxu0 %v786
    %1800 = vmatprep.subr.bf16.mxu0 0
    %1801 = vmatpush1.bf16.msra.mxu0 0
    %1802 = vmatprep.subr.bf16.mxu0 0
    %1803 = vmatpush1.bf16.msra.mxu0 0
    %1804 = vmatprep.subr.bf16.mxu0 0
    %1805 = vmatpush1.bf16.msra.mxu0 0
    %1806 = vmatprep.subr.bf16.mxu0 0
    %1807 = vmatpush1.bf16.msra.mxu0 0
    %1808 = vmatprep.subr.bf16.mxu0 0
    %1809 = vmatpush1.bf16.msra.mxu0 0
    %1810 = vmatprep.subr.bf16.mxu0 0
    %1811 = vmatpush1.bf16.msra.mxu0 0
    %1812 = vmatprep.subr.bf16.mxu0 0
    %1813 = vmatpush1.bf16.msra.mxu0 0
    %1814 = vmatprep.subr.bf16.mxu0 0
    %1815 = vmatpush1.bf16.msra.mxu0 0
    %1816 = vmatprep.subr.bf16.mxu0 0
    %1817 = vmatpush1.bf16.msra.mxu0 0
    %1818 = vmatprep.subr.bf16.mxu0 0
    %1819 = vmatpush1.bf16.msra.mxu0 0
    %1820 = vmatprep.subr.bf16.mxu0 0
    %1821 = vmatpush1.bf16.msra.mxu0 0
    %1822 = vmatprep.subr.bf16.mxu0 0
    %1823 = vmatpush1.bf16.msra.mxu0 0
    %1824 = vmatprep.subr.bf16.mxu0 0
    %1825 = vmatpush1.bf16.msra.mxu0 0
    %1826 = vmatprep.subr.bf16.mxu0 0
    %1827 = vmatpush1.bf16.msra.mxu0 0
    %1828 = vmatprep.mubr.bf16.mxu0 0
    %1829 = vmatmul.mubr.bf16.gmra.mrb[0].mxu0 %v1794
    %v1830 = vpop.f32.mrb[0].mxu0
    %v1831 = vadd.f32 %v775, %v1830
    %v1832 = vpop.f32.mrb[0].mxu0
    %v1833 = vpop.f32.mrb[0].mxu0
    %v1834 = vpop.f32.mrb[0].mxu0
    %1835 = vdwg.mxu0
    %1836 = vmatprep.subr.bf16.mxu0 0
    %1837 = vmatpush1.bf16.msra.mxu0 %v847
    %1838 = vmatprep.subr.bf16.mxu0 0
    %1839 = vmatpush1.bf16.msra.mxu0 %v848
    %1840 = vmatprep.subr.bf16.mxu0 0
    %1841 = vmatpush1.bf16.msra.mxu0 0
    %1842 = vmatprep.subr.bf16.mxu0 0
    %1843 = vmatpush1.bf16.msra.mxu0 0
    %1844 = vmatprep.subr.bf16.mxu0 0
    %1845 = vmatpush1.bf16.msra.mxu0 0
    %1846 = vmatprep.subr.bf16.mxu0 0
    %1847 = vmatpush1.bf16.msra.mxu0 0
    %1848 = vmatprep.subr.bf16.mxu0 0
    %1849 = vmatpush1.bf16.msra.mxu0 0
    %1850 = vmatprep.subr.bf16.mxu0 0
    %1851 = vmatpush1.bf16.msra.mxu0 0
    %1852 = vmatprep.subr.bf16.mxu0 0
    %1853 = vmatpush1.bf16.msra.mxu0 0
    %1854 = vmatprep.subr.bf16.mxu0 0
    %1855 = vmatpush1.bf16.msra.mxu0 0
    %1856 = vmatprep.subr.bf16.mxu0 0
    %1857 = vmatpush1.bf16.msra.mxu0 0
    %1858 = vmatprep.subr.bf16.mxu0 0
    %1859 = vmatpush1.bf16.msra.mxu0 0
    %1860 = vmatprep.subr.bf16.mxu0 0
    %1861 = vmatpush1.bf16.msra.mxu0 0
    %1862 = vmatprep.subr.bf16.mxu0 0
    %1863 = vmatpush1.bf16.msra.mxu0 0
    %1864 = vmatprep.subr.bf16.mxu0 0
    %1865 = vmatpush1.bf16.msra.mxu0 0
    %1866 = vmatprep.subr.bf16.mxu0 0
    %1867 = vmatpush1.bf16.msra.mxu0 0
    %1868 = vmatprep.mubr.bf16.mxu0 0
    %1869 = vmatmul.mubr.bf16.gmra.mrb[0].mxu0 %v1794
    %v1870 = vpop.f32.mrb[0].mxu0
    %v1871 = vadd.f32 %v837, %v1870
    %v1872 = vpop.f32.mrb[0].mxu0
    %v1873 = vpop.f32.mrb[0].mxu0
    %v1874 = vpop.f32.mrb[0].mxu0
    %1875 = vdwg.mxu0
    %1876 = vmatprep.subr.bf16.mxu0 0
    %1877 = vmatpush1.bf16.msra.mxu0 %v905
    %1878 = vmatprep.subr.bf16.mxu0 0
    %1879 = vmatpush1.bf16.msra.mxu0 %v906
    %1880 = vmatprep.subr.bf16.mxu0 0
    %1881 = vmatpush1.bf16.msra.mxu0 0
    %1882 = vmatprep.subr.bf16.mxu0 0
    %1883 = vmatpush1.bf16.msra.mxu0 0
    %1884 = vmatprep.subr.bf16.mxu0 0
    %1885 = vmatpush1.bf16.msra.mxu0 0
    %1886 = vmatprep.subr.bf16.mxu0 0
    %1887 = vmatpush1.bf16.msra.mxu0 0
    %1888 = vmatprep.subr.bf16.mxu0 0
    %1889 = vmatpush1.bf16.msra.mxu0 0
    %1890 = vmatprep.subr.bf16.mxu0 0
    %1891 = vmatpush1.bf16.msra.mxu0 0
    %1892 = vmatprep.subr.bf16.mxu0 0
    %1893 = vmatpush1.bf16.msra.mxu0 0
    %1894 = vmatprep.subr.bf16.mxu0 0
    %1895 = vmatpush1.bf16.msra.mxu0 0
    %1896 = vmatprep.subr.bf16.mxu0 0
    %1897 = vmatpush1.bf16.msra.mxu0 0
    %1898 = vmatprep.subr.bf16.mxu0 0
    %1899 = vmatpush1.bf16.msra.mxu0 0
    %1900 = vmatprep.subr.bf16.mxu0 0
    %1901 = vmatpush1.bf16.msra.mxu0 0
    %1902 = vmatprep.subr.bf16.mxu0 0
    %1903 = vmatpush1.bf16.msra.mxu0 0
    %1904 = vmatprep.subr.bf16.mxu0 0
    %1905 = vmatpush1.bf16.msra.mxu0 0
    %1906 = vmatprep.subr.bf16.mxu0 0
    %1907 = vmatpush1.bf16.msra.mxu0 0
    %1908 = vmatprep.mubr.bf16.mxu0 0
    %1909 = vmatmul.mubr.bf16.gmra.mrb[0].mxu0 %v1794
    %v1910 = vpop.f32.mrb[0].mxu0
    %v1911 = vadd.f32 %v895, %v1910
    %v1912 = vpop.f32.mrb[0].mxu0
    %v1913 = vpop.f32.mrb[0].mxu0
    %v1914 = vpop.f32.mrb[0].mxu0
    %1915 = vdwg.mxu0
    %v1916 = vadd.f32 %v1787, %v1831
    %v1917 = vxor.u32 %v1916, 2147483648
    %v1918 = vmul.f32 %v1917, 1.442695
    %v1919 = vpow.pop %v1918
    %v1920 = vadd.f32 %v1919, 1.0
    %v1921 = vrcp.pop %v1920
    %v1922 = vmul.f32 1.0, %v1921
    %v1923 = vadd.f32 %v1789, %v1871
    %v1924 = vxor.u32 %v1923, 2147483648
    %v1925 = vmul.f32 %v1924, 1.442695
    %v1926 = vpow.pop %v1925
    %v1927 = vadd.f32 %v1926, 1.0
    %v1928 = vrcp.pop %v1927
    %v1929 = vmul.f32 1.0, %v1928
    %v1930 = vmul.f32 %v1922, %v1911
    %v1931 = vadd.f32 %v1791, %v1930
    %v1932 = vtanh.pop %v1931
    %v1933 = vsub.f32 1.0, %v1929
    %v1934 = vmul.f32 %v1933, %v1932
    %v1935 = vmul.f32 %v1929, %v1630
    %v1936 = vadd.f32 %v1934, %v1935
    %s1937 = scalar_lea.vmem [#allocation2], 112
    %v1938 = vld [vmem:[%s1937] sm:$0xf]
    %s1939 = scalar_lea.vmem [#allocation2], 144
    %v1940 = vld [vmem:[%s1939] sm:$0xf]
    %s1941 = scalar_lea.vmem [#allocation2], 176
    %v1942 = vld [vmem:[%s1941] sm:$0xf]
    %v1943 = vpack.c.bf16 %v1781, %v1781
    %v1945 = vsel %vm789, %v1943, 0
    %1947 = vmatprep.subr.bf16.mxu0 0
    %1948 = vmatpush1.bf16.msra.mxu0 %v990
    %1949 = vmatprep.subr.bf16.mxu0 0
    %1950 = vmatpush1.bf16.msra.mxu0 %v991
    %1951 = vmatprep.subr.bf16.mxu0 0
    %1952 = vmatpush1.bf16.msra.mxu0 0
    %1953 = vmatprep.subr.bf16.mxu0 0
    %1954 = vmatpush1.bf16.msra.mxu0 0
    %1955 = vmatprep.subr.bf16.mxu0 0
    %1956 = vmatpush1.bf16.msra.mxu0 0
    %1957 = vmatprep.subr.bf16.mxu0 0
    %1958 = vmatpush1.bf16.msra.mxu0 0
    %1959 = vmatprep.subr.bf16.mxu0 0
    %1960 = vmatpush1.bf16.msra.mxu0 0
    %1961 = vmatprep.subr.bf16.mxu0 0
    %1962 = vmatpush1.bf16.msra.mxu0 0
    %1963 = vmatprep.subr.bf16.mxu0 0
    %1964 = vmatpush1.bf16.msra.mxu0 0
    %1965 = vmatprep.subr.bf16.mxu0 0
    %1966 = vmatpush1.bf16.msra.mxu0 0
    %1967 = vmatprep.subr.bf16.mxu0 0
    %1968 = vmatpush1.bf16.msra.mxu0 0
    %1969 = vmatprep.subr.bf16.mxu0 0
    %1970 = vmatpush1.bf16.msra.mxu0 0
    %1971 = vmatprep.subr.bf16.mxu0 0
    %1972 = vmatpush1.bf16.msra.mxu0 0
    %1973 = vmatprep.subr.bf16.mxu0 0
    %1974 = vmatpush1.bf16.msra.mxu0 0
    %1975 = vmatprep.subr.bf16.mxu0 0
    %1976 = vmatpush1.bf16.msra.mxu0 0
    %1977 = vmatprep.subr.bf16.mxu0 0
    %1978 = vmatpush1.bf16.msra.mxu0 0
    %1979 = vmatprep.mubr.bf16.mxu0 0
    %1980 = vmatmul.mubr.bf16.gmra.mrb[0].mxu0 %v1945
    %v1981 = vpop.f32.mrb[0].mxu0
    %v1982 = vadd.f32 %v980, %v1981
    %v1983 = vpop.f32.mrb[0].mxu0
    %v1984 = vpop.f32.mrb[0].mxu0
    %v1985 = vpop.f32.mrb[0].mxu0
    %1986 = vdwg.mxu0
    %1987 = vmatprep.subr.bf16.mxu0 0
    %1988 = vmatpush1.bf16.msra.mxu0 %v1048
    %1989 = vmatprep.subr.bf16.mxu0 0
    %1990 = vmatpush1.bf16.msra.mxu0 %v1049
    %1991 = vmatprep.subr.bf16.mxu0 0
    %1992 = vmatpush1.bf16.msra.mxu0 0
    %1993 = vmatprep.subr.bf16.mxu0 0
    %1994 = vmatpush1.bf16.msra.mxu0 0
    %1995 = vmatprep.subr.bf16.mxu0 0
    %1996 = vmatpush1.bf16.msra.mxu0 0
    %1997 = vmatprep.subr.bf16.mxu0 0
    %1998 = vmatpush1.bf16.msra.mxu0 0
    %1999 = vmatprep.subr.bf16.mxu0 0
    %2000 = vmatpush1.bf16.msra.mxu0 0
    %2001 = vmatprep.subr.bf16.mxu0 0
    %2002 = vmatpush1.bf16.msra.mxu0 0
    %2003 = vmatprep.subr.bf16.mxu0 0
    %2004 = vmatpush1.bf16.msra.mxu0 0
    %2005 = vmatprep.subr.bf16.mxu0 0
    %2006 = vmatpush1.bf16.msra.mxu0 0
    %2007 = vmatprep.subr.bf16.mxu0 0
    %2008 = vmatpush1.bf16.msra.mxu0 0
    %2009 = vmatprep.subr.bf16.mxu0 0
    %2010 = vmatpush1.bf16.msra.mxu0 0
    %2011 = vmatprep.subr.bf16.mxu0 0
    %2012 = vmatpush1.bf16.msra.mxu0 0
    %2013 = vmatprep.subr.bf16.mxu0 0
    %2014 = vmatpush1.bf16.msra.mxu0 0
    %2015 = vmatprep.subr.bf16.mxu0 0
    %2016 = vmatpush1.bf16.msra.mxu0 0
    %2017 = vmatprep.subr.bf16.mxu0 0
    %2018 = vmatpush1.bf16.msra.mxu0 0
    %2019 = vmatprep.mubr.bf16.mxu0 0
    %2020 = vmatmul.mubr.bf16.gmra.mrb[0].mxu0 %v1945
    %v2021 = vpop.f32.mrb[0].mxu0
    %v2022 = vadd.f32 %v1038, %v2021
    %v2023 = vpop.f32.mrb[0].mxu0
    %v2024 = vpop.f32.mrb[0].mxu0
    %v2025 = vpop.f32.mrb[0].mxu0
    %2026 = vdwg.mxu0
    %2027 = vmatprep.subr.bf16.mxu0 0
    %2028 = vmatpush1.bf16.msra.mxu0 %v1106
    %2029 = vmatprep.subr.bf16.mxu0 0
    %2030 = vmatpush1.bf16.msra.mxu0 %v1107
    %2031 = vmatprep.subr.bf16.mxu0 0
    %2032 = vmatpush1.bf16.msra.mxu0 0
    %2033 = vmatprep.subr.bf16.mxu0 0
    %2034 = vmatpush1.bf16.msra.mxu0 0
    %2035 = vmatprep.subr.bf16.mxu0 0
    %2036 = vmatpush1.bf16.msra.mxu0 0
    %2037 = vmatprep.subr.bf16.mxu0 0
    %2038 = vmatpush1.bf16.msra.mxu0 0
    %2039 = vmatprep.subr.bf16.mxu0 0
    %2040 = vmatpush1.bf16.msra.mxu0 0
    %2041 = vmatprep.subr.bf16.mxu0 0
    %2042 = vmatpush1.bf16.msra.mxu0 0
    %2043 = vmatprep.subr.bf16.mxu0 0
    %2044 = vmatpush1.bf16.msra.mxu0 0
    %2045 = vmatprep.subr.bf16.mxu0 0
    %2046 = vmatpush1.bf16.msra.mxu0 0
    %2047 = vmatprep.subr.bf16.mxu0 0
    %2048 = vmatpush1.bf16.msra.mxu0 0
    %2049 = vmatprep.subr.bf16.mxu0 0
    %2050 = vmatpush1.bf16.msra.mxu0 0
    %2051 = vmatprep.subr.bf16.mxu0 0
    %2052 = vmatpush1.bf16.msra.mxu0 0
    %2053 = vmatprep.subr.bf16.mxu0 0
    %2054 = vmatpush1.bf16.msra.mxu0 0
    %2055 = vmatprep.subr.bf16.mxu0 0
    %2056 = vmatpush1.bf16.msra.mxu0 0
    %2057 = vmatprep.subr.bf16.mxu0 0
    %2058 = vmatpush1.bf16.msra.mxu0 0
    %2059 = vmatprep.mubr.bf16.mxu0 0
    %2060 = vmatmul.mubr.bf16.gmra.mrb[0].mxu0 %v1945
    %v2061 = vpop.f32.mrb[0].mxu0
    %v2062 = vadd.f32 %v1096, %v2061
    %v2063 = vpop.f32.mrb[0].mxu0
    %v2064 = vpop.f32.mrb[0].mxu0
    %v2065 = vpop.f32.mrb[0].mxu0
    %2066 = vdwg.mxu0
    %v2067 = vadd.f32 %v1938, %v1982
    %v2068 = vxor.u32 %v2067, 2147483648
    %v2069 = vmul.f32 %v2068, 1.442695
    %v2070 = vpow.pop %v2069
    %v2071 = vadd.f32 %v2070, 1.0
    %v2072 = vrcp.pop %v2071
    %v2073 = vmul.f32 1.0, %v2072
    %v2074 = vadd.f32 %v1940, %v2022
    %v2075 = vxor.u32 %v2074, 2147483648
    %v2076 = vmul.f32 %v2075, 1.442695
    %v2077 = vpow.pop %v2076
    %v2078 = vadd.f32 %v2077, 1.0
    %v2079 = vrcp.pop %v2078
    %v2080 = vmul.f32 1.0, %v2079
    %v2081 = vmul.f32 %v2073, %v2062
    %v2082 = vadd.f32 %v1942, %v2081
    %v2083 = vtanh.pop %v2082
    %v2084 = vsub.f32 1.0, %v2080
    %v2085 = vmul.f32 %v2084, %v2083
    %v2086 = vmul.f32 %v2080, %v1781
    %v2087 = vadd.f32 %v2085, %v2086
    %s2088 = scalar_lea.vmem [#allocation3], 12
    %2089 = vst.msk [vmem:[%s2088] sm:$0xf] %vm164, %v1936
    %s2090 = scalar_lea.vmem [#allocation4], 16
    %2091 = vst.msk [vmem:[%s2090] sm:$0xf] %vm164, %v2087
    %s2092 = scalar_lea.vmem [#allocation2], 16
    %v2093 = vld [vmem:[%s2092] sm:$0xf]
    %s2094 = scalar_lea.vmem [#allocation2], 48
    %v2095 = vld [vmem:[%s2094] sm:$0xf]
    %s2096 = scalar_lea.vmem [#allocation2], 80
    %v2097 = vld [vmem:[%s2096] sm:$0xf]
    %v2098 = vpack.c.bf16 %v1936, %v1936
    %v2100 = vsel %vm789, %v2098, 0
    %2102 = vmatprep.subr.bf16.mxu0 0
    %2103 = vmatpush1.bf16.msra.mxu0 %v785
    %2104 = vmatprep.subr.bf16.mxu0 0
    %2105 = vmatpush1.bf16.msra.mxu0 %v786
    %2106 = vmatprep.subr.bf16.mxu0 0
    %2107 = vmatpush1.bf16.msra.mxu0 0
    %2108 = vmatprep.subr.bf16.mxu0 0
    %2109 = vmatpush1.bf16.msra.mxu0 0
    %2110 = vmatprep.subr.bf16.mxu0 0
    %2111 = vmatpush1.bf16.msra.mxu0 0
    %2112 = vmatprep.subr.bf16.mxu0 0
    %2113 = vmatpush1.bf16.msra.mxu0 0
    %2114 = vmatprep.subr.bf16.mxu0 0
    %2115 = vmatpush1.bf16.msra.mxu0 0
    %2116 = vmatprep.subr.bf16.mxu0 0
    %2117 = vmatpush1.bf16.msra.mxu0 0
    %2118 = vmatprep.subr.bf16.mxu0 0
    %2119 = vmatpush1.bf16.msra.mxu0 0
    %2120 = vmatprep.subr.bf16.mxu0 0
    %2121 = vmatpush1.bf16.msra.mxu0 0
    %2122 = vmatprep.subr.bf16.mxu0 0
    %2123 = vmatpush1.bf16.msra.mxu0 0
    %2124 = vmatprep.subr.bf16.mxu0 0
    %2125 = vmatpush1.bf16.msra.mxu0 0
    %2126 = vmatprep.subr.bf16.mxu0 0
    %2127 = vmatpush1.bf16.msra.mxu0 0
    %2128 = vmatprep.subr.bf16.mxu0 0
    %2129 = vmatpush1.bf16.msra.mxu0 0
    %2130 = vmatprep.subr.bf16.mxu0 0
    %2131 = vmatpush1.bf16.msra.mxu0 0
    %2132 = vmatprep.subr.bf16.mxu0 0
    %2133 = vmatpush1.bf16.msra.mxu0 0
    %2134 = vmatprep.mubr.bf16.mxu0 0
    %2135 = vmatmul.mubr.bf16.gmra.mrb[0].mxu0 %v2100
    %v2136 = vpop.f32.mrb[0].mxu0
    %v2137 = vadd.f32 %v775, %v2136
    %v2138 = vpop.f32.mrb[0].mxu0
    %v2139 = vpop.f32.mrb[0].mxu0
    %v2140 = vpop.f32.mrb[0].mxu0
    %2141 = vdwg.mxu0
    %2142 = vmatprep.subr.bf16.mxu0 0
    %2143 = vmatpush1.bf16.msra.mxu0 %v847
    %2144 = vmatprep.subr.bf16.mxu0 0
    %2145 = vmatpush1.bf16.msra.mxu0 %v848
    %2146 = vmatprep.subr.bf16.mxu0 0
    %2147 = vmatpush1.bf16.msra.mxu0 0
    %2148 = vmatprep.subr.bf16.mxu0 0
    %2149 = vmatpush1.bf16.msra.mxu0 0
    %2150 = vmatprep.subr.bf16.mxu0 0
    %2151 = vmatpush1.bf16.msra.mxu0 0
    %2152 = vmatprep.subr.bf16.mxu0 0
    %2153 = vmatpush1.bf16.msra.mxu0 0
    %2154 = vmatprep.subr.bf16.mxu0 0
    %2155 = vmatpush1.bf16.msra.mxu0 0
    %2156 = vmatprep.subr.bf16.mxu0 0
    %2157 = vmatpush1.bf16.msra.mxu0 0
    %2158 = vmatprep.subr.bf16.mxu0 0
    %2159 = vmatpush1.bf16.msra.mxu0 0
    %2160 = vmatprep.subr.bf16.mxu0 0
    %2161 = vmatpush1.bf16.msra.mxu0 0
    %2162 = vmatprep.subr.bf16.mxu0 0
    %2163 = vmatpush1.bf16.msra.mxu0 0
    %2164 = vmatprep.subr.bf16.mxu0 0
    %2165 = vmatpush1.bf16.msra.mxu0 0
    %2166 = vmatprep.subr.bf16.mxu0 0
    %2167 = vmatpush1.bf16.msra.mxu0 0
    %2168 = vmatprep.subr.bf16.mxu0 0
    %2169 = vmatpush1.bf16.msra.mxu0 0
    %2170 = vmatprep.subr.bf16.mxu0 0
    %2171 = vmatpush1.bf16.msra.mxu0 0
    %2172 = vmatprep.subr.bf16.mxu0 0
    %2173 = vmatpush1.bf16.msra.mxu0 0
    %2174 = vmatprep.mubr.bf16.mxu0 0
    %2175 = vmatmul.mubr.bf16.gmra.mrb[0].mxu0 %v2100
    %v2176 = vpop.f32.mrb[0].mxu0
    %v2177 = vadd.f32 %v837, %v2176
    %v2178 = vpop.f32.mrb[0].mxu0
    %v2179 = vpop.f32.mrb[0].mxu0
    %v2180 = vpop.f32.mrb[0].mxu0
    %2181 = vdwg.mxu0
    %2182 = vmatprep.subr.bf16.mxu0 0
    %2183 = vmatpush1.bf16.msra.mxu0 %v905
    %2184 = vmatprep.subr.bf16.mxu0 0
    %2185 = vmatpush1.bf16.msra.mxu0 %v906
    %2186 = vmatprep.subr.bf16.mxu0 0
    %2187 = vmatpush1.bf16.msra.mxu0 0
    %2188 = vmatprep.subr.bf16.mxu0 0
    %2189 = vmatpush1.bf16.msra.mxu0 0
    %2190 = vmatprep.subr.bf16.mxu0 0
    %2191 = vmatpush1.bf16.msra.mxu0 0
    %2192 = vmatprep.subr.bf16.mxu0 0
    %2193 = vmatpush1.bf16.msra.mxu0 0
    %2194 = vmatprep.subr.bf16.mxu0 0
    %2195 = vmatpush1.bf16.msra.mxu0 0
    %2196 = vmatprep.subr.bf16.mxu0 0
    %2197 = vmatpush1.bf16.msra.mxu0 0
    %2198 = vmatprep.subr.bf16.mxu0 0
    %2199 = vmatpush1.bf16.msra.mxu0 0
    %2200 = vmatprep.subr.bf16.mxu0 0
    %2201 = vmatpush1.bf16.msra.mxu0 0
    %2202 = vmatprep.subr.bf16.mxu0 0
    %2203 = vmatpush1.bf16.msra.mxu0 0
    %2204 = vmatprep.subr.bf16.mxu0 0
    %2205 = vmatpush1.bf16.msra.mxu0 0
    %2206 = vmatprep.subr.bf16.mxu0 0
    %2207 = vmatpush1.bf16.msra.mxu0 0
    %2208 = vmatprep.subr.bf16.mxu0 0
    %2209 = vmatpush1.bf16.msra.mxu0 0
    %2210 = vmatprep.subr.bf16.mxu0 0
    %2211 = vmatpush1.bf16.msra.mxu0 0
    %2212 = vmatprep.subr.bf16.mxu0 0
    %2213 = vmatpush1.bf16.msra.mxu0 0
    %2214 = vmatprep.mubr.bf16.mxu0 0
    %2215 = vmatmul.mubr.bf16.gmra.mrb[0].mxu0 %v2100
    %v2216 = vpop.f32.mrb[0].mxu0
    %v2217 = vadd.f32 %v895, %v2216
    %v2218 = vpop.f32.mrb[0].mxu0
    %v2219 = vpop.f32.mrb[0].mxu0
    %v2220 = vpop.f32.mrb[0].mxu0
    %2221 = vdwg.mxu0
    %v2222 = vadd.f32 %v2093, %v2137
    %v2223 = vxor.u32 %v2222, 2147483648
    %v2224 = vmul.f32 %v2223, 1.442695
    %v2225 = vpow.pop %v2224
    %v2226 = vadd.f32 %v2225, 1.0
    %v2227 = vrcp.pop %v2226
    %v2228 = vmul.f32 1.0, %v2227
    %v2229 = vadd.f32 %v2095, %v2177
    %v2230 = vxor.u32 %v2229, 2147483648
    %v2231 = vmul.f32 %v2230, 1.442695
    %v2232 = vpow.pop %v2231
    %v2233 = vadd.f32 %v2232, 1.0
    %v2234 = vrcp.pop %v2233
    %v2235 = vmul.f32 1.0, %v2234
    %v2236 = vmul.f32 %v2228, %v2217
    %v2237 = vadd.f32 %v2097, %v2236
    %v2238 = vtanh.pop %v2237
    %v2239 = vsub.f32 1.0, %v2235
    %v2240 = vmul.f32 %v2239, %v2238
    %v2241 = vmul.f32 %v2235, %v1936
    %v2242 = vadd.f32 %v2240, %v2241
    %s2243 = scalar_lea.vmem [#allocation2], 108
    %v2244 = vld [vmem:[%s2243] sm:$0xf]
    %s2245 = scalar_lea.vmem [#allocation2], 140
    %v2246 = vld [vmem:[%s2245] sm:$0xf]
    %s2247 = scalar_lea.vmem [#allocation2], 172
    %v2248 = vld [vmem:[%s2247] sm:$0xf]
    %v2249 = vpack.c.bf16 %v2087, %v2087
    %v2251 = vsel %vm789, %v2249, 0
    %2253 = vmatprep.subr.bf16.mxu0 0
    %2254 = vmatpush1.bf16.msra.mxu0 %v990
    %2255 = vmatprep.subr.bf16.mxu0 0
    %2256 = vmatpush1.bf16.msra.mxu0 %v991
    %2257 = vmatprep.subr.bf16.mxu0 0
    %2258 = vmatpush1.bf16.msra.mxu0 0
    %2259 = vmatprep.subr.bf16.mxu0 0
    %2260 = vmatpush1.bf16.msra.mxu0 0
    %2261 = vmatprep.subr.bf16.mxu0 0
    %2262 = vmatpush1.bf16.msra.mxu0 0
    %2263 = vmatprep.subr.bf16.mxu0 0
    %2264 = vmatpush1.bf16.msra.mxu0 0
    %2265 = vmatprep.subr.bf16.mxu0 0
    %2266 = vmatpush1.bf16.msra.mxu0 0
    %2267 = vmatprep.subr.bf16.mxu0 0
    %2268 = vmatpush1.bf16.msra.mxu0 0
    %2269 = vmatprep.subr.bf16.mxu0 0
    %2270 = vmatpush1.bf16.msra.mxu0 0
    %2271 = vmatprep.subr.bf16.mxu0 0
    %2272 = vmatpush1.bf16.msra.mxu0 0
    %2273 = vmatprep.subr.bf16.mxu0 0
    %2274 = vmatpush1.bf16.msra.mxu0 0
    %2275 = vmatprep.subr.bf16.mxu0 0
    %2276 = vmatpush1.bf16.msra.mxu0 0
    %2277 = vmatprep.subr.bf16.mxu0 0
    %2278 = vmatpush1.bf16.msra.mxu0 0
    %2279 = vmatprep.subr.bf16.mxu0 0
    %2280 = vmatpush1.bf16.msra.mxu0 0
    %2281 = vmatprep.subr.bf16.mxu0 0
    %2282 = vmatpush1.bf16.msra.mxu0 0
    %2283 = vmatprep.subr.bf16.mxu0 0
    %2284 = vmatpush1.bf16.msra.mxu0 0
    %2285 = vmatprep.mubr.bf16.mxu0 0
    %2286 = vmatmul.mubr.bf16.gmra.mrb[0].mxu0 %v2251
    %v2287 = vpop.f32.mrb[0].mxu0
    %v2288 = vadd.f32 %v980, %v2287
    %v2289 = vpop.f32.mrb[0].mxu0
    %v2290 = vpop.f32.mrb[0].mxu0
    %v2291 = vpop.f32.mrb[0].mxu0
    %2292 = vdwg.mxu0
    %2293 = vmatprep.subr.bf16.mxu0 0
    %2294 = vmatpush1.bf16.msra.mxu0 %v1048
    %2295 = vmatprep.subr.bf16.mxu0 0
    %2296 = vmatpush1.bf16.msra.mxu0 %v1049
    %2297 = vmatprep.subr.bf16.mxu0 0
    %2298 = vmatpush1.bf16.msra.mxu0 0
    %2299 = vmatprep.subr.bf16.mxu0 0
    %2300 = vmatpush1.bf16.msra.mxu0 0
    %2301 = vmatprep.subr.bf16.mxu0 0
    %2302 = vmatpush1.bf16.msra.mxu0 0
    %2303 = vmatprep.subr.bf16.mxu0 0
    %2304 = vmatpush1.bf16.msra.mxu0 0
    %2305 = vmatprep.subr.bf16.mxu0 0
    %2306 = vmatpush1.bf16.msra.mxu0 0
    %2307 = vmatprep.subr.bf16.mxu0 0
    %2308 = vmatpush1.bf16.msra.mxu0 0
    %2309 = vmatprep.subr.bf16.mxu0 0
    %2310 = vmatpush1.bf16.msra.mxu0 0
    %2311 = vmatprep.subr.bf16.mxu0 0
    %2312 = vmatpush1.bf16.msra.mxu0 0
    %2313 = vmatprep.subr.bf16.mxu0 0
    %2314 = vmatpush1.bf16.msra.mxu0 0
    %2315 = vmatprep.subr.bf16.mxu0 0
    %2316 = vmatpush1.bf16.msra.mxu0 0
    %2317 = vmatprep.subr.bf16.mxu0 0
    %2318 = vmatpush1.bf16.msra.mxu0 0
    %2319 = vmatprep.subr.bf16.mxu0 0
    %2320 = vmatpush1.bf16.msra.mxu0 0
    %2321 = vmatprep.subr.bf16.mxu0 0
    %2322 = vmatpush1.bf16.msra.mxu0 0
    %2323 = vmatprep.subr.bf16.mxu0 0
    %2324 = vmatpush1.bf16.msra.mxu0 0
    %2325 = vmatprep.mubr.bf16.mxu0 0
    %2326 = vmatmul.mubr.bf16.gmra.mrb[0].mxu0 %v2251
    %v2327 = vpop.f32.mrb[0].mxu0
    %v2328 = vadd.f32 %v1038, %v2327
    %v2329 = vpop.f32.mrb[0].mxu0
    %v2330 = vpop.f32.mrb[0].mxu0
    %v2331 = vpop.f32.mrb[0].mxu0
    %2332 = vdwg.mxu0
    %2333 = vmatprep.subr.bf16.mxu0 0
    %2334 = vmatpush1.bf16.msra.mxu0 %v1106
    %2335 = vmatprep.subr.bf16.mxu0 0
    %2336 = vmatpush1.bf16.msra.mxu0 %v1107
    %2337 = vmatprep.subr.bf16.mxu0 0
    %2338 = vmatpush1.bf16.msra.mxu0 0
    %2339 = vmatprep.subr.bf16.mxu0 0
    %2340 = vmatpush1.bf16.msra.mxu0 0
    %2341 = vmatprep.subr.bf16.mxu0 0
    %2342 = vmatpush1.bf16.msra.mxu0 0
    %2343 = vmatprep.subr.bf16.mxu0 0
    %2344 = vmatpush1.bf16.msra.mxu0 0
    %2345 = vmatprep.subr.bf16.mxu0 0
    %2346 = vmatpush1.bf16.msra.mxu0 0
    %2347 = vmatprep.subr.bf16.mxu0 0
    %2348 = vmatpush1.bf16.msra.mxu0 0
    %2349 = vmatprep.subr.bf16.mxu0 0
    %2350 = vmatpush1.bf16.msra.mxu0 0
    %2351 = vmatprep.subr.bf16.mxu0 0
    %2352 = vmatpush1.bf16.msra.mxu0 0
    %2353 = vmatprep.subr.bf16.mxu0 0
    %2354 = vmatpush1.bf16.msra.mxu0 0
    %2355 = vmatprep.subr.bf16.mxu0 0
    %2356 = vmatpush1.bf16.msra.mxu0 0
    %2357 = vmatprep.subr.bf16.mxu0 0
    %2358 = vmatpush1.bf16.msra.mxu0 0
    %2359 = vmatprep.subr.bf16.mxu0 0
    %2360 = vmatpush1.bf16.msra.mxu0 0
    %2361 = vmatprep.subr.bf16.mxu0 0
    %2362 = vmatpush1.bf16.msra.mxu0 0
    %2363 = vmatprep.subr.bf16.mxu0 0
    %2364 = vmatpush1.bf16.msra.mxu0 0
    %2365 = vmatprep.mubr.bf16.mxu0 0
    %2366 = vmatmul.mubr.bf16.gmra.mrb[0].mxu0 %v2251
    %v2367 = vpop.f32.mrb[0].mxu0
    %v2368 = vadd.f32 %v1096, %v2367
    %v2369 = vpop.f32.mrb[0].mxu0
    %v2370 = vpop.f32.mrb[0].mxu0
    %v2371 = vpop.f32.mrb[0].mxu0
    %2372 = vdwg.mxu0
    %v2373 = vadd.f32 %v2244, %v2288
    %v2374 = vxor.u32 %v2373, 2147483648
    %v2375 = vmul.f32 %v2374, 1.442695
    %v2376 = vpow.pop %v2375
    %v2377 = vadd.f32 %v2376, 1.0
    %v2378 = vrcp.pop %v2377
    %v2379 = vmul.f32 1.0, %v2378
    %v2380 = vadd.f32 %v2246, %v2328
    %v2381 = vxor.u32 %v2380, 2147483648
    %v2382 = vmul.f32 %v2381, 1.442695
    %v2383 = vpow.pop %v2382
    %v2384 = vadd.f32 %v2383, 1.0
    %v2385 = vrcp.pop %v2384
    %v2386 = vmul.f32 1.0, %v2385
    %v2387 = vmul.f32 %v2379, %v2368
    %v2388 = vadd.f32 %v2248, %v2387
    %v2389 = vtanh.pop %v2388
    %v2390 = vsub.f32 1.0, %v2386
    %v2391 = vmul.f32 %v2390, %v2389
    %v2392 = vmul.f32 %v2386, %v2087
    %v2393 = vadd.f32 %v2391, %v2392
    %s2394 = scalar_lea.vmem [#allocation3], 16
    %2395 = vst.msk [vmem:[%s2394] sm:$0xf] %vm164, %v2242
    %s2396 = scalar_lea.vmem [#allocation4], 12
    %2397 = vst.msk [vmem:[%s2396] sm:$0xf] %vm164, %v2393
    %s2398 = scalar_lea.vmem [#allocation2], 20
    %v2399 = vld [vmem:[%s2398] sm:$0xf]
    %s2400 = scalar_lea.vmem [#allocation2], 52
    %v2401 = vld [vmem:[%s2400] sm:$0xf]
    %s2402 = scalar_lea.vmem [#allocation2], 84
    %v2403 = vld [vmem:[%s2402] sm:$0xf]
    %v2404 = vpack.c.bf16 %v2242, %v2242
    %v2406 = vsel %vm789, %v2404, 0
    %2408 = vmatprep.subr.bf16.mxu0 0
    %2409 = vmatpush1.bf16.msra.mxu0 %v785
    %2410 = vmatprep.subr.bf16.mxu0 0
    %2411 = vmatpush1.bf16.msra.mxu0 %v786
    %2412 = vmatprep.subr.bf16.mxu0 0
    %2413 = vmatpush1.bf16.msra.mxu0 0
    %2414 = vmatprep.subr.bf16.mxu0 0
    %2415 = vmatpush1.bf16.msra.mxu0 0
    %2416 = vmatprep.subr.bf16.mxu0 0
    %2417 = vmatpush1.bf16.msra.mxu0 0
    %2418 = vmatprep.subr.bf16.mxu0 0
    %2419 = vmatpush1.bf16.msra.mxu0 0
    %2420 = vmatprep.subr.bf16.mxu0 0
    %2421 = vmatpush1.bf16.msra.mxu0 0
    %2422 = vmatprep.subr.bf16.mxu0 0
    %2423 = vmatpush1.bf16.msra.mxu0 0
    %2424 = vmatprep.subr.bf16.mxu0 0
    %2425 = vmatpush1.bf16.msra.mxu0 0
    %2426 = vmatprep.subr.bf16.mxu0 0
    %2427 = vmatpush1.bf16.msra.mxu0 0
    %2428 = vmatprep.subr.bf16.mxu0 0
    %2429 = vmatpush1.bf16.msra.mxu0 0
    %2430 = vmatprep.subr.bf16.mxu0 0
    %2431 = vmatpush1.bf16.msra.mxu0 0
    %2432 = vmatprep.subr.bf16.mxu0 0
    %2433 = vmatpush1.bf16.msra.mxu0 0
    %2434 = vmatprep.subr.bf16.mxu0 0
    %2435 = vmatpush1.bf16.msra.mxu0 0
    %2436 = vmatprep.subr.bf16.mxu0 0
    %2437 = vmatpush1.bf16.msra.mxu0 0
    %2438 = vmatprep.subr.bf16.mxu0 0
    %2439 = vmatpush1.bf16.msra.mxu0 0
    %2440 = vmatprep.mubr.bf16.mxu0 0
    %2441 = vmatmul.mubr.bf16.gmra.mrb[0].mxu0 %v2406
    %v2442 = vpop.f32.mrb[0].mxu0
    %v2443 = vadd.f32 %v775, %v2442
    %v2444 = vpop.f32.mrb[0].mxu0
    %v2445 = vpop.f32.mrb[0].mxu0
    %v2446 = vpop.f32.mrb[0].mxu0
    %2447 = vdwg.mxu0
    %2448 = vmatprep.subr.bf16.mxu0 0
    %2449 = vmatpush1.bf16.msra.mxu0 %v847
    %2450 = vmatprep.subr.bf16.mxu0 0
    %2451 = vmatpush1.bf16.msra.mxu0 %v848
    %2452 = vmatprep.subr.bf16.mxu0 0
    %2453 = vmatpush1.bf16.msra.mxu0 0
    %2454 = vmatprep.subr.bf16.mxu0 0
    %2455 = vmatpush1.bf16.msra.mxu0 0
    %2456 = vmatprep.subr.bf16.mxu0 0
    %2457 = vmatpush1.bf16.msra.mxu0 0
    %2458 = vmatprep.subr.bf16.mxu0 0
    %2459 = vmatpush1.bf16.msra.mxu0 0
    %2460 = vmatprep.subr.bf16.mxu0 0
    %2461 = vmatpush1.bf16.msra.mxu0 0
    %2462 = vmatprep.subr.bf16.mxu0 0
    %2463 = vmatpush1.bf16.msra.mxu0 0
    %2464 = vmatprep.subr.bf16.mxu0 0
    %2465 = vmatpush1.bf16.msra.mxu0 0
    %2466 = vmatprep.subr.bf16.mxu0 0
    %2467 = vmatpush1.bf16.msra.mxu0 0
    %2468 = vmatprep.subr.bf16.mxu0 0
    %2469 = vmatpush1.bf16.msra.mxu0 0
    %2470 = vmatprep.subr.bf16.mxu0 0
    %2471 = vmatpush1.bf16.msra.mxu0 0
    %2472 = vmatprep.subr.bf16.mxu0 0
    %2473 = vmatpush1.bf16.msra.mxu0 0
    %2474 = vmatprep.subr.bf16.mxu0 0
    %2475 = vmatpush1.bf16.msra.mxu0 0
    %2476 = vmatprep.subr.bf16.mxu0 0
    %2477 = vmatpush1.bf16.msra.mxu0 0
    %2478 = vmatprep.subr.bf16.mxu0 0
    %2479 = vmatpush1.bf16.msra.mxu0 0
    %2480 = vmatprep.mubr.bf16.mxu0 0
    %2481 = vmatmul.mubr.bf16.gmra.mrb[0].mxu0 %v2406
    %v2482 = vpop.f32.mrb[0].mxu0
    %v2483 = vadd.f32 %v837, %v2482
    %v2484 = vpop.f32.mrb[0].mxu0
    %v2485 = vpop.f32.mrb[0].mxu0
    %v2486 = vpop.f32.mrb[0].mxu0
    %2487 = vdwg.mxu0
    %2488 = vmatprep.subr.bf16.mxu0 0
    %2489 = vmatpush1.bf16.msra.mxu0 %v905
    %2490 = vmatprep.subr.bf16.mxu0 0
    %2491 = vmatpush1.bf16.msra.mxu0 %v906
    %2492 = vmatprep.subr.bf16.mxu0 0
    %2493 = vmatpush1.bf16.msra.mxu0 0
    %2494 = vmatprep.subr.bf16.mxu0 0
    %2495 = vmatpush1.bf16.msra.mxu0 0
    %2496 = vmatprep.subr.bf16.mxu0 0
    %2497 = vmatpush1.bf16.msra.mxu0 0
    %2498 = vmatprep.subr.bf16.mxu0 0
    %2499 = vmatpush1.bf16.msra.mxu0 0
    %2500 = vmatprep.subr.bf16.mxu0 0
    %2501 = vmatpush1.bf16.msra.mxu0 0
    %2502 = vmatprep.subr.bf16.mxu0 0
    %2503 = vmatpush1.bf16.msra.mxu0 0
    %2504 = vmatprep.subr.bf16.mxu0 0
    %2505 = vmatpush1.bf16.msra.mxu0 0
    %2506 = vmatprep.subr.bf16.mxu0 0
    %2507 = vmatpush1.bf16.msra.mxu0 0
    %2508 = vmatprep.subr.bf16.mxu0 0
    %2509 = vmatpush1.bf16.msra.mxu0 0
    %2510 = vmatprep.subr.bf16.mxu0 0
    %2511 = vmatpush1.bf16.msra.mxu0 0
    %2512 = vmatprep.subr.bf16.mxu0 0
    %2513 = vmatpush1.bf16.msra.mxu0 0
    %2514 = vmatprep.subr.bf16.mxu0 0
    %2515 = vmatpush1.bf16.msra.mxu0 0
    %2516 = vmatprep.subr.bf16.mxu0 0
    %2517 = vmatpush1.bf16.msra.mxu0 0
    %2518 = vmatprep.subr.bf16.mxu0 0
    %2519 = vmatpush1.bf16.msra.mxu0 0
    %2520 = vmatprep.mubr.bf16.mxu0 0
    %2521 = vmatmul.mubr.bf16.gmra.mrb[0].mxu0 %v2406
    %v2522 = vpop.f32.mrb[0].mxu0
    %v2523 = vadd.f32 %v895, %v2522
    %v2524 = vpop.f32.mrb[0].mxu0
    %v2525 = vpop.f32.mrb[0].mxu0
    %v2526 = vpop.f32.mrb[0].mxu0
    %2527 = vdwg.mxu0
    %v2528 = vadd.f32 %v2399, %v2443
    %v2529 = vxor.u32 %v2528, 2147483648
    %v2530 = vmul.f32 %v2529, 1.442695
    %v2531 = vpow.pop %v2530
    %v2532 = vadd.f32 %v2531, 1.0
    %v2533 = vrcp.pop %v2532
    %v2534 = vmul.f32 1.0, %v2533
    %v2535 = vadd.f32 %v2401, %v2483
    %v2536 = vxor.u32 %v2535, 2147483648
    %v2537 = vmul.f32 %v2536, 1.442695
    %v2538 = vpow.pop %v2537
    %v2539 = vadd.f32 %v2538, 1.0
    %v2540 = vrcp.pop %v2539
    %v2541 = vmul.f32 1.0, %v2540
    %v2542 = vmul.f32 %v2534, %v2523
    %v2543 = vadd.f32 %v2403, %v2542
    %v2544 = vtanh.pop %v2543
    %v2545 = vsub.f32 1.0, %v2541
    %v2546 = vmul.f32 %v2545, %v2544
    %v2547 = vmul.f32 %v2541, %v2242
    %v2548 = vadd.f32 %v2546, %v2547
    %s2549 = scalar_lea.vmem [#allocation2], 104
    %v2550 = vld [vmem:[%s2549] sm:$0xf]
    %s2551 = scalar_lea.vmem [#allocation2], 136
    %v2552 = vld [vmem:[%s2551] sm:$0xf]
    %s2553 = scalar_lea.vmem [#allocation2], 168
    %v2554 = vld [vmem:[%s2553] sm:$0xf]
    %v2555 = vpack.c.bf16 %v2393, %v2393
    %v2557 = vsel %vm789, %v2555, 0
    %2559 = vmatprep.subr.bf16.mxu0 0
    %2560 = vmatpush1.bf16.msra.mxu0 %v990
    %2561 = vmatprep.subr.bf16.mxu0 0
    %2562 = vmatpush1.bf16.msra.mxu0 %v991
    %2563 = vmatprep.subr.bf16.mxu0 0
    %2564 = vmatpush1.bf16.msra.mxu0 0
    %2565 = vmatprep.subr.bf16.mxu0 0
    %2566 = vmatpush1.bf16.msra.mxu0 0
    %2567 = vmatprep.subr.bf16.mxu0 0
    %2568 = vmatpush1.bf16.msra.mxu0 0
    %2569 = vmatprep.subr.bf16.mxu0 0
    %2570 = vmatpush1.bf16.msra.mxu0 0
    %2571 = vmatprep.subr.bf16.mxu0 0
    %2572 = vmatpush1.bf16.msra.mxu0 0
    %2573 = vmatprep.subr.bf16.mxu0 0
    %2574 = vmatpush1.bf16.msra.mxu0 0
    %2575 = vmatprep.subr.bf16.mxu0 0
    %2576 = vmatpush1.bf16.msra.mxu0 0
    %2577 = vmatprep.subr.bf16.mxu0 0
    %2578 = vmatpush1.bf16.msra.mxu0 0
    %2579 = vmatprep.subr.bf16.mxu0 0
    %2580 = vmatpush1.bf16.msra.mxu0 0
    %2581 = vmatprep.subr.bf16.mxu0 0
    %2582 = vmatpush1.bf16.msra.mxu0 0
    %2583 = vmatprep.subr.bf16.mxu0 0
    %2584 = vmatpush1.bf16.msra.mxu0 0
    %2585 = vmatprep.subr.bf16.mxu0 0
    %2586 = vmatpush1.bf16.msra.mxu0 0
    %2587 = vmatprep.subr.bf16.mxu0 0
    %2588 = vmatpush1.bf16.msra.mxu0 0
    %2589 = vmatprep.subr.bf16.mxu0 0
    %2590 = vmatpush1.bf16.msra.mxu0 0
    %2591 = vmatprep.mubr.bf16.mxu0 0
    %2592 = vmatmul.mubr.bf16.gmra.mrb[0].mxu0 %v2557
    %v2593 = vpop.f32.mrb[0].mxu0
    %v2594 = vadd.f32 %v980, %v2593
    %v2595 = vpop.f32.mrb[0].mxu0
    %v2596 = vpop.f32.mrb[0].mxu0
    %v2597 = vpop.f32.mrb[0].mxu0
    %2598 = vdwg.mxu0
    %2599 = vmatprep.subr.bf16.mxu0 0
    %2600 = vmatpush1.bf16.msra.mxu0 %v1048
    %2601 = vmatprep.subr.bf16.mxu0 0
    %2602 = vmatpush1.bf16.msra.mxu0 %v1049
    %2603 = vmatprep.subr.bf16.mxu0 0
    %2604 = vmatpush1.bf16.msra.mxu0 0
    %2605 = vmatprep.subr.bf16.mxu0 0
    %2606 = vmatpush1.bf16.msra.mxu0 0
    %2607 = vmatprep.subr.bf16.mxu0 0
    %2608 = vmatpush1.bf16.msra.mxu0 0
    %2609 = vmatprep.subr.bf16.mxu0 0
    %2610 = vmatpush1.bf16.msra.mxu0 0
    %2611 = vmatprep.subr.bf16.mxu0 0
    %2612 = vmatpush1.bf16.msra.mxu0 0
    %2613 = vmatprep.subr.bf16.mxu0 0
    %2614 = vmatpush1.bf16.msra.mxu0 0
    %2615 = vmatprep.subr.bf16.mxu0 0
    %2616 = vmatpush1.bf16.msra.mxu0 0
    %2617 = vmatprep.subr.bf16.mxu0 0
    %2618 = vmatpush1.bf16.msra.mxu0 0
    %2619 = vmatprep.subr.bf16.mxu0 0
    %2620 = vmatpush1.bf16.msra.mxu0 0
    %2621 = vmatprep.subr.bf16.mxu0 0
    %2622 = vmatpush1.bf16.msra.mxu0 0
    %2623 = vmatprep.subr.bf16.mxu0 0
    %2624 = vmatpush1.bf16.msra.mxu0 0
    %2625 = vmatprep.subr.bf16.mxu0 0
    %2626 = vmatpush1.bf16.msra.mxu0 0
    %2627 = vmatprep.subr.bf16.mxu0 0
    %2628 = vmatpush1.bf16.msra.mxu0 0
    %2629 = vmatprep.subr.bf16.mxu0 0
    %2630 = vmatpush1.bf16.msra.mxu0 0
    %2631 = vmatprep.mubr.bf16.mxu0 0
    %2632 = vmatmul.mubr.bf16.gmra.mrb[0].mxu0 %v2557
    %v2633 = vpop.f32.mrb[0].mxu0
    %v2634 = vadd.f32 %v1038, %v2633
    %v2635 = vpop.f32.mrb[0].mxu0
    %v2636 = vpop.f32.mrb[0].mxu0
    %v2637 = vpop.f32.mrb[0].mxu0
    %2638 = vdwg.mxu0
    %2639 = vmatprep.subr.bf16.mxu0 0
    %2640 = vmatpush1.bf16.msra.mxu0 %v1106
    %2641 = vmatprep.subr.bf16.mxu0 0
    %2642 = vmatpush1.bf16.msra.mxu0 %v1107
    %2643 = vmatprep.subr.bf16.mxu0 0
    %2644 = vmatpush1.bf16.msra.mxu0 0
    %2645 = vmatprep.subr.bf16.mxu0 0
    %2646 = vmatpush1.bf16.msra.mxu0 0
    %2647 = vmatprep.subr.bf16.mxu0 0
    %2648 = vmatpush1.bf16.msra.mxu0 0
    %2649 = vmatprep.subr.bf16.mxu0 0
    %2650 = vmatpush1.bf16.msra.mxu0 0
    %2651 = vmatprep.subr.bf16.mxu0 0
    %2652 = vmatpush1.bf16.msra.mxu0 0
    %2653 = vmatprep.subr.bf16.mxu0 0
    %2654 = vmatpush1.bf16.msra.mxu0 0
    %2655 = vmatprep.subr.bf16.mxu0 0
    %2656 = vmatpush1.bf16.msra.mxu0 0
    %2657 = vmatprep.subr.bf16.mxu0 0
    %2658 = vmatpush1.bf16.msra.mxu0 0
    %2659 = vmatprep.subr.bf16.mxu0 0
    %2660 = vmatpush1.bf16.msra.mxu0 0
    %2661 = vmatprep.subr.bf16.mxu0 0
    %2662 = vmatpush1.bf16.msra.mxu0 0
    %2663 = vmatprep.subr.bf16.mxu0 0
    %2664 = vmatpush1.bf16.msra.mxu0 0
    %2665 = vmatprep.subr.bf16.mxu0 0
    %2666 = vmatpush1.bf16.msra.mxu0 0
    %2667 = vmatprep.subr.bf16.mxu0 0
    %2668 = vmatpush1.bf16.msra.mxu0 0
    %2669 = vmatprep.subr.bf16.mxu0 0
    %2670 = vmatpush1.bf16.msra.mxu0 0
    %2671 = vmatprep.mubr.bf16.mxu0 0
    %2672 = vmatmul.mubr.bf16.gmra.mrb[0].mxu0 %v2557
    %v2673 = vpop.f32.mrb[0].mxu0
    %v2674 = vadd.f32 %v1096, %v2673
    %v2675 = vpop.f32.mrb[0].mxu0
    %v2676 = vpop.f32.mrb[0].mxu0
    %v2677 = vpop.f32.mrb[0].mxu0
    %2678 = vdwg.mxu0
    %v2679 = vadd.f32 %v2550, %v2594
    %v2680 = vxor.u32 %v2679, 2147483648
    %v2681 = vmul.f32 %v2680, 1.442695
    %v2682 = vpow.pop %v2681
    %v2683 = vadd.f32 %v2682, 1.0
    %v2684 = vrcp.pop %v2683
    %v2685 = vmul.f32 1.0, %v2684
    %v2686 = vadd.f32 %v2552, %v2634
    %v2687 = vxor.u32 %v2686, 2147483648
    %v2688 = vmul.f32 %v2687, 1.442695
    %v2689 = vpow.pop %v2688
    %v2690 = vadd.f32 %v2689, 1.0
    %v2691 = vrcp.pop %v2690
    %v2692 = vmul.f32 1.0, %v2691
    %v2693 = vmul.f32 %v2685, %v2674
    %v2694 = vadd.f32 %v2554, %v2693
    %v2695 = vtanh.pop %v2694
    %v2696 = vsub.f32 1.0, %v2692
    %v2697 = vmul.f32 %v2696, %v2695
    %v2698 = vmul.f32 %v2692, %v2393
    %v2699 = vadd.f32 %v2697, %v2698
    %s2700 = scalar_lea.vmem [#allocation3], 20
    %2701 = vst.msk [vmem:[%s2700] sm:$0xf] %vm164, %v2548
    %s2702 = scalar_lea.vmem [#allocation4], 8
    %2703 = vst.msk [vmem:[%s2702] sm:$0xf] %vm164, %v2699
    %s2704 = scalar_lea.vmem [#allocation2], 24
    %v2705 = vld [vmem:[%s2704] sm:$0xf]
    %s2706 = scalar_lea.vmem [#allocation2], 56
    %v2707 = vld [vmem:[%s2706] sm:$0xf]
    %s2708 = scalar_lea.vmem [#allocation2], 88
    %v2709 = vld [vmem:[%s2708] sm:$0xf]
    %v2710 = vpack.c.bf16 %v2548, %v2548
    %v2712 = vsel %vm789, %v2710, 0
    %2714 = vmatprep.subr.bf16.mxu0 0
    %2715 = vmatpush1.bf16.msra.mxu0 %v785
    %2716 = vmatprep.subr.bf16.mxu0 0
    %2717 = vmatpush1.bf16.msra.mxu0 %v786
    %2718 = vmatprep.subr.bf16.mxu0 0
    %2719 = vmatpush1.bf16.msra.mxu0 0
    %2720 = vmatprep.subr.bf16.mxu0 0
    %2721 = vmatpush1.bf16.msra.mxu0 0
    %2722 = vmatprep.subr.bf16.mxu0 0
    %2723 = vmatpush1.bf16.msra.mxu0 0
    %2724 = vmatprep.subr.bf16.mxu0 0
    %2725 = vmatpush1.bf16.msra.mxu0 0
    %2726 = vmatprep.subr.bf16.mxu0 0
    %2727 = vmatpush1.bf16.msra.mxu0 0
    %2728 = vmatprep.subr.bf16.mxu0 0
    %2729 = vmatpush1.bf16.msra.mxu0 0
    %2730 = vmatprep.subr.bf16.mxu0 0
    %2731 = vmatpush1.bf16.msra.mxu0 0
    %2732 = vmatprep.subr.bf16.mxu0 0
    %2733 = vmatpush1.bf16.msra.mxu0 0
    %2734 = vmatprep.subr.bf16.mxu0 0
    %2735 = vmatpush1.bf16.msra.mxu0 0
    %2736 = vmatprep.subr.bf16.mxu0 0
    %2737 = vmatpush1.bf16.msra.mxu0 0
    %2738 = vmatprep.subr.bf16.mxu0 0
    %2739 = vmatpush1.bf16.msra.mxu0 0
    %2740 = vmatprep.subr.bf16.mxu0 0
    %2741 = vmatpush1.bf16.msra.mxu0 0
    %2742 = vmatprep.subr.bf16.mxu0 0
    %2743 = vmatpush1.bf16.msra.mxu0 0
    %2744 = vmatprep.subr.bf16.mxu0 0
    %2745 = vmatpush1.bf16.msra.mxu0 0
    %2746 = vmatprep.mubr.bf16.mxu0 0
    %2747 = vmatmul.mubr.bf16.gmra.mrb[0].mxu0 %v2712
    %v2748 = vpop.f32.mrb[0].mxu0
    %v2749 = vadd.f32 %v775, %v2748
    %v2750 = vpop.f32.mrb[0].mxu0
    %v2751 = vpop.f32.mrb[0].mxu0
    %v2752 = vpop.f32.mrb[0].mxu0
    %2753 = vdwg.mxu0
    %2754 = vmatprep.subr.bf16.mxu0 0
    %2755 = vmatpush1.bf16.msra.mxu0 %v847
    %2756 = vmatprep.subr.bf16.mxu0 0
    %2757 = vmatpush1.bf16.msra.mxu0 %v848
    %2758 = vmatprep.subr.bf16.mxu0 0
    %2759 = vmatpush1.bf16.msra.mxu0 0
    %2760 = vmatprep.subr.bf16.mxu0 0
    %2761 = vmatpush1.bf16.msra.mxu0 0
    %2762 = vmatprep.subr.bf16.mxu0 0
    %2763 = vmatpush1.bf16.msra.mxu0 0
    %2764 = vmatprep.subr.bf16.mxu0 0
    %2765 = vmatpush1.bf16.msra.mxu0 0
    %2766 = vmatprep.subr.bf16.mxu0 0
    %2767 = vmatpush1.bf16.msra.mxu0 0
    %2768 = vmatprep.subr.bf16.mxu0 0
    %2769 = vmatpush1.bf16.msra.mxu0 0
    %2770 = vmatprep.subr.bf16.mxu0 0
    %2771 = vmatpush1.bf16.msra.mxu0 0
    %2772 = vmatprep.subr.bf16.mxu0 0
    %2773 = vmatpush1.bf16.msra.mxu0 0
    %2774 = vmatprep.subr.bf16.mxu0 0
    %2775 = vmatpush1.bf16.msra.mxu0 0
    %2776 = vmatprep.subr.bf16.mxu0 0
    %2777 = vmatpush1.bf16.msra.mxu0 0
    %2778 = vmatprep.subr.bf16.mxu0 0
    %2779 = vmatpush1.bf16.msra.mxu0 0
    %2780 = vmatprep.subr.bf16.mxu0 0
    %2781 = vmatpush1.bf16.msra.mxu0 0
    %2782 = vmatprep.subr.bf16.mxu0 0
    %2783 = vmatpush1.bf16.msra.mxu0 0
    %2784 = vmatprep.subr.bf16.mxu0 0
    %2785 = vmatpush1.bf16.msra.mxu0 0
    %2786 = vmatprep.mubr.bf16.mxu0 0
    %2787 = vmatmul.mubr.bf16.gmra.mrb[0].mxu0 %v2712
    %v2788 = vpop.f32.mrb[0].mxu0
    %v2789 = vadd.f32 %v837, %v2788
    %v2790 = vpop.f32.mrb[0].mxu0
    %v2791 = vpop.f32.mrb[0].mxu0
    %v2792 = vpop.f32.mrb[0].mxu0
    %2793 = vdwg.mxu0
    %2794 = vmatprep.subr.bf16.mxu0 0
    %2795 = vmatpush1.bf16.msra.mxu0 %v905
    %2796 = vmatprep.subr.bf16.mxu0 0
    %2797 = vmatpush1.bf16.msra.mxu0 %v906
    %2798 = vmatprep.subr.bf16.mxu0 0
    %2799 = vmatpush1.bf16.msra.mxu0 0
    %2800 = vmatprep.subr.bf16.mxu0 0
    %2801 = vmatpush1.bf16.msra.mxu0 0
    %2802 = vmatprep.subr.bf16.mxu0 0
    %2803 = vmatpush1.bf16.msra.mxu0 0
    %2804 = vmatprep.subr.bf16.mxu0 0
    %2805 = vmatpush1.bf16.msra.mxu0 0
    %2806 = vmatprep.subr.bf16.mxu0 0
    %2807 = vmatpush1.bf16.msra.mxu0 0
    %2808 = vmatprep.subr.bf16.mxu0 0
    %2809 = vmatpush1.bf16.msra.mxu0 0
    %2810 = vmatprep.subr.bf16.mxu0 0
    %2811 = vmatpush1.bf16.msra.mxu0 0
    %2812 = vmatprep.subr.bf16.mxu0 0
    %2813 = vmatpush1.bf16.msra.mxu0 0
    %2814 = vmatprep.subr.bf16.mxu0 0
    %2815 = vmatpush1.bf16.msra.mxu0 0
    %2816 = vmatprep.subr.bf16.mxu0 0
    %2817 = vmatpush1.bf16.msra.mxu0 0
    %2818 = vmatprep.subr.bf16.mxu0 0
    %2819 = vmatpush1.bf16.msra.mxu0 0
    %2820 = vmatprep.subr.bf16.mxu0 0
    %2821 = vmatpush1.bf16.msra.mxu0 0
    %2822 = vmatprep.subr.bf16.mxu0 0
    %2823 = vmatpush1.bf16.msra.mxu0 0
    %2824 = vmatprep.subr.bf16.mxu0 0
    %2825 = vmatpush1.bf16.msra.mxu0 0
    %2826 = vmatprep.mubr.bf16.mxu0 0
    %2827 = vmatmul.mubr.bf16.gmra.mrb[0].mxu0 %v2712
    %v2828 = vpop.f32.mrb[0].mxu0
    %v2829 = vadd.f32 %v895, %v2828
    %v2830 = vpop.f32.mrb[0].mxu0
    %v2831 = vpop.f32.mrb[0].mxu0
    %v2832 = vpop.f32.mrb[0].mxu0
    %2833 = vdwg.mxu0
    %v2834 = vadd.f32 %v2705, %v2749
    %v2835 = vxor.u32 %v2834, 2147483648
    %v2836 = vmul.f32 %v2835, 1.442695
    %v2837 = vpow.pop %v2836
    %v2838 = vadd.f32 %v2837, 1.0
    %v2839 = vrcp.pop %v2838
    %v2840 = vmul.f32 1.0, %v2839
    %v2841 = vadd.f32 %v2707, %v2789
    %v2842 = vxor.u32 %v2841, 2147483648
    %v2843 = vmul.f32 %v2842, 1.442695
    %v2844 = vpow.pop %v2843
    %v2845 = vadd.f32 %v2844, 1.0
    %v2846 = vrcp.pop %v2845
    %v2847 = vmul.f32 1.0, %v2846
    %v2848 = vmul.f32 %v2840, %v2829
    %v2849 = vadd.f32 %v2709, %v2848
    %v2850 = vtanh.pop %v2849
    %v2851 = vsub.f32 1.0, %v2847
    %v2852 = vmul.f32 %v2851, %v2850
    %v2853 = vmul.f32 %v2847, %v2548
    %v2854 = vadd.f32 %v2852, %v2853
    %s2855 = scalar_lea.vmem [#allocation2], 100
    %v2856 = vld [vmem:[%s2855] sm:$0xf]
    %s2857 = scalar_lea.vmem [#allocation2], 132
    %v2858 = vld [vmem:[%s2857] sm:$0xf]
    %s2859 = scalar_lea.vmem [#allocation2], 164
    %v2860 = vld [vmem:[%s2859] sm:$0xf]
    %v2861 = vpack.c.bf16 %v2699, %v2699
    %v2863 = vsel %vm789, %v2861, 0
    %2865 = vmatprep.subr.bf16.mxu0 0
    %2866 = vmatpush1.bf16.msra.mxu0 %v990
    %2867 = vmatprep.subr.bf16.mxu0 0
    %2868 = vmatpush1.bf16.msra.mxu0 %v991
    %2869 = vmatprep.subr.bf16.mxu0 0
    %2870 = vmatpush1.bf16.msra.mxu0 0
    %2871 = vmatprep.subr.bf16.mxu0 0
    %2872 = vmatpush1.bf16.msra.mxu0 0
    %2873 = vmatprep.subr.bf16.mxu0 0
    %2874 = vmatpush1.bf16.msra.mxu0 0
    %2875 = vmatprep.subr.bf16.mxu0 0
    %2876 = vmatpush1.bf16.msra.mxu0 0
    %2877 = vmatprep.subr.bf16.mxu0 0
    %2878 = vmatpush1.bf16.msra.mxu0 0
    %2879 = vmatprep.subr.bf16.mxu0 0
    %2880 = vmatpush1.bf16.msra.mxu0 0
    %2881 = vmatprep.subr.bf16.mxu0 0
    %2882 = vmatpush1.bf16.msra.mxu0 0
    %2883 = vmatprep.subr.bf16.mxu0 0
    %2884 = vmatpush1.bf16.msra.mxu0 0
    %2885 = vmatprep.subr.bf16.mxu0 0
    %2886 = vmatpush1.bf16.msra.mxu0 0
    %2887 = vmatprep.subr.bf16.mxu0 0
    %2888 = vmatpush1.bf16.msra.mxu0 0
    %2889 = vmatprep.subr.bf16.mxu0 0
    %2890 = vmatpush1.bf16.msra.mxu0 0
    %2891 = vmatprep.subr.bf16.mxu0 0
    %2892 = vmatpush1.bf16.msra.mxu0 0
    %2893 = vmatprep.subr.bf16.mxu0 0
    %2894 = vmatpush1.bf16.msra.mxu0 0
    %2895 = vmatprep.subr.bf16.mxu0 0
    %2896 = vmatpush1.bf16.msra.mxu0 0
    %2897 = vmatprep.mubr.bf16.mxu0 0
    %2898 = vmatmul.mubr.bf16.gmra.mrb[0].mxu0 %v2863
    %v2899 = vpop.f32.mrb[0].mxu0
    %v2900 = vadd.f32 %v980, %v2899
    %v2901 = vpop.f32.mrb[0].mxu0
    %v2902 = vpop.f32.mrb[0].mxu0
    %v2903 = vpop.f32.mrb[0].mxu0
    %2904 = vdwg.mxu0
    %2905 = vmatprep.subr.bf16.mxu0 0
    %2906 = vmatpush1.bf16.msra.mxu0 %v1048
    %2907 = vmatprep.subr.bf16.mxu0 0
    %2908 = vmatpush1.bf16.msra.mxu0 %v1049
    %2909 = vmatprep.subr.bf16.mxu0 0
    %2910 = vmatpush1.bf16.msra.mxu0 0
    %2911 = vmatprep.subr.bf16.mxu0 0
    %2912 = vmatpush1.bf16.msra.mxu0 0
    %2913 = vmatprep.subr.bf16.mxu0 0
    %2914 = vmatpush1.bf16.msra.mxu0 0
    %2915 = vmatprep.subr.bf16.mxu0 0
    %2916 = vmatpush1.bf16.msra.mxu0 0
    %2917 = vmatprep.subr.bf16.mxu0 0
    %2918 = vmatpush1.bf16.msra.mxu0 0
    %2919 = vmatprep.subr.bf16.mxu0 0
    %2920 = vmatpush1.bf16.msra.mxu0 0
    %2921 = vmatprep.subr.bf16.mxu0 0
    %2922 = vmatpush1.bf16.msra.mxu0 0
    %2923 = vmatprep.subr.bf16.mxu0 0
    %2924 = vmatpush1.bf16.msra.mxu0 0
    %2925 = vmatprep.subr.bf16.mxu0 0
    %2926 = vmatpush1.bf16.msra.mxu0 0
    %2927 = vmatprep.subr.bf16.mxu0 0
    %2928 = vmatpush1.bf16.msra.mxu0 0
    %2929 = vmatprep.subr.bf16.mxu0 0
    %2930 = vmatpush1.bf16.msra.mxu0 0
    %2931 = vmatprep.subr.bf16.mxu0 0
    %2932 = vmatpush1.bf16.msra.mxu0 0
    %2933 = vmatprep.subr.bf16.mxu0 0
    %2934 = vmatpush1.bf16.msra.mxu0 0
    %2935 = vmatprep.subr.bf16.mxu0 0
    %2936 = vmatpush1.bf16.msra.mxu0 0
    %2937 = vmatprep.mubr.bf16.mxu0 0
    %2938 = vmatmul.mubr.bf16.gmra.mrb[0].mxu0 %v2863
    %v2939 = vpop.f32.mrb[0].mxu0
    %v2940 = vadd.f32 %v1038, %v2939
    %v2941 = vpop.f32.mrb[0].mxu0
    %v2942 = vpop.f32.mrb[0].mxu0
    %v2943 = vpop.f32.mrb[0].mxu0
    %2944 = vdwg.mxu0
    %2945 = vmatprep.subr.bf16.mxu0 0
    %2946 = vmatpush1.bf16.msra.mxu0 %v1106
    %2947 = vmatprep.subr.bf16.mxu0 0
    %2948 = vmatpush1.bf16.msra.mxu0 %v1107
    %2949 = vmatprep.subr.bf16.mxu0 0
    %2950 = vmatpush1.bf16.msra.mxu0 0
    %2951 = vmatprep.subr.bf16.mxu0 0
    %2952 = vmatpush1.bf16.msra.mxu0 0
    %2953 = vmatprep.subr.bf16.mxu0 0
    %2954 = vmatpush1.bf16.msra.mxu0 0
    %2955 = vmatprep.subr.bf16.mxu0 0
    %2956 = vmatpush1.bf16.msra.mxu0 0
    %2957 = vmatprep.subr.bf16.mxu0 0
    %2958 = vmatpush1.bf16.msra.mxu0 0
    %2959 = vmatprep.subr.bf16.mxu0 0
    %2960 = vmatpush1.bf16.msra.mxu0 0
    %2961 = vmatprep.subr.bf16.mxu0 0
    %2962 = vmatpush1.bf16.msra.mxu0 0
    %2963 = vmatprep.subr.bf16.mxu0 0
    %2964 = vmatpush1.bf16.msra.mxu0 0
    %2965 = vmatprep.subr.bf16.mxu0 0
    %2966 = vmatpush1.bf16.msra.mxu0 0
    %2967 = vmatprep.subr.bf16.mxu0 0
    %2968 = vmatpush1.bf16.msra.mxu0 0
    %2969 = vmatprep.subr.bf16.mxu0 0
    %2970 = vmatpush1.bf16.msra.mxu0 0
    %2971 = vmatprep.subr.bf16.mxu0 0
    %2972 = vmatpush1.bf16.msra.mxu0 0
    %2973 = vmatprep.subr.bf16.mxu0 0
    %2974 = vmatpush1.bf16.msra.mxu0 0
    %2975 = vmatprep.subr.bf16.mxu0 0
    %2976 = vmatpush1.bf16.msra.mxu0 0
    %2977 = vmatprep.mubr.bf16.mxu0 0
    %2978 = vmatmul.mubr.bf16.gmra.mrb[0].mxu0 %v2863
    %v2979 = vpop.f32.mrb[0].mxu0
    %v2980 = vadd.f32 %v1096, %v2979
    %v2981 = vpop.f32.mrb[0].mxu0
    %v2982 = vpop.f32.mrb[0].mxu0
    %v2983 = vpop.f32.mrb[0].mxu0
    %2984 = vdwg.mxu0
    %v2985 = vadd.f32 %v2856, %v2900
    %v2986 = vxor.u32 %v2985, 2147483648
    %v2987 = vmul.f32 %v2986, 1.442695
    %v2988 = vpow.pop %v2987
    %v2989 = vadd.f32 %v2988, 1.0
    %v2990 = vrcp.pop %v2989
    %v2991 = vmul.f32 1.0, %v2990
    %v2992 = vadd.f32 %v2858, %v2940
    %v2993 = vxor.u32 %v2992, 2147483648
    %v2994 = vmul.f32 %v2993, 1.442695
    %v2995 = vpow.pop %v2994
    %v2996 = vadd.f32 %v2995, 1.0
    %v2997 = vrcp.pop %v2996
    %v2998 = vmul.f32 1.0, %v2997
    %v2999 = vmul.f32 %v2991, %v2980
    %v3000 = vadd.f32 %v2860, %v2999
    %v3001 = vtanh.pop %v3000
    %v3002 = vsub.f32 1.0, %v2998
    %v3003 = vmul.f32 %v3002, %v3001
    %v3004 = vmul.f32 %v2998, %v2699
    %v3005 = vadd.f32 %v3003, %v3004
    %s3006 = scalar_lea.vmem [#allocation3], 24
    %3007 = vst.msk [vmem:[%s3006] sm:$0xf] %vm164, %v2854
    %s3008 = scalar_lea.vmem [#allocation4], 4
    %3009 = vst.msk [vmem:[%s3008] sm:$0xf] %vm164, %v3005
    %s3010 = scalar_lea.vmem [#allocation2], 28
    %v3011 = vld [vmem:[%s3010] sm:$0xf]
    %s3012 = scalar_lea.vmem [#allocation2], 60
    %v3013 = vld [vmem:[%s3012] sm:$0xf]
    %s3014 = scalar_lea.vmem [#allocation2], 92
    %v3015 = vld [vmem:[%s3014] sm:$0xf]
    %v3016 = vpack.c.bf16 %v2854, %v2854
    %v3018 = vsel %vm789, %v3016, 0
    %3020 = vmatprep.subr.bf16.mxu0 0
    %3021 = vmatpush1.bf16.msra.mxu0 %v785
    %3022 = vmatprep.subr.bf16.mxu0 0
    %3023 = vmatpush1.bf16.msra.mxu0 %v786
    %3024 = vmatprep.subr.bf16.mxu0 0
    %3025 = vmatpush1.bf16.msra.mxu0 0
    %3026 = vmatprep.subr.bf16.mxu0 0
    %3027 = vmatpush1.bf16.msra.mxu0 0
    %3028 = vmatprep.subr.bf16.mxu0 0
    %3029 = vmatpush1.bf16.msra.mxu0 0
    %3030 = vmatprep.subr.bf16.mxu0 0
    %3031 = vmatpush1.bf16.msra.mxu0 0
    %3032 = vmatprep.subr.bf16.mxu0 0
    %3033 = vmatpush1.bf16.msra.mxu0 0
    %3034 = vmatprep.subr.bf16.mxu0 0
    %3035 = vmatpush1.bf16.msra.mxu0 0
    %3036 = vmatprep.subr.bf16.mxu0 0
    %3037 = vmatpush1.bf16.msra.mxu0 0
    %3038 = vmatprep.subr.bf16.mxu0 0
    %3039 = vmatpush1.bf16.msra.mxu0 0
    %3040 = vmatprep.subr.bf16.mxu0 0
    %3041 = vmatpush1.bf16.msra.mxu0 0
    %3042 = vmatprep.subr.bf16.mxu0 0
    %3043 = vmatpush1.bf16.msra.mxu0 0
    %3044 = vmatprep.subr.bf16.mxu0 0
    %3045 = vmatpush1.bf16.msra.mxu0 0
    %3046 = vmatprep.subr.bf16.mxu0 0
    %3047 = vmatpush1.bf16.msra.mxu0 0
    %3048 = vmatprep.subr.bf16.mxu0 0
    %3049 = vmatpush1.bf16.msra.mxu0 0
    %3050 = vmatprep.subr.bf16.mxu0 0
    %3051 = vmatpush1.bf16.msra.mxu0 0
    %3052 = vmatprep.mubr.bf16.mxu0 0
    %3053 = vmatmul.mubr.bf16.gmra.mrb[0].mxu0 %v3018
    %v3054 = vpop.f32.mrb[0].mxu0
    %v3055 = vadd.f32 %v775, %v3054
    %v3056 = vpop.f32.mrb[0].mxu0
    %v3057 = vpop.f32.mrb[0].mxu0
    %v3058 = vpop.f32.mrb[0].mxu0
    %3059 = vdwg.mxu0
    %3060 = vmatprep.subr.bf16.mxu0 0
    %3061 = vmatpush1.bf16.msra.mxu0 %v847
    %3062 = vmatprep.subr.bf16.mxu0 0
    %3063 = vmatpush1.bf16.msra.mxu0 %v848
    %3064 = vmatprep.subr.bf16.mxu0 0
    %3065 = vmatpush1.bf16.msra.mxu0 0
    %3066 = vmatprep.subr.bf16.mxu0 0
    %3067 = vmatpush1.bf16.msra.mxu0 0
    %3068 = vmatprep.subr.bf16.mxu0 0
    %3069 = vmatpush1.bf16.msra.mxu0 0
    %3070 = vmatprep.subr.bf16.mxu0 0
    %3071 = vmatpush1.bf16.msra.mxu0 0
    %3072 = vmatprep.subr.bf16.mxu0 0
    %3073 = vmatpush1.bf16.msra.mxu0 0
    %3074 = vmatprep.subr.bf16.mxu0 0
    %3075 = vmatpush1.bf16.msra.mxu0 0
    %3076 = vmatprep.subr.bf16.mxu0 0
    %3077 = vmatpush1.bf16.msra.mxu0 0
    %3078 = vmatprep.subr.bf16.mxu0 0
    %3079 = vmatpush1.bf16.msra.mxu0 0
    %3080 = vmatprep.subr.bf16.mxu0 0
    %3081 = vmatpush1.bf16.msra.mxu0 0
    %3082 = vmatprep.subr.bf16.mxu0 0
    %3083 = vmatpush1.bf16.msra.mxu0 0
    %3084 = vmatprep.subr.bf16.mxu0 0
    %3085 = vmatpush1.bf16.msra.mxu0 0
    %3086 = vmatprep.subr.bf16.mxu0 0
    %3087 = vmatpush1.bf16.msra.mxu0 0
    %3088 = vmatprep.subr.bf16.mxu0 0
    %3089 = vmatpush1.bf16.msra.mxu0 0
    %3090 = vmatprep.subr.bf16.mxu0 0
    %3091 = vmatpush1.bf16.msra.mxu0 0
    %3092 = vmatprep.mubr.bf16.mxu0 0
    %3093 = vmatmul.mubr.bf16.gmra.mrb[0].mxu0 %v3018
    %v3094 = vpop.f32.mrb[0].mxu0
    %v3095 = vadd.f32 %v837, %v3094
    %v3096 = vpop.f32.mrb[0].mxu0
    %v3097 = vpop.f32.mrb[0].mxu0
    %v3098 = vpop.f32.mrb[0].mxu0
    %3099 = vdwg.mxu0
    %3100 = vmatprep.subr.bf16.mxu0 0
    %3101 = vmatpush1.bf16.msra.mxu0 %v905
    %3102 = vmatprep.subr.bf16.mxu0 0
    %3103 = vmatpush1.bf16.msra.mxu0 %v906
    %3104 = vmatprep.subr.bf16.mxu0 0
    %3105 = vmatpush1.bf16.msra.mxu0 0
    %3106 = vmatprep.subr.bf16.mxu0 0
    %3107 = vmatpush1.bf16.msra.mxu0 0
    %3108 = vmatprep.subr.bf16.mxu0 0
    %3109 = vmatpush1.bf16.msra.mxu0 0
    %3110 = vmatprep.subr.bf16.mxu0 0
    %3111 = vmatpush1.bf16.msra.mxu0 0
    %3112 = vmatprep.subr.bf16.mxu0 0
    %3113 = vmatpush1.bf16.msra.mxu0 0
    %3114 = vmatprep.subr.bf16.mxu0 0
    %3115 = vmatpush1.bf16.msra.mxu0 0
    %3116 = vmatprep.subr.bf16.mxu0 0
    %3117 = vmatpush1.bf16.msra.mxu0 0
    %3118 = vmatprep.subr.bf16.mxu0 0
    %3119 = vmatpush1.bf16.msra.mxu0 0
    %3120 = vmatprep.subr.bf16.mxu0 0
    %3121 = vmatpush1.bf16.msra.mxu0 0
    %3122 = vmatprep.subr.bf16.mxu0 0
    %3123 = vmatpush1.bf16.msra.mxu0 0
    %3124 = vmatprep.subr.bf16.mxu0 0
    %3125 = vmatpush1.bf16.msra.mxu0 0
    %3126 = vmatprep.subr.bf16.mxu0 0
    %3127 = vmatpush1.bf16.msra.mxu0 0
    %3128 = vmatprep.subr.bf16.mxu0 0
    %3129 = vmatpush1.bf16.msra.mxu0 0
    %3130 = vmatprep.subr.bf16.mxu0 0
    %3131 = vmatpush1.bf16.msra.mxu0 0
    %3132 = vmatprep.mubr.bf16.mxu0 0
    %3133 = vmatmul.mubr.bf16.gmra.mrb[0].mxu0 %v3018
    %v3134 = vpop.f32.mrb[0].mxu0
    %v3135 = vadd.f32 %v895, %v3134
    %v3136 = vpop.f32.mrb[0].mxu0
    %v3137 = vpop.f32.mrb[0].mxu0
    %v3138 = vpop.f32.mrb[0].mxu0
    %3139 = vdwg.mxu0
    %v3140 = vadd.f32 %v3011, %v3055
    %v3141 = vxor.u32 %v3140, 2147483648
    %v3142 = vmul.f32 %v3141, 1.442695
    %v3143 = vpow.pop %v3142
    %v3144 = vadd.f32 %v3143, 1.0
    %v3145 = vrcp.pop %v3144
    %v3146 = vmul.f32 1.0, %v3145
    %v3147 = vadd.f32 %v3013, %v3095
    %v3148 = vxor.u32 %v3147, 2147483648
    %v3149 = vmul.f32 %v3148, 1.442695
    %v3150 = vpow.pop %v3149
    %v3151 = vadd.f32 %v3150, 1.0
    %v3152 = vrcp.pop %v3151
    %v3153 = vmul.f32 1.0, %v3152
    %v3154 = vmul.f32 %v3146, %v3135
    %v3155 = vadd.f32 %v3015, %v3154
    %v3156 = vtanh.pop %v3155
    %v3157 = vsub.f32 1.0, %v3153
    %v3158 = vmul.f32 %v3157, %v3156
    %v3159 = vmul.f32 %v3153, %v2854
    %v3160 = vadd.f32 %v3158, %v3159
    %v3161 = vld [vmem:[%s497] sm:$0xf]
    %v3162 = vld [vmem:[%s608] sm:$0xf]
    %v3163 = vld [vmem:[%s719] sm:$0xf]
    %v3164 = vpack.c.bf16 %v3005, %v3005
    %v3166 = vsel %vm789, %v3164, 0
    %3168 = vmatprep.subr.bf16.mxu0 0
    %3169 = vmatpush1.bf16.msra.mxu0 %v990
    %3170 = vmatprep.subr.bf16.mxu0 0
    %3171 = vmatpush1.bf16.msra.mxu0 %v991
    %3172 = vmatprep.subr.bf16.mxu0 0
    %3173 = vmatpush1.bf16.msra.mxu0 0
    %3174 = vmatprep.subr.bf16.mxu0 0
    %3175 = vmatpush1.bf16.msra.mxu0 0
    %3176 = vmatprep.subr.bf16.mxu0 0
    %3177 = vmatpush1.bf16.msra.mxu0 0
    %3178 = vmatprep.subr.bf16.mxu0 0
    %3179 = vmatpush1.bf16.msra.mxu0 0
    %3180 = vmatprep.subr.bf16.mxu0 0
    %3181 = vmatpush1.bf16.msra.mxu0 0
    %3182 = vmatprep.subr.bf16.mxu0 0
    %3183 = vmatpush1.bf16.msra.mxu0 0
    %3184 = vmatprep.subr.bf16.mxu0 0
    %3185 = vmatpush1.bf16.msra.mxu0 0
    %3186 = vmatprep.subr.bf16.mxu0 0
    %3187 = vmatpush1.bf16.msra.mxu0 0
    %3188 = vmatprep.subr.bf16.mxu0 0
    %3189 = vmatpush1.bf16.msra.mxu0 0
    %3190 = vmatprep.subr.bf16.mxu0 0
    %3191 = vmatpush1.bf16.msra.mxu0 0
    %3192 = vmatprep.subr.bf16.mxu0 0
    %3193 = vmatpush1.bf16.msra.mxu0 0
    %3194 = vmatprep.subr.bf16.mxu0 0
    %3195 = vmatpush1.bf16.msra.mxu0 0
    %3196 = vmatprep.subr.bf16.mxu0 0
    %3197 = vmatpush1.bf16.msra.mxu0 0
    %3198 = vmatprep.subr.bf16.mxu0 0
    %3199 = vmatpush1.bf16.msra.mxu0 0
    %3200 = vmatprep.mubr.bf16.mxu0 0
    %3201 = vmatmul.mubr.bf16.gmra.mrb[0].mxu0 %v3166
    %v3202 = vpop.f32.mrb[0].mxu0
    %v3203 = vadd.f32 %v980, %v3202
    %v3204 = vpop.f32.mrb[0].mxu0
    %v3205 = vpop.f32.mrb[0].mxu0
    %v3206 = vpop.f32.mrb[0].mxu0
    %3207 = vdwg.mxu0
    %3208 = vmatprep.subr.bf16.mxu0 0
    %3209 = vmatpush1.bf16.msra.mxu0 %v1048
    %3210 = vmatprep.subr.bf16.mxu0 0
    %3211 = vmatpush1.bf16.msra.mxu0 %v1049
    %3212 = vmatprep.subr.bf16.mxu0 0
    %3213 = vmatpush1.bf16.msra.mxu0 0
    %3214 = vmatprep.subr.bf16.mxu0 0
    %3215 = vmatpush1.bf16.msra.mxu0 0
    %3216 = vmatprep.subr.bf16.mxu0 0
    %3217 = vmatpush1.bf16.msra.mxu0 0
    %3218 = vmatprep.subr.bf16.mxu0 0
    %3219 = vmatpush1.bf16.msra.mxu0 0
    %3220 = vmatprep.subr.bf16.mxu0 0
    %3221 = vmatpush1.bf16.msra.mxu0 0
    %3222 = vmatprep.subr.bf16.mxu0 0
    %3223 = vmatpush1.bf16.msra.mxu0 0
    %3224 = vmatprep.subr.bf16.mxu0 0
    %3225 = vmatpush1.bf16.msra.mxu0 0
    %3226 = vmatprep.subr.bf16.mxu0 0
    %3227 = vmatpush1.bf16.msra.mxu0 0
    %3228 = vmatprep.subr.bf16.mxu0 0
    %3229 = vmatpush1.bf16.msra.mxu0 0
    %3230 = vmatprep.subr.bf16.mxu0 0
    %3231 = vmatpush1.bf16.msra.mxu0 0
    %3232 = vmatprep.subr.bf16.mxu0 0
    %3233 = vmatpush1.bf16.msra.mxu0 0
    %3234 = vmatprep.subr.bf16.mxu0 0
    %3235 = vmatpush1.bf16.msra.mxu0 0
    %3236 = vmatprep.subr.bf16.mxu0 0
    %3237 = vmatpush1.bf16.msra.mxu0 0
    %3238 = vmatprep.subr.bf16.mxu0 0
    %3239 = vmatpush1.bf16.msra.mxu0 0
    %3240 = vmatprep.mubr.bf16.mxu0 0
    %3241 = vmatmul.mubr.bf16.gmra.mrb[0].mxu0 %v3166
    %v3242 = vpop.f32.mrb[0].mxu0
    %v3243 = vadd.f32 %v1038, %v3242
    %v3244 = vpop.f32.mrb[0].mxu0
    %v3245 = vpop.f32.mrb[0].mxu0
    %v3246 = vpop.f32.mrb[0].mxu0
    %3247 = vdwg.mxu0
    %3248 = vmatprep.subr.bf16.mxu0 0
    %3249 = vmatpush1.bf16.msra.mxu0 %v1106
    %3250 = vmatprep.subr.bf16.mxu0 0
    %3251 = vmatpush1.bf16.msra.mxu0 %v1107
    %3252 = vmatprep.subr.bf16.mxu0 0
    %3253 = vmatpush1.bf16.msra.mxu0 0
    %3254 = vmatprep.subr.bf16.mxu0 0
    %3255 = vmatpush1.bf16.msra.mxu0 0
    %3256 = vmatprep.subr.bf16.mxu0 0
    %3257 = vmatpush1.bf16.msra.mxu0 0
    %3258 = vmatprep.subr.bf16.mxu0 0
    %3259 = vmatpush1.bf16.msra.mxu0 0
    %3260 = vmatprep.subr.bf16.mxu0 0
    %3261 = vmatpush1.bf16.msra.mxu0 0
    %3262 = vmatprep.subr.bf16.mxu0 0
    %3263 = vmatpush1.bf16.msra.mxu0 0
    %3264 = vmatprep.subr.bf16.mxu0 0
    %3265 = vmatpush1.bf16.msra.mxu0 0
    %3266 = vmatprep.subr.bf16.mxu0 0
    %3267 = vmatpush1.bf16.msra.mxu0 0
    %3268 = vmatprep.subr.bf16.mxu0 0
    %3269 = vmatpush1.bf16.msra.mxu0 0
    %3270 = vmatprep.subr.bf16.mxu0 0
    %3271 = vmatpush1.bf16.msra.mxu0 0
    %3272 = vmatprep.subr.bf16.mxu0 0
    %3273 = vmatpush1.bf16.msra.mxu0 0
    %3274 = vmatprep.subr.bf16.mxu0 0
    %3275 = vmatpush1.bf16.msra.mxu0 0
    %3276 = vmatprep.subr.bf16.mxu0 0
    %3277 = vmatpush1.bf16.msra.mxu0 0
    %3278 = vmatprep.subr.bf16.mxu0 0
    %3279 = vmatpush1.bf16.msra.mxu0 0
    %3280 = vmatprep.mubr.bf16.mxu0 0
    %3281 = vmatmul.mubr.bf16.gmra.mrb[0].mxu0 %v3166
    %v3282 = vpop.f32.mrb[0].mxu0
    %v3283 = vadd.f32 %v1096, %v3282
    %v3284 = vpop.f32.mrb[0].mxu0
    %v3285 = vpop.f32.mrb[0].mxu0
    %v3286 = vpop.f32.mrb[0].mxu0
    %3287 = vdwg.mxu0
    %v3288 = vadd.f32 %v3161, %v3203
    %v3289 = vxor.u32 %v3288, 2147483648
    %v3290 = vmul.f32 %v3289, 1.442695
    %v3291 = vpow.pop %v3290
    %v3292 = vadd.f32 %v3291, 1.0
    %v3293 = vrcp.pop %v3292
    %v3294 = vmul.f32 1.0, %v3293
    %v3295 = vadd.f32 %v3162, %v3243
    %v3296 = vxor.u32 %v3295, 2147483648
    %v3297 = vmul.f32 %v3296, 1.442695
    %v3298 = vpow.pop %v3297
    %v3299 = vadd.f32 %v3298, 1.0
    %v3300 = vrcp.pop %v3299
    %v3301 = vmul.f32 1.0, %v3300
    %v3302 = vmul.f32 %v3294, %v3283
    %v3303 = vadd.f32 %v3163, %v3302
    %v3304 = vtanh.pop %v3303
    %v3305 = vsub.f32 1.0, %v3301
    %v3306 = vmul.f32 %v3305, %v3304
    %v3307 = vmul.f32 %v3301, %v3005
    %v3308 = vadd.f32 %v3306, %v3307
    %s3309 = scalar_lea.vmem [#allocation3], 28
    %3310 = vst.msk [vmem:[%s3309] sm:$0xf] %vm164, %v3160
    %3311 = vst.msk [vmem:[#allocation4] sm:$0xf] %vm164, %v3308
    %v3312 = vld [vmem:[#allocation3] sm:$0xf]
    %v3313 = vld [vmem:[#allocation3 + $0x4] sm:$0xf]
    %v3314 = vld [vmem:[#allocation3 + $0x8] sm:$0xf]
    %v3315 = vld [vmem:[#allocation3 + $0xc] sm:$0xf]
    %v3316 = vld [vmem:[#allocation3 + $0x10] sm:$0xf]
    %v3317 = vld [vmem:[#allocation3 + $0x14] sm:$0xf]
    %v3318 = vld [vmem:[#allocation3 + $0x18] sm:$0xf]
    %v3319 = vld [vmem:[#allocation3 + $0x1c] sm:$0xf]
    %v3320 = vld [vmem:[#allocation4] sm:$0xf]
    %v3321 = vld [vmem:[#allocation4 + $0x4] sm:$0xf]
    %v3322 = vld [vmem:[#allocation4 + $0x8] sm:$0xf]
    %v3323 = vld [vmem:[#allocation4 + $0xc] sm:$0xf]
    %v3324 = vld [vmem:[#allocation4 + $0x10] sm:$0xf]
    %v3325 = vld [vmem:[#allocation4 + $0x14] sm:$0xf]
    %v3326 = vld [vmem:[#allocation4 + $0x18] sm:$0xf]
    %v3327 = vld [vmem:[#allocation4 + $0x1c] sm:$0xf]
    %3336 = vrot.lane.b32.xlu0 %v3320, 32
    %v3337 = vpop.permute.xlu0 %3336
    %3338 = vrot.lane.b32.xlu0 %v3321, 32
    %v3339 = vpop.permute.xlu0 %3338
    %3340 = vrot.lane.b32.xlu0 %v3322, 32
    %v3341 = vpop.permute.xlu0 %3340
    %3342 = vrot.lane.b32.xlu0 %v3323, 32
    %v3343 = vpop.permute.xlu0 %3342
    %3344 = vrot.lane.b32.xlu0 %v3324, 32
    %v3345 = vpop.permute.xlu0 %3344
    %3346 = vrot.lane.b32.xlu0 %v3325, 32
    %v3347 = vpop.permute.xlu0 %3346
    %3348 = vrot.lane.b32.xlu0 %v3326, 32
    %v3349 = vpop.permute.xlu0 %3348
    %3350 = vrot.lane.b32.xlu0 %v3327, 32
    %v3351 = vpop.permute.xlu0 %3350
    %v3360 = vsel %vm789, %v3312, %v3337
    %v3361 = vsel %vm789, %v3313, %v3339
    %v3362 = vsel %vm789, %v3314, %v3341
    %v3363 = vsel %vm789, %v3315, %v3343
    %v3364 = vsel %vm789, %v3316, %v3345
    %v3365 = vsel %vm789, %v3317, %v3347
    %v3366 = vsel %vm789, %v3318, %v3349
    %v3367 = vsel %vm789, %v3319, %v3351
    %vm3368 = vcmask 519168
    %3369 = vst.msk [vmem:[#allocation5] sm:$0xf] %vm3368, %v3360
    %3370 = vst.msk [vmem:[#allocation5 + $0x4] sm:$0xf] %vm3368, %v3361
    %3371 = vst.msk [vmem:[#allocation5 + $0x8] sm:$0xf] %vm3368, %v3362
    %3372 = vst.msk [vmem:[#allocation5 + $0xc] sm:$0xf] %vm3368, %v3363
    %3373 = vst.msk [vmem:[#allocation5 + $0x10] sm:$0xf] %vm3368, %v3364
    %3374 = vst.msk [vmem:[#allocation5 + $0x14] sm:$0xf] %vm3368, %v3365
    %3375 = vst.msk [vmem:[#allocation5 + $0x18] sm:$0xf] %vm3368, %v3366
    %3376 = vst.msk [vmem:[#allocation5 + $0x1c] sm:$0xf] %vm3368, %v3367
    %v3377 = vpack.c.bf16 %v3160, %v3160
    %v3378 = vld [vmem:[%s5] sm:$0xf]
    %v3379 = vld [vmem:[%s5 + $0x4] sm:$0xf]
    %v3380 = vld [vmem:[%s5 + $0x8] sm:$0xf]
    %v3381 = vld [vmem:[%s5 + $0xc] sm:$0xf]
    %v3382 = vpack.c.bf16 %v3308, %v3308
    %s3383 = scalar_lea.vmem %s5, 16
    %v3384 = vld [vmem:[%s3383] sm:$0xf]
    %v3385 = vld [vmem:[%s3383 + $0x4] sm:$0xf]
    %v3386 = vld [vmem:[%s3383 + $0x8] sm:$0xf]
    %v3387 = vld [vmem:[%s3383 + $0xc] sm:$0xf]
    %v3392 = vunpack.c.l.b16 %v3384
    %v3393 = vunpack.c.l.b16 %v3385
    %v3394 = vunpack.c.l.b16 %v3386
    %v3395 = vunpack.c.l.b16 %v3387
    %v3396 = vpack.c.b16 %v3393, %v3392
    %v3397 = vpack.c.b16 %v3395, %v3394
    %v3401 = vsel %vm789, %v3382, 0
    %3403 = vmatprep.subr.bf16.mxu0 0
    %3404 = vmatpush1.bf16.msra.mxu0 %v3396
    %3405 = vmatprep.subr.bf16.mxu0 0
    %3406 = vmatpush1.bf16.msra.mxu0 %v3397
    %3407 = vmatprep.subr.bf16.mxu0 0
    %3408 = vmatpush1.bf16.msra.mxu0 0
    %3409 = vmatprep.subr.bf16.mxu0 0
    %3410 = vmatpush1.bf16.msra.mxu0 0
    %3411 = vmatprep.subr.bf16.mxu0 0
    %3412 = vmatpush1.bf16.msra.mxu0 0
    %3413 = vmatprep.subr.bf16.mxu0 0
    %3414 = vmatpush1.bf16.msra.mxu0 0
    %3415 = vmatprep.subr.bf16.mxu0 0
    %3416 = vmatpush1.bf16.msra.mxu0 0
    %3417 = vmatprep.subr.bf16.mxu0 0
    %3418 = vmatpush1.bf16.msra.mxu0 0
    %3419 = vmatprep.subr.bf16.mxu0 0
    %3420 = vmatpush1.bf16.msra.mxu0 0
    %3421 = vmatprep.subr.bf16.mxu0 0
    %3422 = vmatpush1.bf16.msra.mxu0 0
    %3423 = vmatprep.subr.bf16.mxu0 0
    %3424 = vmatpush1.bf16.msra.mxu0 0
    %3425 = vmatprep.subr.bf16.mxu0 0
    %3426 = vmatpush1.bf16.msra.mxu0 0
    %3427 = vmatprep.subr.bf16.mxu0 0
    %3428 = vmatpush1.bf16.msra.mxu0 0
    %3429 = vmatprep.subr.bf16.mxu0 0
    %3430 = vmatpush1.bf16.msra.mxu0 0
    %3431 = vmatprep.subr.bf16.mxu0 0
    %3432 = vmatpush1.bf16.msra.mxu0 0
    %3433 = vmatprep.subr.bf16.mxu0 0
    %3434 = vmatpush1.bf16.msra.mxu0 0
    %3435 = vmatprep.mubr.bf16.mxu0 0
    %3436 = vmatmul.mubr.bf16.gmra.mrb[0].mxu0 %v3401
    %v3437 = vpop.f32.mrb[0].mxu0
    %v3438 = vadd.f32 0.0, %v3437
    %v3439 = vpop.f32.mrb[0].mxu0
    %v3440 = vpop.f32.mrb[0].mxu0
    %v3441 = vpop.f32.mrb[0].mxu0
    %3442 = vdwg.mxu0
    %v3447 = vunpack.c.l.b16 %v3378
    %v3448 = vunpack.c.l.b16 %v3379
    %v3449 = vunpack.c.l.b16 %v3380
    %v3450 = vunpack.c.l.b16 %v3381
    %v3451 = vpack.c.b16 %v3448, %v3447
    %v3452 = vpack.c.b16 %v3450, %v3449
    %v3456 = vsel %vm789, %v3377, 0
    %3458 = vmatprep.subr.bf16.mxu0 0
    %3459 = vmatpush1.bf16.msra.mxu0 %v3451
    %3460 = vmatprep.subr.bf16.mxu0 0
    %3461 = vmatpush1.bf16.msra.mxu0 %v3452
    %3462 = vmatprep.subr.bf16.mxu0 0
    %3463 = vmatpush1.bf16.msra.mxu0 0
    %3464 = vmatprep.subr.bf16.mxu0 0
    %3465 = vmatpush1.bf16.msra.mxu0 0
    %3466 = vmatprep.subr.bf16.mxu0 0
    %3467 = vmatpush1.bf16.msra.mxu0 0
    %3468 = vmatprep.subr.bf16.mxu0 0
    %3469 = vmatpush1.bf16.msra.mxu0 0
    %3470 = vmatprep.subr.bf16.mxu0 0
    %3471 = vmatpush1.bf16.msra.mxu0 0
    %3472 = vmatprep.subr.bf16.mxu0 0
    %3473 = vmatpush1.bf16.msra.mxu0 0
    %3474 = vmatprep.subr.bf16.mxu0 0
    %3475 = vmatpush1.bf16.msra.mxu0 0
    %3476 = vmatprep.subr.bf16.mxu0 0
    %3477 = vmatpush1.bf16.msra.mxu0 0
    %3478 = vmatprep.subr.bf16.mxu0 0
    %3479 = vmatpush1.bf16.msra.mxu0 0
    %3480 = vmatprep.subr.bf16.mxu0 0
    %3481 = vmatpush1.bf16.msra.mxu0 0
    %3482 = vmatprep.subr.bf16.mxu0 0
    %3483 = vmatpush1.bf16.msra.mxu0 0
    %3484 = vmatprep.subr.bf16.mxu0 0
    %3485 = vmatpush1.bf16.msra.mxu0 0
    %3486 = vmatprep.subr.bf16.mxu0 0
    %3487 = vmatpush1.bf16.msra.mxu0 0
    %3488 = vmatprep.subr.bf16.mxu0 0
    %3489 = vmatpush1.bf16.msra.mxu0 0
    %3490 = vmatprep.mubr.bf16.mxu0 0
    %3491 = vmatmul.mubr.bf16.gmra.mrb[0].mxu0 %v3456
    %v3492 = vpop.f32.mrb[0].mxu0
    %v3493 = vadd.f32 %v3438, %v3492
    %v3494 = vpop.f32.mrb[0].mxu0
    %v3495 = vpop.f32.mrb[0].mxu0
    %v3496 = vpop.f32.mrb[0].mxu0
    %3497 = vdwg.mxu0
    %v3498 = vld [vmem:[%s6] sm:$0x1]
    %v3500 = vlaneseq
    %v3501 = vshrl.u32 %v3500, 7
    %v3502 = vsub.s32 0, %v3501
    %v3503 = vrot.slane %v3498, %v3502
    %v3505 = vadd.f32 %v3493, %v3503
    %v3506 = vtanh.pop %v3505
    %3507 = vst.msk [vmem:[#allocation7] sm:$0xf] %vm164, %v3506
    // Predicated region
    $region30: #{encoder_forward.3} parent=1 // pred_check
      _
    $region31: #{encoder_forward.3} parent=1 // pred_check_branch
      %3509 = sbr.rel (0) target = $region33
    $region32: #{encoder_forward.3} parent=1 // pred_region
      %s3511 = ssub.s32 512, 512
      %3512 = vsyncadd [#allocation6], %s3511
      %s3513 = sshll.u32 [#allocation5], 4
      %s3514 = int_to_ptr.vmem [resolvable:$true] %s3513
      %3519 = dma.vmem_to_hbm [thread:$0]  %s3514, 512, %s7, [#allocation6], 64, 64, 4
    $region33: #{encoder_forward.3} parent=1 // pred_fallthru
      _
    // Predicated region
    $region34: #{encoder_forward.3} parent=1 // pred_check
      _
    $region35: #{encoder_forward.3} parent=1 // pred_check_branch
      %3521 = sbr.rel (0) target = $region37
    $region36: #{encoder_forward.3} parent=1 // pred_region
      %s3523 = ssub.s32 64, 64
      %3524 = vsyncadd [#allocation8], %s3523
      %s3526 = sshll.u32 [#allocation7], 4
      %s3527 = int_to_ptr.vmem [resolvable:$true] %s3526
      %3529 = dma.vmem_to_hbm [thread:$0]  %s3527, 64, %s8, [#allocation8]
    $region37: #{encoder_forward.3} parent=1 // pred_fallthru
      _
    // Predicated region
    $region38: #{encoder_forward.3} parent=1 // pred_check
      _
    $region39: #{encoder_forward.3} parent=1 // pred_check_branch
      %3531 = sbr.rel (0) target = $region41
    $region40: #{encoder_forward.3} parent=1 // pred_region
      %3532 = dma.done [#allocation6], 512
    $region41: #{encoder_forward.3} parent=1 // pred_fallthru
      _
    // Predicated region
    $region42: #{encoder_forward.3} parent=1 // pred_check
      _
    $region43: #{encoder_forward.3} parent=1 // pred_check_branch
      %3534 = sbr.rel (0) target = $region45
    $region44: #{encoder_forward.3} parent=1 // pred_region
      %3535 = dma.done [#allocation8], 64
    $region45: #{encoder_forward.3} parent=1 // pred_fallthru
      _
    %3536 = vsyncpa [#allocation6], 1
    %3537 = vsyncpa [#allocation8], 1

// kernel: encoder_forward.2
$region0: #{encoder_forward.2}
  #allocation0 [shape = 'u32[]', space=smem, size = 0x4, offset = 0x4, fixed_abs, tag = 'smem constant byte address 0x4 - core index']
  #allocation1 [shape = 'u32[144,128]{1,0:T(1,128)}', space=vmem, size = 0x12000, scoped, tag = 'internal scratch']
  #allocation2 [shape = 'f32[6,8,4,32]{3,2,1,0:T(4,128)}', space=vmem, size = 0x18000, scoped, tag = 'scratch operand']
  #allocation3 [shape = 'f32[8,4,32]{2,1,0:T(4,128)}', space=vmem, size = 0x4000, scoped, tag = 'scratch operand']
  #allocation4 [shape = 'f32[8,4,32]{2,1,0:T(4,128)}', space=vmem, size = 0x4000, scoped, tag = 'scratch operand']
  %s0 = inlined_call_operand.hbm [shape: f32[8,4,8], index: 0, kind: input, shape index: {}]
  %s1 = inlined_call_operand.hbm [shape: bf16[6,8,32], index: 1, kind: input, shape index: {}]
  %s2 = inlined_call_operand.hbm [shape: bf16[6,32,32], index: 2, kind: input, shape index: {}]
  %s3 = inlined_call_operand.hbm [shape: f32[6,1,32], index: 3, kind: input, shape index: {}]
  %s4 = inlined_call_operand.hbm [shape: f32[6,1,32], index: 4, kind: input, shape index: {}]
  %s5 = inlined_call_operand.vmem [shape: bf16[2,32,32], index: 5, kind: input, shape index: {}]
  %s6 = inlined_call_operand.vmem [shape: f32[1,32], index: 6, kind: input, shape index: {}]
  %s7 = inlined_call_operand.vmem [shape: f32[8,4,64], index: 7, kind: output, shape index: {0}]
  %s8 = inlined_call_operand.hbm [shape: f32[4,32], index: 8, kind: output, shape index: {1}]
  %9 = xla_tuple %s7, %s8
  %s10 = sld [smem:[#allocation0]]
  $region66: #{encoder_forward.2} parent=0
    _
  %s12 = ssub.s32 1, %s10
  %s13 = scalar_select 0, %s12, %s10
  $region1: #{encoder_forward.2} parent=0
    #allocation5 [shape = 'u8[16384]{0}', space=vmem, size = 0x4000, scoped, tag = 'input window, operand 0, single buffered']
    #allocation6 [shape = 's32[1]{0}', space=sflag, size = 0x4, scoped, tag = 'scoped memory for encoder_forward.2']
    #allocation7 [shape = 's32[1]{0}', space=sflag, size = 0x4, scoped, tag = 'scoped memory for encoder_forward.2']
    #allocation8 [shape = 'u8[12288]{0}', space=vmem, size = 0x3000, scoped, tag = 'input window, operand 1, single buffered']
    #allocation9 [shape = 's32[1]{0}', space=sflag, size = 0x4, scoped, tag = 'scoped memory for encoder_forward.2']
    #allocation10 [shape = 'u8[49152]{0}', space=vmem, size = 0xc000, scoped, tag = 'input window, operand 2, single buffered']
    #allocation11 [shape = 'u8[3072]{0}', space=vmem, size = 0xc00, scoped, tag = 'input window, operand 3, single buffered']
    #allocation12 [shape = 's32[1]{0}', space=sflag, size = 0x4, scoped, tag = 'scoped memory for encoder_forward.2']
    #allocation13 [shape = 'u8[3072]{0}', space=vmem, size = 0xc00, scoped, tag = 'input window, operand 4, single buffered']
    #allocation14 [shape = 'u8[2048]{0}', space=vmem, size = 0x800, scoped, tag = 'output window, operand 1, single buffered']
    %14 = vsyncpa [#allocation6], 0
    %15 = vsyncpa [#allocation9], 0
    %16 = vsyncpa [#allocation12], 0
    %17 = vsyncpa [#allocation7], 0
    // Predicated region
    $region2: #{encoder_forward.2} parent=1 // pred_check
      _
    $region3: #{encoder_forward.2} parent=1 // pred_check_branch
      %19 = sbr.rel (0) target = $region5
    $region4: #{encoder_forward.2} parent=1 // pred_region
      %s21 = ssub.s32 512, 512
      %22 = vsyncadd [#allocation6], %s21
      %s23 = sshll.u32 [#allocation5], 4
      %s24 = int_to_ptr.vmem [resolvable:$true] %s23
      %29 = dma.hbm_to_vmem [thread:$0]  %s0, 512, %s24, [#allocation6], 64, 64, 4
    $region5: #{encoder_forward.2} parent=1 // pred_fallthru
      _
    // Predicated region
    $region6: #{encoder_forward.2} parent=1 // pred_check
      _
    $region7: #{encoder_forward.2} parent=1 // pred_check_branch
      %31 = sbr.rel (0) target = $region9
    $region8: #{encoder_forward.2} parent=1 // pred_region
      %s33 = ssub.s32 384, 384
      %34 = vsyncadd [#allocation9], %s33
      %s35 = sshll.u32 [#allocation8], 4
      %s36 = int_to_ptr.vmem [resolvable:$true] %s35
      %41 = dma.hbm_to_vmem [thread:$0]  %s1, 384, %s36, [#allocation9], 64, 64, 4
    $region9: #{encoder_forward.2} parent=1 // pred_fallthru
      _
    // Predicated region
    $region10: #{encoder_forward.2} parent=1 // pred_check
      _
    $region11: #{encoder_forward.2} parent=1 // pred_check_branch
      %43 = sbr.rel (0) target = $region13
    $region12: #{encoder_forward.2} parent=1 // pred_region
      %s45 = ssub.s32 1536, 1536
      %46 = vsyncadd [#allocation9], %s45
      %s47 = sshll.u32 [#allocation10], 4
      %s48 = int_to_ptr.vmem [resolvable:$true] %s47
      %53 = dma.hbm_to_vmem [thread:$0]  %s2, 1536, %s48, [#allocation9], 64, 64, 4
    $region13: #{encoder_forward.2} parent=1 // pred_fallthru
      _
    // Predicated region
    $region14: #{encoder_forward.2} parent=1 // pred_check
      _
    $region15: #{encoder_forward.2} parent=1 // pred_check_branch
      %55 = sbr.rel (0) target = $region17
    $region16: #{encoder_forward.2} parent=1 // pred_region
      %s57 = ssub.s32 96, 96
      %58 = vsyncadd [#allocation12], %s57
      %s59 = sshll.u32 [#allocation11], 4
      %s60 = int_to_ptr.vmem [resolvable:$true] %s59
      %65 = dma.hbm_to_vmem [thread:$0]  %s3, 96, %s60, [#allocation12], 16, 16, 1
    $region17: #{encoder_forward.2} parent=1 // pred_fallthru
      _
    // Predicated region
    $region18: #{encoder_forward.2} parent=1 // pred_check
      _
    $region19: #{encoder_forward.2} parent=1 // pred_check_branch
      %67 = sbr.rel (0) target = $region21
    $region20: #{encoder_forward.2} parent=1 // pred_region
      %s69 = ssub.s32 96, 96
      %70 = vsyncadd [#allocation12], %s69
      %s71 = sshll.u32 [#allocation13], 4
      %s72 = int_to_ptr.vmem [resolvable:$true] %s71
      %77 = dma.hbm_to_vmem [thread:$0]  %s4, 96, %s72, [#allocation12], 16, 16, 1
    $region21: #{encoder_forward.2} parent=1 // pred_fallthru
      _
    // Predicated region
    $region22: #{encoder_forward.2} parent=1 // pred_check
      _
    $region23: #{encoder_forward.2} parent=1 // pred_check_branch
      %79 = sbr.rel (0) target = $region25
    $region24: #{encoder_forward.2} parent=1 // pred_region
      _
    $region25: #{encoder_forward.2} parent=1 // pred_fallthru
      _
    // Predicated region
    $region26: #{encoder_forward.2} parent=1 // pred_check
      _
    $region27: #{encoder_forward.2} parent=1 // pred_check_branch
      %81 = sbr.rel (0) target = $region29
    $region28: #{encoder_forward.2} parent=1 // pred_region
      _
    $region29: #{encoder_forward.2} parent=1 // pred_fallthru
      _
    // Predicated region
    $region30: #{encoder_forward.2} parent=1 // pred_check
      _
    $region31: #{encoder_forward.2} parent=1 // pred_check_branch
      %83 = sbr.rel (0) target = $region33
    $region32: #{encoder_forward.2} parent=1 // pred_region
      %84 = dma.done [#allocation6], 512
    $region33: #{encoder_forward.2} parent=1 // pred_fallthru
      _
    // Predicated region
    $region34: #{encoder_forward.2} parent=1 // pred_check
      _
    $region35: #{encoder_forward.2} parent=1 // pred_check_branch
      %86 = sbr.rel (0) target = $region37
    $region36: #{encoder_forward.2} parent=1 // pred_region
      %87 = dma.done [#allocation9], 384
    $region37: #{encoder_forward.2} parent=1 // pred_fallthru
      _
    // Predicated region
    $region38: #{encoder_forward.2} parent=1 // pred_check
      _
    $region39: #{encoder_forward.2} parent=1 // pred_check_branch
      %89 = sbr.rel (0) target = $region41
    $region40: #{encoder_forward.2} parent=1 // pred_region
      %90 = dma.done [#allocation9], 1536
    $region41: #{encoder_forward.2} parent=1 // pred_fallthru
      _
    // Predicated region
    $region42: #{encoder_forward.2} parent=1 // pred_check
      _
    $region43: #{encoder_forward.2} parent=1 // pred_check_branch
      %92 = sbr.rel (0) target = $region45
    $region44: #{encoder_forward.2} parent=1 // pred_region
      %93 = dma.done [#allocation12], 96
    $region45: #{encoder_forward.2} parent=1 // pred_fallthru
      _
    // Predicated region
    $region46: #{encoder_forward.2} parent=1 // pred_check
      _
    $region47: #{encoder_forward.2} parent=1 // pred_check_branch
      %95 = sbr.rel (0) target = $region49
    $region48: #{encoder_forward.2} parent=1 // pred_region
      %96 = dma.done [#allocation12], 96
    $region49: #{encoder_forward.2} parent=1 // pred_fallthru
      _
    %v98 = vld [vmem:[#allocation5] sm:$0xf]
    %v99 = vld [vmem:[#allocation5 + $0x4] sm:$0xf]
    %v100 = vld [vmem:[#allocation5 + $0x8] sm:$0xf]
    %v101 = vld [vmem:[#allocation5 + $0xc] sm:$0xf]
    %v102 = vld [vmem:[#allocation5 + $0x10] sm:$0xf]
    %v103 = vld [vmem:[#allocation5 + $0x14] sm:$0xf]
    %v104 = vld [vmem:[#allocation5 + $0x18] sm:$0xf]
    %v105 = vld [vmem:[#allocation5 + $0x1c] sm:$0xf]
    %v114 = vcombine.low %v98, %v99
    %v115 = vcombine.low %v100, %v101
    %v116 = vcombine.low %v102, %v103
    %v117 = vcombine.low %v104, %v105
    %v122 = vpack.c.bf16 %v115, %v114
    %v123 = vpack.c.bf16 %v117, %v116
    %v124 = vld [vmem:[#allocation8] sm:$0xf]
    %v125 = vld [vmem:[#allocation11] sm:$0x1]
    %v127 = vlaneseq
    %v128 = vshrl.u32 %v127, 7
    %v129 = vsub.s32 0, %v128
    %v130 = vrot.slane %v125, %v129
    %vm132 = vcmask 64512
    %v134 = vsel %vm132, %v122, 0
    %v137 = vsel %vm132, %v123, 0
    %vm139 = vcmask 1043456
    %v141 = vsel %vm139, %v124, 0
    %143 = vmatprep.subr.bf16.mxu0 0
    %144 = vmatpush1.bf16.msra.mxu0 %v141
    %145 = vmatprep.subr.bf16.mxu0 0
    %146 = vmatpush1.bf16.msra.mxu0 0
    %147 = vmatprep.subr.bf16.mxu0 0
    %148 = vmatpush1.bf16.msra.mxu0 0
    %149 = vmatprep.subr.bf16.mxu0 0
    %150 = vmatpush1.bf16.msra.mxu0 0
    %151 = vmatprep.subr.bf16.mxu0 0
    %152 = vmatpush1.bf16.msra.mxu0 0
    %153 = vmatprep.subr.bf16.mxu0 0
    %154 = vmatpush1.bf16.msra.mxu0 0
    %155 = vmatprep.subr.bf16.mxu0 0
    %156 = vmatpush1.bf16.msra.mxu0 0
    %157 = vmatprep.subr.bf16.mxu0 0
    %158 = vmatpush1.bf16.msra.mxu0 0
    %159 = vmatprep.subr.bf16.mxu0 0
    %160 = vmatpush1.bf16.msra.mxu0 0
    %161 = vmatprep.subr.bf16.mxu0 0
    %162 = vmatpush1.bf16.msra.mxu0 0
    %163 = vmatprep.subr.bf16.mxu0 0
    %164 = vmatpush1.bf16.msra.mxu0 0
    %165 = vmatprep.subr.bf16.mxu0 0
    %166 = vmatpush1.bf16.msra.mxu0 0
    %167 = vmatprep.subr.bf16.mxu0 0
    %168 = vmatpush1.bf16.msra.mxu0 0
    %169 = vmatprep.subr.bf16.mxu0 0
    %170 = vmatpush1.bf16.msra.mxu0 0
    %171 = vmatprep.subr.bf16.mxu0 0
    %172 = vmatpush1.bf16.msra.mxu0 0
    %173 = vmatprep.subr.bf16.mxu0 0
    %174 = vmatpush1.bf16.msra.mxu0 0
    %175 = vmatprep.mubr.bf16.mxu0 0
    %176 = vmatmul.mubr.bf16.gmra.mrb[0].mxu0 %v134
    %v177 = vpop.f32.mrb[0].mxu0
    %v178 = vadd.f32 %v130, %v177
    %v179 = vpop.f32.mrb[0].mxu0
    %v180 = vpop.f32.mrb[0].mxu0
    %v181 = vadd.f32 %v130, %v180
    %v182 = vpop.f32.mrb[0].mxu0
    %183 = vmatprep.mubr.bf16.mxu0 0
    %184 = vmatmul.mubr.bf16.gmra.mrb[0].mxu0 %v137
    %v185 = vpop.f32.mrb[0].mxu0
    %v186 = vadd.f32 %v130, %v185
    %v187 = vpop.f32.mrb[0].mxu0
    %v188 = vpop.f32.mrb[0].mxu0
    %v189 = vadd.f32 %v130, %v188
    %v190 = vpop.f32.mrb[0].mxu0
    %191 = vdwg.mxu0
    %v196 = vcombine.high %v178, %v178
    %v197 = vcombine.high %v181, %v181
    %v198 = vcombine.high %v186, %v186
    %v199 = vcombine.high %v189, %v189
    %vm204 = vcmask 257024
    %205 = vst.msk [vmem:[#allocation2] sm:$0xf] %vm204, %v178
    %206 = vst.msk [vmem:[#allocation2 + $0x4] sm:$0xf] %vm204, %v196
    %207 = vst.msk [vmem:[#allocation2 + $0x8] sm:$0xf] %vm204, %v181
    %208 = vst.msk [vmem:[#allocation2 + $0xc] sm:$0xf] %vm204, %v197
    %209 = vst.msk [vmem:[#allocation2 + $0x10] sm:$0xf] %vm204, %v186
    %210 = vst.msk [vmem:[#allocation2 + $0x14] sm:$0xf] %vm204, %v198
    %211 = vst.msk [vmem:[#allocation2 + $0x18] sm:$0xf] %vm204, %v189
    %212 = vst.msk [vmem:[#allocation2 + $0x1c] sm:$0xf] %vm204, %v199
    %s213 = scalar_lea.vmem [#allocation8], 4
    %v214 = vld [vmem:[%s213] sm:$0xf]
    %s215 = scalar_lea.vmem [#allocation11], 1
    %v216 = vld [vmem:[%s215] sm:$0x1]
    %v218 = vlaneseq
    %v219 = vshrl.u32 %v218, 7
    %v220 = vsub.s32 0, %v219
    %v221 = vrot.slane %v216, %v220
    %v224 = vsel %vm139, %v214, 0
    %226 = vmatprep.subr.bf16.mxu0 0
    %227 = vmatpush1.bf16.msra.mxu0 %v224
    %228 = vmatprep.subr.bf16.mxu0 0
    %229 = vmatpush1.bf16.msra.mxu0 0
    %230 = vmatprep.subr.bf16.mxu0 0
    %231 = vmatpush1.bf16.msra.mxu0 0
    %232 = vmatprep.subr.bf16.mxu0 0
    %233 = vmatpush1.bf16.msra.mxu0 0
    %234 = vmatprep.subr.bf16.mxu0 0
    %235 = vmatpush1.bf16.msra.mxu0 0
    %236 = vmatprep.subr.bf16.mxu0 0
    %237 = vmatpush1.bf16.msra.mxu0 0
    %238 = vmatprep.subr.bf16.mxu0 0
    %239 = vmatpush1.bf16.msra.mxu0 0
    %240 = vmatprep.subr.bf16.mxu0 0
    %241 = vmatpush1.bf16.msra.mxu0 0
    %242 = vmatprep.subr.bf16.mxu0 0
    %243 = vmatpush1.bf16.msra.mxu0 0
    %244 = vmatprep.subr.bf16.mxu0 0
    %245 = vmatpush1.bf16.msra.mxu0 0
    %246 = vmatprep.subr.bf16.mxu0 0
    %247 = vmatpush1.bf16.msra.mxu0 0
    %248 = vmatprep.subr.bf16.mxu0 0
    %249 = vmatpush1.bf16.msra.mxu0 0
    %250 = vmatprep.subr.bf16.mxu0 0
    %251 = vmatpush1.bf16.msra.mxu0 0
    %252 = vmatprep.subr.bf16.mxu0 0
    %253 = vmatpush1.bf16.msra.mxu0 0
    %254 = vmatprep.subr.bf16.mxu0 0
    %255 = vmatpush1.bf16.msra.mxu0 0
    %256 = vmatprep.subr.bf16.mxu0 0
    %257 = vmatpush1.bf16.msra.mxu0 0
    %258 = vmatprep.mubr.bf16.mxu0 0
    %259 = vmatmul.mubr.bf16.gmra.mrb[0].mxu0 %v134
    %v260 = vpop.f32.mrb[0].mxu0
    %v261 = vadd.f32 %v221, %v260
    %v262 = vpop.f32.mrb[0].mxu0
    %v263 = vpop.f32.mrb[0].mxu0
    %v264 = vadd.f32 %v221, %v263
    %v265 = vpop.f32.mrb[0].mxu0
    %266 = vmatprep.mubr.bf16.mxu0 0
    %267 = vmatmul.mubr.bf16.gmra.mrb[0].mxu0 %v137
    %v268 = vpop.f32.mrb[0].mxu0
    %v269 = vadd.f32 %v221, %v268
    %v270 = vpop.f32.mrb[0].mxu0
    %v271 = vpop.f32.mrb[0].mxu0
    %v272 = vadd.f32 %v221, %v271
    %v273 = vpop.f32.mrb[0].mxu0
    %274 = vdwg.mxu0
    %v279 = vcombine.high %v261, %v261
    %v280 = vcombine.high %v264, %v264
    %v281 = vcombine.high %v269, %v269
    %v282 = vcombine.high %v272, %v272
    %s287 = scalar_lea.vmem [#allocation2], 32
    %288 = vst.msk [vmem:[%s287] sm:$0xf] %vm204, %v261
    %289 = vst.msk [vmem:[%s287 + $0x4] sm:$0xf] %vm204, %v279
    %290 = vst.msk [vmem:[%s287 + $0x8] sm:$0xf] %vm204, %v264
    %291 = vst.msk [vmem:[%s287 + $0xc] sm:$0xf] %vm204, %v280
    %292 = vst.msk [vmem:[%s287 + $0x10] sm:$0xf] %vm204, %v269
    %293 = vst.msk [vmem:[%s287 + $0x14] sm:$0xf] %vm204, %v281
    %294 = vst.msk [vmem:[%s287 + $0x18] sm:$0xf] %vm204, %v272
    %295 = vst.msk [vmem:[%s287 + $0x1c] sm:$0xf] %vm204, %v282
    %s296 = scalar_lea.vmem [#allocation8], 8
    %v297 = vld [vmem:[%s296] sm:$0xf]
    %s298 = scalar_lea.vmem [#allocation11], 2
    %v299 = vld [vmem:[%s298] sm:$0x1]
    %v301 = vlaneseq
    %v302 = vshrl.u32 %v301, 7
    %v303 = vsub.s32 0, %v302
    %v304 = vrot.slane %v299, %v303
    %v307 = vsel %vm139, %v297, 0
    %309 = vmatprep.subr.bf16.mxu0 0
    %310 = vmatpush1.bf16.msra.mxu0 %v307
    %311 = vmatprep.subr.bf16.mxu0 0
    %312 = vmatpush1.bf16.msra.mxu0 0
    %313 = vmatprep.subr.bf16.mxu0 0
    %314 = vmatpush1.bf16.msra.mxu0 0
    %315 = vmatprep.subr.bf16.mxu0 0
    %316 = vmatpush1.bf16.msra.mxu0 0
    %317 = vmatprep.subr.bf16.mxu0 0
    %318 = vmatpush1.bf16.msra.mxu0 0
    %319 = vmatprep.subr.bf16.mxu0 0
    %320 = vmatpush1.bf16.msra.mxu0 0
    %321 = vmatprep.subr.bf16.mxu0 0
    %322 = vmatpush1.bf16.msra.mxu0 0
    %323 = vmatprep.subr.bf16.mxu0 0
    %324 = vmatpush1.bf16.msra.mxu0 0
    %325 = vmatprep.subr.bf16.mxu0 0
    %326 = vmatpush1.bf16.msra.mxu0 0
    %327 = vmatprep.subr.bf16.mxu0 0
    %328 = vmatpush1.bf16.msra.mxu0 0
    %329 = vmatprep.subr.bf16.mxu0 0
    %330 = vmatpush1.bf16.msra.mxu0 0
    %331 = vmatprep.subr.bf16.mxu0 0
    %332 = vmatpush1.bf16.msra.mxu0 0
    %333 = vmatprep.subr.bf16.mxu0 0
    %334 = vmatpush1.bf16.msra.mxu0 0
    %335 = vmatprep.subr.bf16.mxu0 0
    %336 = vmatpush1.bf16.msra.mxu0 0
    %337 = vmatprep.subr.bf16.mxu0 0
    %338 = vmatpush1.bf16.msra.mxu0 0
    %339 = vmatprep.subr.bf16.mxu0 0
    %340 = vmatpush1.bf16.msra.mxu0 0
    %341 = vmatprep.mubr.bf16.mxu0 0
    %342 = vmatmul.mubr.bf16.gmra.mrb[0].mxu0 %v134
    %v343 = vpop.f32.mrb[0].mxu0
    %v344 = vadd.f32 %v304, %v343
    %v345 = vpop.f32.mrb[0].mxu0
    %v346 = vpop.f32.mrb[0].mxu0
    %v347 = vadd.f32 %v304, %v346
    %v348 = vpop.f32.mrb[0].mxu0
    %349 = vmatprep.mubr.bf16.mxu0 0
    %350 = vmatmul.mubr.bf16.gmra.mrb[0].mxu0 %v137
    %v351 = vpop.f32.mrb[0].mxu0
    %v352 = vadd.f32 %v304, %v351
    %v353 = vpop.f32.mrb[0].mxu0
    %v354 = vpop.f32.mrb[0].mxu0
    %v355 = vadd.f32 %v304, %v354
    %v356 = vpop.f32.mrb[0].mxu0
    %357 = vdwg.mxu0
    %v362 = vcombine.high %v344, %v344
    %v363 = vcombine.high %v347, %v347
    %v364 = vcombine.high %v352, %v352
    %v365 = vcombine.high %v355, %v355
    %s370 = scalar_lea.vmem [#allocation2], 64
    %371 = vst.msk [vmem:[%s370] sm:$0xf] %vm204, %v344
    %372 = vst.msk [vmem:[%s370 + $0x4] sm:$0xf] %vm204, %v362
    %373 = vst.msk [vmem:[%s370 + $0x8] sm:$0xf] %vm204, %v347
    %374 = vst.msk [vmem:[%s370 + $0xc] sm:$0xf] %vm204, %v363
    %375 = vst.msk [vmem:[%s370 + $0x10] sm:$0xf] %vm204, %v352
    %376 = vst.msk [vmem:[%s370 + $0x14] sm:$0xf] %vm204, %v364
    %377 = vst.msk [vmem:[%s370 + $0x18] sm:$0xf] %vm204, %v355
    %378 = vst.msk [vmem:[%s370 + $0x1c] sm:$0xf] %vm204, %v365
    %s379 = scalar_lea.vmem [#allocation8], 12
    %v380 = vld [vmem:[%s379] sm:$0xf]
    %s381 = scalar_lea.vmem [#allocation11], 3
    %v382 = vld [vmem:[%s381] sm:$0x1]
    %v384 = vlaneseq
    %v385 = vshrl.u32 %v384, 7
    %v386 = vsub.s32 0, %v385
    %v387 = vrot.slane %v382, %v386
    %v390 = vsel %vm139, %v380, 0
    %392 = vmatprep.subr.bf16.mxu0 0
    %393 = vmatpush1.bf16.msra.mxu0 %v390
    %394 = vmatprep.subr.bf16.mxu0 0
    %395 = vmatpush1.bf16.msra.mxu0 0
    %396 = vmatprep.subr.bf16.mxu0 0
    %397 = vmatpush1.bf16.msra.mxu0 0
    %398 = vmatprep.subr.bf16.mxu0 0
    %399 = vmatpush1.bf16.msra.mxu0 0
    %400 = vmatprep.subr.bf16.mxu0 0
    %401 = vmatpush1.bf16.msra.mxu0 0
    %402 = vmatprep.subr.bf16.mxu0 0
    %403 = vmatpush1.bf16.msra.mxu0 0
    %404 = vmatprep.subr.bf16.mxu0 0
    %405 = vmatpush1.bf16.msra.mxu0 0
    %406 = vmatprep.subr.bf16.mxu0 0
    %407 = vmatpush1.bf16.msra.mxu0 0
    %408 = vmatprep.subr.bf16.mxu0 0
    %409 = vmatpush1.bf16.msra.mxu0 0
    %410 = vmatprep.subr.bf16.mxu0 0
    %411 = vmatpush1.bf16.msra.mxu0 0
    %412 = vmatprep.subr.bf16.mxu0 0
    %413 = vmatpush1.bf16.msra.mxu0 0
    %414 = vmatprep.subr.bf16.mxu0 0
    %415 = vmatpush1.bf16.msra.mxu0 0
    %416 = vmatprep.subr.bf16.mxu0 0
    %417 = vmatpush1.bf16.msra.mxu0 0
    %418 = vmatprep.subr.bf16.mxu0 0
    %419 = vmatpush1.bf16.msra.mxu0 0
    %420 = vmatprep.subr.bf16.mxu0 0
    %421 = vmatpush1.bf16.msra.mxu0 0
    %422 = vmatprep.subr.bf16.mxu0 0
    %423 = vmatpush1.bf16.msra.mxu0 0
    %424 = vmatprep.mubr.bf16.mxu0 0
    %425 = vmatmul.mubr.bf16.gmra.mrb[0].mxu0 %v134
    %v426 = vpop.f32.mrb[0].mxu0
    %v427 = vadd.f32 %v387, %v426
    %v428 = vpop.f32.mrb[0].mxu0
    %v429 = vpop.f32.mrb[0].mxu0
    %v430 = vadd.f32 %v387, %v429
    %v431 = vpop.f32.mrb[0].mxu0
    %432 = vmatprep.mubr.bf16.mxu0 0
    %433 = vmatmul.mubr.bf16.gmra.mrb[0].mxu0 %v137
    %v434 = vpop.f32.mrb[0].mxu0
    %v435 = vadd.f32 %v387, %v434
    %v436 = vpop.f32.mrb[0].mxu0
    %v437 = vpop.f32.mrb[0].mxu0
    %v438 = vadd.f32 %v387, %v437
    %v439 = vpop.f32.mrb[0].mxu0
    %440 = vdwg.mxu0
    %v445 = vcombine.high %v427, %v427
    %v446 = vcombine.high %v430, %v430
    %v447 = vcombine.high %v435, %v435
    %v448 = vcombine.high %v438, %v438
    %s453 = scalar_lea.vmem [#allocation2], 96
    %454 = vst.msk [vmem:[%s453] sm:$0xf] %vm204, %v427
    %455 = vst.msk [vmem:[%s453 + $0x4] sm:$0xf] %vm204, %v445
    %456 = vst.msk [vmem:[%s453 + $0x8] sm:$0xf] %vm204, %v430
    %457 = vst.msk [vmem:[%s453 + $0xc] sm:$0xf] %vm204, %v446
    %458 = vst.msk [vmem:[%s453 + $0x10] sm:$0xf] %vm204, %v435
    %459 = vst.msk [vmem:[%s453 + $0x14] sm:$0xf] %vm204, %v447
    %460 = vst.msk [vmem:[%s453 + $0x18] sm:$0xf] %vm204, %v438
    %461 = vst.msk [vmem:[%s453 + $0x1c] sm:$0xf] %vm204, %v448
    %s462 = scalar_lea.vmem [#allocation8], 16
    %v463 = vld [vmem:[%s462] sm:$0xf]
    %s464 = scalar_lea.vmem [#allocation11], 4
    %v465 = vld [vmem:[%s464] sm:$0x1]
    %v467 = vlaneseq
    %v468 = vshrl.u32 %v467, 7
    %v469 = vsub.s32 0, %v468
    %v470 = vrot.slane %v465, %v469
    %v473 = vsel %vm139, %v463, 0
    %475 = vmatprep.subr.bf16.mxu0 0
    %476 = vmatpush1.bf16.msra.mxu0 %v473
    %477 = vmatprep.subr.bf16.mxu0 0
    %478 = vmatpush1.bf16.msra.mxu0 0
    %479 = vmatprep.subr.bf16.mxu0 0
    %480 = vmatpush1.bf16.msra.mxu0 0
    %481 = vmatprep.subr.bf16.mxu0 0
    %482 = vmatpush1.bf16.msra.mxu0 0
    %483 = vmatprep.subr.bf16.mxu0 0
    %484 = vmatpush1.bf16.msra.mxu0 0
    %485 = vmatprep.subr.bf16.mxu0 0
    %486 = vmatpush1.bf16.msra.mxu0 0
    %487 = vmatprep.subr.bf16.mxu0 0
    %488 = vmatpush1.bf16.msra.mxu0 0
    %489 = vmatprep.subr.bf16.mxu0 0
    %490 = vmatpush1.bf16.msra.mxu0 0
    %491 = vmatprep.subr.bf16.mxu0 0
    %492 = vmatpush1.bf16.msra.mxu0 0
    %493 = vmatprep.subr.bf16.mxu0 0
    %494 = vmatpush1.bf16.msra.mxu0 0
    %495 = vmatprep.subr.bf16.mxu0 0
    %496 = vmatpush1.bf16.msra.mxu0 0
    %497 = vmatprep.subr.bf16.mxu0 0
    %498 = vmatpush1.bf16.msra.mxu0 0
    %499 = vmatprep.subr.bf16.mxu0 0
    %500 = vmatpush1.bf16.msra.mxu0 0
    %501 = vmatprep.subr.bf16.mxu0 0
    %502 = vmatpush1.bf16.msra.mxu0 0
    %503 = vmatprep.subr.bf16.mxu0 0
    %504 = vmatpush1.bf16.msra.mxu0 0
    %505 = vmatprep.subr.bf16.mxu0 0
    %506 = vmatpush1.bf16.msra.mxu0 0
    %507 = vmatprep.mubr.bf16.mxu0 0
    %508 = vmatmul.mubr.bf16.gmra.mrb[0].mxu0 %v134
    %v509 = vpop.f32.mrb[0].mxu0
    %v510 = vadd.f32 %v470, %v509
    %v511 = vpop.f32.mrb[0].mxu0
    %v512 = vpop.f32.mrb[0].mxu0
    %v513 = vadd.f32 %v470, %v512
    %v514 = vpop.f32.mrb[0].mxu0
    %515 = vmatprep.mubr.bf16.mxu0 0
    %516 = vmatmul.mubr.bf16.gmra.mrb[0].mxu0 %v137
    %v517 = vpop.f32.mrb[0].mxu0
    %v518 = vadd.f32 %v470, %v517
    %v519 = vpop.f32.mrb[0].mxu0
    %v520 = vpop.f32.mrb[0].mxu0
    %v521 = vadd.f32 %v470, %v520
    %v522 = vpop.f32.mrb[0].mxu0
    %523 = vdwg.mxu0
    %v528 = vcombine.high %v510, %v510
    %v529 = vcombine.high %v513, %v513
    %v530 = vcombine.high %v518, %v518
    %v531 = vcombine.high %v521, %v521
    %s536 = scalar_lea.vmem [#allocation2], 128
    %537 = vst.msk [vmem:[%s536] sm:$0xf] %vm204, %v510
    %538 = vst.msk [vmem:[%s536 + $0x4] sm:$0xf] %vm204, %v528
    %539 = vst.msk [vmem:[%s536 + $0x8] sm:$0xf] %vm204, %v513
    %540 = vst.msk [vmem:[%s536 + $0xc] sm:$0xf] %vm204, %v529
    %541 = vst.msk [vmem:[%s536 + $0x10] sm:$0xf] %vm204, %v518
    %542 = vst.msk [vmem:[%s536 + $0x14] sm:$0xf] %vm204, %v530
    %543 = vst.msk [vmem:[%s536 + $0x18] sm:$0xf] %vm204, %v521
    %544 = vst.msk [vmem:[%s536 + $0x1c] sm:$0xf] %vm204, %v531
    %s545 = scalar_lea.vmem [#allocation8], 20
    %v546 = vld [vmem:[%s545] sm:$0xf]
    %s547 = scalar_lea.vmem [#allocation11], 5
    %v548 = vld [vmem:[%s547] sm:$0x1]
    %v550 = vlaneseq
    %v551 = vshrl.u32 %v550, 7
    %v552 = vsub.s32 0, %v551
    %v553 = vrot.slane %v548, %v552
    %v556 = vsel %vm139, %v546, 0
    %558 = vmatprep.subr.bf16.mxu0 0
    %559 = vmatpush1.bf16.msra.mxu0 %v556
    %560 = vmatprep.subr.bf16.mxu0 0
    %561 = vmatpush1.bf16.msra.mxu0 0
    %562 = vmatprep.subr.bf16.mxu0 0
    %563 = vmatpush1.bf16.msra.mxu0 0
    %564 = vmatprep.subr.bf16.mxu0 0
    %565 = vmatpush1.bf16.msra.mxu0 0
    %566 = vmatprep.subr.bf16.mxu0 0
    %567 = vmatpush1.bf16.msra.mxu0 0
    %568 = vmatprep.subr.bf16.mxu0 0
    %569 = vmatpush1.bf16.msra.mxu0 0
    %570 = vmatprep.subr.bf16.mxu0 0
    %571 = vmatpush1.bf16.msra.mxu0 0
    %572 = vmatprep.subr.bf16.mxu0 0
    %573 = vmatpush1.bf16.msra.mxu0 0
    %574 = vmatprep.subr.bf16.mxu0 0
    %575 = vmatpush1.bf16.msra.mxu0 0
    %576 = vmatprep.subr.bf16.mxu0 0
    %577 = vmatpush1.bf16.msra.mxu0 0
    %578 = vmatprep.subr.bf16.mxu0 0
    %579 = vmatpush1.bf16.msra.mxu0 0
    %580 = vmatprep.subr.bf16.mxu0 0
    %581 = vmatpush1.bf16.msra.mxu0 0
    %582 = vmatprep.subr.bf16.mxu0 0
    %583 = vmatpush1.bf16.msra.mxu0 0
    %584 = vmatprep.subr.bf16.mxu0 0
    %585 = vmatpush1.bf16.msra.mxu0 0
    %586 = vmatprep.subr.bf16.mxu0 0
    %587 = vmatpush1.bf16.msra.mxu0 0
    %588 = vmatprep.subr.bf16.mxu0 0
    %589 = vmatpush1.bf16.msra.mxu0 0
    %590 = vmatprep.mubr.bf16.mxu0 0
    %591 = vmatmul.mubr.bf16.gmra.mrb[0].mxu0 %v134
    %v592 = vpop.f32.mrb[0].mxu0
    %v593 = vadd.f32 %v553, %v592
    %v594 = vpop.f32.mrb[0].mxu0
    %v595 = vpop.f32.mrb[0].mxu0
    %v596 = vadd.f32 %v553, %v595
    %v597 = vpop.f32.mrb[0].mxu0
    %598 = vmatprep.mubr.bf16.mxu0 0
    %599 = vmatmul.mubr.bf16.gmra.mrb[0].mxu0 %v137
    %v600 = vpop.f32.mrb[0].mxu0
    %v601 = vadd.f32 %v553, %v600
    %v602 = vpop.f32.mrb[0].mxu0
    %v603 = vpop.f32.mrb[0].mxu0
    %v604 = vadd.f32 %v553, %v603
    %v605 = vpop.f32.mrb[0].mxu0
    %606 = vdwg.mxu0
    %v611 = vcombine.high %v593, %v593
    %v612 = vcombine.high %v596, %v596
    %v613 = vcombine.high %v601, %v601
    %v614 = vcombine.high %v604, %v604
    %s619 = scalar_lea.vmem [#allocation2], 160
    %620 = vst.msk [vmem:[%s619] sm:$0xf] %vm204, %v593
    %621 = vst.msk [vmem:[%s619 + $0x4] sm:$0xf] %vm204, %v611
    %622 = vst.msk [vmem:[%s619 + $0x8] sm:$0xf] %vm204, %v596
    %623 = vst.msk [vmem:[%s619 + $0xc] sm:$0xf] %vm204, %v612
    %624 = vst.msk [vmem:[%s619 + $0x10] sm:$0xf] %vm204, %v601
    %625 = vst.msk [vmem:[%s619 + $0x14] sm:$0xf] %vm204, %v613
    %626 = vst.msk [vmem:[%s619 + $0x18] sm:$0xf] %vm204, %v604
    %627 = vst.msk [vmem:[%s619 + $0x1c] sm:$0xf] %vm204, %v614
    %v628 = vld [vmem:[#allocation10] sm:$0xf]
    %v629 = vld [vmem:[#allocation10 + $0x4] sm:$0xf]
    %v630 = vld [vmem:[#allocation10 + $0x8] sm:$0xf]
    %v631 = vld [vmem:[#allocation10 + $0xc] sm:$0xf]
    %s632 = scalar_lea.vmem [#allocation10], 16
    %v633 = vld [vmem:[%s632] sm:$0xf]
    %v634 = vld [vmem:[%s632 + $0x4] sm:$0xf]
    %v635 = vld [vmem:[%s632 + $0x8] sm:$0xf]
    %v636 = vld [vmem:[%s632 + $0xc] sm:$0xf]
    %s637 = scalar_lea.vmem [#allocation10], 32
    %v638 = vld [vmem:[%s637] sm:$0xf]
    %v639 = vld [vmem:[%s637 + $0x4] sm:$0xf]
    %v640 = vld [vmem:[%s637 + $0x8] sm:$0xf]
    %v641 = vld [vmem:[%s637 + $0xc] sm:$0xf]
    %s642 = scalar_lea.vmem [#allocation10], 48
    %v643 = vld [vmem:[%s642] sm:$0xf]
    %v644 = vld [vmem:[%s642 + $0x4] sm:$0xf]
    %v645 = vld [vmem:[%s642 + $0x8] sm:$0xf]
    %v646 = vld [vmem:[%s642 + $0xc] sm:$0xf]
    %s647 = scalar_lea.vmem [#allocation10], 64
    %v648 = vld [vmem:[%s647] sm:$0xf]
    %v649 = vld [vmem:[%s647 + $0x4] sm:$0xf]
    %v650 = vld [vmem:[%s647 + $0x8] sm:$0xf]
    %v651 = vld [vmem:[%s647 + $0xc] sm:$0xf]
    %s652 = scalar_lea.vmem [#allocation10], 80
    %v653 = vld [vmem:[%s652] sm:$0xf]
    %v654 = vld [vmem:[%s652 + $0x4] sm:$0xf]
    %v655 = vld [vmem:[%s652 + $0x8] sm:$0xf]
    %v656 = vld [vmem:[%s652 + $0xc] sm:$0xf]
    %v657 = vld [vmem:[#allocation13] sm:$0x1]
    %s658 = scalar_lea.vmem [#allocation13], 1
    %v659 = vld [vmem:[%s658] sm:$0x1]
    %s660 = scalar_lea.vmem [#allocation13], 2
    %v661 = vld [vmem:[%s660] sm:$0x1]
    %s662 = scalar_lea.vmem [#allocation13], 3
    %v663 = vld [vmem:[%s662] sm:$0x1]
    %s664 = scalar_lea.vmem [#allocation13], 4
    %v665 = vld [vmem:[%s664] sm:$0x1]
    %s666 = scalar_lea.vmem [#allocation13], 5
    %v667 = vld [vmem:[%s666] sm:$0x1]
    %v668 = vld [vmem:[#allocation2] sm:$0xf]
    %v669 = vld [vmem:[%s287] sm:$0xf]
    %v670 = vld [vmem:[%s370] sm:$0xf]
    %v672 = vlaneseq
    %v673 = vshrl.u32 %v672, 7
    %v674 = vsub.s32 0, %v673
    %v675 = vrot.slane %v657, %v674
    %v681 = vunpack.c.l.b16 %v628
    %v682 = vunpack.c.l.b16 %v629
    %v683 = vunpack.c.l.b16 %v630
    %v684 = vunpack.c.l.b16 %v631
    %v685 = vpack.c.b16 %v682, %v681
    %v686 = vpack.c.b16 %v684, %v683
    %vm689 = vcmask 261120
    %v691 = vsel %vm689, 0, 0
    %693 = vmatprep.subr.bf16.mxu0 0
    %694 = vmatpush1.bf16.msra.mxu0 %v685
    %695 = vmatprep.subr.bf16.mxu0 0
    %696 = vmatpush1.bf16.msra.mxu0 %v686
    %697 = vmatprep.subr.bf16.mxu0 0
    %698 = vmatpush1.bf16.msra.mxu0 0
    %699 = vmatprep.subr.bf16.mxu0 0
    %700 = vmatpush1.bf16.msra.mxu0 0
    %701 = vmatprep.subr.bf16.mxu0 0
    %702 = vmatpush1.bf16.msra.mxu0 0
    %703 = vmatprep.subr.bf16.mxu0 0
    %704 = vmatpush1.bf16.msra.mxu0 0
    %705 = vmatprep.subr.bf16.mxu0 0
    %706 = vmatpush1.bf16.msra.mxu0 0
    %707 = vmatprep.subr.bf16.mxu0 0
    %708 = vmatpush1.bf16.msra.mxu0 0
    %709 = vmatprep.subr.bf16.mxu0 0
    %710 = vmatpush1.bf16.msra.mxu0 0
    %711 = vmatprep.subr.bf16.mxu0 0
    %712 = vmatpush1.bf16.msra.mxu0 0
    %713 = vmatprep.subr.bf16.mxu0 0
    %714 = vmatpush1.bf16.msra.mxu0 0
    %715 = vmatprep.subr.bf16.mxu0 0
    %716 = vmatpush1.bf16.msra.mxu0 0
    %717 = vmatprep.subr.bf16.mxu0 0
    %718 = vmatpush1.bf16.msra.mxu0 0
    %719 = vmatprep.subr.bf16.mxu0 0
    %720 = vmatpush1.bf16.msra.mxu0 0
    %721 = vmatprep.subr.bf16.mxu0 0
    %722 = vmatpush1.bf16.msra.mxu0 0
    %723 = vmatprep.subr.bf16.mxu0 0
    %724 = vmatpush1.bf16.msra.mxu0 0
    %725 = vmatprep.mubr.bf16.mxu0 0
    %726 = vmatmul.mubr.bf16.gmra.mrb[0].mxu0 %v691
    %v727 = vpop.f32.mrb[0].mxu0
    %v728 = vadd.f32 %v675, %v727
    %v729 = vpop.f32.mrb[0].mxu0
    %v730 = vpop.f32.mrb[0].mxu0
    %v731 = vpop.f32.mrb[0].mxu0
    %732 = vdwg.mxu0
    %v734 = vlaneseq
    %v735 = vshrl.u32 %v734, 7
    %v736 = vsub.s32 0, %v735
    %v737 = vrot.slane %v659, %v736
    %v743 = vunpack.c.l.b16 %v633
    %v744 = vunpack.c.l.b16 %v634
    %v745 = vunpack.c.l.b16 %v635
    %v746 = vunpack.c.l.b16 %v636
    %v747 = vpack.c.b16 %v744, %v743
    %v748 = vpack.c.b16 %v746, %v745
    %751 = vmatprep.subr.bf16.mxu0 0
    %752 = vmatpush1.bf16.msra.mxu0 %v747
    %753 = vmatprep.subr.bf16.mxu0 0
    %754 = vmatpush1.bf16.msra.mxu0 %v748
    %755 = vmatprep.subr.bf16.mxu0 0
    %756 = vmatpush1.bf16.msra.mxu0 0
    %757 = vmatprep.subr.bf16.mxu0 0
    %758 = vmatpush1.bf16.msra.mxu0 0
    %759 = vmatprep.subr.bf16.mxu0 0
    %760 = vmatpush1.bf16.msra.mxu0 0
    %761 = vmatprep.subr.bf16.mxu0 0
    %762 = vmatpush1.bf16.msra.mxu0 0
    %763 = vmatprep.subr.bf16.mxu0 0
    %764 = vmatpush1.bf16.msra.mxu0 0
    %765 = vmatprep.subr.bf16.mxu0 0
    %766 = vmatpush1.bf16.msra.mxu0 0
    %767 = vmatprep.subr.bf16.mxu0 0
    %768 = vmatpush1.bf16.msra.mxu0 0
    %769 = vmatprep.subr.bf16.mxu0 0
    %770 = vmatpush1.bf16.msra.mxu0 0
    %771 = vmatprep.subr.bf16.mxu0 0
    %772 = vmatpush1.bf16.msra.mxu0 0
    %773 = vmatprep.subr.bf16.mxu0 0
    %774 = vmatpush1.bf16.msra.mxu0 0
    %775 = vmatprep.subr.bf16.mxu0 0
    %776 = vmatpush1.bf16.msra.mxu0 0
    %777 = vmatprep.subr.bf16.mxu0 0
    %778 = vmatpush1.bf16.msra.mxu0 0
    %779 = vmatprep.subr.bf16.mxu0 0
    %780 = vmatpush1.bf16.msra.mxu0 0
    %781 = vmatprep.subr.bf16.mxu0 0
    %782 = vmatpush1.bf16.msra.mxu0 0
    %783 = vmatprep.mubr.bf16.mxu0 0
    %784 = vmatmul.mubr.bf16.gmra.mrb[0].mxu0 %v691
    %v785 = vpop.f32.mrb[0].mxu0
    %v786 = vadd.f32 %v737, %v785
    %v787 = vpop.f32.mrb[0].mxu0
    %v788 = vpop.f32.mrb[0].mxu0
    %v789 = vpop.f32.mrb[0].mxu0
    %790 = vdwg.mxu0
    %v792 = vlaneseq
    %v793 = vshrl.u32 %v792, 7
    %v794 = vsub.s32 0, %v793
    %v795 = vrot.slane %v661, %v794
    %v801 = vunpack.c.l.b16 %v638
    %v802 = vunpack.c.l.b16 %v639
    %v803 = vunpack.c.l.b16 %v640
    %v804 = vunpack.c.l.b16 %v641
    %v805 = vpack.c.b16 %v802, %v801
    %v806 = vpack.c.b16 %v804, %v803
    %809 = vmatprep.subr.bf16.mxu0 0
    %810 = vmatpush1.bf16.msra.mxu0 %v805
    %811 = vmatprep.subr.bf16.mxu0 0
    %812 = vmatpush1.bf16.msra.mxu0 %v806
    %813 = vmatprep.subr.bf16.mxu0 0
    %814 = vmatpush1.bf16.msra.mxu0 0
    %815 = vmatprep.subr.bf16.mxu0 0
    %816 = vmatpush1.bf16.msra.mxu0 0
    %817 = vmatprep.subr.bf16.mxu0 0
    %818 = vmatpush1.bf16.msra.mxu0 0
    %819 = vmatprep.subr.bf16.mxu0 0
    %820 = vmatpush1.bf16.msra.mxu0 0
    %821 = vmatprep.subr.bf16.mxu0 0
    %822 = vmatpush1.bf16.msra.mxu0 0
    %823 = vmatprep.subr.bf16.mxu0 0
    %824 = vmatpush1.bf16.msra.mxu0 0
    %825 = vmatprep.subr.bf16.mxu0 0
    %826 = vmatpush1.bf16.msra.mxu0 0
    %827 = vmatprep.subr.bf16.mxu0 0
    %828 = vmatpush1.bf16.msra.mxu0 0
    %829 = vmatprep.subr.bf16.mxu0 0
    %830 = vmatpush1.bf16.msra.mxu0 0
    %831 = vmatprep.subr.bf16.mxu0 0
    %832 = vmatpush1.bf16.msra.mxu0 0
    %833 = vmatprep.subr.bf16.mxu0 0
    %834 = vmatpush1.bf16.msra.mxu0 0
    %835 = vmatprep.subr.bf16.mxu0 0
    %836 = vmatpush1.bf16.msra.mxu0 0
    %837 = vmatprep.subr.bf16.mxu0 0
    %838 = vmatpush1.bf16.msra.mxu0 0
    %839 = vmatprep.subr.bf16.mxu0 0
    %840 = vmatpush1.bf16.msra.mxu0 0
    %841 = vmatprep.mubr.bf16.mxu0 0
    %842 = vmatmul.mubr.bf16.gmra.mrb[0].mxu0 %v691
    %v843 = vpop.f32.mrb[0].mxu0
    %v844 = vadd.f32 %v795, %v843
    %v845 = vpop.f32.mrb[0].mxu0
    %v846 = vpop.f32.mrb[0].mxu0
    %v847 = vpop.f32.mrb[0].mxu0
    %848 = vdwg.mxu0
    %v849 = vadd.f32 %v668, %v728
    %v850 = vxor.u32 %v849, 2147483648
    %v851 = vmul.f32 %v850, 1.442695
    %v852 = vpow.pop %v851
    %v853 = vadd.f32 %v852, 1.0
    %v854 = vrcp.pop %v853
    %v855 = vmul.f32 1.0, %v854
    %v856 = vadd.f32 %v669, %v786
    %v857 = vxor.u32 %v856, 2147483648
    %v858 = vmul.f32 %v857, 1.442695
    %v859 = vpow.pop %v858
    %v860 = vadd.f32 %v859, 1.0
    %v861 = vrcp.pop %v860
    %v862 = vmul.f32 1.0, %v861
    %v863 = vmul.f32 %v855, %v844
    %v864 = vadd.f32 %v670, %v863
    %v865 = vtanh.pop %v864
    %v866 = vsub.f32 1.0, %v862
    %v867 = vmul.f32 %v866, %v865
    %v868 = vmul.f32 %v862, 0.0
    %v869 = vadd.f32 %v867, %v868
    %s870 = scalar_lea.vmem [#allocation2], 124
    %v871 = vld [vmem:[%s870] sm:$0xf]
    %s872 = scalar_lea.vmem [#allocation2], 156
    %v873 = vld [vmem:[%s872] sm:$0xf]
    %s874 = scalar_lea.vmem [#allocation2], 188
    %v875 = vld [vmem:[%s874] sm:$0xf]
    %v877 = vlaneseq
    %v878 = vshrl.u32 %v877, 7
    %v879 = vsub.s32 0, %v878
    %v880 = vrot.slane %v663, %v879
    %v886 = vunpack.c.l.b16 %v643
    %v887 = vunpack.c.l.b16 %v644
    %v888 = vunpack.c.l.b16 %v645
    %v889 = vunpack.c.l.b16 %v646
    %v890 = vpack.c.b16 %v887, %v886
    %v891 = vpack.c.b16 %v889, %v888
    %894 = vmatprep.subr.bf16.mxu0 0
    %895 = vmatpush1.bf16.msra.mxu0 %v890
    %896 = vmatprep.subr.bf16.mxu0 0
    %897 = vmatpush1.bf16.msra.mxu0 %v891
    %898 = vmatprep.subr.bf16.mxu0 0
    %899 = vmatpush1.bf16.msra.mxu0 0
    %900 = vmatprep.subr.bf16.mxu0 0
    %901 = vmatpush1.bf16.msra.mxu0 0
    %902 = vmatprep.subr.bf16.mxu0 0
    %903 = vmatpush1.bf16.msra.mxu0 0
    %904 = vmatprep.subr.bf16.mxu0 0
    %905 = vmatpush1.bf16.msra.mxu0 0
    %906 = vmatprep.subr.bf16.mxu0 0
    %907 = vmatpush1.bf16.msra.mxu0 0
    %908 = vmatprep.subr.bf16.mxu0 0
    %909 = vmatpush1.bf16.msra.mxu0 0
    %910 = vmatprep.subr.bf16.mxu0 0
    %911 = vmatpush1.bf16.msra.mxu0 0
    %912 = vmatprep.subr.bf16.mxu0 0
    %913 = vmatpush1.bf16.msra.mxu0 0
    %914 = vmatprep.subr.bf16.mxu0 0
    %915 = vmatpush1.bf16.msra.mxu0 0
    %916 = vmatprep.subr.bf16.mxu0 0
    %917 = vmatpush1.bf16.msra.mxu0 0
    %918 = vmatprep.subr.bf16.mxu0 0
    %919 = vmatpush1.bf16.msra.mxu0 0
    %920 = vmatprep.subr.bf16.mxu0 0
    %921 = vmatpush1.bf16.msra.mxu0 0
    %922 = vmatprep.subr.bf16.mxu0 0
    %923 = vmatpush1.bf16.msra.mxu0 0
    %924 = vmatprep.subr.bf16.mxu0 0
    %925 = vmatpush1.bf16.msra.mxu0 0
    %926 = vmatprep.mubr.bf16.mxu0 0
    %927 = vmatmul.mubr.bf16.gmra.mrb[0].mxu0 %v691
    %v928 = vpop.f32.mrb[0].mxu0
    %v929 = vadd.f32 %v880, %v928
    %v930 = vpop.f32.mrb[0].mxu0
    %v931 = vpop.f32.mrb[0].mxu0
    %v932 = vpop.f32.mrb[0].mxu0
    %933 = vdwg.mxu0
    %v935 = vlaneseq
    %v936 = vshrl.u32 %v935, 7
    %v937 = vsub.s32 0, %v936
    %v938 = vrot.slane %v665, %v937
    %v944 = vunpack.c.l.b16 %v648
    %v945 = vunpack.c.l.b16 %v649
    %v946 = vunpack.c.l.b16 %v650
    %v947 = vunpack.c.l.b16 %v651
    %v948 = vpack.c.b16 %v945, %v944
    %v949 = vpack.c.b16 %v947, %v946
    %952 = vmatprep.subr.bf16.mxu0 0
    %953 = vmatpush1.bf16.msra.mxu0 %v948
    %954 = vmatprep.subr.bf16.mxu0 0
    %955 = vmatpush1.bf16.msra.mxu0 %v949
    %956 = vmatprep.subr.bf16.mxu0 0
    %957 = vmatpush1.bf16.msra.mxu0 0
    %958 = vmatprep.subr.bf16.mxu0 0
    %959 = vmatpush1.bf16.msra.mxu0 0
    %960 = vmatprep.subr.bf16.mxu0 0
    %961 = vmatpush1.bf16.msra.mxu0 0
    %962 = vmatprep.subr.bf16.mxu0 0
    %963 = vmatpush1.bf16.msra.mxu0 0
    %964 = vmatprep.subr.bf16.mxu0 0
    %965 = vmatpush1.bf16.msra.mxu0 0
    %966 = vmatprep.subr.bf16.mxu0 0
    %967 = vmatpush1.bf16.msra.mxu0 0
    %968 = vmatprep.subr.bf16.mxu0 0
    %969 = vmatpush1.bf16.msra.mxu0 0
    %970 = vmatprep.subr.bf16.mxu0 0
    %971 = vmatpush1.bf16.msra.mxu0 0
    %972 = vmatprep.subr.bf16.mxu0 0
    %973 = vmatpush1.bf16.msra.mxu0 0
    %974 = vmatprep.subr.bf16.mxu0 0
    %975 = vmatpush1.bf16.msra.mxu0 0
    %976 = vmatprep.subr.bf16.mxu0 0
    %977 = vmatpush1.bf16.msra.mxu0 0
    %978 = vmatprep.subr.bf16.mxu0 0
    %979 = vmatpush1.bf16.msra.mxu0 0
    %980 = vmatprep.subr.bf16.mxu0 0
    %981 = vmatpush1.bf16.msra.mxu0 0
    %982 = vmatprep.subr.bf16.mxu0 0
    %983 = vmatpush1.bf16.msra.mxu0 0
    %984 = vmatprep.mubr.bf16.mxu0 0
    %985 = vmatmul.mubr.bf16.gmra.mrb[0].mxu0 %v691
    %v986 = vpop.f32.mrb[0].mxu0
    %v987 = vadd.f32 %v938, %v986
    %v988 = vpop.f32.mrb[0].mxu0
    %v989 = vpop.f32.mrb[0].mxu0
    %v990 = vpop.f32.mrb[0].mxu0
    %991 = vdwg.mxu0
    %v993 = vlaneseq
    %v994 = vshrl.u32 %v993, 7
    %v995 = vsub.s32 0, %v994
    %v996 = vrot.slane %v667, %v995
    %v1002 = vunpack.c.l.b16 %v653
    %v1003 = vunpack.c.l.b16 %v654
    %v1004 = vunpack.c.l.b16 %v655
    %v1005 = vunpack.c.l.b16 %v656
    %v1006 = vpack.c.b16 %v1003, %v1002
    %v1007 = vpack.c.b16 %v1005, %v1004
    %1010 = vmatprep.subr.bf16.mxu0 0
    %1011 = vmatpush1.bf16.msra.mxu0 %v1006
    %1012 = vmatprep.subr.bf16.mxu0 0
    %1013 = vmatpush1.bf16.msra.mxu0 %v1007
    %1014 = vmatprep.subr.bf16.mxu0 0
    %1015 = vmatpush1.bf16.msra.mxu0 0
    %1016 = vmatprep.subr.bf16.mxu0 0
    %1017 = vmatpush1.bf16.msra.mxu0 0
    %1018 = vmatprep.subr.bf16.mxu0 0
    %1019 = vmatpush1.bf16.msra.mxu0 0
    %1020 = vmatprep.subr.bf16.mxu0 0
    %1021 = vmatpush1.bf16.msra.mxu0 0
    %1022 = vmatprep.subr.bf16.mxu0 0
    %1023 = vmatpush1.bf16.msra.mxu0 0
    %1024 = vmatprep.subr.bf16.mxu0 0
    %1025 = vmatpush1.bf16.msra.mxu0 0
    %1026 = vmatprep.subr.bf16.mxu0 0
    %1027 = vmatpush1.bf16.msra.mxu0 0
    %1028 = vmatprep.subr.bf16.mxu0 0
    %1029 = vmatpush1.bf16.msra.mxu0 0
    %1030 = vmatprep.subr.bf16.mxu0 0
    %1031 = vmatpush1.bf16.msra.mxu0 0
    %1032 = vmatprep.subr.bf16.mxu0 0
    %1033 = vmatpush1.bf16.msra.mxu0 0
    %1034 = vmatprep.subr.bf16.mxu0 0
    %1035 = vmatpush1.bf16.msra.mxu0 0
    %1036 = vmatprep.subr.bf16.mxu0 0
    %1037 = vmatpush1.bf16.msra.mxu0 0
    %1038 = vmatprep.subr.bf16.mxu0 0
    %1039 = vmatpush1.bf16.msra.mxu0 0
    %1040 = vmatprep.subr.bf16.mxu0 0
    %1041 = vmatpush1.bf16.msra.mxu0 0
    %1042 = vmatprep.mubr.bf16.mxu0 0
    %1043 = vmatmul.mubr.bf16.gmra.mrb[0].mxu0 %v691
    %v1044 = vpop.f32.mrb[0].mxu0
    %v1045 = vadd.f32 %v996, %v1044
    %v1046 = vpop.f32.mrb[0].mxu0
    %v1047 = vpop.f32.mrb[0].mxu0
    %v1048 = vpop.f32.mrb[0].mxu0
    %1049 = vdwg.mxu0
    %v1050 = vadd.f32 %v871, %v929
    %v1051 = vxor.u32 %v1050, 2147483648
    %v1052 = vmul.f32 %v1051, 1.442695
    %v1053 = vpow.pop %v1052
    %v1054 = vadd.f32 %v1053, 1.0
    %v1055 = vrcp.pop %v1054
    %v1056 = vmul.f32 1.0, %v1055
    %v1057 = vadd.f32 %v873, %v987
    %v1058 = vxor.u32 %v1057, 2147483648
    %v1059 = vmul.f32 %v1058, 1.442695
    %v1060 = vpow.pop %v1059
    %v1061 = vadd.f32 %v1060, 1.0
    %v1062 = vrcp.pop %v1061
    %v1063 = vmul.f32 1.0, %v1062
    %v1064 = vmul.f32 %v1056, %v1045
    %v1065 = vadd.f32 %v875, %v1064
    %v1066 = vtanh.pop %v1065
    %v1067 = vsub.f32 1.0, %v1063
    %v1068 = vmul.f32 %v1067, %v1066
    %v1069 = vmul.f32 %v1063, 0.0
    %v1070 = vadd.f32 %v1068, %v1069
    %1071 = vst.msk [vmem:[#allocation3] sm:$0xf] %vm204, %v869
    %s1072 = scalar_lea.vmem [#allocation4], 28
    %1073 = vst.msk [vmem:[%s1072] sm:$0xf] %vm204, %v1070
    %s1074 = scalar_lea.vmem [#allocation2], 4
    %v1075 = vld [vmem:[%s1074] sm:$0xf]
    %s1076 = scalar_lea.vmem [#allocation2], 36
    %v1077 = vld [vmem:[%s1076] sm:$0xf]
    %s1078 = scalar_lea.vmem [#allocation2], 68
    %v1079 = vld [vmem:[%s1078] sm:$0xf]
    %v1080 = vpack.c.bf16 %v869, %v869
    %v1082 = vsel %vm689, %v1080, 0
    %1084 = vmatprep.subr.bf16.mxu0 0
    %1085 = vmatpush1.bf16.msra.mxu0 %v685
    %1086 = vmatprep.subr.bf16.mxu0 0
    %1087 = vmatpush1.bf16.msra.mxu0 %v686
    %1088 = vmatprep.subr.bf16.mxu0 0
    %1089 = vmatpush1.bf16.msra.mxu0 0
    %1090 = vmatprep.subr.bf16.mxu0 0
    %1091 = vmatpush1.bf16.msra.mxu0 0
    %1092 = vmatprep.subr.bf16.mxu0 0
    %1093 = vmatpush1.bf16.msra.mxu0 0
    %1094 = vmatprep.subr.bf16.mxu0 0
    %1095 = vmatpush1.bf16.msra.mxu0 0
    %1096 = vmatprep.subr.bf16.mxu0 0
    %1097 = vmatpush1.bf16.msra.mxu0 0
    %1098 = vmatprep.subr.bf16.mxu0 0
    %1099 = vmatpush1.bf16.msra.mxu0 0
    %1100 = vmatprep.subr.bf16.mxu0 0
    %1101 = vmatpush1.bf16.msra.mxu0 0
    %1102 = vmatprep.subr.bf16.mxu0 0
    %1103 = vmatpush1.bf16.msra.mxu0 0
    %1104 = vmatprep.subr.bf16.mxu0 0
    %1105 = vmatpush1.bf16.msra.mxu0 0
    %1106 = vmatprep.subr.bf16.mxu0 0
    %1107 = vmatpush1.bf16.msra.mxu0 0
    %1108 = vmatprep.subr.bf16.mxu0 0
    %1109 = vmatpush1.bf16.msra.mxu0 0
    %1110 = vmatprep.subr.bf16.mxu0 0
    %1111 = vmatpush1.bf16.msra.mxu0 0
    %1112 = vmatprep.subr.bf16.mxu0 0
    %1113 = vmatpush1.bf16.msra.mxu0 0
    %1114 = vmatprep.subr.bf16.mxu0 0
    %1115 = vmatpush1.bf16.msra.mxu0 0
    %1116 = vmatprep.mubr.bf16.mxu0 0
    %1117 = vmatmul.mubr.bf16.gmra.mrb[0].mxu0 %v1082
    %v1118 = vpop.f32.mrb[0].mxu0
    %v1119 = vadd.f32 %v675, %v1118
    %v1120 = vpop.f32.mrb[0].mxu0
    %v1121 = vpop.f32.mrb[0].mxu0
    %v1122 = vpop.f32.mrb[0].mxu0
    %1123 = vdwg.mxu0
    %1124 = vmatprep.subr.bf16.mxu0 0
    %1125 = vmatpush1.bf16.msra.mxu0 %v747
    %1126 = vmatprep.subr.bf16.mxu0 0
    %1127 = vmatpush1.bf16.msra.mxu0 %v748
    %1128 = vmatprep.subr.bf16.mxu0 0
    %1129 = vmatpush1.bf16.msra.mxu0 0
    %1130 = vmatprep.subr.bf16.mxu0 0
    %1131 = vmatpush1.bf16.msra.mxu0 0
    %1132 = vmatprep.subr.bf16.mxu0 0
    %1133 = vmatpush1.bf16.msra.mxu0 0
    %1134 = vmatprep.subr.bf16.mxu0 0
    %1135 = vmatpush1.bf16.msra.mxu0 0
    %1136 = vmatprep.subr.bf16.mxu0 0
    %1137 = vmatpush1.bf16.msra.mxu0 0
    %1138 = vmatprep.subr.bf16.mxu0 0
    %1139 = vmatpush1.bf16.msra.mxu0 0
    %1140 = vmatprep.subr.bf16.mxu0 0
    %1141 = vmatpush1.bf16.msra.mxu0 0
    %1142 = vmatprep.subr.bf16.mxu0 0
    %1143 = vmatpush1.bf16.msra.mxu0 0
    %1144 = vmatprep.subr.bf16.mxu0 0
    %1145 = vmatpush1.bf16.msra.mxu0 0
    %1146 = vmatprep.subr.bf16.mxu0 0
    %1147 = vmatpush1.bf16.msra.mxu0 0
    %1148 = vmatprep.subr.bf16.mxu0 0
    %1149 = vmatpush1.bf16.msra.mxu0 0
    %1150 = vmatprep.subr.bf16.mxu0 0
    %1151 = vmatpush1.bf16.msra.mxu0 0
    %1152 = vmatprep.subr.bf16.mxu0 0
    %1153 = vmatpush1.bf16.msra.mxu0 0
    %1154 = vmatprep.subr.bf16.mxu0 0
    %1155 = vmatpush1.bf16.msra.mxu0 0
    %1156 = vmatprep.mubr.bf16.mxu0 0
    %1157 = vmatmul.mubr.bf16.gmra.mrb[0].mxu0 %v1082
    %v1158 = vpop.f32.mrb[0].mxu0
    %v1159 = vadd.f32 %v737, %v1158
    %v1160 = vpop.f32.mrb[0].mxu0
    %v1161 = vpop.f32.mrb[0].mxu0
    %v1162 = vpop.f32.mrb[0].mxu0
    %1163 = vdwg.mxu0
    %1164 = vmatprep.subr.bf16.mxu0 0
    %1165 = vmatpush1.bf16.msra.mxu0 %v805
    %1166 = vmatprep.subr.bf16.mxu0 0
    %1167 = vmatpush1.bf16.msra.mxu0 %v806
    %1168 = vmatprep.subr.bf16.mxu0 0
    %1169 = vmatpush1.bf16.msra.mxu0 0
    %1170 = vmatprep.subr.bf16.mxu0 0
    %1171 = vmatpush1.bf16.msra.mxu0 0
    %1172 = vmatprep.subr.bf16.mxu0 0
    %1173 = vmatpush1.bf16.msra.mxu0 0
    %1174 = vmatprep.subr.bf16.mxu0 0
    %1175 = vmatpush1.bf16.msra.mxu0 0
    %1176 = vmatprep.subr.bf16.mxu0 0
    %1177 = vmatpush1.bf16.msra.mxu0 0
    %1178 = vmatprep.subr.bf16.mxu0 0
    %1179 = vmatpush1.bf16.msra.mxu0 0
    %1180 = vmatprep.subr.bf16.mxu0 0
    %1181 = vmatpush1.bf16.msra.mxu0 0
    %1182 = vmatprep.subr.bf16.mxu0 0
    %1183 = vmatpush1.bf16.msra.mxu0 0
    %1184 = vmatprep.subr.bf16.mxu0 0
    %1185 = vmatpush1.bf16.msra.mxu0 0
    %1186 = vmatprep.subr.bf16.mxu0 0
    %1187 = vmatpush1.bf16.msra.mxu0 0
    %1188 = vmatprep.subr.bf16.mxu0 0
    %1189 = vmatpush1.bf16.msra.mxu0 0
    %1190 = vmatprep.subr.bf16.mxu0 0
    %1191 = vmatpush1.bf16.msra.mxu0 0
    %1192 = vmatprep.subr.bf16.mxu0 0
    %1193 = vmatpush1.bf16.msra.mxu0 0
    %1194 = vmatprep.subr.bf16.mxu0 0
    %1195 = vmatpush1.bf16.msra.mxu0 0
    %1196 = vmatprep.mubr.bf16.mxu0 0
    %1197 = vmatmul.mubr.bf16.gmra.mrb[0].mxu0 %v1082
    %v1198 = vpop.f32.mrb[0].mxu0
    %v1199 = vadd.f32 %v795, %v1198
    %v1200 = vpop.f32.mrb[0].mxu0
    %v1201 = vpop.f32.mrb[0].mxu0
    %v1202 = vpop.f32.mrb[0].mxu0
    %1203 = vdwg.mxu0
    %v1204 = vadd.f32 %v1075, %v1119
    %v1205 = vxor.u32 %v1204, 2147483648
    %v1206 = vmul.f32 %v1205, 1.442695
    %v1207 = vpow.pop %v1206
    %v1208 = vadd.f32 %v1207, 1.0
    %v1209 = vrcp.pop %v1208
    %v1210 = vmul.f32 1.0, %v1209
    %v1211 = vadd.f32 %v1077, %v1159
    %v1212 = vxor.u32 %v1211, 2147483648
    %v1213 = vmul.f32 %v1212, 1.442695
    %v1214 = vpow.pop %v1213
    %v1215 = vadd.f32 %v1214, 1.0
    %v1216 = vrcp.pop %v1215
    %v1217 = vmul.f32 1.0, %v1216
    %v1218 = vmul.f32 %v1210, %v1199
    %v1219 = vadd.f32 %v1079, %v1218
    %v1220 = vtanh.pop %v1219
    %v1221 = vsub.f32 1.0, %v1217
    %v1222 = vmul.f32 %v1221, %v1220
    %v1223 = vmul.f32 %v1217, %v869
    %v1224 = vadd.f32 %v1222, %v1223
    %s1225 = scalar_lea.vmem [#allocation2], 120
    %v1226 = vld [vmem:[%s1225] sm:$0xf]
    %s1227 = scalar_lea.vmem [#allocation2], 152
    %v1228 = vld [vmem:[%s1227] sm:$0xf]
    %s1229 = scalar_lea.vmem [#allocation2], 184
    %v1230 = vld [vmem:[%s1229] sm:$0xf]
    %v1231 = vpack.c.bf16 %v1070, %v1070
    %v1233 = vsel %vm689, %v1231, 0
    %1235 = vmatprep.subr.bf16.mxu0 0
    %1236 = vmatpush1.bf16.msra.mxu0 %v890
    %1237 = vmatprep.subr.bf16.mxu0 0
    %1238 = vmatpush1.bf16.msra.mxu0 %v891
    %1239 = vmatprep.subr.bf16.mxu0 0
    %1240 = vmatpush1.bf16.msra.mxu0 0
    %1241 = vmatprep.subr.bf16.mxu0 0
    %1242 = vmatpush1.bf16.msra.mxu0 0
    %1243 = vmatprep.subr.bf16.mxu0 0
    %1244 = vmatpush1.bf16.msra.mxu0 0
    %1245 = vmatprep.subr.bf16.mxu0 0
    %1246 = vmatpush1.bf16.msra.mxu0 0
    %1247 = vmatprep.subr.bf16.mxu0 0
    %1248 = vmatpush1.bf16.msra.mxu0 0
    %1249 = vmatprep.subr.bf16.mxu0 0
    %1250 = vmatpush1.bf16.msra.mxu0 0
    %1251 = vmatprep.subr.bf16.mxu0 0
    %1252 = vmatpush1.bf16.msra.mxu0 0
    %1253 = vmatprep.subr.bf16.mxu0 0
    %1254 = vmatpush1.bf16.msra.mxu0 0
    %1255 = vmatprep.subr.bf16.mxu0 0
    %1256 = vmatpush1.bf16.msra.mxu0 0
    %1257 = vmatprep.subr.bf16.mxu0 0
    %1258 = vmatpush1.bf16.msra.mxu0 0
    %1259 = vmatprep.subr.bf16.mxu0 0
    %1260 = vmatpush1.bf16.msra.mxu0 0
    %1261 = vmatprep.subr.bf16.mxu0 0
    %1262 = vmatpush1.bf16.msra.mxu0 0
    %1263 = vmatprep.subr.bf16.mxu0 0
    %1264 = vmatpush1.bf16.msra.mxu0 0
    %1265 = vmatprep.subr.bf16.mxu0 0
    %1266 = vmatpush1.bf16.msra.mxu0 0
    %1267 = vmatprep.mubr.bf16.mxu0 0
    %1268 = vmatmul.mubr.bf16.gmra.mrb[0].mxu0 %v1233
    %v1269 = vpop.f32.mrb[0].mxu0
    %v1270 = vadd.f32 %v880, %v1269
    %v1271 = vpop.f32.mrb[0].mxu0
    %v1272 = vpop.f32.mrb[0].mxu0
    %v1273 = vpop.f32.mrb[0].mxu0
    %1274 = vdwg.mxu0
    %1275 = vmatprep.subr.bf16.mxu0 0
    %1276 = vmatpush1.bf16.msra.mxu0 %v948
    %1277 = vmatprep.subr.bf16.mxu0 0
    %1278 = vmatpush1.bf16.msra.mxu0 %v949
    %1279 = vmatprep.subr.bf16.mxu0 0
    %1280 = vmatpush1.bf16.msra.mxu0 0
    %1281 = vmatprep.subr.bf16.mxu0 0
    %1282 = vmatpush1.bf16.msra.mxu0 0
    %1283 = vmatprep.subr.bf16.mxu0 0
    %1284 = vmatpush1.bf16.msra.mxu0 0
    %1285 = vmatprep.subr.bf16.mxu0 0
    %1286 = vmatpush1.bf16.msra.mxu0 0
    %1287 = vmatprep.subr.bf16.mxu0 0
    %1288 = vmatpush1.bf16.msra.mxu0 0
    %1289 = vmatprep.subr.bf16.mxu0 0
    %1290 = vmatpush1.bf16.msra.mxu0 0
    %1291 = vmatprep.subr.bf16.mxu0 0
    %1292 = vmatpush1.bf16.msra.mxu0 0
    %1293 = vmatprep.subr.bf16.mxu0 0
    %1294 = vmatpush1.bf16.msra.mxu0 0
    %1295 = vmatprep.subr.bf16.mxu0 0
    %1296 = vmatpush1.bf16.msra.mxu0 0
    %1297 = vmatprep.subr.bf16.mxu0 0
    %1298 = vmatpush1.bf16.msra.mxu0 0
    %1299 = vmatprep.subr.bf16.mxu0 0
    %1300 = vmatpush1.bf16.msra.mxu0 0
    %1301 = vmatprep.subr.bf16.mxu0 0
    %1302 = vmatpush1.bf16.msra.mxu0 0
    %1303 = vmatprep.subr.bf16.mxu0 0
    %1304 = vmatpush1.bf16.msra.mxu0 0
    %1305 = vmatprep.subr.bf16.mxu0 0
    %1306 = vmatpush1.bf16.msra.mxu0 0
    %1307 = vmatprep.mubr.bf16.mxu0 0
    %1308 = vmatmul.mubr.bf16.gmra.mrb[0].mxu0 %v1233
    %v1309 = vpop.f32.mrb[0].mxu0
    %v1310 = vadd.f32 %v938, %v1309
    %v1311 = vpop.f32.mrb[0].mxu0
    %v1312 = vpop.f32.mrb[0].mxu0
    %v1313 = vpop.f32.mrb[0].mxu0
    %1314 = vdwg.mxu0
    %1315 = vmatprep.subr.bf16.mxu0 0
    %1316 = vmatpush1.bf16.msra.mxu0 %v1006
    %1317 = vmatprep.subr.bf16.mxu0 0
    %1318 = vmatpush1.bf16.msra.mxu0 %v1007
    %1319 = vmatprep.subr.bf16.mxu0 0
    %1320 = vmatpush1.bf16.msra.mxu0 0
    %1321 = vmatprep.subr.bf16.mxu0 0
    %1322 = vmatpush1.bf16.msra.mxu0 0
    %1323 = vmatprep.subr.bf16.mxu0 0
    %1324 = vmatpush1.bf16.msra.mxu0 0
    %1325 = vmatprep.subr.bf16.mxu0 0
    %1326 = vmatpush1.bf16.msra.mxu0 0
    %1327 = vmatprep.subr.bf16.mxu0 0
    %1328 = vmatpush1.bf16.msra.mxu0 0
    %1329 = vmatprep.subr.bf16.mxu0 0
    %1330 = vmatpush1.bf16.msra.mxu0 0
    %1331 = vmatprep.subr.bf16.mxu0 0
    %1332 = vmatpush1.bf16.msra.mxu0 0
    %1333 = vmatprep.subr.bf16.mxu0 0
    %1334 = vmatpush1.bf16.msra.mxu0 0
    %1335 = vmatprep.subr.bf16.mxu0 0
    %1336 = vmatpush1.bf16.msra.mxu0 0
    %1337 = vmatprep.subr.bf16.mxu0 0
    %1338 = vmatpush1.bf16.msra.mxu0 0
    %1339 = vmatprep.subr.bf16.mxu0 0
    %1340 = vmatpush1.bf16.msra.mxu0 0
    %1341 = vmatprep.subr.bf16.mxu0 0
    %1342 = vmatpush1.bf16.msra.mxu0 0
    %1343 = vmatprep.subr.bf16.mxu0 0
    %1344 = vmatpush1.bf16.msra.mxu0 0
    %1345 = vmatprep.subr.bf16.mxu0 0
    %1346 = vmatpush1.bf16.msra.mxu0 0
    %1347 = vmatprep.mubr.bf16.mxu0 0
    %1348 = vmatmul.mubr.bf16.gmra.mrb[0].mxu0 %v1233
    %v1349 = vpop.f32.mrb[0].mxu0
    %v1350 = vadd.f32 %v996, %v1349
    %v1351 = vpop.f32.mrb[0].mxu0
    %v1352 = vpop.f32.mrb[0].mxu0
    %v1353 = vpop.f32.mrb[0].mxu0
    %1354 = vdwg.mxu0
    %v1355 = vadd.f32 %v1226, %v1270
    %v1356 = vxor.u32 %v1355, 2147483648
    %v1357 = vmul.f32 %v1356, 1.442695
    %v1358 = vpow.pop %v1357
    %v1359 = vadd.f32 %v1358, 1.0
    %v1360 = vrcp.pop %v1359
    %v1361 = vmul.f32 1.0, %v1360
    %v1362 = vadd.f32 %v1228, %v1310
    %v1363 = vxor.u32 %v1362, 2147483648
    %v1364 = vmul.f32 %v1363, 1.442695
    %v1365 = vpow.pop %v1364
    %v1366 = vadd.f32 %v1365, 1.0
    %v1367 = vrcp.pop %v1366
    %v1368 = vmul.f32 1.0, %v1367
    %v1369 = vmul.f32 %v1361, %v1350
    %v1370 = vadd.f32 %v1230, %v1369
    %v1371 = vtanh.pop %v1370
    %v1372 = vsub.f32 1.0, %v1368
    %v1373 = vmul.f32 %v1372, %v1371
    %v1374 = vmul.f32 %v1368, %v1070
    %v1375 = vadd.f32 %v1373, %v1374
    %s1376 = scalar_lea.vmem [#allocation3], 4
    %1377 = vst.msk [vmem:[%s1376] sm:$0xf] %vm204, %v1224
    %s1378 = scalar_lea.vmem [#allocation4], 24
    %1379 = vst.msk [vmem:[%s1378] sm:$0xf] %vm204, %v1375
    %s1380 = scalar_lea.vmem [#allocation2], 8
    %v1381 = vld [vmem:[%s1380] sm:$0xf]
    %s1382 = scalar_lea.vmem [#allocation2], 40
    %v1383 = vld [vmem:[%s1382] sm:$0xf]
    %s1384 = scalar_lea.vmem [#allocation2], 72
    %v1385 = vld [vmem:[%s1384] sm:$0xf]
    %v1386 = vpack.c.bf16 %v1224, %v1224
    %v1388 = vsel %vm689, %v1386, 0
    %1390 = vmatprep.subr.bf16.mxu0 0
    %1391 = vmatpush1.bf16.msra.mxu0 %v685
    %1392 = vmatprep.subr.bf16.mxu0 0
    %1393 = vmatpush1.bf16.msra.mxu0 %v686
    %1394 = vmatprep.subr.bf16.mxu0 0
    %1395 = vmatpush1.bf16.msra.mxu0 0
    %1396 = vmatprep.subr.bf16.mxu0 0
    %1397 = vmatpush1.bf16.msra.mxu0 0
    %1398 = vmatprep.subr.bf16.mxu0 0
    %1399 = vmatpush1.bf16.msra.mxu0 0
    %1400 = vmatprep.subr.bf16.mxu0 0
    %1401 = vmatpush1.bf16.msra.mxu0 0
    %1402 = vmatprep.subr.bf16.mxu0 0
    %1403 = vmatpush1.bf16.msra.mxu0 0
    %1404 = vmatprep.subr.bf16.mxu0 0
    %1405 = vmatpush1.bf16.msra.mxu0 0
    %1406 = vmatprep.subr.bf16.mxu0 0
    %1407 = vmatpush1.bf16.msra.mxu0 0
    %1408 = vmatprep.subr.bf16.mxu0 0
    %1409 = vmatpush1.bf16.msra.mxu0 0
    %1410 = vmatprep.subr.bf16.mxu0 0
    %1411 = vmatpush1.bf16.msra.mxu0 0
    %1412 = vmatprep.subr.bf16.mxu0 0
    %1413 = vmatpush1.bf16.msra.mxu0 0
    %1414 = vmatprep.subr.bf16.mxu0 0
    %1415 = vmatpush1.bf16.msra.mxu0 0
    %1416 = vmatprep.subr.bf16.mxu0 0
    %1417 = vmatpush1.bf16.msra.mxu0 0
    %1418 = vmatprep.subr.bf16.mxu0 0
    %1419 = vmatpush1.bf16.msra.mxu0 0
    %1420 = vmatprep.subr.bf16.mxu0 0
    %1421 = vmatpush1.bf16.msra.mxu0 0
    %1422 = vmatprep.mubr.bf16.mxu0 0
    %1423 = vmatmul.mubr.bf16.gmra.mrb[0].mxu0 %v1388
    %v1424 = vpop.f32.mrb[0].mxu0
    %v1425 = vadd.f32 %v675, %v1424
    %v1426 = vpop.f32.mrb[0].mxu0
    %v1427 = vpop.f32.mrb[0].mxu0
    %v1428 = vpop.f32.mrb[0].mxu0
    %1429 = vdwg.mxu0
    %1430 = vmatprep.subr.bf16.mxu0 0
    %1431 = vmatpush1.bf16.msra.mxu0 %v747
    %1432 = vmatprep.subr.bf16.mxu0 0
    %1433 = vmatpush1.bf16.msra.mxu0 %v748
    %1434 = vmatprep.subr.bf16.mxu0 0
    %1435 = vmatpush1.bf16.msra.mxu0 0
    %1436 = vmatprep.subr.bf16.mxu0 0
    %1437 = vmatpush1.bf16.msra.mxu0 0
    %1438 = vmatprep.subr.bf16.mxu0 0
    %1439 = vmatpush1.bf16.msra.mxu0 0
    %1440 = vmatprep.subr.bf16.mxu0 0
    %1441 = vmatpush1.bf16.msra.mxu0 0
    %1442 = vmatprep.subr.bf16.mxu0 0
    %1443 = vmatpush1.bf16.msra.mxu0 0
    %1444 = vmatprep.subr.bf16.mxu0 0
    %1445 = vmatpush1.bf16.msra.mxu0 0
    %1446 = vmatprep.subr.bf16.mxu0 0
    %1447 = vmatpush1.bf16.msra.mxu0 0
    %1448 = vmatprep.subr.bf16.mxu0 0
    %1449 = vmatpush1.bf16.msra.mxu0 0
    %1450 = vmatprep.subr.bf16.mxu0 0
    %1451 = vmatpush1.bf16.msra.mxu0 0
    %1452 = vmatprep.subr.bf16.mxu0 0
    %1453 = vmatpush1.bf16.msra.mxu0 0
    %1454 = vmatprep.subr.bf16.mxu0 0
    %1455 = vmatpush1.bf16.msra.mxu0 0
    %1456 = vmatprep.subr.bf16.mxu0 0
    %1457 = vmatpush1.bf16.msra.mxu0 0
    %1458 = vmatprep.subr.bf16.mxu0 0
    %1459 = vmatpush1.bf16.msra.mxu0 0
    %1460 = vmatprep.subr.bf16.mxu0 0
    %1461 = vmatpush1.bf16.msra.mxu0 0
    %1462 = vmatprep.mubr.bf16.mxu0 0
    %1463 = vmatmul.mubr.bf16.gmra.mrb[0].mxu0 %v1388
    %v1464 = vpop.f32.mrb[0].mxu0
    %v1465 = vadd.f32 %v737, %v1464
    %v1466 = vpop.f32.mrb[0].mxu0
    %v1467 = vpop.f32.mrb[0].mxu0
    %v1468 = vpop.f32.mrb[0].mxu0
    %1469 = vdwg.mxu0
    %1470 = vmatprep.subr.bf16.mxu0 0
    %1471 = vmatpush1.bf16.msra.mxu0 %v805
    %1472 = vmatprep.subr.bf16.mxu0 0
    %1473 = vmatpush1.bf16.msra.mxu0 %v806
    %1474 = vmatprep.subr.bf16.mxu0 0
    %1475 = vmatpush1.bf16.msra.mxu0 0
    %1476 = vmatprep.subr.bf16.mxu0 0
    %1477 = vmatpush1.bf16.msra.mxu0 0
    %1478 = vmatprep.subr.bf16.mxu0 0
    %1479 = vmatpush1.bf16.msra.mxu0 0
    %1480 = vmatprep.subr.bf16.mxu0 0
    %1481 = vmatpush1.bf16.msra.mxu0 0
    %1482 = vmatprep.subr.bf16.mxu0 0
    %1483 = vmatpush1.bf16.msra.mxu0 0
    %1484 = vmatprep.subr.bf16.mxu0 0
    %1485 = vmatpush1.bf16.msra.mxu0 0
    %1486 = vmatprep.subr.bf16.mxu0 0
    %1487 = vmatpush1.bf16.msra.mxu0 0
    %1488 = vmatprep.subr.bf16.mxu0 0
    %1489 = vmatpush1.bf16.msra.mxu0 0
    %1490 = vmatprep.subr.bf16.mxu0 0
    %1491 = vmatpush1.bf16.msra.mxu0 0
    %1492 = vmatprep.subr.bf16.mxu0 0
    %1493 = vmatpush1.bf16.msra.mxu0 0
    %1494 = vmatprep.subr.bf16.mxu0 0
    %1495 = vmatpush1.bf16.msra.mxu0 0
    %1496 = vmatprep.subr.bf16.mxu0 0
    %1497 = vmatpush1.bf16.msra.mxu0 0
    %1498 = vmatprep.subr.bf16.mxu0 0
    %1499 = vmatpush1.bf16.msra.mxu0 0
    %1500 = vmatprep.subr.bf16.mxu0 0
    %1501 = vmatpush1.bf16.msra.mxu0 0
    %1502 = vmatprep.mubr.bf16.mxu0 0
    %1503 = vmatmul.mubr.bf16.gmra.mrb[0].mxu0 %v1388
    %v1504 = vpop.f32.mrb[0].mxu0
    %v1505 = vadd.f32 %v795, %v1504
    %v1506 = vpop.f32.mrb[0].mxu0
    %v1507 = vpop.f32.mrb[0].mxu0
    %v1508 = vpop.f32.mrb[0].mxu0
    %1509 = vdwg.mxu0
    %v1510 = vadd.f32 %v1381, %v1425
    %v1511 = vxor.u32 %v1510, 2147483648
    %v1512 = vmul.f32 %v1511, 1.442695
    %v1513 = vpow.pop %v1512
    %v1514 = vadd.f32 %v1513, 1.0
    %v1515 = vrcp.pop %v1514
    %v1516 = vmul.f32 1.0, %v1515
    %v1517 = vadd.f32 %v1383, %v1465
    %v1518 = vxor.u32 %v1517, 2147483648
    %v1519 = vmul.f32 %v1518, 1.442695
    %v1520 = vpow.pop %v1519
    %v1521 = vadd.f32 %v1520, 1.0
    %v1522 = vrcp.pop %v1521
    %v1523 = vmul.f32 1.0, %v1522
    %v1524 = vmul.f32 %v1516, %v1505
    %v1525 = vadd.f32 %v1385, %v1524
    %v1526 = vtanh.pop %v1525
    %v1527 = vsub.f32 1.0, %v1523
    %v1528 = vmul.f32 %v1527, %v1526
    %v1529 = vmul.f32 %v1523, %v1224
    %v1530 = vadd.f32 %v1528, %v1529
    %s1531 = scalar_lea.vmem [#allocation2], 116
    %v1532 = vld [vmem:[%s1531] sm:$0xf]
    %s1533 = scalar_lea.vmem [#allocation2], 148
    %v1534 = vld [vmem:[%s1533] sm:$0xf]
    %s1535 = scalar_lea.vmem [#allocation2], 180
    %v1536 = vld [vmem:[%s1535] sm:$0xf]
    %v1537 = vpack.c.bf16 %v1375, %v1375
    %v1539 = vsel %vm689, %v1537, 0
    %1541 = vmatprep.subr.bf16.mxu0 0
    %1542 = vmatpush1.bf16.msra.mxu0 %v890
    %1543 = vmatprep.subr.bf16.mxu0 0
    %1544 = vmatpush1.bf16.msra.mxu0 %v891
    %1545 = vmatprep.subr.bf16.mxu0 0
    %1546 = vmatpush1.bf16.msra.mxu0 0
    %1547 = vmatprep.subr.bf16.mxu0 0
    %1548 = vmatpush1.bf16.msra.mxu0 0
    %1549 = vmatprep.subr.bf16.mxu0 0
    %1550 = vmatpush1.bf16.msra.mxu0 0
    %1551 = vmatprep.subr.bf16.mxu0 0
    %1552 = vmatpush1.bf16.msra.mxu0 0
    %1553 = vmatprep.subr.bf16.mxu0 0
    %1554 = vmatpush1.bf16.msra.mxu0 0
    %1555 = vmatprep.subr.bf16.mxu0 0
    %1556 = vmatpush1.bf16.msra.mxu0 0
    %1557 = vmatprep.subr.bf16.mxu0 0
    %1558 = vmatpush1.bf16.msra.mxu0 0
    %1559 = vmatprep.subr.bf16.mxu0 0
    %1560 = vmatpush1.bf16.msra.mxu0 0
    %1561 = vmatprep.subr.bf16.mxu0 0
    %1562 = vmatpush1.bf16.msra.mxu0 0
    %1563 = vmatprep.subr.bf16.mxu0 0
    %1564 = vmatpush1.bf16.msra.mxu0 0
    %1565 = vmatprep.subr.bf16.mxu0 0
    %1566 = vmatpush1.bf16.msra.mxu0 0
    %1567 = vmatprep.subr.bf16.mxu0 0
    %1568 = vmatpush1.bf16.msra.mxu0 0
    %1569 = vmatprep.subr.bf16.mxu0 0
    %1570 = vmatpush1.bf16.msra.mxu0 0
    %1571 = vmatprep.subr.bf16.mxu0 0
    %1572 = vmatpush1.bf16.msra.mxu0 0
    %1573 = vmatprep.mubr.bf16.mxu0 0
    %1574 = vmatmul.mubr.bf16.gmra.mrb[0].mxu0 %v1539
    %v1575 = vpop.f32.mrb[0].mxu0
    %v1576 = vadd.f32 %v880, %v1575
    %v1577 = vpop.f32.mrb[0].mxu0
    %v1578 = vpop.f32.mrb[0].mxu0
    %v1579 = vpop.f32.mrb[0].mxu0
    %1580 = vdwg.mxu0
    %1581 = vmatprep.subr.bf16.mxu0 0
    %1582 = vmatpush1.bf16.msra.mxu0 %v948
    %1583 = vmatprep.subr.bf16.mxu0 0
    %1584 = vmatpush1.bf16.msra.mxu0 %v949
    %1585 = vmatprep.subr.bf16.mxu0 0
    %1586 = vmatpush1.bf16.msra.mxu0 0
    %1587 = vmatprep.subr.bf16.mxu0 0
    %1588 = vmatpush1.bf16.msra.mxu0 0
    %1589 = vmatprep.subr.bf16.mxu0 0
    %1590 = vmatpush1.bf16.msra.mxu0 0
    %1591 = vmatprep.subr.bf16.mxu0 0
    %1592 = vmatpush1.bf16.msra.mxu0 0
    %1593 = vmatprep.subr.bf16.mxu0 0
    %1594 = vmatpush1.bf16.msra.mxu0 0
    %1595 = vmatprep.subr.bf16.mxu0 0
    %1596 = vmatpush1.bf16.msra.mxu0 0
    %1597 = vmatprep.subr.bf16.mxu0 0
    %1598 = vmatpush1.bf16.msra.mxu0 0
    %1599 = vmatprep.subr.bf16.mxu0 0
    %1600 = vmatpush1.bf16.msra.mxu0 0
    %1601 = vmatprep.subr.bf16.mxu0 0
    %1602 = vmatpush1.bf16.msra.mxu0 0
    %1603 = vmatprep.subr.bf16.mxu0 0
    %1604 = vmatpush1.bf16.msra.mxu0 0
    %1605 = vmatprep.subr.bf16.mxu0 0
    %1606 = vmatpush1.bf16.msra.mxu0 0
    %1607 = vmatprep.subr.bf16.mxu0 0
    %1608 = vmatpush1.bf16.msra.mxu0 0
    %1609 = vmatprep.subr.bf16.mxu0 0
    %1610 = vmatpush1.bf16.msra.mxu0 0
    %1611 = vmatprep.subr.bf16.mxu0 0
    %1612 = vmatpush1.bf16.msra.mxu0 0
    %1613 = vmatprep.mubr.bf16.mxu0 0
    %1614 = vmatmul.mubr.bf16.gmra.mrb[0].mxu0 %v1539
    %v1615 = vpop.f32.mrb[0].mxu0
    %v1616 = vadd.f32 %v938, %v1615
    %v1617 = vpop.f32.mrb[0].mxu0
    %v1618 = vpop.f32.mrb[0].mxu0
    %v1619 = vpop.f32.mrb[0].mxu0
    %1620 = vdwg.mxu0
    %1621 = vmatprep.subr.bf16.mxu0 0
    %1622 = vmatpush1.bf16.msra.mxu0 %v1006
    %1623 = vmatprep.subr.bf16.mxu0 0
    %1624 = vmatpush1.bf16.msra.mxu0 %v1007
    %1625 = vmatprep.subr.bf16.mxu0 0
    %1626 = vmatpush1.bf16.msra.mxu0 0
    %1627 = vmatprep.subr.bf16.mxu0 0
    %1628 = vmatpush1.bf16.msra.mxu0 0
    %1629 = vmatprep.subr.bf16.mxu0 0
    %1630 = vmatpush1.bf16.msra.mxu0 0
    %1631 = vmatprep.subr.bf16.mxu0 0
    %1632 = vmatpush1.bf16.msra.mxu0 0
    %1633 = vmatprep.subr.bf16.mxu0 0
    %1634 = vmatpush1.bf16.msra.mxu0 0
    %1635 = vmatprep.subr.bf16.mxu0 0
    %1636 = vmatpush1.bf16.msra.mxu0 0
    %1637 = vmatprep.subr.bf16.mxu0 0
    %1638 = vmatpush1.bf16.msra.mxu0 0
    %1639 = vmatprep.subr.bf16.mxu0 0
    %1640 = vmatpush1.bf16.msra.mxu0 0
    %1641 = vmatprep.subr.bf16.mxu0 0
    %1642 = vmatpush1.bf16.msra.mxu0 0
    %1643 = vmatprep.subr.bf16.mxu0 0
    %1644 = vmatpush1.bf16.msra.mxu0 0
    %1645 = vmatprep.subr.bf16.mxu0 0
    %1646 = vmatpush1.bf16.msra.mxu0 0
    %1647 = vmatprep.subr.bf16.mxu0 0
    %1648 = vmatpush1.bf16.msra.mxu0 0
    %1649 = vmatprep.subr.bf16.mxu0 0
    %1650 = vmatpush1.bf16.msra.mxu0 0
    %1651 = vmatprep.subr.bf16.mxu0 0
    %1652 = vmatpush1.bf16.msra.mxu0 0
    %1653 = vmatprep.mubr.bf16.mxu0 0
    %1654 = vmatmul.mubr.bf16.gmra.mrb[0].mxu0 %v1539
    %v1655 = vpop.f32.mrb[0].mxu0
    %v1656 = vadd.f32 %v996, %v1655
    %v1657 = vpop.f32.mrb[0].mxu0
    %v1658 = vpop.f32.mrb[0].mxu0
    %v1659 = vpop.f32.mrb[0].mxu0
    %1660 = vdwg.mxu0
    %v1661 = vadd.f32 %v1532, %v1576
    %v1662 = vxor.u32 %v1661, 2147483648
    %v1663 = vmul.f32 %v1662, 1.442695
    %v1664 = vpow.pop %v1663
    %v1665 = vadd.f32 %v1664, 1.0
    %v1666 = vrcp.pop %v1665
    %v1667 = vmul.f32 1.0, %v1666
    %v1668 = vadd.f32 %v1534, %v1616
    %v1669 = vxor.u32 %v1668, 2147483648
    %v1670 = vmul.f32 %v1669, 1.442695
    %v1671 = vpow.pop %v1670
    %v1672 = vadd.f32 %v1671, 1.0
    %v1673 = vrcp.pop %v1672
    %v1674 = vmul.f32 1.0, %v1673
    %v1675 = vmul.f32 %v1667, %v1656
    %v1676 = vadd.f32 %v1536, %v1675
    %v1677 = vtanh.pop %v1676
    %v1678 = vsub.f32 1.0, %v1674
    %v1679 = vmul.f32 %v1678, %v1677
    %v1680 = vmul.f32 %v1674, %v1375
    %v1681 = vadd.f32 %v1679, %v1680
    %s1682 = scalar_lea.vmem [#allocation3], 8
    %1683 = vst.msk [vmem:[%s1682] sm:$0xf] %vm204, %v1530
    %s1684 = scalar_lea.vmem [#allocation4], 20
    %1685 = vst.msk [vmem:[%s1684] sm:$0xf] %vm204, %v1681
    %s1686 = scalar_lea.vmem [#allocation2], 12
    %v1687 = vld [vmem:[%s1686] sm:$0xf]
    %s1688 = scalar_lea.vmem [#allocation2], 44
    %v1689 = vld [vmem:[%s1688] sm:$0xf]
    %s1690 = scalar_lea.vmem [#allocation2], 76
    %v1691 = vld [vmem:[%s1690] sm:$0xf]
    %v1692 = vpack.c.bf16 %v1530, %v1530
    %v1694 = vsel %vm689, %v1692, 0
    %1696 = vmatprep.subr.bf16.mxu0 0
    %1697 = vmatpush1.bf16.msra.mxu0 %v685
    %1698 = vmatprep.subr.bf16.mxu0 0
    %1699 = vmatpush1.bf16.msra.mxu0 %v686
    %1700 = vmatprep.subr.bf16.mxu0 0
    %1701 = vmatpush1.bf16.msra.mxu0 0
    %1702 = vmatprep.subr.bf16.mxu0 0
    %1703 = vmatpush1.bf16.msra.mxu0 0
    %1704 = vmatprep.subr.bf16.mxu0 0
    %1705 = vmatpush1.bf16.msra.mxu0 0
    %1706 = vmatprep.subr.bf16.mxu0 0
    %1707 = vmatpush1.bf16.msra.mxu0 0
    %1708 = vmatprep.subr.bf16.mxu0 0
    %1709 = vmatpush1.bf16.msra.mxu0 0
    %1710 = vmatprep.subr.bf16.mxu0 0
    %1711 = vmatpush1.bf16.msra.mxu0 0
    %1712 = vmatprep.subr.bf16.mxu0 0
    %1713 = vmatpush1.bf16.msra.mxu0 0
    %1714 = vmatprep.subr.bf16.mxu0 0
    %1715 = vmatpush1.bf16.msra.mxu0 0
    %1716 = vmatprep.subr.bf16.mxu0 0
    %1717 = vmatpush1.bf16.msra.mxu0 0
    %1718 = vmatprep.subr.bf16.mxu0 0
    %1719 = vmatpush1.bf16.msra.mxu0 0
    %1720 = vmatprep.subr.bf16.mxu0 0
    %1721 = vmatpush1.bf16.msra.mxu0 0
    %1722 = vmatprep.subr.bf16.mxu0 0
    %1723 = vmatpush1.bf16.msra.mxu0 0
    %1724 = vmatprep.subr.bf16.mxu0 0
    %1725 = vmatpush1.bf16.msra.mxu0 0
    %1726 = vmatprep.subr.bf16.mxu0 0
    %1727 = vmatpush1.bf16.msra.mxu0 0
    %1728 = vmatprep.mubr.bf16.mxu0 0
    %1729 = vmatmul.mubr.bf16.gmra.mrb[0].mxu0 %v1694
    %v1730 = vpop.f32.mrb[0].mxu0
    %v1731 = vadd.f32 %v675, %v1730
    %v1732 = vpop.f32.mrb[0].mxu0
    %v1733 = vpop.f32.mrb[0].mxu0
    %v1734 = vpop.f32.mrb[0].mxu0
    %1735 = vdwg.mxu0
    %1736 = vmatprep.subr.bf16.mxu0 0
    %1737 = vmatpush1.bf16.msra.mxu0 %v747
    %1738 = vmatprep.subr.bf16.mxu0 0
    %1739 = vmatpush1.bf16.msra.mxu0 %v748
    %1740 = vmatprep.subr.bf16.mxu0 0
    %1741 = vmatpush1.bf16.msra.mxu0 0
    %1742 = vmatprep.subr.bf16.mxu0 0
    %1743 = vmatpush1.bf16.msra.mxu0 0
    %1744 = vmatprep.subr.bf16.mxu0 0
    %1745 = vmatpush1.bf16.msra.mxu0 0
    %1746 = vmatprep.subr.bf16.mxu0 0
    %1747 = vmatpush1.bf16.msra.mxu0 0
    %1748 = vmatprep.subr.bf16.mxu0 0
    %1749 = vmatpush1.bf16.msra.mxu0 0
    %1750 = vmatprep.subr.bf16.mxu0 0
    %1751 = vmatpush1.bf16.msra.mxu0 0
    %1752 = vmatprep.subr.bf16.mxu0 0
    %1753 = vmatpush1.bf16.msra.mxu0 0
    %1754 = vmatprep.subr.bf16.mxu0 0
    %1755 = vmatpush1.bf16.msra.mxu0 0
    %1756 = vmatprep.subr.bf16.mxu0 0
    %1757 = vmatpush1.bf16.msra.mxu0 0
    %1758 = vmatprep.subr.bf16.mxu0 0
    %1759 = vmatpush1.bf16.msra.mxu0 0
    %1760 = vmatprep.subr.bf16.mxu0 0
    %1761 = vmatpush1.bf16.msra.mxu0 0
    %1762 = vmatprep.subr.bf16.mxu0 0
    %1763 = vmatpush1.bf16.msra.mxu0 0
    %1764 = vmatprep.subr.bf16.mxu0 0
    %1765 = vmatpush1.bf16.msra.mxu0 0
    %1766 = vmatprep.subr.bf16.mxu0 0
    %1767 = vmatpush1.bf16.msra.mxu0 0
    %1768 = vmatprep.mubr.bf16.mxu0 0
    %1769 = vmatmul.mubr.bf16.gmra.mrb[0].mxu0 %v1694
    %v1770 = vpop.f32.mrb[0].mxu0
    %v1771 = vadd.f32 %v737, %v1770
    %v1772 = vpop.f32.mrb[0].mxu0
    %v1773 = vpop.f32.mrb[0].mxu0
    %v1774 = vpop.f32.mrb[0].mxu0
    %1775 = vdwg.mxu0
    %1776 = vmatprep.subr.bf16.mxu0 0
    %1777 = vmatpush1.bf16.msra.mxu0 %v805
    %1778 = vmatprep.subr.bf16.mxu0 0
    %1779 = vmatpush1.bf16.msra.mxu0 %v806
    %1780 = vmatprep.subr.bf16.mxu0 0
    %1781 = vmatpush1.bf16.msra.mxu0 0
    %1782 = vmatprep.subr.bf16.mxu0 0
    %1783 = vmatpush1.bf16.msra.mxu0 0
    %1784 = vmatprep.subr.bf16.mxu0 0
    %1785 = vmatpush1.bf16.msra.mxu0 0
    %1786 = vmatprep.subr.bf16.mxu0 0
    %1787 = vmatpush1.bf16.msra.mxu0 0
    %1788 = vmatprep.subr.bf16.mxu0 0
    %1789 = vmatpush1.bf16.msra.mxu0 0
    %1790 = vmatprep.subr.bf16.mxu0 0
    %1791 = vmatpush1.bf16.msra.mxu0 0
    %1792 = vmatprep.subr.bf16.mxu0 0
    %1793 = vmatpush1.bf16.msra.mxu0 0
    %1794 = vmatprep.subr.bf16.mxu0 0
    %1795 = vmatpush1.bf16.msra.mxu0 0
    %1796 = vmatprep.subr.bf16.mxu0 0
    %1797 = vmatpush1.bf16.msra.mxu0 0
    %1798 = vmatprep.subr.bf16.mxu0 0
    %1799 = vmatpush1.bf16.msra.mxu0 0
    %1800 = vmatprep.subr.bf16.mxu0 0
    %1801 = vmatpush1.bf16.msra.mxu0 0
    %1802 = vmatprep.subr.bf16.mxu0 0
    %1803 = vmatpush1.bf16.msra.mxu0 0
    %1804 = vmatprep.subr.bf16.mxu0 0
    %1805 = vmatpush1.bf16.msra.mxu0 0
    %1806 = vmatprep.subr.bf16.mxu0 0
    %1807 = vmatpush1.bf16.msra.mxu0 0
    %1808 = vmatprep.mubr.bf16.mxu0 0
    %1809 = vmatmul.mubr.bf16.gmra.mrb[0].mxu0 %v1694
    %v1810 = vpop.f32.mrb[0].mxu0
    %v1811 = vadd.f32 %v795, %v1810
    %v1812 = vpop.f32.mrb[0].mxu0
    %v1813 = vpop.f32.mrb[0].mxu0
    %v1814 = vpop.f32.mrb[0].mxu0
    %1815 = vdwg.mxu0
    %v1816 = vadd.f32 %v1687, %v1731
    %v1817 = vxor.u32 %v1816, 2147483648
    %v1818 = vmul.f32 %v1817, 1.442695
    %v1819 = vpow.pop %v1818
    %v1820 = vadd.f32 %v1819, 1.0
    %v1821 = vrcp.pop %v1820
    %v1822 = vmul.f32 1.0, %v1821
    %v1823 = vadd.f32 %v1689, %v1771
    %v1824 = vxor.u32 %v1823, 2147483648
    %v1825 = vmul.f32 %v1824, 1.442695
    %v1826 = vpow.pop %v1825
    %v1827 = vadd.f32 %v1826, 1.0
    %v1828 = vrcp.pop %v1827
    %v1829 = vmul.f32 1.0, %v1828
    %v1830 = vmul.f32 %v1822, %v1811
    %v1831 = vadd.f32 %v1691, %v1830
    %v1832 = vtanh.pop %v1831
    %v1833 = vsub.f32 1.0, %v1829
    %v1834 = vmul.f32 %v1833, %v1832
    %v1835 = vmul.f32 %v1829, %v1530
    %v1836 = vadd.f32 %v1834, %v1835
    %s1837 = scalar_lea.vmem [#allocation2], 112
    %v1838 = vld [vmem:[%s1837] sm:$0xf]
    %s1839 = scalar_lea.vmem [#allocation2], 144
    %v1840 = vld [vmem:[%s1839] sm:$0xf]
    %s1841 = scalar_lea.vmem [#allocation2], 176
    %v1842 = vld [vmem:[%s1841] sm:$0xf]
    %v1843 = vpack.c.bf16 %v1681, %v1681
    %v1845 = vsel %vm689, %v1843, 0
    %1847 = vmatprep.subr.bf16.mxu0 0
    %1848 = vmatpush1.bf16.msra.mxu0 %v890
    %1849 = vmatprep.subr.bf16.mxu0 0
    %1850 = vmatpush1.bf16.msra.mxu0 %v891
    %1851 = vmatprep.subr.bf16.mxu0 0
    %1852 = vmatpush1.bf16.msra.mxu0 0
    %1853 = vmatprep.subr.bf16.mxu0 0
    %1854 = vmatpush1.bf16.msra.mxu0 0
    %1855 = vmatprep.subr.bf16.mxu0 0
    %1856 = vmatpush1.bf16.msra.mxu0 0
    %1857 = vmatprep.subr.bf16.mxu0 0
    %1858 = vmatpush1.bf16.msra.mxu0 0
    %1859 = vmatprep.subr.bf16.mxu0 0
    %1860 = vmatpush1.bf16.msra.mxu0 0
    %1861 = vmatprep.subr.bf16.mxu0 0
    %1862 = vmatpush1.bf16.msra.mxu0 0
    %1863 = vmatprep.subr.bf16.mxu0 0
    %1864 = vmatpush1.bf16.msra.mxu0 0
    %1865 = vmatprep.subr.bf16.mxu0 0
    %1866 = vmatpush1.bf16.msra.mxu0 0
    %1867 = vmatprep.subr.bf16.mxu0 0
    %1868 = vmatpush1.bf16.msra.mxu0 0
    %1869 = vmatprep.subr.bf16.mxu0 0
    %1870 = vmatpush1.bf16.msra.mxu0 0
    %1871 = vmatprep.subr.bf16.mxu0 0
    %1872 = vmatpush1.bf16.msra.mxu0 0
    %1873 = vmatprep.subr.bf16.mxu0 0
    %1874 = vmatpush1.bf16.msra.mxu0 0
    %1875 = vmatprep.subr.bf16.mxu0 0
    %1876 = vmatpush1.bf16.msra.mxu0 0
    %1877 = vmatprep.subr.bf16.mxu0 0
    %1878 = vmatpush1.bf16.msra.mxu0 0
    %1879 = vmatprep.mubr.bf16.mxu0 0
    %1880 = vmatmul.mubr.bf16.gmra.mrb[0].mxu0 %v1845
    %v1881 = vpop.f32.mrb[0].mxu0
    %v1882 = vadd.f32 %v880, %v1881
    %v1883 = vpop.f32.mrb[0].mxu0
    %v1884 = vpop.f32.mrb[0].mxu0
    %v1885 = vpop.f32.mrb[0].mxu0
    %1886 = vdwg.mxu0
    %1887 = vmatprep.subr.bf16.mxu0 0
    %1888 = vmatpush1.bf16.msra.mxu0 %v948
    %1889 = vmatprep.subr.bf16.mxu0 0
    %1890 = vmatpush1.bf16.msra.mxu0 %v949
    %1891 = vmatprep.subr.bf16.mxu0 0
    %1892 = vmatpush1.bf16.msra.mxu0 0
    %1893 = vmatprep.subr.bf16.mxu0 0
    %1894 = vmatpush1.bf16.msra.mxu0 0
    %1895 = vmatprep.subr.bf16.mxu0 0
    %1896 = vmatpush1.bf16.msra.mxu0 0
    %1897 = vmatprep.subr.bf16.mxu0 0
    %1898 = vmatpush1.bf16.msra.mxu0 0
    %1899 = vmatprep.subr.bf16.mxu0 0
    %1900 = vmatpush1.bf16.msra.mxu0 0
    %1901 = vmatprep.subr.bf16.mxu0 0
    %1902 = vmatpush1.bf16.msra.mxu0 0
    %1903 = vmatprep.subr.bf16.mxu0 0
    %1904 = vmatpush1.bf16.msra.mxu0 0
    %1905 = vmatprep.subr.bf16.mxu0 0
    %1906 = vmatpush1.bf16.msra.mxu0 0
    %1907 = vmatprep.subr.bf16.mxu0 0
    %1908 = vmatpush1.bf16.msra.mxu0 0
    %1909 = vmatprep.subr.bf16.mxu0 0
    %1910 = vmatpush1.bf16.msra.mxu0 0
    %1911 = vmatprep.subr.bf16.mxu0 0
    %1912 = vmatpush1.bf16.msra.mxu0 0
    %1913 = vmatprep.subr.bf16.mxu0 0
    %1914 = vmatpush1.bf16.msra.mxu0 0
    %1915 = vmatprep.subr.bf16.mxu0 0
    %1916 = vmatpush1.bf16.msra.mxu0 0
    %1917 = vmatprep.subr.bf16.mxu0 0
    %1918 = vmatpush1.bf16.msra.mxu0 0
    %1919 = vmatprep.mubr.bf16.mxu0 0
    %1920 = vmatmul.mubr.bf16.gmra.mrb[0].mxu0 %v1845
    %v1921 = vpop.f32.mrb[0].mxu0
    %v1922 = vadd.f32 %v938, %v1921
    %v1923 = vpop.f32.mrb[0].mxu0
    %v1924 = vpop.f32.mrb[0].mxu0
    %v1925 = vpop.f32.mrb[0].mxu0
    %1926 = vdwg.mxu0
    %1927 = vmatprep.subr.bf16.mxu0 0
    %1928 = vmatpush1.bf16.msra.mxu0 %v1006
    %1929 = vmatprep.subr.bf16.mxu0 0
    %1930 = vmatpush1.bf16.msra.mxu0 %v1007
    %1931 = vmatprep.subr.bf16.mxu0 0
    %1932 = vmatpush1.bf16.msra.mxu0 0
    %1933 = vmatprep.subr.bf16.mxu0 0
    %1934 = vmatpush1.bf16.msra.mxu0 0
    %1935 = vmatprep.subr.bf16.mxu0 0
    %1936 = vmatpush1.bf16.msra.mxu0 0
    %1937 = vmatprep.subr.bf16.mxu0 0
    %1938 = vmatpush1.bf16.msra.mxu0 0
    %1939 = vmatprep.subr.bf16.mxu0 0
    %1940 = vmatpush1.bf16.msra.mxu0 0
    %1941 = vmatprep.subr.bf16.mxu0 0
    %1942 = vmatpush1.bf16.msra.mxu0 0
    %1943 = vmatprep.subr.bf16.mxu0 0
    %1944 = vmatpush1.bf16.msra.mxu0 0
    %1945 = vmatprep.subr.bf16.mxu0 0
    %1946 = vmatpush1.bf16.msra.mxu0 0
    %1947 = vmatprep.subr.bf16.mxu0 0
    %1948 = vmatpush1.bf16.msra.mxu0 0
    %1949 = vmatprep.subr.bf16.mxu0 0
    %1950 = vmatpush1.bf16.msra.mxu0 0
    %1951 = vmatprep.subr.bf16.mxu0 0
    %1952 = vmatpush1.bf16.msra.mxu0 0
    %1953 = vmatprep.subr.bf16.mxu0 0
    %1954 = vmatpush1.bf16.msra.mxu0 0
    %1955 = vmatprep.subr.bf16.mxu0 0
    %1956 = vmatpush1.bf16.msra.mxu0 0
    %1957 = vmatprep.subr.bf16.mxu0 0
    %1958 = vmatpush1.bf16.msra.mxu0 0
    %1959 = vmatprep.mubr.bf16.mxu0 0
    %1960 = vmatmul.mubr.bf16.gmra.mrb[0].mxu0 %v1845
    %v1961 = vpop.f32.mrb[0].mxu0
    %v1962 = vadd.f32 %v996, %v1961
    %v1963 = vpop.f32.mrb[0].mxu0
    %v1964 = vpop.f32.mrb[0].mxu0
    %v1965 = vpop.f32.mrb[0].mxu0
    %1966 = vdwg.mxu0
    %v1967 = vadd.f32 %v1838, %v1882
    %v1968 = vxor.u32 %v1967, 2147483648
    %v1969 = vmul.f32 %v1968, 1.442695
    %v1970 = vpow.pop %v1969
    %v1971 = vadd.f32 %v1970, 1.0
    %v1972 = vrcp.pop %v1971
    %v1973 = vmul.f32 1.0, %v1972
    %v1974 = vadd.f32 %v1840, %v1922
    %v1975 = vxor.u32 %v1974, 2147483648
    %v1976 = vmul.f32 %v1975, 1.442695
    %v1977 = vpow.pop %v1976
    %v1978 = vadd.f32 %v1977, 1.0
    %v1979 = vrcp.pop %v1978
    %v1980 = vmul.f32 1.0, %v1979
    %v1981 = vmul.f32 %v1973, %v1962
    %v1982 = vadd.f32 %v1842, %v1981
    %v1983 = vtanh.pop %v1982
    %v1984 = vsub.f32 1.0, %v1980
    %v1985 = vmul.f32 %v1984, %v1983
    %v1986 = vmul.f32 %v1980, %v1681
    %v1987 = vadd.f32 %v1985, %v1986
    %s1988 = scalar_lea.vmem [#allocation3], 12
    %1989 = vst.msk [vmem:[%s1988] sm:$0xf] %vm204, %v1836
    %s1990 = scalar_lea.vmem [#allocation4], 16
    %1991 = vst.msk [vmem:[%s1990] sm:$0xf] %vm204, %v1987
    %s1992 = scalar_lea.vmem [#allocation2], 16
    %v1993 = vld [vmem:[%s1992] sm:$0xf]
    %s1994 = scalar_lea.vmem [#allocation2], 48
    %v1995 = vld [vmem:[%s1994] sm:$0xf]
    %s1996 = scalar_lea.vmem [#allocation2], 80
    %v1997 = vld [vmem:[%s1996] sm:$0xf]
    %v1998 = vpack.c.bf16 %v1836, %v1836
    %v2000 = vsel %vm689, %v1998, 0
    %2002 = vmatprep.subr.bf16.mxu0 0
    %2003 = vmatpush1.bf16.msra.mxu0 %v685
    %2004 = vmatprep.subr.bf16.mxu0 0
    %2005 = vmatpush1.bf16.msra.mxu0 %v686
    %2006 = vmatprep.subr.bf16.mxu0 0
    %2007 = vmatpush1.bf16.msra.mxu0 0
    %2008 = vmatprep.subr.bf16.mxu0 0
    %2009 = vmatpush1.bf16.msra.mxu0 0
    %2010 = vmatprep.subr.bf16.mxu0 0
    %2011 = vmatpush1.bf16.msra.mxu0 0
    %2012 = vmatprep.subr.bf16.mxu0 0
    %2013 = vmatpush1.bf16.msra.mxu0 0
    %2014 = vmatprep.subr.bf16.mxu0 0
    %2015 = vmatpush1.bf16.msra.mxu0 0
    %2016 = vmatprep.subr.bf16.mxu0 0
    %2017 = vmatpush1.bf16.msra.mxu0 0
    %2018 = vmatprep.subr.bf16.mxu0 0
    %2019 = vmatpush1.bf16.msra.mxu0 0
    %2020 = vmatprep.subr.bf16.mxu0 0
    %2021 = vmatpush1.bf16.msra.mxu0 0
    %2022 = vmatprep.subr.bf16.mxu0 0
    %2023 = vmatpush1.bf16.msra.mxu0 0
    %2024 = vmatprep.subr.bf16.mxu0 0
    %2025 = vmatpush1.bf16.msra.mxu0 0
    %2026 = vmatprep.subr.bf16.mxu0 0
    %2027 = vmatpush1.bf16.msra.mxu0 0
    %2028 = vmatprep.subr.bf16.mxu0 0
    %2029 = vmatpush1.bf16.msra.mxu0 0
    %2030 = vmatprep.subr.bf16.mxu0 0
    %2031 = vmatpush1.bf16.msra.mxu0 0
    %2032 = vmatprep.subr.bf16.mxu0 0
    %2033 = vmatpush1.bf16.msra.mxu0 0
    %2034 = vmatprep.mubr.bf16.mxu0 0
    %2035 = vmatmul.mubr.bf16.gmra.mrb[0].mxu0 %v2000
    %v2036 = vpop.f32.mrb[0].mxu0
    %v2037 = vadd.f32 %v675, %v2036
    %v2038 = vpop.f32.mrb[0].mxu0
    %v2039 = vpop.f32.mrb[0].mxu0
    %v2040 = vpop.f32.mrb[0].mxu0
    %2041 = vdwg.mxu0
    %2042 = vmatprep.subr.bf16.mxu0 0
    %2043 = vmatpush1.bf16.msra.mxu0 %v747
    %2044 = vmatprep.subr.bf16.mxu0 0
    %2045 = vmatpush1.bf16.msra.mxu0 %v748
    %2046 = vmatprep.subr.bf16.mxu0 0
    %2047 = vmatpush1.bf16.msra.mxu0 0
    %2048 = vmatprep.subr.bf16.mxu0 0
    %2049 = vmatpush1.bf16.msra.mxu0 0
    %2050 = vmatprep.subr.bf16.mxu0 0
    %2051 = vmatpush1.bf16.msra.mxu0 0
    %2052 = vmatprep.subr.bf16.mxu0 0
    %2053 = vmatpush1.bf16.msra.mxu0 0
    %2054 = vmatprep.subr.bf16.mxu0 0
    %2055 = vmatpush1.bf16.msra.mxu0 0
    %2056 = vmatprep.subr.bf16.mxu0 0
    %2057 = vmatpush1.bf16.msra.mxu0 0
    %2058 = vmatprep.subr.bf16.mxu0 0
    %2059 = vmatpush1.bf16.msra.mxu0 0
    %2060 = vmatprep.subr.bf16.mxu0 0
    %2061 = vmatpush1.bf16.msra.mxu0 0
    %2062 = vmatprep.subr.bf16.mxu0 0
    %2063 = vmatpush1.bf16.msra.mxu0 0
    %2064 = vmatprep.subr.bf16.mxu0 0
    %2065 = vmatpush1.bf16.msra.mxu0 0
    %2066 = vmatprep.subr.bf16.mxu0 0
    %2067 = vmatpush1.bf16.msra.mxu0 0
    %2068 = vmatprep.subr.bf16.mxu0 0
    %2069 = vmatpush1.bf16.msra.mxu0 0
    %2070 = vmatprep.subr.bf16.mxu0 0
    %2071 = vmatpush1.bf16.msra.mxu0 0
    %2072 = vmatprep.subr.bf16.mxu0 0
    %2073 = vmatpush1.bf16.msra.mxu0 0
    %2074 = vmatprep.mubr.bf16.mxu0 0
    %2075 = vmatmul.mubr.bf16.gmra.mrb[0].mxu0 %v2000
    %v2076 = vpop.f32.mrb[0].mxu0
    %v2077 = vadd.f32 %v737, %v2076
    %v2078 = vpop.f32.mrb[0].mxu0
    %v2079 = vpop.f32.mrb[0].mxu0
    %v2080 = vpop.f32.mrb[0].mxu0
    %2081 = vdwg.mxu0
    %2082 = vmatprep.subr.bf16.mxu0 0
    %2083 = vmatpush1.bf16.msra.mxu0 %v805
    %2084 = vmatprep.subr.bf16.mxu0 0
    %2085 = vmatpush1.bf16.msra.mxu0 %v806
    %2086 = vmatprep.subr.bf16.mxu0 0
    %2087 = vmatpush1.bf16.msra.mxu0 0
    %2088 = vmatprep.subr.bf16.mxu0 0
    %2089 = vmatpush1.bf16.msra.mxu0 0
    %2090 = vmatprep.subr.bf16.mxu0 0
    %2091 = vmatpush1.bf16.msra.mxu0 0
    %2092 = vmatprep.subr.bf16.mxu0 0
    %2093 = vmatpush1.bf16.msra.mxu0 0
    %2094 = vmatprep.subr.bf16.mxu0 0
    %2095 = vmatpush1.bf16.msra.mxu0 0
    %2096 = vmatprep.subr.bf16.mxu0 0
    %2097 = vmatpush1.bf16.msra.mxu0 0
    %2098 = vmatprep.subr.bf16.mxu0 0
    %2099 = vmatpush1.bf16.msra.mxu0 0
    %2100 = vmatprep.subr.bf16.mxu0 0
    %2101 = vmatpush1.bf16.msra.mxu0 0
    %2102 = vmatprep.subr.bf16.mxu0 0
    %2103 = vmatpush1.bf16.msra.mxu0 0
    %2104 = vmatprep.subr.bf16.mxu0 0
    %2105 = vmatpush1.bf16.msra.mxu0 0
    %2106 = vmatprep.subr.bf16.mxu0 0
    %2107 = vmatpush1.bf16.msra.mxu0 0
    %2108 = vmatprep.subr.bf16.mxu0 0
    %2109 = vmatpush1.bf16.msra.mxu0 0
    %2110 = vmatprep.subr.bf16.mxu0 0
    %2111 = vmatpush1.bf16.msra.mxu0 0
    %2112 = vmatprep.subr.bf16.mxu0 0
    %2113 = vmatpush1.bf16.msra.mxu0 0
    %2114 = vmatprep.mubr.bf16.mxu0 0
    %2115 = vmatmul.mubr.bf16.gmra.mrb[0].mxu0 %v2000
    %v2116 = vpop.f32.mrb[0].mxu0
    %v2117 = vadd.f32 %v795, %v2116
    %v2118 = vpop.f32.mrb[0].mxu0
    %v2119 = vpop.f32.mrb[0].mxu0
    %v2120 = vpop.f32.mrb[0].mxu0
    %2121 = vdwg.mxu0
    %v2122 = vadd.f32 %v1993, %v2037
    %v2123 = vxor.u32 %v2122, 2147483648
    %v2124 = vmul.f32 %v2123, 1.442695
    %v2125 = vpow.pop %v2124
    %v2126 = vadd.f32 %v2125, 1.0
    %v2127 = vrcp.pop %v2126
    %v2128 = vmul.f32 1.0, %v2127
    %v2129 = vadd.f32 %v1995, %v2077
    %v2130 = vxor.u32 %v2129, 2147483648
    %v2131 = vmul.f32 %v2130, 1.442695
    %v2132 = vpow.pop %v2131
    %v2133 = vadd.f32 %v2132, 1.0
    %v2134 = vrcp.pop %v2133
    %v2135 = vmul.f32 1.0, %v2134
    %v2136 = vmul.f32 %v2128, %v2117
    %v2137 = vadd.f32 %v1997, %v2136
    %v2138 = vtanh.pop %v2137
    %v2139 = vsub.f32 1.0, %v2135
    %v2140 = vmul.f32 %v2139, %v2138
    %v2141 = vmul.f32 %v2135, %v1836
    %v2142 = vadd.f32 %v2140, %v2141
    %s2143 = scalar_lea.vmem [#allocation2], 108
    %v2144 = vld [vmem:[%s2143] sm:$0xf]
    %s2145 = scalar_lea.vmem [#allocation2], 140
    %v2146 = vld [vmem:[%s2145] sm:$0xf]
    %s2147 = scalar_lea.vmem [#allocation2], 172
    %v2148 = vld [vmem:[%s2147] sm:$0xf]
    %v2149 = vpack.c.bf16 %v1987, %v1987
    %v2151 = vsel %vm689, %v2149, 0
    %2153 = vmatprep.subr.bf16.mxu0 0
    %2154 = vmatpush1.bf16.msra.mxu0 %v890
    %2155 = vmatprep.subr.bf16.mxu0 0
    %2156 = vmatpush1.bf16.msra.mxu0 %v891
    %2157 = vmatprep.subr.bf16.mxu0 0
    %2158 = vmatpush1.bf16.msra.mxu0 0
    %2159 = vmatprep.subr.bf16.mxu0 0
    %2160 = vmatpush1.bf16.msra.mxu0 0
    %2161 = vmatprep.subr.bf16.mxu0 0
    %2162 = vmatpush1.bf16.msra.mxu0 0
    %2163 = vmatprep.subr.bf16.mxu0 0
    %2164 = vmatpush1.bf16.msra.mxu0 0
    %2165 = vmatprep.subr.bf16.mxu0 0
    %2166 = vmatpush1.bf16.msra.mxu0 0
    %2167 = vmatprep.subr.bf16.mxu0 0
    %2168 = vmatpush1.bf16.msra.mxu0 0
    %2169 = vmatprep.subr.bf16.mxu0 0
    %2170 = vmatpush1.bf16.msra.mxu0 0
    %2171 = vmatprep.subr.bf16.mxu0 0
    %2172 = vmatpush1.bf16.msra.mxu0 0
    %2173 = vmatprep.subr.bf16.mxu0 0
    %2174 = vmatpush1.bf16.msra.mxu0 0
    %2175 = vmatprep.subr.bf16.mxu0 0
    %2176 = vmatpush1.bf16.msra.mxu0 0
    %2177 = vmatprep.subr.bf16.mxu0 0
    %2178 = vmatpush1.bf16.msra.mxu0 0
    %2179 = vmatprep.subr.bf16.mxu0 0
    %2180 = vmatpush1.bf16.msra.mxu0 0
    %2181 = vmatprep.subr.bf16.mxu0 0
    %2182 = vmatpush1.bf16.msra.mxu0 0
    %2183 = vmatprep.subr.bf16.mxu0 0
    %2184 = vmatpush1.bf16.msra.mxu0 0
    %2185 = vmatprep.mubr.bf16.mxu0 0
    %2186 = vmatmul.mubr.bf16.gmra.mrb[0].mxu0 %v2151
    %v2187 = vpop.f32.mrb[0].mxu0
    %v2188 = vadd.f32 %v880, %v2187
    %v2189 = vpop.f32.mrb[0].mxu0
    %v2190 = vpop.f32.mrb[0].mxu0
    %v2191 = vpop.f32.mrb[0].mxu0
    %2192 = vdwg.mxu0
    %2193 = vmatprep.subr.bf16.mxu0 0
    %2194 = vmatpush1.bf16.msra.mxu0 %v948
    %2195 = vmatprep.subr.bf16.mxu0 0
    %2196 = vmatpush1.bf16.msra.mxu0 %v949
    %2197 = vmatprep.subr.bf16.mxu0 0
    %2198 = vmatpush1.bf16.msra.mxu0 0
    %2199 = vmatprep.subr.bf16.mxu0 0
    %2200 = vmatpush1.bf16.msra.mxu0 0
    %2201 = vmatprep.subr.bf16.mxu0 0
    %2202 = vmatpush1.bf16.msra.mxu0 0
    %2203 = vmatprep.subr.bf16.mxu0 0
    %2204 = vmatpush1.bf16.msra.mxu0 0
    %2205 = vmatprep.subr.bf16.mxu0 0
    %2206 = vmatpush1.bf16.msra.mxu0 0
    %2207 = vmatprep.subr.bf16.mxu0 0
    %2208 = vmatpush1.bf16.msra.mxu0 0
    %2209 = vmatprep.subr.bf16.mxu0 0
    %2210 = vmatpush1.bf16.msra.mxu0 0
    %2211 = vmatprep.subr.bf16.mxu0 0
    %2212 = vmatpush1.bf16.msra.mxu0 0
    %2213 = vmatprep.subr.bf16.mxu0 0
    %2214 = vmatpush1.bf16.msra.mxu0 0
    %2215 = vmatprep.subr.bf16.mxu0 0
    %2216 = vmatpush1.bf16.msra.mxu0 0
    %2217 = vmatprep.subr.bf16.mxu0 0
    %2218 = vmatpush1.bf16.msra.mxu0 0
    %2219 = vmatprep.subr.bf16.mxu0 0
    %2220 = vmatpush1.bf16.msra.mxu0 0
    %2221 = vmatprep.subr.bf16.mxu0 0
    %2222 = vmatpush1.bf16.msra.mxu0 0
    %2223 = vmatprep.subr.bf16.mxu0 0
    %2224 = vmatpush1.bf16.msra.mxu0 0
    %2225 = vmatprep.mubr.bf16.mxu0 0
    %2226 = vmatmul.mubr.bf16.gmra.mrb[0].mxu0 %v2151
    %v2227 = vpop.f32.mrb[0].mxu0
    %v2228 = vadd.f32 %v938, %v2227
    %v2229 = vpop.f32.mrb[0].mxu0
    %v2230 = vpop.f32.mrb[0].mxu0
    %v2231 = vpop.f32.mrb[0].mxu0
    %2232 = vdwg.mxu0
    %2233 = vmatprep.subr.bf16.mxu0 0
    %2234 = vmatpush1.bf16.msra.mxu0 %v1006
    %2235 = vmatprep.subr.bf16.mxu0 0
    %2236 = vmatpush1.bf16.msra.mxu0 %v1007
    %2237 = vmatprep.subr.bf16.mxu0 0
    %2238 = vmatpush1.bf16.msra.mxu0 0
    %2239 = vmatprep.subr.bf16.mxu0 0
    %2240 = vmatpush1.bf16.msra.mxu0 0
    %2241 = vmatprep.subr.bf16.mxu0 0
    %2242 = vmatpush1.bf16.msra.mxu0 0
    %2243 = vmatprep.subr.bf16.mxu0 0
    %2244 = vmatpush1.bf16.msra.mxu0 0
    %2245 = vmatprep.subr.bf16.mxu0 0
    %2246 = vmatpush1.bf16.msra.mxu0 0
    %2247 = vmatprep.subr.bf16.mxu0 0
    %2248 = vmatpush1.bf16.msra.mxu0 0
    %2249 = vmatprep.subr.bf16.mxu0 0
    %2250 = vmatpush1.bf16.msra.mxu0 0
    %2251 = vmatprep.subr.bf16.mxu0 0
    %2252 = vmatpush1.bf16.msra.mxu0 0
    %2253 = vmatprep.subr.bf16.mxu0 0
    %2254 = vmatpush1.bf16.msra.mxu0 0
    %2255 = vmatprep.subr.bf16.mxu0 0
    %2256 = vmatpush1.bf16.msra.mxu0 0
    %2257 = vmatprep.subr.bf16.mxu0 0
    %2258 = vmatpush1.bf16.msra.mxu0 0
    %2259 = vmatprep.subr.bf16.mxu0 0
    %2260 = vmatpush1.bf16.msra.mxu0 0
    %2261 = vmatprep.subr.bf16.mxu0 0
    %2262 = vmatpush1.bf16.msra.mxu0 0
    %2263 = vmatprep.subr.bf16.mxu0 0
    %2264 = vmatpush1.bf16.msra.mxu0 0
    %2265 = vmatprep.mubr.bf16.mxu0 0
    %2266 = vmatmul.mubr.bf16.gmra.mrb[0].mxu0 %v2151
    %v2267 = vpop.f32.mrb[0].mxu0
    %v2268 = vadd.f32 %v996, %v2267
    %v2269 = vpop.f32.mrb[0].mxu0
    %v2270 = vpop.f32.mrb[0].mxu0
    %v2271 = vpop.f32.mrb[0].mxu0
    %2272 = vdwg.mxu0
    %v2273 = vadd.f32 %v2144, %v2188
    %v2274 = vxor.u32 %v2273, 2147483648
    %v2275 = vmul.f32 %v2274, 1.442695
    %v2276 = vpow.pop %v2275
    %v2277 = vadd.f32 %v2276, 1.0
    %v2278 = vrcp.pop %v2277
    %v2279 = vmul.f32 1.0, %v2278
    %v2280 = vadd.f32 %v2146, %v2228
    %v2281 = vxor.u32 %v2280, 2147483648
    %v2282 = vmul.f32 %v2281, 1.442695
    %v2283 = vpow.pop %v2282
    %v2284 = vadd.f32 %v2283, 1.0
    %v2285 = vrcp.pop %v2284
    %v2286 = vmul.f32 1.0, %v2285
    %v2287 = vmul.f32 %v2279, %v2268
    %v2288 = vadd.f32 %v2148, %v2287
    %v2289 = vtanh.pop %v2288
    %v2290 = vsub.f32 1.0, %v2286
    %v2291 = vmul.f32 %v2290, %v2289
    %v2292 = vmul.f32 %v2286, %v1987
    %v2293 = vadd.f32 %v2291, %v2292
    %s2294 = scalar_lea.vmem [#allocation3], 16
    %2295 = vst.msk [vmem:[%s2294] sm:$0xf] %vm204, %v2142
    %s2296 = scalar_lea.vmem [#allocation4], 12
    %2297 = vst.msk [vmem:[%s2296] sm:$0xf] %vm204, %v2293
    %s2298 = scalar_lea.vmem [#allocation2], 20
    %v2299 = vld [vmem:[%s2298] sm:$0xf]
    %s2300 = scalar_lea.vmem [#allocation2], 52
    %v2301 = vld [vmem:[%s2300] sm:$0xf]
    %s2302 = scalar_lea.vmem [#allocation2], 84
    %v2303 = vld [vmem:[%s2302] sm:$0xf]
    %v2304 = vpack.c.bf16 %v2142, %v2142
    %v2306 = vsel %vm689, %v2304, 0
    %2308 = vmatprep.subr.bf16.mxu0 0
    %2309 = vmatpush1.bf16.msra.mxu0 %v685
    %2310 = vmatprep.subr.bf16.mxu0 0
    %2311 = vmatpush1.bf16.msra.mxu0 %v686
    %2312 = vmatprep.subr.bf16.mxu0 0
    %2313 = vmatpush1.bf16.msra.mxu0 0
    %2314 = vmatprep.subr.bf16.mxu0 0
    %2315 = vmatpush1.bf16.msra.mxu0 0
    %2316 = vmatprep.subr.bf16.mxu0 0
    %2317 = vmatpush1.bf16.msra.mxu0 0
    %2318 = vmatprep.subr.bf16.mxu0 0
    %2319 = vmatpush1.bf16.msra.mxu0 0
    %2320 = vmatprep.subr.bf16.mxu0 0
    %2321 = vmatpush1.bf16.msra.mxu0 0
    %2322 = vmatprep.subr.bf16.mxu0 0
    %2323 = vmatpush1.bf16.msra.mxu0 0
    %2324 = vmatprep.subr.bf16.mxu0 0
    %2325 = vmatpush1.bf16.msra.mxu0 0
    %2326 = vmatprep.subr.bf16.mxu0 0
    %2327 = vmatpush1.bf16.msra.mxu0 0
    %2328 = vmatprep.subr.bf16.mxu0 0
    %2329 = vmatpush1.bf16.msra.mxu0 0
    %2330 = vmatprep.subr.bf16.mxu0 0
    %2331 = vmatpush1.bf16.msra.mxu0 0
    %2332 = vmatprep.subr.bf16.mxu0 0
    %2333 = vmatpush1.bf16.msra.mxu0 0
    %2334 = vmatprep.subr.bf16.mxu0 0
    %2335 = vmatpush1.bf16.msra.mxu0 0
    %2336 = vmatprep.subr.bf16.mxu0 0
    %2337 = vmatpush1.bf16.msra.mxu0 0
    %2338 = vmatprep.subr.bf16.mxu0 0
    %2339 = vmatpush1.bf16.msra.mxu0 0
    %2340 = vmatprep.mubr.bf16.mxu0 0
    %2341 = vmatmul.mubr.bf16.gmra.mrb[0].mxu0 %v2306
    %v2342 = vpop.f32.mrb[0].mxu0
    %v2343 = vadd.f32 %v675, %v2342
    %v2344 = vpop.f32.mrb[0].mxu0
    %v2345 = vpop.f32.mrb[0].mxu0
    %v2346 = vpop.f32.mrb[0].mxu0
    %2347 = vdwg.mxu0
    %2348 = vmatprep.subr.bf16.mxu0 0
    %2349 = vmatpush1.bf16.msra.mxu0 %v747
    %2350 = vmatprep.subr.bf16.mxu0 0
    %2351 = vmatpush1.bf16.msra.mxu0 %v748
    %2352 = vmatprep.subr.bf16.mxu0 0
    %2353 = vmatpush1.bf16.msra.mxu0 0
    %2354 = vmatprep.subr.bf16.mxu0 0
    %2355 = vmatpush1.bf16.msra.mxu0 0
    %2356 = vmatprep.subr.bf16.mxu0 0
    %2357 = vmatpush1.bf16.msra.mxu0 0
    %2358 = vmatprep.subr.bf16.mxu0 0
    %2359 = vmatpush1.bf16.msra.mxu0 0
    %2360 = vmatprep.subr.bf16.mxu0 0
    %2361 = vmatpush1.bf16.msra.mxu0 0
    %2362 = vmatprep.subr.bf16.mxu0 0
    %2363 = vmatpush1.bf16.msra.mxu0 0
    %2364 = vmatprep.subr.bf16.mxu0 0
    %2365 = vmatpush1.bf16.msra.mxu0 0
    %2366 = vmatprep.subr.bf16.mxu0 0
    %2367 = vmatpush1.bf16.msra.mxu0 0
    %2368 = vmatprep.subr.bf16.mxu0 0
    %2369 = vmatpush1.bf16.msra.mxu0 0
    %2370 = vmatprep.subr.bf16.mxu0 0
    %2371 = vmatpush1.bf16.msra.mxu0 0
    %2372 = vmatprep.subr.bf16.mxu0 0
    %2373 = vmatpush1.bf16.msra.mxu0 0
    %2374 = vmatprep.subr.bf16.mxu0 0
    %2375 = vmatpush1.bf16.msra.mxu0 0
    %2376 = vmatprep.subr.bf16.mxu0 0
    %2377 = vmatpush1.bf16.msra.mxu0 0
    %2378 = vmatprep.subr.bf16.mxu0 0
    %2379 = vmatpush1.bf16.msra.mxu0 0
    %2380 = vmatprep.mubr.bf16.mxu0 0
    %2381 = vmatmul.mubr.bf16.gmra.mrb[0].mxu0 %v2306
    %v2382 = vpop.f32.mrb[0].mxu0
    %v2383 = vadd.f32 %v737, %v2382
    %v2384 = vpop.f32.mrb[0].mxu0
    %v2385 = vpop.f32.mrb[0].mxu0
    %v2386 = vpop.f32.mrb[0].mxu0
    %2387 = vdwg.mxu0
    %2388 = vmatprep.subr.bf16.mxu0 0
    %2389 = vmatpush1.bf16.msra.mxu0 %v805
    %2390 = vmatprep.subr.bf16.mxu0 0
    %2391 = vmatpush1.bf16.msra.mxu0 %v806
    %2392 = vmatprep.subr.bf16.mxu0 0
    %2393 = vmatpush1.bf16.msra.mxu0 0
    %2394 = vmatprep.subr.bf16.mxu0 0
    %2395 = vmatpush1.bf16.msra.mxu0 0
    %2396 = vmatprep.subr.bf16.mxu0 0
    %2397 = vmatpush1.bf16.msra.mxu0 0
    %2398 = vmatprep.subr.bf16.mxu0 0
    %2399 = vmatpush1.bf16.msra.mxu0 0
    %2400 = vmatprep.subr.bf16.mxu0 0
    %2401 = vmatpush1.bf16.msra.mxu0 0
    %2402 = vmatprep.subr.bf16.mxu0 0
    %2403 = vmatpush1.bf16.msra.mxu0 0
    %2404 = vmatprep.subr.bf16.mxu0 0
    %2405 = vmatpush1.bf16.msra.mxu0 0
    %2406 = vmatprep.subr.bf16.mxu0 0
    %2407 = vmatpush1.bf16.msra.mxu0 0
    %2408 = vmatprep.subr.bf16.mxu0 0
    %2409 = vmatpush1.bf16.msra.mxu0 0
    %2410 = vmatprep.subr.bf16.mxu0 0
    %2411 = vmatpush1.bf16.msra.mxu0 0
    %2412 = vmatprep.subr.bf16.mxu0 0
    %2413 = vmatpush1.bf16.msra.mxu0 0
    %2414 = vmatprep.subr.bf16.mxu0 0
    %2415 = vmatpush1.bf16.msra.mxu0 0
    %2416 = vmatprep.subr.bf16.mxu0 0
    %2417 = vmatpush1.bf16.msra.mxu0 0
    %2418 = vmatprep.subr.bf16.mxu0 0
    %2419 = vmatpush1.bf16.msra.mxu0 0
    %2420 = vmatprep.mubr.bf16.mxu0 0
    %2421 = vmatmul.mubr.bf16.gmra.mrb[0].mxu0 %v2306
    %v2422 = vpop.f32.mrb[0].mxu0
    %v2423 = vadd.f32 %v795, %v2422
    %v2424 = vpop.f32.mrb[0].mxu0
    %v2425 = vpop.f32.mrb[0].mxu0
    %v2426 = vpop.f32.mrb[0].mxu0
    %2427 = vdwg.mxu0
    %v2428 = vadd.f32 %v2299, %v2343
    %v2429 = vxor.u32 %v2428, 2147483648
    %v2430 = vmul.f32 %v2429, 1.442695
    %v2431 = vpow.pop %v2430
    %v2432 = vadd.f32 %v2431, 1.0
    %v2433 = vrcp.pop %v2432
    %v2434 = vmul.f32 1.0, %v2433
    %v2435 = vadd.f32 %v2301, %v2383
    %v2436 = vxor.u32 %v2435, 2147483648
    %v2437 = vmul.f32 %v2436, 1.442695
    %v2438 = vpow.pop %v2437
    %v2439 = vadd.f32 %v2438, 1.0
    %v2440 = vrcp.pop %v2439
    %v2441 = vmul.f32 1.0, %v2440
    %v2442 = vmul.f32 %v2434, %v2423
    %v2443 = vadd.f32 %v2303, %v2442
    %v2444 = vtanh.pop %v2443
    %v2445 = vsub.f32 1.0, %v2441
    %v2446 = vmul.f32 %v2445, %v2444
    %v2447 = vmul.f32 %v2441, %v2142
    %v2448 = vadd.f32 %v2446, %v2447
    %s2449 = scalar_lea.vmem [#allocation2], 104
    %v2450 = vld [vmem:[%s2449] sm:$0xf]
    %s2451 = scalar_lea.vmem [#allocation2], 136
    %v2452 = vld [vmem:[%s2451] sm:$0xf]
    %s2453 = scalar_lea.vmem [#allocation2], 168
    %v2454 = vld [vmem:[%s2453] sm:$0xf]
    %v2455 = vpack.c.bf16 %v2293, %v2293
    %v2457 = vsel %vm689, %v2455, 0
    %2459 = vmatprep.subr.bf16.mxu0 0
    %2460 = vmatpush1.bf16.msra.mxu0 %v890
    %2461 = vmatprep.subr.bf16.mxu0 0
    %2462 = vmatpush1.bf16.msra.mxu0 %v891
    %2463 = vmatprep.subr.bf16.mxu0 0
    %2464 = vmatpush1.bf16.msra.mxu0 0
    %2465 = vmatprep.subr.bf16.mxu0 0
    %2466 = vmatpush1.bf16.msra.mxu0 0
    %2467 = vmatprep.subr.bf16.mxu0 0
    %2468 = vmatpush1.bf16.msra.mxu0 0
    %2469 = vmatprep.subr.bf16.mxu0 0
    %2470 = vmatpush1.bf16.msra.mxu0 0
    %2471 = vmatprep.subr.bf16.mxu0 0
    %2472 = vmatpush1.bf16.msra.mxu0 0
    %2473 = vmatprep.subr.bf16.mxu0 0
    %2474 = vmatpush1.bf16.msra.mxu0 0
    %2475 = vmatprep.subr.bf16.mxu0 0
    %2476 = vmatpush1.bf16.msra.mxu0 0
    %2477 = vmatprep.subr.bf16.mxu0 0
    %2478 = vmatpush1.bf16.msra.mxu0 0
    %2479 = vmatprep.subr.bf16.mxu0 0
    %2480 = vmatpush1.bf16.msra.mxu0 0
    %2481 = vmatprep.subr.bf16.mxu0 0
    %2482 = vmatpush1.bf16.msra.mxu0 0
    %2483 = vmatprep.subr.bf16.mxu0 0
    %2484 = vmatpush1.bf16.msra.mxu0 0
    %2485 = vmatprep.subr.bf16.mxu0 0
    %2486 = vmatpush1.bf16.msra.mxu0 0
    %2487 = vmatprep.subr.bf16.mxu0 0
    %2488 = vmatpush1.bf16.msra.mxu0 0
    %2489 = vmatprep.subr.bf16.mxu0 0
    %2490 = vmatpush1.bf16.msra.mxu0 0
    %2491 = vmatprep.mubr.bf16.mxu0 0
    %2492 = vmatmul.mubr.bf16.gmra.mrb[0].mxu0 %v2457
    %v2493 = vpop.f32.mrb[0].mxu0
    %v2494 = vadd.f32 %v880, %v2493
    %v2495 = vpop.f32.mrb[0].mxu0
    %v2496 = vpop.f32.mrb[0].mxu0
    %v2497 = vpop.f32.mrb[0].mxu0
    %2498 = vdwg.mxu0
    %2499 = vmatprep.subr.bf16.mxu0 0
    %2500 = vmatpush1.bf16.msra.mxu0 %v948
    %2501 = vmatprep.subr.bf16.mxu0 0
    %2502 = vmatpush1.bf16.msra.mxu0 %v949
    %2503 = vmatprep.subr.bf16.mxu0 0
    %2504 = vmatpush1.bf16.msra.mxu0 0
    %2505 = vmatprep.subr.bf16.mxu0 0
    %2506 = vmatpush1.bf16.msra.mxu0 0
    %2507 = vmatprep.subr.bf16.mxu0 0
    %2508 = vmatpush1.bf16.msra.mxu0 0
    %2509 = vmatprep.subr.bf16.mxu0 0
    %2510 = vmatpush1.bf16.msra.mxu0 0
    %2511 = vmatprep.subr.bf16.mxu0 0
    %2512 = vmatpush1.bf16.msra.mxu0 0
    %2513 = vmatprep.subr.bf16.mxu0 0
    %2514 = vmatpush1.bf16.msra.mxu0 0
    %2515 = vmatprep.subr.bf16.mxu0 0
    %2516 = vmatpush1.bf16.msra.mxu0 0
    %2517 = vmatprep.subr.bf16.mxu0 0
    %2518 = vmatpush1.bf16.msra.mxu0 0
    %2519 = vmatprep.subr.bf16.mxu0 0
    %2520 = vmatpush1.bf16.msra.mxu0 0
    %2521 = vmatprep.subr.bf16.mxu0 0
    %2522 = vmatpush1.bf16.msra.mxu0 0
    %2523 = vmatprep.subr.bf16.mxu0 0
    %2524 = vmatpush1.bf16.msra.mxu0 0
    %2525 = vmatprep.subr.bf16.mxu0 0
    %2526 = vmatpush1.bf16.msra.mxu0 0
    %2527 = vmatprep.subr.bf16.mxu0 0
    %2528 = vmatpush1.bf16.msra.mxu0 0
    %2529 = vmatprep.subr.bf16.mxu0 0
    %2530 = vmatpush1.bf16.msra.mxu0 0
    %2531 = vmatprep.mubr.bf16.mxu0 0
    %2532 = vmatmul.mubr.bf16.gmra.mrb[0].mxu0 %v2457
    %v2533 = vpop.f32.mrb[0].mxu0
    %v2534 = vadd.f32 %v938, %v2533
    %v2535 = vpop.f32.mrb[0].mxu0
    %v2536 = vpop.f32.mrb[0].mxu0
    %v2537 = vpop.f32.mrb[0].mxu0
    %2538 = vdwg.mxu0
    %2539 = vmatprep.subr.bf16.mxu0 0
    %2540 = vmatpush1.bf16.msra.mxu0 %v1006
    %2541 = vmatprep.subr.bf16.mxu0 0
    %2542 = vmatpush1.bf16.msra.mxu0 %v1007
    %2543 = vmatprep.subr.bf16.mxu0 0
    %2544 = vmatpush1.bf16.msra.mxu0 0
    %2545 = vmatprep.subr.bf16.mxu0 0
    %2546 = vmatpush1.bf16.msra.mxu0 0
    %2547 = vmatprep.subr.bf16.mxu0 0
    %2548 = vmatpush1.bf16.msra.mxu0 0
    %2549 = vmatprep.subr.bf16.mxu0 0
    %2550 = vmatpush1.bf16.msra.mxu0 0
    %2551 = vmatprep.subr.bf16.mxu0 0
    %2552 = vmatpush1.bf16.msra.mxu0 0
    %2553 = vmatprep.subr.bf16.mxu0 0
    %2554 = vmatpush1.bf16.msra.mxu0 0
    %2555 = vmatprep.subr.bf16.mxu0 0
    %2556 = vmatpush1.bf16.msra.mxu0 0
    %2557 = vmatprep.subr.bf16.mxu0 0
    %2558 = vmatpush1.bf16.msra.mxu0 0
    %2559 = vmatprep.subr.bf16.mxu0 0
    %2560 = vmatpush1.bf16.msra.mxu0 0
    %2561 = vmatprep.subr.bf16.mxu0 0
    %2562 = vmatpush1.bf16.msra.mxu0 0
    %2563 = vmatprep.subr.bf16.mxu0 0
    %2564 = vmatpush1.bf16.msra.mxu0 0
    %2565 = vmatprep.subr.bf16.mxu0 0
    %2566 = vmatpush1.bf16.msra.mxu0 0
    %2567 = vmatprep.subr.bf16.mxu0 0
    %2568 = vmatpush1.bf16.msra.mxu0 0
    %2569 = vmatprep.subr.bf16.mxu0 0
    %2570 = vmatpush1.bf16.msra.mxu0 0
    %2571 = vmatprep.mubr.bf16.mxu0 0
    %2572 = vmatmul.mubr.bf16.gmra.mrb[0].mxu0 %v2457
    %v2573 = vpop.f32.mrb[0].mxu0
    %v2574 = vadd.f32 %v996, %v2573
    %v2575 = vpop.f32.mrb[0].mxu0
    %v2576 = vpop.f32.mrb[0].mxu0
    %v2577 = vpop.f32.mrb[0].mxu0
    %2578 = vdwg.mxu0
    %v2579 = vadd.f32 %v2450, %v2494
    %v2580 = vxor.u32 %v2579, 2147483648
    %v2581 = vmul.f32 %v2580, 1.442695
    %v2582 = vpow.pop %v2581
    %v2583 = vadd.f32 %v2582, 1.0
    %v2584 = vrcp.pop %v2583
    %v2585 = vmul.f32 1.0, %v2584
    %v2586 = vadd.f32 %v2452, %v2534
    %v2587 = vxor.u32 %v2586, 2147483648
    %v2588 = vmul.f32 %v2587, 1.442695
    %v2589 = vpow.pop %v2588
    %v2590 = vadd.f32 %v2589, 1.0
    %v2591 = vrcp.pop %v2590
    %v2592 = vmul.f32 1.0, %v2591
    %v2593 = vmul.f32 %v2585, %v2574
    %v2594 = vadd.f32 %v2454, %v2593
    %v2595 = vtanh.pop %v2594
    %v2596 = vsub.f32 1.0, %v2592
    %v2597 = vmul.f32 %v2596, %v2595
    %v2598 = vmul.f32 %v2592, %v2293
    %v2599 = vadd.f32 %v2597, %v2598
    %s2600 = scalar_lea.vmem [#allocation3], 20
    %2601 = vst.msk [vmem:[%s2600] sm:$0xf] %vm204, %v2448
    %s2602 = scalar_lea.vmem [#allocation4], 8
    %2603 = vst.msk [vmem:[%s2602] sm:$0xf] %vm204, %v2599
    %s2604 = scalar_lea.vmem [#allocation2], 24
    %v2605 = vld [vmem:[%s2604] sm:$0xf]
    %s2606 = scalar_lea.vmem [#allocation2], 56
    %v2607 = vld [vmem:[%s2606] sm:$0xf]
    %s2608 = scalar_lea.vmem [#allocation2], 88
    %v2609 = vld [vmem:[%s2608] sm:$0xf]
    %v2610 = vpack.c.bf16 %v2448, %v2448
    %v2612 = vsel %vm689, %v2610, 0
    %2614 = vmatprep.subr.bf16.mxu0 0
    %2615 = vmatpush1.bf16.msra.mxu0 %v685
    %2616 = vmatprep.subr.bf16.mxu0 0
    %2617 = vmatpush1.bf16.msra.mxu0 %v686
    %2618 = vmatprep.subr.bf16.mxu0 0
    %2619 = vmatpush1.bf16.msra.mxu0 0
    %2620 = vmatprep.subr.bf16.mxu0 0
    %2621 = vmatpush1.bf16.msra.mxu0 0
    %2622 = vmatprep.subr.bf16.mxu0 0
    %2623 = vmatpush1.bf16.msra.mxu0 0
    %2624 = vmatprep.subr.bf16.mxu0 0
    %2625 = vmatpush1.bf16.msra.mxu0 0
    %2626 = vmatprep.subr.bf16.mxu0 0
    %2627 = vmatpush1.bf16.msra.mxu0 0
    %2628 = vmatprep.subr.bf16.mxu0 0
    %2629 = vmatpush1.bf16.msra.mxu0 0
    %2630 = vmatprep.subr.bf16.mxu0 0
    %2631 = vmatpush1.bf16.msra.mxu0 0
    %2632 = vmatprep.subr.bf16.mxu0 0
    %2633 = vmatpush1.bf16.msra.mxu0 0
    %2634 = vmatprep.subr.bf16.mxu0 0
    %2635 = vmatpush1.bf16.msra.mxu0 0
    %2636 = vmatprep.subr.bf16.mxu0 0
    %2637 = vmatpush1.bf16.msra.mxu0 0
    %2638 = vmatprep.subr.bf16.mxu0 0
    %2639 = vmatpush1.bf16.msra.mxu0 0
    %2640 = vmatprep.subr.bf16.mxu0 0
    %2641 = vmatpush1.bf16.msra.mxu0 0
    %2642 = vmatprep.subr.bf16.mxu0 0
    %2643 = vmatpush1.bf16.msra.mxu0 0
    %2644 = vmatprep.subr.bf16.mxu0 0
    %2645 = vmatpush1.bf16.msra.mxu0 0
    %2646 = vmatprep.mubr.bf16.mxu0 0
    %2647 = vmatmul.mubr.bf16.gmra.mrb[0].mxu0 %v2612
    %v2648 = vpop.f32.mrb[0].mxu0
    %v2649 = vadd.f32 %v675, %v2648
    %v2650 = vpop.f32.mrb[0].mxu0
    %v2651 = vpop.f32.mrb[0].mxu0
    %v2652 = vpop.f32.mrb[0].mxu0
    %2653 = vdwg.mxu0
    %2654 = vmatprep.subr.bf16.mxu0 0
    %2655 = vmatpush1.bf16.msra.mxu0 %v747
    %2656 = vmatprep.subr.bf16.mxu0 0
    %2657 = vmatpush1.bf16.msra.mxu0 %v748
    %2658 = vmatprep.subr.bf16.mxu0 0
    %2659 = vmatpush1.bf16.msra.mxu0 0
    %2660 = vmatprep.subr.bf16.mxu0 0
    %2661 = vmatpush1.bf16.msra.mxu0 0
    %2662 = vmatprep.subr.bf16.mxu0 0
    %2663 = vmatpush1.bf16.msra.mxu0 0
    %2664 = vmatprep.subr.bf16.mxu0 0
    %2665 = vmatpush1.bf16.msra.mxu0 0
    %2666 = vmatprep.subr.bf16.mxu0 0
    %2667 = vmatpush1.bf16.msra.mxu0 0
    %2668 = vmatprep.subr.bf16.mxu0 0
    %2669 = vmatpush1.bf16.msra.mxu0 0
    %2670 = vmatprep.subr.bf16.mxu0 0
    %2671 = vmatpush1.bf16.msra.mxu0 0
    %2672 = vmatprep.subr.bf16.mxu0 0
    %2673 = vmatpush1.bf16.msra.mxu0 0
    %2674 = vmatprep.subr.bf16.mxu0 0
    %2675 = vmatpush1.bf16.msra.mxu0 0
    %2676 = vmatprep.subr.bf16.mxu0 0
    %2677 = vmatpush1.bf16.msra.mxu0 0
    %2678 = vmatprep.subr.bf16.mxu0 0
    %2679 = vmatpush1.bf16.msra.mxu0 0
    %2680 = vmatprep.subr.bf16.mxu0 0
    %2681 = vmatpush1.bf16.msra.mxu0 0
    %2682 = vmatprep.subr.bf16.mxu0 0
    %2683 = vmatpush1.bf16.msra.mxu0 0
    %2684 = vmatprep.subr.bf16.mxu0 0
    %2685 = vmatpush1.bf16.msra.mxu0 0
    %2686 = vmatprep.mubr.bf16.mxu0 0
    %2687 = vmatmul.mubr.bf16.gmra.mrb[0].mxu0 %v2612
    %v2688 = vpop.f32.mrb[0].mxu0
    %v2689 = vadd.f32 %v737, %v2688
    %v2690 = vpop.f32.mrb[0].mxu0
    %v2691 = vpop.f32.mrb[0].mxu0
    %v2692 = vpop.f32.mrb[0].mxu0
    %2693 = vdwg.mxu0
    %2694 = vmatprep.subr.bf16.mxu0 0
    %2695 = vmatpush1.bf16.msra.mxu0 %v805
    %2696 = vmatprep.subr.bf16.mxu0 0
    %2697 = vmatpush1.bf16.msra.mxu0 %v806
    %2698 = vmatprep.subr.bf16.mxu0 0
    %2699 = vmatpush1.bf16.msra.mxu0 0
    %2700 = vmatprep.subr.bf16.mxu0 0
    %2701 = vmatpush1.bf16.msra.mxu0 0
    %2702 = vmatprep.subr.bf16.mxu0 0
    %2703 = vmatpush1.bf16.msra.mxu0 0
    %2704 = vmatprep.subr.bf16.mxu0 0
    %2705 = vmatpush1.bf16.msra.mxu0 0
    %2706 = vmatprep.subr.bf16.mxu0 0
    %2707 = vmatpush1.bf16.msra.mxu0 0
    %2708 = vmatprep.subr.bf16.mxu0 0
    %2709 = vmatpush1.bf16.msra.mxu0 0
    %2710 = vmatprep.subr.bf16.mxu0 0
    %2711 = vmatpush1.bf16.msra.mxu0 0
    %2712 = vmatprep.subr.bf16.mxu0 0
    %2713 = vmatpush1.bf16.msra.mxu0 0
    %2714 = vmatprep.subr.bf16.mxu0 0
    %2715 = vmatpush1.bf16.msra.mxu0 0
    %2716 = vmatprep.subr.bf16.mxu0 0
    %2717 = vmatpush1.bf16.msra.mxu0 0
    %2718 = vmatprep.subr.bf16.mxu0 0
    %2719 = vmatpush1.bf16.msra.mxu0 0
    %2720 = vmatprep.subr.bf16.mxu0 0
    %2721 = vmatpush1.bf16.msra.mxu0 0
    %2722 = vmatprep.subr.bf16.mxu0 0
    %2723 = vmatpush1.bf16.msra.mxu0 0
    %2724 = vmatprep.subr.bf16.mxu0 0
    %2725 = vmatpush1.bf16.msra.mxu0 0
    %2726 = vmatprep.mubr.bf16.mxu0 0
    %2727 = vmatmul.mubr.bf16.gmra.mrb[0].mxu0 %v2612
    %v2728 = vpop.f32.mrb[0].mxu0
    %v2729 = vadd.f32 %v795, %v2728
    %v2730 = vpop.f32.mrb[0].mxu0
    %v2731 = vpop.f32.mrb[0].mxu0
    %v2732 = vpop.f32.mrb[0].mxu0
    %2733 = vdwg.mxu0
    %v2734 = vadd.f32 %v2605, %v2649
    %v2735 = vxor.u32 %v2734, 2147483648
    %v2736 = vmul.f32 %v2735, 1.442695
    %v2737 = vpow.pop %v2736
    %v2738 = vadd.f32 %v2737, 1.0
    %v2739 = vrcp.pop %v2738
    %v2740 = vmul.f32 1.0, %v2739
    %v2741 = vadd.f32 %v2607, %v2689
    %v2742 = vxor.u32 %v2741, 2147483648
    %v2743 = vmul.f32 %v2742, 1.442695
    %v2744 = vpow.pop %v2743
    %v2745 = vadd.f32 %v2744, 1.0
    %v2746 = vrcp.pop %v2745
    %v2747 = vmul.f32 1.0, %v2746
    %v2748 = vmul.f32 %v2740, %v2729
    %v2749 = vadd.f32 %v2609, %v2748
    %v2750 = vtanh.pop %v2749
    %v2751 = vsub.f32 1.0, %v2747
    %v2752 = vmul.f32 %v2751, %v2750
    %v2753 = vmul.f32 %v2747, %v2448
    %v2754 = vadd.f32 %v2752, %v2753
    %s2755 = scalar_lea.vmem [#allocation2], 100
    %v2756 = vld [vmem:[%s2755] sm:$0xf]
    %s2757 = scalar_lea.vmem [#allocation2], 132
    %v2758 = vld [vmem:[%s2757] sm:$0xf]
    %s2759 = scalar_lea.vmem [#allocation2], 164
    %v2760 = vld [vmem:[%s2759] sm:$0xf]
    %v2761 = vpack.c.bf16 %v2599, %v2599
    %v2763 = vsel %vm689, %v2761, 0
    %2765 = vmatprep.subr.bf16.mxu0 0
    %2766 = vmatpush1.bf16.msra.mxu0 %v890
    %2767 = vmatprep.subr.bf16.mxu0 0
    %2768 = vmatpush1.bf16.msra.mxu0 %v891
    %2769 = vmatprep.subr.bf16.mxu0 0
    %2770 = vmatpush1.bf16.msra.mxu0 0
    %2771 = vmatprep.subr.bf16.mxu0 0
    %2772 = vmatpush1.bf16.msra.mxu0 0
    %2773 = vmatprep.subr.bf16.mxu0 0
    %2774 = vmatpush1.bf16.msra.mxu0 0
    %2775 = vmatprep.subr.bf16.mxu0 0
    %2776 = vmatpush1.bf16.msra.mxu0 0
    %2777 = vmatprep.subr.bf16.mxu0 0
    %2778 = vmatpush1.bf16.msra.mxu0 0
    %2779 = vmatprep.subr.bf16.mxu0 0
    %2780 = vmatpush1.bf16.msra.mxu0 0
    %2781 = vmatprep.subr.bf16.mxu0 0
    %2782 = vmatpush1.bf16.msra.mxu0 0
    %2783 = vmatprep.subr.bf16.mxu0 0
    %2784 = vmatpush1.bf16.msra.mxu0 0
    %2785 = vmatprep.subr.bf16.mxu0 0
    %2786 = vmatpush1.bf16.msra.mxu0 0
    %2787 = vmatprep.subr.bf16.mxu0 0
    %2788 = vmatpush1.bf16.msra.mxu0 0
    %2789 = vmatprep.subr.bf16.mxu0 0
    %2790 = vmatpush1.bf16.msra.mxu0 0
    %2791 = vmatprep.subr.bf16.mxu0 0
    %2792 = vmatpush1.bf16.msra.mxu0 0
    %2793 = vmatprep.subr.bf16.mxu0 0
    %2794 = vmatpush1.bf16.msra.mxu0 0
    %2795 = vmatprep.subr.bf16.mxu0 0
    %2796 = vmatpush1.bf16.msra.mxu0 0
    %2797 = vmatprep.mubr.bf16.mxu0 0
    %2798 = vmatmul.mubr.bf16.gmra.mrb[0].mxu0 %v2763
    %v2799 = vpop.f32.mrb[0].mxu0
    %v2800 = vadd.f32 %v880, %v2799
    %v2801 = vpop.f32.mrb[0].mxu0
    %v2802 = vpop.f32.mrb[0].mxu0
    %v2803 = vpop.f32.mrb[0].mxu0
    %2804 = vdwg.mxu0
    %2805 = vmatprep.subr.bf16.mxu0 0
    %2806 = vmatpush1.bf16.msra.mxu0 %v948
    %2807 = vmatprep.subr.bf16.mxu0 0
    %2808 = vmatpush1.bf16.msra.mxu0 %v949
    %2809 = vmatprep.subr.bf16.mxu0 0
    %2810 = vmatpush1.bf16.msra.mxu0 0
    %2811 = vmatprep.subr.bf16.mxu0 0
    %2812 = vmatpush1.bf16.msra.mxu0 0
    %2813 = vmatprep.subr.bf16.mxu0 0
    %2814 = vmatpush1.bf16.msra.mxu0 0
    %2815 = vmatprep.subr.bf16.mxu0 0
    %2816 = vmatpush1.bf16.msra.mxu0 0
    %2817 = vmatprep.subr.bf16.mxu0 0
    %2818 = vmatpush1.bf16.msra.mxu0 0
    %2819 = vmatprep.subr.bf16.mxu0 0
    %2820 = vmatpush1.bf16.msra.mxu0 0
    %2821 = vmatprep.subr.bf16.mxu0 0
    %2822 = vmatpush1.bf16.msra.mxu0 0
    %2823 = vmatprep.subr.bf16.mxu0 0
    %2824 = vmatpush1.bf16.msra.mxu0 0
    %2825 = vmatprep.subr.bf16.mxu0 0
    %2826 = vmatpush1.bf16.msra.mxu0 0
    %2827 = vmatprep.subr.bf16.mxu0 0
    %2828 = vmatpush1.bf16.msra.mxu0 0
    %2829 = vmatprep.subr.bf16.mxu0 0
    %2830 = vmatpush1.bf16.msra.mxu0 0
    %2831 = vmatprep.subr.bf16.mxu0 0
    %2832 = vmatpush1.bf16.msra.mxu0 0
    %2833 = vmatprep.subr.bf16.mxu0 0
    %2834 = vmatpush1.bf16.msra.mxu0 0
    %2835 = vmatprep.subr.bf16.mxu0 0
    %2836 = vmatpush1.bf16.msra.mxu0 0
    %2837 = vmatprep.mubr.bf16.mxu0 0
    %2838 = vmatmul.mubr.bf16.gmra.mrb[0].mxu0 %v2763
    %v2839 = vpop.f32.mrb[0].mxu0
    %v2840 = vadd.f32 %v938, %v2839
    %v2841 = vpop.f32.mrb[0].mxu0
    %v2842 = vpop.f32.mrb[0].mxu0
    %v2843 = vpop.f32.mrb[0].mxu0
    %2844 = vdwg.mxu0
    %2845 = vmatprep.subr.bf16.mxu0 0
    %2846 = vmatpush1.bf16.msra.mxu0 %v1006
    %2847 = vmatprep.subr.bf16.mxu0 0
    %2848 = vmatpush1.bf16.msra.mxu0 %v1007
    %2849 = vmatprep.subr.bf16.mxu0 0
    %2850 = vmatpush1.bf16.msra.mxu0 0
    %2851 = vmatprep.subr.bf16.mxu0 0
    %2852 = vmatpush1.bf16.msra.mxu0 0
    %2853 = vmatprep.subr.bf16.mxu0 0
    %2854 = vmatpush1.bf16.msra.mxu0 0
    %2855 = vmatprep.subr.bf16.mxu0 0
    %2856 = vmatpush1.bf16.msra.mxu0 0
    %2857 = vmatprep.subr.bf16.mxu0 0
    %2858 = vmatpush1.bf16.msra.mxu0 0
    %2859 = vmatprep.subr.bf16.mxu0 0
    %2860 = vmatpush1.bf16.msra.mxu0 0
    %2861 = vmatprep.subr.bf16.mxu0 0
    %2862 = vmatpush1.bf16.msra.mxu0 0
    %2863 = vmatprep.subr.bf16.mxu0 0
    %2864 = vmatpush1.bf16.msra.mxu0 0
    %2865 = vmatprep.subr.bf16.mxu0 0
    %2866 = vmatpush1.bf16.msra.mxu0 0
    %2867 = vmatprep.subr.bf16.mxu0 0
    %2868 = vmatpush1.bf16.msra.mxu0 0
    %2869 = vmatprep.subr.bf16.mxu0 0
    %2870 = vmatpush1.bf16.msra.mxu0 0
    %2871 = vmatprep.subr.bf16.mxu0 0
    %2872 = vmatpush1.bf16.msra.mxu0 0
    %2873 = vmatprep.subr.bf16.mxu0 0
    %2874 = vmatpush1.bf16.msra.mxu0 0
    %2875 = vmatprep.subr.bf16.mxu0 0
    %2876 = vmatpush1.bf16.msra.mxu0 0
    %2877 = vmatprep.mubr.bf16.mxu0 0
    %2878 = vmatmul.mubr.bf16.gmra.mrb[0].mxu0 %v2763
    %v2879 = vpop.f32.mrb[0].mxu0
    %v2880 = vadd.f32 %v996, %v2879
    %v2881 = vpop.f32.mrb[0].mxu0
    %v2882 = vpop.f32.mrb[0].mxu0
    %v2883 = vpop.f32.mrb[0].mxu0
    %2884 = vdwg.mxu0
    %v2885 = vadd.f32 %v2756, %v2800
    %v2886 = vxor.u32 %v2885, 2147483648
    %v2887 = vmul.f32 %v2886, 1.442695
    %v2888 = vpow.pop %v2887
    %v2889 = vadd.f32 %v2888, 1.0
    %v2890 = vrcp.pop %v2889
    %v2891 = vmul.f32 1.0, %v2890
    %v2892 = vadd.f32 %v2758, %v2840
    %v2893 = vxor.u32 %v2892, 2147483648
    %v2894 = vmul.f32 %v2893, 1.442695
    %v2895 = vpow.pop %v2894
    %v2896 = vadd.f32 %v2895, 1.0
    %v2897 = vrcp.pop %v2896
    %v2898 = vmul.f32 1.0, %v2897
    %v2899 = vmul.f32 %v2891, %v2880
    %v2900 = vadd.f32 %v2760, %v2899
    %v2901 = vtanh.pop %v2900
    %v2902 = vsub.f32 1.0, %v2898
    %v2903 = vmul.f32 %v2902, %v2901
    %v2904 = vmul.f32 %v2898, %v2599
    %v2905 = vadd.f32 %v2903, %v2904
    %s2906 = scalar_lea.vmem [#allocation3], 24
    %2907 = vst.msk [vmem:[%s2906] sm:$0xf] %vm204, %v2754
    %s2908 = scalar_lea.vmem [#allocation4], 4
    %2909 = vst.msk [vmem:[%s2908] sm:$0xf] %vm204, %v2905
    %s2910 = scalar_lea.vmem [#allocation2], 28
    %v2911 = vld [vmem:[%s2910] sm:$0xf]
    %s2912 = scalar_lea.vmem [#allocation2], 60
    %v2913 = vld [vmem:[%s2912] sm:$0xf]
    %s2914 = scalar_lea.vmem [#allocation2], 92
    %v2915 = vld [vmem:[%s2914] sm:$0xf]
    %v2916 = vpack.c.bf16 %v2754, %v2754
    %v2918 = vsel %vm689, %v2916, 0
    %2920 = vmatprep.subr.bf16.mxu0 0
    %2921 = vmatpush1.bf16.msra.mxu0 %v685
    %2922 = vmatprep.subr.bf16.mxu0 0
    %2923 = vmatpush1.bf16.msra.mxu0 %v686
    %2924 = vmatprep.subr.bf16.mxu0 0
    %2925 = vmatpush1.bf16.msra.mxu0 0
    %2926 = vmatprep.subr.bf16.mxu0 0
    %2927 = vmatpush1.bf16.msra.mxu0 0
    %2928 = vmatprep.subr.bf16.mxu0 0
    %2929 = vmatpush1.bf16.msra.mxu0 0
    %2930 = vmatprep.subr.bf16.mxu0 0
    %2931 = vmatpush1.bf16.msra.mxu0 0
    %2932 = vmatprep.subr.bf16.mxu0 0
    %2933 = vmatpush1.bf16.msra.mxu0 0
    %2934 = vmatprep.subr.bf16.mxu0 0
    %2935 = vmatpush1.bf16.msra.mxu0 0
    %2936 = vmatprep.subr.bf16.mxu0 0
    %2937 = vmatpush1.bf16.msra.mxu0 0
    %2938 = vmatprep.subr.bf16.mxu0 0
    %2939 = vmatpush1.bf16.msra.mxu0 0
    %2940 = vmatprep.subr.bf16.mxu0 0
    %2941 = vmatpush1.bf16.msra.mxu0 0
    %2942 = vmatprep.subr.bf16.mxu0 0
    %2943 = vmatpush1.bf16.msra.mxu0 0
    %2944 = vmatprep.subr.bf16.mxu0 0
    %2945 = vmatpush1.bf16.msra.mxu0 0
    %2946 = vmatprep.subr.bf16.mxu0 0
    %2947 = vmatpush1.bf16.msra.mxu0 0
    %2948 = vmatprep.subr.bf16.mxu0 0
    %2949 = vmatpush1.bf16.msra.mxu0 0
    %2950 = vmatprep.subr.bf16.mxu0 0
    %2951 = vmatpush1.bf16.msra.mxu0 0
    %2952 = vmatprep.mubr.bf16.mxu0 0
    %2953 = vmatmul.mubr.bf16.gmra.mrb[0].mxu0 %v2918
    %v2954 = vpop.f32.mrb[0].mxu0
    %v2955 = vadd.f32 %v675, %v2954
    %v2956 = vpop.f32.mrb[0].mxu0
    %v2957 = vpop.f32.mrb[0].mxu0
    %v2958 = vpop.f32.mrb[0].mxu0
    %2959 = vdwg.mxu0
    %2960 = vmatprep.subr.bf16.mxu0 0
    %2961 = vmatpush1.bf16.msra.mxu0 %v747
    %2962 = vmatprep.subr.bf16.mxu0 0
    %2963 = vmatpush1.bf16.msra.mxu0 %v748
    %2964 = vmatprep.subr.bf16.mxu0 0
    %2965 = vmatpush1.bf16.msra.mxu0 0
    %2966 = vmatprep.subr.bf16.mxu0 0
    %2967 = vmatpush1.bf16.msra.mxu0 0
    %2968 = vmatprep.subr.bf16.mxu0 0
    %2969 = vmatpush1.bf16.msra.mxu0 0
    %2970 = vmatprep.subr.bf16.mxu0 0
    %2971 = vmatpush1.bf16.msra.mxu0 0
    %2972 = vmatprep.subr.bf16.mxu0 0
    %2973 = vmatpush1.bf16.msra.mxu0 0
    %2974 = vmatprep.subr.bf16.mxu0 0
    %2975 = vmatpush1.bf16.msra.mxu0 0
    %2976 = vmatprep.subr.bf16.mxu0 0
    %2977 = vmatpush1.bf16.msra.mxu0 0
    %2978 = vmatprep.subr.bf16.mxu0 0
    %2979 = vmatpush1.bf16.msra.mxu0 0
    %2980 = vmatprep.subr.bf16.mxu0 0
    %2981 = vmatpush1.bf16.msra.mxu0 0
    %2982 = vmatprep.subr.bf16.mxu0 0
    %2983 = vmatpush1.bf16.msra.mxu0 0
    %2984 = vmatprep.subr.bf16.mxu0 0
    %2985 = vmatpush1.bf16.msra.mxu0 0
    %2986 = vmatprep.subr.bf16.mxu0 0
    %2987 = vmatpush1.bf16.msra.mxu0 0
    %2988 = vmatprep.subr.bf16.mxu0 0
    %2989 = vmatpush1.bf16.msra.mxu0 0
    %2990 = vmatprep.subr.bf16.mxu0 0
    %2991 = vmatpush1.bf16.msra.mxu0 0
    %2992 = vmatprep.mubr.bf16.mxu0 0
    %2993 = vmatmul.mubr.bf16.gmra.mrb[0].mxu0 %v2918
    %v2994 = vpop.f32.mrb[0].mxu0
    %v2995 = vadd.f32 %v737, %v2994
    %v2996 = vpop.f32.mrb[0].mxu0
    %v2997 = vpop.f32.mrb[0].mxu0
    %v2998 = vpop.f32.mrb[0].mxu0
    %2999 = vdwg.mxu0
    %3000 = vmatprep.subr.bf16.mxu0 0
    %3001 = vmatpush1.bf16.msra.mxu0 %v805
    %3002 = vmatprep.subr.bf16.mxu0 0
    %3003 = vmatpush1.bf16.msra.mxu0 %v806
    %3004 = vmatprep.subr.bf16.mxu0 0
    %3005 = vmatpush1.bf16.msra.mxu0 0
    %3006 = vmatprep.subr.bf16.mxu0 0
    %3007 = vmatpush1.bf16.msra.mxu0 0
    %3008 = vmatprep.subr.bf16.mxu0 0
    %3009 = vmatpush1.bf16.msra.mxu0 0
    %3010 = vmatprep.subr.bf16.mxu0 0
    %3011 = vmatpush1.bf16.msra.mxu0 0
    %3012 = vmatprep.subr.bf16.mxu0 0
    %3013 = vmatpush1.bf16.msra.mxu0 0
    %3014 = vmatprep.subr.bf16.mxu0 0
    %3015 = vmatpush1.bf16.msra.mxu0 0
    %3016 = vmatprep.subr.bf16.mxu0 0
    %3017 = vmatpush1.bf16.msra.mxu0 0
    %3018 = vmatprep.subr.bf16.mxu0 0
    %3019 = vmatpush1.bf16.msra.mxu0 0
    %3020 = vmatprep.subr.bf16.mxu0 0
    %3021 = vmatpush1.bf16.msra.mxu0 0
    %3022 = vmatprep.subr.bf16.mxu0 0
    %3023 = vmatpush1.bf16.msra.mxu0 0
    %3024 = vmatprep.subr.bf16.mxu0 0
    %3025 = vmatpush1.bf16.msra.mxu0 0
    %3026 = vmatprep.subr.bf16.mxu0 0
    %3027 = vmatpush1.bf16.msra.mxu0 0
    %3028 = vmatprep.subr.bf16.mxu0 0
    %3029 = vmatpush1.bf16.msra.mxu0 0
    %3030 = vmatprep.subr.bf16.mxu0 0
    %3031 = vmatpush1.bf16.msra.mxu0 0
    %3032 = vmatprep.mubr.bf16.mxu0 0
    %3033 = vmatmul.mubr.bf16.gmra.mrb[0].mxu0 %v2918
    %v3034 = vpop.f32.mrb[0].mxu0
    %v3035 = vadd.f32 %v795, %v3034
    %v3036 = vpop.f32.mrb[0].mxu0
    %v3037 = vpop.f32.mrb[0].mxu0
    %v3038 = vpop.f32.mrb[0].mxu0
    %3039 = vdwg.mxu0
    %v3040 = vadd.f32 %v2911, %v2955
    %v3041 = vxor.u32 %v3040, 2147483648
    %v3042 = vmul.f32 %v3041, 1.442695
    %v3043 = vpow.pop %v3042
    %v3044 = vadd.f32 %v3043, 1.0
    %v3045 = vrcp.pop %v3044
    %v3046 = vmul.f32 1.0, %v3045
    %v3047 = vadd.f32 %v2913, %v2995
    %v3048 = vxor.u32 %v3047, 2147483648
    %v3049 = vmul.f32 %v3048, 1.442695
    %v3050 = vpow.pop %v3049
    %v3051 = vadd.f32 %v3050, 1.0
    %v3052 = vrcp.pop %v3051
    %v3053 = vmul.f32 1.0, %v3052
    %v3054 = vmul.f32 %v3046, %v3035
    %v3055 = vadd.f32 %v2915, %v3054
    %v3056 = vtanh.pop %v3055
    %v3057 = vsub.f32 1.0, %v3053
    %v3058 = vmul.f32 %v3057, %v3056
    %v3059 = vmul.f32 %v3053, %v2754
    %v3060 = vadd.f32 %v3058, %v3059
    %v3061 = vld [vmem:[%s453] sm:$0xf]
    %v3062 = vld [vmem:[%s536] sm:$0xf]
    %v3063 = vld [vmem:[%s619] sm:$0xf]
    %v3064 = vpack.c.bf16 %v2905, %v2905
    %v3066 = vsel %vm689, %v3064, 0
    %3068 = vmatprep.subr.bf16.mxu0 0
    %3069 = vmatpush1.bf16.msra.mxu0 %v890
    %3070 = vmatprep.subr.bf16.mxu0 0
    %3071 = vmatpush1.bf16.msra.mxu0 %v891
    %3072 = vmatprep.subr.bf16.mxu0 0
    %3073 = vmatpush1.bf16.msra.mxu0 0
    %3074 = vmatprep.subr.bf16.mxu0 0
    %3075 = vmatpush1.bf16.msra.mxu0 0
    %3076 = vmatprep.subr.bf16.mxu0 0
    %3077 = vmatpush1.bf16.msra.mxu0 0
    %3078 = vmatprep.subr.bf16.mxu0 0
    %3079 = vmatpush1.bf16.msra.mxu0 0
    %3080 = vmatprep.subr.bf16.mxu0 0
    %3081 = vmatpush1.bf16.msra.mxu0 0
    %3082 = vmatprep.subr.bf16.mxu0 0
    %3083 = vmatpush1.bf16.msra.mxu0 0
    %3084 = vmatprep.subr.bf16.mxu0 0
    %3085 = vmatpush1.bf16.msra.mxu0 0
    %3086 = vmatprep.subr.bf16.mxu0 0
    %3087 = vmatpush1.bf16.msra.mxu0 0
    %3088 = vmatprep.subr.bf16.mxu0 0
    %3089 = vmatpush1.bf16.msra.mxu0 0
    %3090 = vmatprep.subr.bf16.mxu0 0
    %3091 = vmatpush1.bf16.msra.mxu0 0
    %3092 = vmatprep.subr.bf16.mxu0 0
    %3093 = vmatpush1.bf16.msra.mxu0 0
    %3094 = vmatprep.subr.bf16.mxu0 0
    %3095 = vmatpush1.bf16.msra.mxu0 0
    %3096 = vmatprep.subr.bf16.mxu0 0
    %3097 = vmatpush1.bf16.msra.mxu0 0
    %3098 = vmatprep.subr.bf16.mxu0 0
    %3099 = vmatpush1.bf16.msra.mxu0 0
    %3100 = vmatprep.mubr.bf16.mxu0 0
    %3101 = vmatmul.mubr.bf16.gmra.mrb[0].mxu0 %v3066
    %v3102 = vpop.f32.mrb[0].mxu0
    %v3103 = vadd.f32 %v880, %v3102
    %v3104 = vpop.f32.mrb[0].mxu0
    %v3105 = vpop.f32.mrb[0].mxu0
    %v3106 = vpop.f32.mrb[0].mxu0
    %3107 = vdwg.mxu0
    %3108 = vmatprep.subr.bf16.mxu0 0
    %3109 = vmatpush1.bf16.msra.mxu0 %v948
    %3110 = vmatprep.subr.bf16.mxu0 0
    %3111 = vmatpush1.bf16.msra.mxu0 %v949
    %3112 = vmatprep.subr.bf16.mxu0 0
    %3113 = vmatpush1.bf16.msra.mxu0 0
    %3114 = vmatprep.subr.bf16.mxu0 0
    %3115 = vmatpush1.bf16.msra.mxu0 0
    %3116 = vmatprep.subr.bf16.mxu0 0
    %3117 = vmatpush1.bf16.msra.mxu0 0
    %3118 = vmatprep.subr.bf16.mxu0 0
    %3119 = vmatpush1.bf16.msra.mxu0 0
    %3120 = vmatprep.subr.bf16.mxu0 0
    %3121 = vmatpush1.bf16.msra.mxu0 0
    %3122 = vmatprep.subr.bf16.mxu0 0
    %3123 = vmatpush1.bf16.msra.mxu0 0
    %3124 = vmatprep.subr.bf16.mxu0 0
    %3125 = vmatpush1.bf16.msra.mxu0 0
    %3126 = vmatprep.subr.bf16.mxu0 0
    %3127 = vmatpush1.bf16.msra.mxu0 0
    %3128 = vmatprep.subr.bf16.mxu0 0
    %3129 = vmatpush1.bf16.msra.mxu0 0
    %3130 = vmatprep.subr.bf16.mxu0 0
    %3131 = vmatpush1.bf16.msra.mxu0 0
    %3132 = vmatprep.subr.bf16.mxu0 0
    %3133 = vmatpush1.bf16.msra.mxu0 0
    %3134 = vmatprep.subr.bf16.mxu0 0
    %3135 = vmatpush1.bf16.msra.mxu0 0
    %3136 = vmatprep.subr.bf16.mxu0 0
    %3137 = vmatpush1.bf16.msra.mxu0 0
    %3138 = vmatprep.subr.bf16.mxu0 0
    %3139 = vmatpush1.bf16.msra.mxu0 0
    %3140 = vmatprep.mubr.bf16.mxu0 0
    %3141 = vmatmul.mubr.bf16.gmra.mrb[0].mxu0 %v3066
    %v3142 = vpop.f32.mrb[0].mxu0
    %v3143 = vadd.f32 %v938, %v3142
    %v3144 = vpop.f32.mrb[0].mxu0
    %v3145 = vpop.f32.mrb[0].mxu0
    %v3146 = vpop.f32.mrb[0].mxu0
    %3147 = vdwg.mxu0
    %3148 = vmatprep.subr.bf16.mxu0 0
    %3149 = vmatpush1.bf16.msra.mxu0 %v1006
    %3150 = vmatprep.subr.bf16.mxu0 0
    %3151 = vmatpush1.bf16.msra.mxu0 %v1007
    %3152 = vmatprep.subr.bf16.mxu0 0
    %3153 = vmatpush1.bf16.msra.mxu0 0
    %3154 = vmatprep.subr.bf16.mxu0 0
    %3155 = vmatpush1.bf16.msra.mxu0 0
    %3156 = vmatprep.subr.bf16.mxu0 0
    %3157 = vmatpush1.bf16.msra.mxu0 0
    %3158 = vmatprep.subr.bf16.mxu0 0
    %3159 = vmatpush1.bf16.msra.mxu0 0
    %3160 = vmatprep.subr.bf16.mxu0 0
    %3161 = vmatpush1.bf16.msra.mxu0 0
    %3162 = vmatprep.subr.bf16.mxu0 0
    %3163 = vmatpush1.bf16.msra.mxu0 0
    %3164 = vmatprep.subr.bf16.mxu0 0
    %3165 = vmatpush1.bf16.msra.mxu0 0
    %3166 = vmatprep.subr.bf16.mxu0 0
    %3167 = vmatpush1.bf16.msra.mxu0 0
    %3168 = vmatprep.subr.bf16.mxu0 0
    %3169 = vmatpush1.bf16.msra.mxu0 0
    %3170 = vmatprep.subr.bf16.mxu0 0
    %3171 = vmatpush1.bf16.msra.mxu0 0
    %3172 = vmatprep.subr.bf16.mxu0 0
    %3173 = vmatpush1.bf16.msra.mxu0 0
    %3174 = vmatprep.subr.bf16.mxu0 0
    %3175 = vmatpush1.bf16.msra.mxu0 0
    %3176 = vmatprep.subr.bf16.mxu0 0
    %3177 = vmatpush1.bf16.msra.mxu0 0
    %3178 = vmatprep.subr.bf16.mxu0 0
    %3179 = vmatpush1.bf16.msra.mxu0 0
    %3180 = vmatprep.mubr.bf16.mxu0 0
    %3181 = vmatmul.mubr.bf16.gmra.mrb[0].mxu0 %v3066
    %v3182 = vpop.f32.mrb[0].mxu0
    %v3183 = vadd.f32 %v996, %v3182
    %v3184 = vpop.f32.mrb[0].mxu0
    %v3185 = vpop.f32.mrb[0].mxu0
    %v3186 = vpop.f32.mrb[0].mxu0
    %3187 = vdwg.mxu0
    %v3188 = vadd.f32 %v3061, %v3103
    %v3189 = vxor.u32 %v3188, 2147483648
    %v3190 = vmul.f32 %v3189, 1.442695
    %v3191 = vpow.pop %v3190
    %v3192 = vadd.f32 %v3191, 1.0
    %v3193 = vrcp.pop %v3192
    %v3194 = vmul.f32 1.0, %v3193
    %v3195 = vadd.f32 %v3062, %v3143
    %v3196 = vxor.u32 %v3195, 2147483648
    %v3197 = vmul.f32 %v3196, 1.442695
    %v3198 = vpow.pop %v3197
    %v3199 = vadd.f32 %v3198, 1.0
    %v3200 = vrcp.pop %v3199
    %v3201 = vmul.f32 1.0, %v3200
    %v3202 = vmul.f32 %v3194, %v3183
    %v3203 = vadd.f32 %v3063, %v3202
    %v3204 = vtanh.pop %v3203
    %v3205 = vsub.f32 1.0, %v3201
    %v3206 = vmul.f32 %v3205, %v3204
    %v3207 = vmul.f32 %v3201, %v2905
    %v3208 = vadd.f32 %v3206, %v3207
    %s3209 = scalar_lea.vmem [#allocation3], 28
    %3210 = vst.msk [vmem:[%s3209] sm:$0xf] %vm204, %v3060
    %3211 = vst.msk [vmem:[#allocation4] sm:$0xf] %vm204, %v3208
    %v3212 = vld [vmem:[#allocation3] sm:$0xf]
    %v3213 = vld [vmem:[#allocation3 + $0x4] sm:$0xf]
    %v3214 = vld [vmem:[#allocation3 + $0x8] sm:$0xf]
    %v3215 = vld [vmem:[#allocation3 + $0xc] sm:$0xf]
    %v3216 = vld [vmem:[#allocation3 + $0x10] sm:$0xf]
    %v3217 = vld [vmem:[#allocation3 + $0x14] sm:$0xf]
    %v3218 = vld [vmem:[#allocation3 + $0x18] sm:$0xf]
    %v3219 = vld [vmem:[#allocation3 + $0x1c] sm:$0xf]
    %v3220 = vld [vmem:[#allocation4] sm:$0xf]
    %v3221 = vld [vmem:[#allocation4 + $0x4] sm:$0xf]
    %v3222 = vld [vmem:[#allocation4 + $0x8] sm:$0xf]
    %v3223 = vld [vmem:[#allocation4 + $0xc] sm:$0xf]
    %v3224 = vld [vmem:[#allocation4 + $0x10] sm:$0xf]
    %v3225 = vld [vmem:[#allocation4 + $0x14] sm:$0xf]
    %v3226 = vld [vmem:[#allocation4 + $0x18] sm:$0xf]
    %v3227 = vld [vmem:[#allocation4 + $0x1c] sm:$0xf]
    %3236 = vrot.lane.b32.xlu0 %v3220, 32
    %v3237 = vpop.permute.xlu0 %3236
    %3238 = vrot.lane.b32.xlu0 %v3221, 32
    %v3239 = vpop.permute.xlu0 %3238
    %3240 = vrot.lane.b32.xlu0 %v3222, 32
    %v3241 = vpop.permute.xlu0 %3240
    %3242 = vrot.lane.b32.xlu0 %v3223, 32
    %v3243 = vpop.permute.xlu0 %3242
    %3244 = vrot.lane.b32.xlu0 %v3224, 32
    %v3245 = vpop.permute.xlu0 %3244
    %3246 = vrot.lane.b32.xlu0 %v3225, 32
    %v3247 = vpop.permute.xlu0 %3246
    %3248 = vrot.lane.b32.xlu0 %v3226, 32
    %v3249 = vpop.permute.xlu0 %3248
    %3250 = vrot.lane.b32.xlu0 %v3227, 32
    %v3251 = vpop.permute.xlu0 %3250
    %v3260 = vsel %vm689, %v3212, %v3237
    %v3261 = vsel %vm689, %v3213, %v3239
    %v3262 = vsel %vm689, %v3214, %v3241
    %v3263 = vsel %vm689, %v3215, %v3243
    %v3264 = vsel %vm689, %v3216, %v3245
    %v3265 = vsel %vm689, %v3217, %v3247
    %v3266 = vsel %vm689, %v3218, %v3249
    %v3267 = vsel %vm689, %v3219, %v3251
    %vm3268 = vcmask 519168
    %3269 = vst.msk [vmem:[%s7] sm:$0xf] %vm3268, %v3260
    %3270 = vst.msk [vmem:[%s7 + $0x4] sm:$0xf] %vm3268, %v3261
    %3271 = vst.msk [vmem:[%s7 + $0x8] sm:$0xf] %vm3268, %v3262
    %3272 = vst.msk [vmem:[%s7 + $0xc] sm:$0xf] %vm3268, %v3263
    %3273 = vst.msk [vmem:[%s7 + $0x10] sm:$0xf] %vm3268, %v3264
    %3274 = vst.msk [vmem:[%s7 + $0x14] sm:$0xf] %vm3268, %v3265
    %3275 = vst.msk [vmem:[%s7 + $0x18] sm:$0xf] %vm3268, %v3266
    %3276 = vst.msk [vmem:[%s7 + $0x1c] sm:$0xf] %vm3268, %v3267
    %v3277 = vpack.c.bf16 %v3060, %v3060
    %v3278 = vld [vmem:[%s5] sm:$0xf]
    %v3279 = vld [vmem:[%s5 + $0x4] sm:$0xf]
    %v3280 = vld [vmem:[%s5 + $0x8] sm:$0xf]
    %v3281 = vld [vmem:[%s5 + $0xc] sm:$0xf]
    %v3282 = vpack.c.bf16 %v3208, %v3208
    %s3283 = scalar_lea.vmem %s5, 16
    %v3284 = vld [vmem:[%s3283] sm:$0xf]
    %v3285 = vld [vmem:[%s3283 + $0x4] sm:$0xf]
    %v3286 = vld [vmem:[%s3283 + $0x8] sm:$0xf]
    %v3287 = vld [vmem:[%s3283 + $0xc] sm:$0xf]
    %v3292 = vunpack.c.l.b16 %v3284
    %v3293 = vunpack.c.l.b16 %v3285
    %v3294 = vunpack.c.l.b16 %v3286
    %v3295 = vunpack.c.l.b16 %v3287
    %v3296 = vpack.c.b16 %v3293, %v3292
    %v3297 = vpack.c.b16 %v3295, %v3294
    %v3301 = vsel %vm689, %v3282, 0
    %3303 = vmatprep.subr.bf16.mxu0 0
    %3304 = vmatpush1.bf16.msra.mxu0 %v3296
    %3305 = vmatprep.subr.bf16.mxu0 0
    %3306 = vmatpush1.bf16.msra.mxu0 %v3297
    %3307 = vmatprep.subr.bf16.mxu0 0
    %3308 = vmatpush1.bf16.msra.mxu0 0
    %3309 = vmatprep.subr.bf16.mxu0 0
    %3310 = vmatpush1.bf16.msra.mxu0 0
    %3311 = vmatprep.subr.bf16.mxu0 0
    %3312 = vmatpush1.bf16.msra.mxu0 0
    %3313 = vmatprep.subr.bf16.mxu0 0
    %3314 = vmatpush1.bf16.msra.mxu0 0
    %3315 = vmatprep.subr.bf16.mxu0 0
    %3316 = vmatpush1.bf16.msra.mxu0 0
    %3317 = vmatprep.subr.bf16.mxu0 0
    %3318 = vmatpush1.bf16.msra.mxu0 0
    %3319 = vmatprep.subr.bf16.mxu0 0
    %3320 = vmatpush1.bf16.msra.mxu0 0
    %3321 = vmatprep.subr.bf16.mxu0 0
    %3322 = vmatpush1.bf16.msra.mxu0 0
    %3323 = vmatprep.subr.bf16.mxu0 0
    %3324 = vmatpush1.bf16.msra.mxu0 0
    %3325 = vmatprep.subr.bf16.mxu0 0
    %3326 = vmatpush1.bf16.msra.mxu0 0
    %3327 = vmatprep.subr.bf16.mxu0 0
    %3328 = vmatpush1.bf16.msra.mxu0 0
    %3329 = vmatprep.subr.bf16.mxu0 0
    %3330 = vmatpush1.bf16.msra.mxu0 0
    %3331 = vmatprep.subr.bf16.mxu0 0
    %3332 = vmatpush1.bf16.msra.mxu0 0
    %3333 = vmatprep.subr.bf16.mxu0 0
    %3334 = vmatpush1.bf16.msra.mxu0 0
    %3335 = vmatprep.mubr.bf16.mxu0 0
    %3336 = vmatmul.mubr.bf16.gmra.mrb[0].mxu0 %v3301
    %v3337 = vpop.f32.mrb[0].mxu0
    %v3338 = vadd.f32 0.0, %v3337
    %v3339 = vpop.f32.mrb[0].mxu0
    %v3340 = vpop.f32.mrb[0].mxu0
    %v3341 = vpop.f32.mrb[0].mxu0
    %3342 = vdwg.mxu0
    %v3347 = vunpack.c.l.b16 %v3278
    %v3348 = vunpack.c.l.b16 %v3279
    %v3349 = vunpack.c.l.b16 %v3280
    %v3350 = vunpack.c.l.b16 %v3281
    %v3351 = vpack.c.b16 %v3348, %v3347
    %v3352 = vpack.c.b16 %v3350, %v3349
    %v3356 = vsel %vm689, %v3277, 0
    %3358 = vmatprep.subr.bf16.mxu0 0
    %3359 = vmatpush1.bf16.msra.mxu0 %v3351
    %3360 = vmatprep.subr.bf16.mxu0 0
    %3361 = vmatpush1.bf16.msra.mxu0 %v3352
    %3362 = vmatprep.subr.bf16.mxu0 0
    %3363 = vmatpush1.bf16.msra.mxu0 0
    %3364 = vmatprep.subr.bf16.mxu0 0
    %3365 = vmatpush1.bf16.msra.mxu0 0
    %3366 = vmatprep.subr.bf16.mxu0 0
    %3367 = vmatpush1.bf16.msra.mxu0 0
    %3368 = vmatprep.subr.bf16.mxu0 0
    %3369 = vmatpush1.bf16.msra.mxu0 0
    %3370 = vmatprep.subr.bf16.mxu0 0
    %3371 = vmatpush1.bf16.msra.mxu0 0
    %3372 = vmatprep.subr.bf16.mxu0 0
    %3373 = vmatpush1.bf16.msra.mxu0 0
    %3374 = vmatprep.subr.bf16.mxu0 0
    %3375 = vmatpush1.bf16.msra.mxu0 0
    %3376 = vmatprep.subr.bf16.mxu0 0
    %3377 = vmatpush1.bf16.msra.mxu0 0
    %3378 = vmatprep.subr.bf16.mxu0 0
    %3379 = vmatpush1.bf16.msra.mxu0 0
    %3380 = vmatprep.subr.bf16.mxu0 0
    %3381 = vmatpush1.bf16.msra.mxu0 0
    %3382 = vmatprep.subr.bf16.mxu0 0
    %3383 = vmatpush1.bf16.msra.mxu0 0
    %3384 = vmatprep.subr.bf16.mxu0 0
    %3385 = vmatpush1.bf16.msra.mxu0 0
    %3386 = vmatprep.subr.bf16.mxu0 0
    %3387 = vmatpush1.bf16.msra.mxu0 0
    %3388 = vmatprep.subr.bf16.mxu0 0
    %3389 = vmatpush1.bf16.msra.mxu0 0
    %3390 = vmatprep.mubr.bf16.mxu0 0
    %3391 = vmatmul.mubr.bf16.gmra.mrb[0].mxu0 %v3356
    %v3392 = vpop.f32.mrb[0].mxu0
    %v3393 = vadd.f32 %v3338, %v3392
    %v3394 = vpop.f32.mrb[0].mxu0
    %v3395 = vpop.f32.mrb[0].mxu0
    %v3396 = vpop.f32.mrb[0].mxu0
    %3397 = vdwg.mxu0
    %v3398 = vld [vmem:[%s6] sm:$0x1]
    %v3400 = vlaneseq
    %v3401 = vshrl.u32 %v3400, 7
    %v3402 = vsub.s32 0, %v3401
    %v3403 = vrot.slane %v3398, %v3402
    %v3405 = vadd.f32 %v3393, %v3403
    %v3406 = vtanh.pop %v3405
    %3407 = vst.msk [vmem:[#allocation14] sm:$0xf] %vm204, %v3406
    // Predicated region
    $region50: #{encoder_forward.2} parent=1 // pred_check
      _
    $region51: #{encoder_forward.2} parent=1 // pred_check_branch
      %3409 = sbr.rel (0) target = $region53
    $region52: #{encoder_forward.2} parent=1 // pred_region
      _
    $region53: #{encoder_forward.2} parent=1 // pred_fallthru
      _
    // Predicated region
    $region54: #{encoder_forward.2} parent=1 // pred_check
      _
    $region55: #{encoder_forward.2} parent=1 // pred_check_branch
      %3411 = sbr.rel (0) target = $region57
    $region56: #{encoder_forward.2} parent=1 // pred_region
      %s3413 = ssub.s32 64, 64
      %3414 = vsyncadd [#allocation7], %s3413
      %s3416 = sshll.u32 [#allocation14], 4
      %s3417 = int_to_ptr.vmem [resolvable:$true] %s3416
      %3419 = dma.vmem_to_hbm [thread:$0]  %s3417, 64, %s8, [#allocation7]
    $region57: #{encoder_forward.2} parent=1 // pred_fallthru
      _
    // Predicated region
    $region58: #{encoder_forward.2} parent=1 // pred_check
      _
    $region59: #{encoder_forward.2} parent=1 // pred_check_branch
      %3421 = sbr.rel (0) target = $region61
    $region60: #{encoder_forward.2} parent=1 // pred_region
      _
    $region61: #{encoder_forward.2} parent=1 // pred_fallthru
      _
    // Predicated region
    $region62: #{encoder_forward.2} parent=1 // pred_check
      _
    $region63: #{encoder_forward.2} parent=1 // pred_check_branch
      %3423 = sbr.rel (0) target = $region65
    $region64: #{encoder_forward.2} parent=1 // pred_region
      %3424 = dma.done [#allocation7], 64
    $region65: #{encoder_forward.2} parent=1 // pred_fallthru
      _
    %3425 = vsyncpa [#allocation6], 1
    %3426 = vsyncpa [#allocation9], 1
    %3427 = vsyncpa [#allocation12], 1
    %3428 = vsyncpa [#allocation7], 1

</llo_original>
